<compile_context>
chip_gen: v7x
topology: tpu7x:2x2x1
jax: 0.10.0
libtpu: 0.0.40
codegen_flags: <defaults>
</compile_context>

<pallas_src>
import functools

import jax
import jax.numpy as jnp
from jax.experimental import pallas as pl
from jax.experimental.pallas import tpu as pltpu

_COMPILER_PARAMS = pltpu.CompilerParams(
    dimension_semantics=("parallel", "parallel"),   # batch axis, pixel-tile axis
    vmem_limit_bytes=48 * 1024 * 1024,              # <= v7x's 64 MiB physical VMEM
)


# ---------------------------------------------------------------------------
# Pallas kernels
# ---------------------------------------------------------------------------
def _conv3x3_kernel(xp_ref, w_ref, b_ref, o_ref, *, relu, th):
    """3x3 / stride-1 / pad-1 conv for one row-tile of one batch element.

    xp_ref: (1, H+2, W+2, Cin)  padded image (resident across the row-tile axis)
    w_ref : (9*Cin, Cout)       fused taps, bf16
    b_ref : (1, Cout)           f32
    o_ref : (1, TH, W, Cout)    output rows [t*TH, t*TH + TH)
    """
    t = pl.program_id(1)
    w = o_ref.shape[2]
    cin = xp_ref.shape[3]
    cout = o_ref.shape[3]

    r0 = t * th
    if th % 8 == 0:
        r0 = pl.multiple_of(r0, 8)

    # In-VMEM im2col: gather the 9 shifted (TH, W, Cin) views, tap-major along
    # channels -> (TH*W, 9*Cin).  No K-times duplicated HBM copy.
    cols = []
    for di in range(3):
        rows = xp_ref[0, pl.ds(r0 + di, th), :, :].astype(w_ref.dtype)  # (TH, W+2, Cin) bf16
        for dj in range(3):
            cols.append(rows[:, dj:dj + w, :])                          # (TH, W, Cin)
    xcol = jnp.concatenate(cols, axis=-1).reshape(th * w, 9 * cin)      # (TH*W, 9*Cin)

    # Single deep-contraction MXU matmul; accumulation stays in the MXU path.
    acc = jnp.dot(xcol, w_ref[...], preferred_element_type=jnp.float32)
    acc = acc + b_ref[...]              # (1, Cout) broadcasts over the pixel rows
    if relu:
        acc = jnp.maximum(acc, 0.0)
    o_ref[0] = acc.reshape(th, w, cout)


def _conv1x1_kernel(x_ref, w_ref, b_ref, o_ref, *, relu):
    """1x1 conv (pointwise matmul) on one pixel-tile of one batch element.

    x_ref: (1, TM, Cin) f32;  w_ref: (Cin, Cout) bf16;  b_ref: (1, Cout) f32
    o_ref: (1, TM, Cout) f32
    """
    acc = jnp.dot(x_ref[0].astype(w_ref.dtype), w_ref[...],
                  preferred_element_type=jnp.float32)
    acc = acc + b_ref[...]
    if relu:
        acc = jnp.maximum(acc, 0.0)
    o_ref[0] = acc


# ---------------------------------------------------------------------------
# Tiling helpers
# ---------------------------------------------------------------------------
def _row_tile(h, w, target_px=512):
    """Largest divisor of h with tile pixels ~<= target_px (for 3x3 convs)."""
    th = max(1, min(h, max(1, target_px // max(w, 1))))
    while h % th:
        th -= 1
    return th


def _m_tile(m, target=512):
    """Largest multiple-of-8 divisor of m that is <= target (for 1x1 convs)."""
    best = m
    for d in range(8, min(m, target) + 1, 8):
        if m % d == 0:
            best = d
    return best


# ---------------------------------------------------------------------------
# Layer wrappers
# ---------------------------------------------------------------------------
def conv3x3(x, prm, relu=True):
    """Conv2d(k=3, stride=1, padding=1) + optional ReLU.  x: (N, H, W, Cin)."""
    w, b = prm                                   # w: (9*Cin, Cout) bf16
    n, h, wd, cin = x.shape
    cout = w.shape[1]
    xp = jnp.pad(x, ((0, 0), (1, 1), (1, 1), (0, 0)))
    th = _row_tile(h, wd)
    t = h // th
    out = pl.pallas_call(
        functools.partial(_conv3x3_kernel, relu=relu, th=th),
        out_shape=jax.ShapeDtypeStruct((n, h, wd, cout), jnp.float32),
        grid=(n, t),
        in_specs=[
            # full padded image; constant block index along the tile axis -> resident
            pl.BlockSpec((1, h + 2, wd + 2, cin), lambda i, j: (i, 0, 0, 0)),
            pl.BlockSpec((9 * cin, cout), lambda i, j: (0, 0)),   # weights resident
            pl.BlockSpec((1, cout), lambda i, j: (0, 0)),         # bias resident
        ],
        out_specs=pl.BlockSpec((1, th, wd, cout), lambda i, j: (i, j, 0, 0)),
        compiler_params=_COMPILER_PARAMS,
    )(xp, w, b)
    return out


def conv1x1(x, prm, relu=True):
    """Conv2d(k=1, stride=1, padding=0) + optional ReLU.  x: (N, H, W, Cin)."""
    w, b = prm                                   # w: (Cin, Cout) bf16
    n, h, wd, cin = x.shape
    cout = w.shape[1]
    m = h * wd
    xf = x.reshape(n, m, cin)                    # NHWC row-major -> free reshape
    tm = _m_tile(m)
    out = pl.pallas_call(
        functools.partial(_conv1x1_kernel, relu=relu),
        out_shape=jax.ShapeDtypeStruct((n, m, cout), jnp.float32),
        grid=(n, m // tm),
        in_specs=[
            pl.BlockSpec((1, tm, cin), lambda i, j: (i, j, 0)),
            pl.BlockSpec((cin, cout), lambda i, j: (0, 0)),       # weights resident
            pl.BlockSpec((1, cout), lambda i, j: (0, 0)),         # bias resident
        ],
        out_specs=pl.BlockSpec((1, tm, cout), lambda i, j: (i, j, 0)),
        compiler_params=_COMPILER_PARAMS,
    )(xf, w, b)
    return out.reshape(n, h, wd, cout)


# ---------------------------------------------------------------------------
# Parameters (deterministic synthetic He init; zero bias).  Weights are stored
# pre-fused as (KH*KW*Cin, Cout) in bf16; head convs are zero-padded to 64
# output channels (lane-denser stores), sliced back in the forward pass.
# ---------------------------------------------------------------------------
def _conv_param(key, kh, cin, cout, cout_pad=None):
    cout_pad = cout if cout_pad is None else cout_pad
    std = (2.0 / (kh * kh * cin)) ** 0.5
    w = std * jax.random.normal(key, (kh * kh * cin, cout), jnp.float32)
    if cout_pad != cout:
        w = jnp.pad(w, ((0, 0), (0, cout_pad - cout)))
    b = jnp.zeros((1, cout_pad), jnp.float32)
    return w.astype(jnp.bfloat16), b


def init_params(key):
    counter = [0]

    def nxt(kh, cin, cout, cout_pad=None):
        k = jax.random.fold_in(key, counter[0])
        counter[0] += 1
        return _conv_param(k, kh, cin, cout, cout_pad)

    p = {}
    for tag, head in (("L1", 38), ("L2", 19)):
        p[f"{tag}_1"] = nxt(3, 128, 128)
        p[f"{tag}_2"] = nxt(3, 128, 128)
        p[f"{tag}_3"] = nxt(3, 128, 128)
        p[f"{tag}_4"] = nxt(1, 128, 512)
        p[f"{tag}_5"] = nxt(1, 512, head, cout_pad=64)   # 38/19 -> 64 lanes
    return p


# ---------------------------------------------------------------------------
# Forward pass (mirrors Stage_1.forward)
# ---------------------------------------------------------------------------
def stage_1_forward(params, x):
    """x: (N, H, W, 128) NHWC  ->  (h1: (N,H,W,38), h2: (N,H,W,19))."""
    def branch(tag, n_out):
        h = conv3x3(x, params[f"{tag}_1"], relu=True)
        h = conv3x3(h, params[f"{tag}_2"], relu=True)
        h = conv3x3(h, params[f"{tag}_3"], relu=True)
        h = conv1x1(h, params[f"{tag}_4"], relu=True)
        h = conv1x1(h, params[f"{tag}_5"], relu=False)
        return h[..., :n_out]                 # drop zero lane-padding channels
    return branch("L1", 38), branch("L2", 19)


# ---------------------------------------------------------------------------
# Pure-JAX reference (f32) for a correctness sanity check
# ---------------------------------------------------------------------------
def _reference_forward(params, x):
    def conv(h, prm, relu):
        w, b = prm
        w = w.astype(jnp.float32)
        cin = h.shape[-1]
        taps = w.shape[0] // cin
        kh = int(round(taps ** 0.5))
        wk = w.reshape(kh, kh, cin, w.shape[1])
        y = jax.lax.conv_general_dilated(
            h, wk, window_strides=(1, 1), padding="SAME",
            dimension_numbers=("NHWC", "HWIO", "NHWC"),
            precision=jax.lax.Precision.HIGHEST)
        y = y + b.reshape(1, 1, 1, -1)
        return jnp.maximum(y, 0.0) if relu else y

    def branch(tag, n_out):
        h = conv(x, params[f"{tag}_1"], True)
        h = conv(h, params[f"{tag}_2"], True)
        h = conv(h, params[f"{tag}_3"], True)
        h = conv(h, params[f"{tag}_4"], True)
        h = conv(h, params[f"{tag}_5"], False)
        return h[..., :n_out]

    return branch("L1", 38), branch("L2", 19)


def _rel_err(a, b):
    return float(jnp.linalg.norm(a - b) / (jnp.linalg.norm(b) + 1e-6))


# ---------------------------------------------------------------------------
if __name__ == "__main__":
    key = jax.random.PRNGKey(0)
    params = init_params(jax.random.fold_in(key, 1))

    # NHWC input; equivalent to a (2, 128, 24, 24) NCHW PyTorch input.
    x = jax.random.normal(jax.random.fold_in(key, 2), (2, 24, 24, 128), jnp.float32)

    fwd = jax.jit(stage_1_forward)
    h1, h2 = fwd(params, x)
    jax.block_until_ready((h1, h2))

    assert h1.shape == (2, 24, 24, 38)   # NHWC of PyTorch (2, 38, 24, 24)
    assert h2.shape == (2, 24, 24, 19)   # NHWC of PyTorch (2, 19, 24, 24)

    # Sanity check vs. pure-JAX reference (kernel feeds bf16 operands to the
    # MXU with f32 accumulation, so allow a small relative tolerance).
    r1, r2 = jax.jit(_reference_forward)(params, x)
    jax.block_until_ready((r1, r2))
    e1, e2 = _rel_err(h1, r1), _rel_err(h2, r2)
    assert e1 < 5e-2 and e2 < 5e-2, (e1, e2)

    print("KERNEL_OK")
</pallas_src>

<mosaic_0001>
module attributes {stable_mosaic.version = 11 : i64} {
  func.func @_conv3x3_kernel(%arg0: i32, %arg1: i32, %arg2: memref<1x26x26x128xf32, #tpu.memory_space<vmem>>, %arg3: memref<1152x128xbf16, #tpu.memory_space<vmem>>, %arg4: memref<1x128xf32, #tpu.memory_space<vmem>>, %arg5: memref<1x12x24x128xf32, #tpu.memory_space<vmem>>) attributes {dimension_semantics = [#tpu.dimension_semantics<parallel>, #tpu.dimension_semantics<parallel>], iteration_bounds = array<i64: 2, 2>, scalar_prefetch = 0 : i64, scratch_operands = 0 : i64, tpu.core_type = #tpu.core_type<tc>, window_params = [{transform_indices = @transform_0, window_bounds = array<i64: 1, 26, 26, 128>}, {pipeline_mode = #tpu.pipeline_mode<synchronous>, transform_indices = @transform_1, window_bounds = array<i64: 1152, 128>}, {pipeline_mode = #tpu.pipeline_mode<synchronous>, transform_indices = @transform_2, window_bounds = array<i64: 1, 128>}, {transform_indices = @transform_3, window_bounds = array<i64: 1, 12, 24, 128>}]} {
    %c12_i32 = arith.constant 12 : i32
    %0 = arith.muli %arg1, %c12_i32 : i32
    %c0_i32 = arith.constant 0 : i32
    %1 = arith.addi %0, %c0_i32 : i32
    %c0 = arith.constant 0 : index
    %2 = arith.index_cast %1 : i32 to index
    %c0_0 = arith.constant 0 : index
    %c0_1 = arith.constant 0 : index
    %3 = vector.load %arg2[%c0, %2, %c0_0, %c0_1] : memref<1x26x26x128xf32, #tpu.memory_space<vmem>>, vector<1x12x26x128xf32>
    %4 = vector.shape_cast %3 : vector<1x12x26x128xf32> to vector<12x26x128xf32>
    %5 = arith.truncf %4 : vector<12x26x128xf32> to vector<12x26x128xbf16>
    %6 = vector.extract_strided_slice %5 {offsets = [0, 0, 0], sizes = [12, 24, 128], strides = [1, 1, 1]} : vector<12x26x128xbf16> to vector<12x24x128xbf16>
    %7 = vector.extract_strided_slice %5 {offsets = [0, 1, 0], sizes = [12, 24, 128], strides = [1, 1, 1]} : vector<12x26x128xbf16> to vector<12x24x128xbf16>
    %8 = vector.extract_strided_slice %5 {offsets = [0, 2, 0], sizes = [12, 24, 128], strides = [1, 1, 1]} : vector<12x26x128xbf16> to vector<12x24x128xbf16>
    %c1_i32 = arith.constant 1 : i32
    %9 = arith.addi %0, %c1_i32 : i32
    %c0_2 = arith.constant 0 : index
    %10 = arith.index_cast %9 : i32 to index
    %c0_3 = arith.constant 0 : index
    %c0_4 = arith.constant 0 : index
    %11 = vector.load %arg2[%c0_2, %10, %c0_3, %c0_4] : memref<1x26x26x128xf32, #tpu.memory_space<vmem>>, vector<1x12x26x128xf32>
    %12 = vector.shape_cast %11 : vector<1x12x26x128xf32> to vector<12x26x128xf32>
    %13 = arith.truncf %12 : vector<12x26x128xf32> to vector<12x26x128xbf16>
    %14 = vector.extract_strided_slice %13 {offsets = [0, 0, 0], sizes = [12, 24, 128], strides = [1, 1, 1]} : vector<12x26x128xbf16> to vector<12x24x128xbf16>
    %15 = vector.extract_strided_slice %13 {offsets = [0, 1, 0], sizes = [12, 24, 128], strides = [1, 1, 1]} : vector<12x26x128xbf16> to vector<12x24x128xbf16>
    %16 = vector.extract_strided_slice %13 {offsets = [0, 2, 0], sizes = [12, 24, 128], strides = [1, 1, 1]} : vector<12x26x128xbf16> to vector<12x24x128xbf16>
    %c2_i32 = arith.constant 2 : i32
    %17 = arith.addi %0, %c2_i32 : i32
    %c0_5 = arith.constant 0 : index
    %18 = arith.index_cast %17 : i32 to index
    %c0_6 = arith.constant 0 : index
    %c0_7 = arith.constant 0 : index
    %19 = vector.load %arg2[%c0_5, %18, %c0_6, %c0_7] : memref<1x26x26x128xf32, #tpu.memory_space<vmem>>, vector<1x12x26x128xf32>
    %20 = vector.shape_cast %19 : vector<1x12x26x128xf32> to vector<12x26x128xf32>
    %21 = arith.truncf %20 : vector<12x26x128xf32> to vector<12x26x128xbf16>
    %22 = vector.extract_strided_slice %21 {offsets = [0, 0, 0], sizes = [12, 24, 128], strides = [1, 1, 1]} : vector<12x26x128xbf16> to vector<12x24x128xbf16>
    %23 = vector.extract_strided_slice %21 {offsets = [0, 1, 0], sizes = [12, 24, 128], strides = [1, 1, 1]} : vector<12x26x128xbf16> to vector<12x24x128xbf16>
    %24 = vector.extract_strided_slice %21 {offsets = [0, 2, 0], sizes = [12, 24, 128], strides = [1, 1, 1]} : vector<12x26x128xbf16> to vector<12x24x128xbf16>
    %25 = tpu.concatenate %6, %7, %8, %14, %15, %16, %22, %23, %24 in 2 : vector<12x24x128xbf16>, vector<12x24x128xbf16>, vector<12x24x128xbf16>, vector<12x24x128xbf16>, vector<12x24x128xbf16>, vector<12x24x128xbf16>, vector<12x24x128xbf16>, vector<12x24x128xbf16>, vector<12x24x128xbf16> -> vector<12x24x1152xbf16>
    %26 = vector.shape_cast %25 : vector<12x24x1152xbf16> to vector<288x1152xbf16>
    %c0_8 = arith.constant 0 : index
    %c0_9 = arith.constant 0 : index
    %27 = vector.load %arg3[%c0_8, %c0_9] : memref<1152x128xbf16, #tpu.memory_space<vmem>>, vector<1152x128xbf16>
    %cst = arith.constant dense<0.000000e+00> : vector<288x128xf32>
    %28 = tpu.matmul %26, %27, %cst {dimension_numbers = #tpu.dot_dimension_numbers<[1], [0], [0], [1], [0, 0, 1, 1], [], []>} : vector<288x1152xbf16>, vector<1152x128xbf16>, vector<288x128xf32> -> vector<288x128xf32>
    %c0_10 = arith.constant 0 : index
    %c0_11 = arith.constant 0 : index
    %29 = vector.load %arg4[%c0_10, %c0_11] : memref<1x128xf32, #tpu.memory_space<vmem>>, vector<1x128xf32>
    %30 = vector.broadcast %29 : vector<1x128xf32> to vector<288x128xf32>
    %31 = arith.addf %28, %30 : vector<288x128xf32>
    %cst_12 = arith.constant 0.000000e+00 : f32
    %32 = vector.broadcast %cst_12 : f32 to vector<288x128xf32>
    %33 = arith.maximumf %31, %32 : vector<288x128xf32>
    %34 = vector.shape_cast %33 : vector<288x128xf32> to vector<12x24x128xf32>
    %c0_13 = arith.constant 0 : index
    %c0_14 = arith.constant 0 : index
    %c0_15 = arith.constant 0 : index
    %c0_16 = arith.constant 0 : index
    %35 = vector.load %arg5[%c0_13, %c0_14, %c0_15, %c0_16] : memref<1x12x24x128xf32, #tpu.memory_space<vmem>>, vector<1x12x24x128xf32>
    %36 = vector.shape_cast %35 : vector<1x12x24x128xf32> to vector<12x24x128xf32>
    %37 = vector.shape_cast %34 : vector<12x24x128xf32> to vector<1x12x24x128xf32>
    tpu.vector_store %arg5[%c0_13, %c0_14, %c0_15, %c0_16], %37 {strides = array<i32>} : memref<1x12x24x128xf32, #tpu.memory_space<vmem>>, vector<1x12x24x128xf32>,
    return
  }
  func.func @transform_0(%arg0: i32, %arg1: i32) -> (i32, i32, i32, i32) {
    %c0_i32 = arith.constant 0 : i32
    %c0_i32_0 = arith.constant 0 : i32
    %c0_i32_1 = arith.constant 0 : i32
    %c0_i32_2 = arith.constant 0 : i32
    return %arg0, %c0_i32, %c0_i32_0, %c0_i32_1 : i32, i32, i32, i32
  }
  func.func @transform_1(%arg0: i32, %arg1: i32) -> (i32, i32) {
    %c0_i32 = arith.constant 0 : i32
    %c0_i32_0 = arith.constant 0 : i32
    %c0_i32_1 = arith.constant 0 : i32
    return %c0_i32, %c0_i32_0 : i32, i32
  }
  func.func @transform_2(%arg0: i32, %arg1: i32) -> (i32, i32) {
    %c0_i32 = arith.constant 0 : i32
    %c0_i32_0 = arith.constant 0 : i32
    %c0_i32_1 = arith.constant 0 : i32
    return %c0_i32, %c0_i32_0 : i32, i32
  }
  func.func @transform_3(%arg0: i32, %arg1: i32) -> (i32, i32, i32, i32) {
    %c0_i32 = arith.constant 0 : i32
    %c0_i32_0 = arith.constant 0 : i32
    %c0_i32_1 = arith.constant 0 : i32
    return %arg0, %arg1, %c0_i32, %c0_i32_0 : i32, i32, i32, i32
  }
}

module attributes {stable_mosaic.version = 11 : i64} {
  func.func @_conv3x3_kernel(%arg0: i32, %arg1: i32, %arg2: memref<1x26x26x128xf32, #tpu.memory_space<vmem>>, %arg3: memref<1152x128xbf16, #tpu.memory_space<vmem>>, %arg4: memref<1x128xf32, #tpu.memory_space<vmem>>, %arg5: memref<1x12x24x128xf32, #tpu.memory_space<vmem>>) attributes {dimension_semantics = [#tpu.dimension_semantics<parallel>, #tpu.dimension_semantics<parallel>], iteration_bounds = array<i64: 2, 2>, scalar_prefetch = 0 : i64, scratch_operands = 0 : i64, tpu.core_type = #tpu.core_type<tc>, window_params = [{transform_indices = @transform_0, window_bounds = array<i64: 1, 26, 26, 128>}, {pipeline_mode = #tpu.pipeline_mode<synchronous>, transform_indices = @transform_1, window_bounds = array<i64: 1152, 128>}, {pipeline_mode = #tpu.pipeline_mode<synchronous>, transform_indices = @transform_2, window_bounds = array<i64: 1, 128>}, {transform_indices = @transform_3, window_bounds = array<i64: 1, 12, 24, 128>}]} {
    %c12_i32 = arith.constant 12 : i32
    %0 = arith.muli %arg1, %c12_i32 : i32
    %c0_i32 = arith.constant 0 : i32
    %1 = arith.addi %0, %c0_i32 : i32
    %c0 = arith.constant 0 : index
    %2 = arith.index_cast %1 : i32 to index
    %c0_0 = arith.constant 0 : index
    %c0_1 = arith.constant 0 : index
    %3 = vector.load %arg2[%c0, %2, %c0_0, %c0_1] : memref<1x26x26x128xf32, #tpu.memory_space<vmem>>, vector<1x12x26x128xf32>
    %4 = vector.shape_cast %3 : vector<1x12x26x128xf32> to vector<12x26x128xf32>
    %5 = arith.truncf %4 : vector<12x26x128xf32> to vector<12x26x128xbf16>
    %6 = vector.extract_strided_slice %5 {offsets = [0, 0, 0], sizes = [12, 24, 128], strides = [1, 1, 1]} : vector<12x26x128xbf16> to vector<12x24x128xbf16>
    %7 = vector.extract_strided_slice %5 {offsets = [0, 1, 0], sizes = [12, 24, 128], strides = [1, 1, 1]} : vector<12x26x128xbf16> to vector<12x24x128xbf16>
    %8 = vector.extract_strided_slice %5 {offsets = [0, 2, 0], sizes = [12, 24, 128], strides = [1, 1, 1]} : vector<12x26x128xbf16> to vector<12x24x128xbf16>
    %c1_i32 = arith.constant 1 : i32
    %9 = arith.addi %0, %c1_i32 : i32
    %c0_2 = arith.constant 0 : index
    %10 = arith.index_cast %9 : i32 to index
    %c0_3 = arith.constant 0 : index
    %c0_4 = arith.constant 0 : index
    %11 = vector.load %arg2[%c0_2, %10, %c0_3, %c0_4] : memref<1x26x26x128xf32, #tpu.memory_space<vmem>>, vector<1x12x26x128xf32>
    %12 = vector.shape_cast %11 : vector<1x12x26x128xf32> to vector<12x26x128xf32>
    %13 = arith.truncf %12 : vector<12x26x128xf32> to vector<12x26x128xbf16>
    %14 = vector.extract_strided_slice %13 {offsets = [0, 0, 0], sizes = [12, 24, 128], strides = [1, 1, 1]} : vector<12x26x128xbf16> to vector<12x24x128xbf16>
    %15 = vector.extract_strided_slice %13 {offsets = [0, 1, 0], sizes = [12, 24, 128], strides = [1, 1, 1]} : vector<12x26x128xbf16> to vector<12x24x128xbf16>
    %16 = vector.extract_strided_slice %13 {offsets = [0, 2, 0], sizes = [12, 24, 128], strides = [1, 1, 1]} : vector<12x26x128xbf16> to vector<12x24x128xbf16>
    %c2_i32 = arith.constant 2 : i32
    %17 = arith.addi %0, %c2_i32 : i32
    %c0_5 = arith.constant 0 : index
    %18 = arith.index_cast %17 : i32 to index
    %c0_6 = arith.constant 0 : index
    %c0_7 = arith.constant 0 : index
    %19 = vector.load %arg2[%c0_5, %18, %c0_6, %c0_7] : memref<1x26x26x128xf32, #tpu.memory_space<vmem>>, vector<1x12x26x128xf32>
    %20 = vector.shape_cast %19 : vector<1x12x26x128xf32> to vector<12x26x128xf32>
    %21 = arith.truncf %20 : vector<12x26x128xf32> to vector<12x26x128xbf16>
    %22 = vector.extract_strided_slice %21 {offsets = [0, 0, 0], sizes = [12, 24, 128], strides = [1, 1, 1]} : vector<12x26x128xbf16> to vector<12x24x128xbf16>
    %23 = vector.extract_strided_slice %21 {offsets = [0, 1, 0], sizes = [12, 24, 128], strides = [1, 1, 1]} : vector<12x26x128xbf16> to vector<12x24x128xbf16>
    %24 = vector.extract_strided_slice %21 {offsets = [0, 2, 0], sizes = [12, 24, 128], strides = [1, 1, 1]} : vector<12x26x128xbf16> to vector<12x24x128xbf16>
    %25 = tpu.concatenate %6, %7, %8, %14, %15, %16, %22, %23, %24 in 2 : vector<12x24x128xbf16>, vector<12x24x128xbf16>, vector<12x24x128xbf16>, vector<12x24x128xbf16>, vector<12x24x128xbf16>, vector<12x24x128xbf16>, vector<12x24x128xbf16>, vector<12x24x128xbf16>, vector<12x24x128xbf16> -> vector<12x24x1152xbf16>
    %26 = vector.shape_cast %25 : vector<12x24x1152xbf16> to vector<288x1152xbf16>
    %c0_8 = arith.constant 0 : index
    %c0_9 = arith.constant 0 : index
    %27 = vector.load %arg3[%c0_8, %c0_9] : memref<1152x128xbf16, #tpu.memory_space<vmem>>, vector<1152x128xbf16>
    %cst = arith.constant dense<0.000000e+00> : vector<288x128xf32>
    %28 = tpu.matmul %26, %27, %cst {dimension_numbers = #tpu.dot_dimension_numbers<[1], [0], [0], [1], [0, 0, 1, 1], [], []>} : vector<288x1152xbf16>, vector<1152x128xbf16>, vector<288x128xf32> -> vector<288x128xf32>
    %c0_10 = arith.constant 0 : index
    %c0_11 = arith.constant 0 : index
    %29 = vector.load %arg4[%c0_10, %c0_11] : memref<1x128xf32, #tpu.memory_space<vmem>>, vector<1x128xf32>
    %30 = vector.broadcast %29 : vector<1x128xf32> to vector<288x128xf32>
    %31 = arith.addf %28, %30 : vector<288x128xf32>
    %cst_12 = arith.constant 0.000000e+00 : f32
    %32 = vector.broadcast %cst_12 : f32 to vector<288x128xf32>
    %33 = arith.maximumf %31, %32 : vector<288x128xf32>
    %34 = vector.shape_cast %33 : vector<288x128xf32> to vector<12x24x128xf32>
    %c0_13 = arith.constant 0 : index
    %c0_14 = arith.constant 0 : index
    %c0_15 = arith.constant 0 : index
    %c0_16 = arith.constant 0 : index
    %35 = vector.load %arg5[%c0_13, %c0_14, %c0_15, %c0_16] : memref<1x12x24x128xf32, #tpu.memory_space<vmem>>, vector<1x12x24x128xf32>
    %36 = vector.shape_cast %35 : vector<1x12x24x128xf32> to vector<12x24x128xf32>
    %37 = vector.shape_cast %34 : vector<12x24x128xf32> to vector<1x12x24x128xf32>
    tpu.vector_store %arg5[%c0_13, %c0_14, %c0_15, %c0_16], %37 {strides = array<i32>} : memref<1x12x24x128xf32, #tpu.memory_space<vmem>>, vector<1x12x24x128xf32>,
    return
  }
  func.func @transform_0(%arg0: i32, %arg1: i32) -> (i32, i32, i32, i32) {
    %c0_i32 = arith.constant 0 : i32
    %c0_i32_0 = arith.constant 0 : i32
    %c0_i32_1 = arith.constant 0 : i32
    %c0_i32_2 = arith.constant 0 : i32
    return %arg0, %c0_i32, %c0_i32_0, %c0_i32_1 : i32, i32, i32, i32
  }
  func.func @transform_1(%arg0: i32, %arg1: i32) -> (i32, i32) {
    %c0_i32 = arith.constant 0 : i32
    %c0_i32_0 = arith.constant 0 : i32
    %c0_i32_1 = arith.constant 0 : i32
    return %c0_i32, %c0_i32_0 : i32, i32
  }
  func.func @transform_2(%arg0: i32, %arg1: i32) -> (i32, i32) {
    %c0_i32 = arith.constant 0 : i32
    %c0_i32_0 = arith.constant 0 : i32
    %c0_i32_1 = arith.constant 0 : i32
    return %c0_i32, %c0_i32_0 : i32, i32
  }
  func.func @transform_3(%arg0: i32, %arg1: i32) -> (i32, i32, i32, i32) {
    %c0_i32 = arith.constant 0 : i32
    %c0_i32_0 = arith.constant 0 : i32
    %c0_i32_1 = arith.constant 0 : i32
    return %arg0, %arg1, %c0_i32, %c0_i32_0 : i32, i32, i32, i32
  }
}

module attributes {stable_mosaic.version = 11 : i64} {
  func.func @_conv1x1_kernel(%arg0: i32, %arg1: i32, %arg2: memref<1x288x128xf32, #tpu.memory_space<vmem>>, %arg3: memref<128x512xbf16, #tpu.memory_space<vmem>>, %arg4: memref<1x512xf32, #tpu.memory_space<vmem>>, %arg5: memref<1x288x512xf32, #tpu.memory_space<vmem>>) attributes {dimension_semantics = [#tpu.dimension_semantics<parallel>, #tpu.dimension_semantics<parallel>], iteration_bounds = array<i64: 2, 2>, scalar_prefetch = 0 : i64, scratch_operands = 0 : i64, tpu.core_type = #tpu.core_type<tc>, window_params = [{transform_indices = @transform_0, window_bounds = array<i64: 1, 288, 128>}, {pipeline_mode = #tpu.pipeline_mode<synchronous>, transform_indices = @transform_1, window_bounds = array<i64: 128, 512>}, {pipeline_mode = #tpu.pipeline_mode<synchronous>, transform_indices = @transform_2, window_bounds = array<i64: 1, 512>}, {transform_indices = @transform_3, window_bounds = array<i64: 1, 288, 512>}]} {
    %c0 = arith.constant 0 : index
    %c0_0 = arith.constant 0 : index
    %c0_1 = arith.constant 0 : index
    %0 = vector.load %arg2[%c0, %c0_0, %c0_1] : memref<1x288x128xf32, #tpu.memory_space<vmem>>, vector<1x288x128xf32>
    %1 = vector.shape_cast %0 : vector<1x288x128xf32> to vector<288x128xf32>
    %2 = arith.truncf %1 : vector<288x128xf32> to vector<288x128xbf16>
    %c0_2 = arith.constant 0 : index
    %c0_3 = arith.constant 0 : index
    %3 = vector.load %arg3[%c0_2, %c0_3] : memref<128x512xbf16, #tpu.memory_space<vmem>>, vector<128x512xbf16>
    %cst = arith.constant dense<0.000000e+00> : vector<288x512xf32>
    %4 = tpu.matmul %2, %3, %cst {dimension_numbers = #tpu.dot_dimension_numbers<[1], [0], [0], [1], [0, 0, 1, 1], [], []>} : vector<288x128xbf16>, vector<128x512xbf16>, vector<288x512xf32> -> vector<288x512xf32>
    %c0_4 = arith.constant 0 : index
    %c0_5 = arith.constant 0 : index
    %5 = vector.load %arg4[%c0_4, %c0_5] : memref<1x512xf32, #tpu.memory_space<vmem>>, vector<1x512xf32>
    %6 = vector.broadcast %5 : vector<1x512xf32> to vector<288x512xf32>
    %7 = arith.addf %4, %6 : vector<288x512xf32>
    %cst_6 = arith.constant 0.000000e+00 : f32
    %8 = vector.broadcast %cst_6 : f32 to vector<288x512xf32>
    %9 = arith.maximumf %7, %8 : vector<288x512xf32>
    %c0_7 = arith.constant 0 : index
    %c0_8 = arith.constant 0 : index
    %c0_9 = arith.constant 0 : index
    %10 = vector.load %arg5[%c0_7, %c0_8, %c0_9] : memref<1x288x512xf32, #tpu.memory_space<vmem>>, vector<1x288x512xf32>
    %11 = vector.shape_cast %10 : vector<1x288x512xf32> to vector<288x512xf32>
    %12 = vector.shape_cast %9 : vector<288x512xf32> to vector<1x288x512xf32>
    tpu.vector_store %arg5[%c0_7, %c0_8, %c0_9], %12 {strides = array<i32>} : memref<1x288x512xf32, #tpu.memory_space<vmem>>, vector<1x288x512xf32>,
    return
  }
  func.func @transform_0(%arg0: i32, %arg1: i32) -> (i32, i32, i32) {
    %c0_i32 = arith.constant 0 : i32
    %c0_i32_0 = arith.constant 0 : i32
    return %arg0, %arg1, %c0_i32 : i32, i32, i32
  }
  func.func @transform_1(%arg0: i32, %arg1: i32) -> (i32, i32) {
    %c0_i32 = arith.constant 0 : i32
    %c0_i32_0 = arith.constant 0 : i32
    %c0_i32_1 = arith.constant 0 : i32
    return %c0_i32, %c0_i32_0 : i32, i32
  }
  func.func @transform_2(%arg0: i32, %arg1: i32) -> (i32, i32) {
    %c0_i32 = arith.constant 0 : i32
    %c0_i32_0 = arith.constant 0 : i32
    %c0_i32_1 = arith.constant 0 : i32
    return %c0_i32, %c0_i32_0 : i32, i32
  }
  func.func @transform_3(%arg0: i32, %arg1: i32) -> (i32, i32, i32) {
    %c0_i32 = arith.constant 0 : i32
    %c0_i32_0 = arith.constant 0 : i32
    return %arg0, %arg1, %c0_i32 : i32, i32, i32
  }
}

module attributes {stable_mosaic.version = 11 : i64} {
  func.func @_conv1x1_kernel(%arg0: i32, %arg1: i32, %arg2: memref<1x288x512xf32, #tpu.memory_space<vmem>>, %arg3: memref<512x64xbf16, #tpu.memory_space<vmem>>, %arg4: memref<1x64xf32, #tpu.memory_space<vmem>>, %arg5: memref<1x288x64xf32, #tpu.memory_space<vmem>>) attributes {dimension_semantics = [#tpu.dimension_semantics<parallel>, #tpu.dimension_semantics<parallel>], iteration_bounds = array<i64: 2, 2>, scalar_prefetch = 0 : i64, scratch_operands = 0 : i64, tpu.core_type = #tpu.core_type<tc>, window_params = [{transform_indices = @transform_0, window_bounds = array<i64: 1, 288, 512>}, {pipeline_mode = #tpu.pipeline_mode<synchronous>, transform_indices = @transform_1, window_bounds = array<i64: 512, 64>}, {pipeline_mode = #tpu.pipeline_mode<synchronous>, transform_indices = @transform_2, window_bounds = array<i64: 1, 64>}, {transform_indices = @transform_3, window_bounds = array<i64: 1, 288, 64>}]} {
    %c0 = arith.constant 0 : index
    %c0_0 = arith.constant 0 : index
    %c0_1 = arith.constant 0 : index
    %0 = vector.load %arg2[%c0, %c0_0, %c0_1] : memref<1x288x512xf32, #tpu.memory_space<vmem>>, vector<1x288x512xf32>
    %1 = vector.shape_cast %0 : vector<1x288x512xf32> to vector<288x512xf32>
    %2 = arith.truncf %1 : vector<288x512xf32> to vector<288x512xbf16>
    %c0_2 = arith.constant 0 : index
    %c0_3 = arith.constant 0 : index
    %3 = vector.load %arg3[%c0_2, %c0_3] : memref<512x64xbf16, #tpu.memory_space<vmem>>, vector<512x64xbf16>
    %cst = arith.constant dense<0.000000e+00> : vector<288x64xf32>
    %4 = tpu.matmul %2, %3, %cst {dimension_numbers = #tpu.dot_dimension_numbers<[1], [0], [0], [1], [0, 0, 1, 1], [], []>} : vector<288x512xbf16>, vector<512x64xbf16>, vector<288x64xf32> -> vector<288x64xf32>
    %c0_4 = arith.constant 0 : index
    %c0_5 = arith.constant 0 : index
    %5 = vector.load %arg4[%c0_4, %c0_5] : memref<1x64xf32, #tpu.memory_space<vmem>>, vector<1x64xf32>
    %6 = vector.broadcast %5 : vector<1x64xf32> to vector<288x64xf32>
    %7 = arith.addf %4, %6 : vector<288x64xf32>
    %c0_6 = arith.constant 0 : index
    %c0_7 = arith.constant 0 : index
    %c0_8 = arith.constant 0 : index
    %8 = vector.load %arg5[%c0_6, %c0_7, %c0_8] : memref<1x288x64xf32, #tpu.memory_space<vmem>>, vector<1x288x64xf32>
    %9 = vector.shape_cast %8 : vector<1x288x64xf32> to vector<288x64xf32>
    %10 = vector.shape_cast %7 : vector<288x64xf32> to vector<1x288x64xf32>
    tpu.vector_store %arg5[%c0_6, %c0_7, %c0_8], %10 {strides = array<i32>} : memref<1x288x64xf32, #tpu.memory_space<vmem>>, vector<1x288x64xf32>,
    return
  }
  func.func @transform_0(%arg0: i32, %arg1: i32) -> (i32, i32, i32) {
    %c0_i32 = arith.constant 0 : i32
    %c0_i32_0 = arith.constant 0 : i32
    return %arg0, %arg1, %c0_i32 : i32, i32, i32
  }
  func.func @transform_1(%arg0: i32, %arg1: i32) -> (i32, i32) {
    %c0_i32 = arith.constant 0 : i32
    %c0_i32_0 = arith.constant 0 : i32
    %c0_i32_1 = arith.constant 0 : i32
    return %c0_i32, %c0_i32_0 : i32, i32
  }
  func.func @transform_2(%arg0: i32, %arg1: i32) -> (i32, i32) {
    %c0_i32 = arith.constant 0 : i32
    %c0_i32_0 = arith.constant 0 : i32
    %c0_i32_1 = arith.constant 0 : i32
    return %c0_i32, %c0_i32_0 : i32, i32
  }
  func.func @transform_3(%arg0: i32, %arg1: i32) -> (i32, i32, i32) {
    %c0_i32 = arith.constant 0 : i32
    %c0_i32_0 = arith.constant 0 : i32
    return %arg0, %arg1, %c0_i32 : i32, i32, i32
  }
}

module attributes {stable_mosaic.version = 11 : i64} {
  func.func @_conv1x1_kernel(%arg0: i32, %arg1: i32, %arg2: memref<1x288x512xf32, #tpu.memory_space<vmem>>, %arg3: memref<512x64xbf16, #tpu.memory_space<vmem>>, %arg4: memref<1x64xf32, #tpu.memory_space<vmem>>, %arg5: memref<1x288x64xf32, #tpu.memory_space<vmem>>) attributes {dimension_semantics = [#tpu.dimension_semantics<parallel>, #tpu.dimension_semantics<parallel>], iteration_bounds = array<i64: 2, 2>, scalar_prefetch = 0 : i64, scratch_operands = 0 : i64, tpu.core_type = #tpu.core_type<tc>, window_params = [{transform_indices = @transform_0, window_bounds = array<i64: 1, 288, 512>}, {pipeline_mode = #tpu.pipeline_mode<synchronous>, transform_indices = @transform_1, window_bounds = array<i64: 512, 64>}, {pipeline_mode = #tpu.pipeline_mode<synchronous>, transform_indices = @transform_2, window_bounds = array<i64: 1, 64>}, {transform_indices = @transform_3, window_bounds = array<i64: 1, 288, 64>}]} {
    %c0 = arith.constant 0 : index
    %c0_0 = arith.constant 0 : index
    %c0_1 = arith.constant 0 : index
    %0 = vector.load %arg2[%c0, %c0_0, %c0_1] : memref<1x288x512xf32, #tpu.memory_space<vmem>>, vector<1x288x512xf32>
    %1 = vector.shape_cast %0 : vector<1x288x512xf32> to vector<288x512xf32>
    %2 = arith.truncf %1 : vector<288x512xf32> to vector<288x512xbf16>
    %c0_2 = arith.constant 0 : index
    %c0_3 = arith.constant 0 : index
    %3 = vector.load %arg3[%c0_2, %c0_3] : memref<512x64xbf16, #tpu.memory_space<vmem>>, vector<512x64xbf16>
    %cst = arith.constant dense<0.000000e+00> : vector<288x64xf32>
    %4 = tpu.matmul %2, %3, %cst {dimension_numbers = #tpu.dot_dimension_numbers<[1], [0], [0], [1], [0, 0, 1, 1], [], []>} : vector<288x512xbf16>, vector<512x64xbf16>, vector<288x64xf32> -> vector<288x64xf32>
    %c0_4 = arith.constant 0 : index
    %c0_5 = arith.constant 0 : index
    %5 = vector.load %arg4[%c0_4, %c0_5] : memref<1x64xf32, #tpu.memory_space<vmem>>, vector<1x64xf32>
    %6 = vector.broadcast %5 : vector<1x64xf32> to vector<288x64xf32>
    %7 = arith.addf %4, %6 : vector<288x64xf32>
    %c0_6 = arith.constant 0 : index
    %c0_7 = arith.constant 0 : index
    %c0_8 = arith.constant 0 : index
    %8 = vector.load %arg5[%c0_6, %c0_7, %c0_8] : memref<1x288x64xf32, #tpu.memory_space<vmem>>, vector<1x288x64xf32>
    %9 = vector.shape_cast %8 : vector<1x288x64xf32> to vector<288x64xf32>
    %10 = vector.shape_cast %7 : vector<288x64xf32> to vector<1x288x64xf32>
    tpu.vector_store %arg5[%c0_6, %c0_7, %c0_8], %10 {strides = array<i32>} : memref<1x288x64xf32, #tpu.memory_space<vmem>>, vector<1x288x64xf32>,
    return
  }
  func.func @transform_0(%arg0: i32, %arg1: i32) -> (i32, i32, i32) {
    %c0_i32 = arith.constant 0 : i32
    %c0_i32_0 = arith.constant 0 : i32
    return %arg0, %arg1, %c0_i32 : i32, i32, i32
  }
  func.func @transform_1(%arg0: i32, %arg1: i32) -> (i32, i32) {
    %c0_i32 = arith.constant 0 : i32
    %c0_i32_0 = arith.constant 0 : i32
    %c0_i32_1 = arith.constant 0 : i32
    return %c0_i32, %c0_i32_0 : i32, i32
  }
  func.func @transform_2(%arg0: i32, %arg1: i32) -> (i32, i32) {
    %c0_i32 = arith.constant 0 : i32
    %c0_i32_0 = arith.constant 0 : i32
    %c0_i32_1 = arith.constant 0 : i32
    return %c0_i32, %c0_i32_0 : i32, i32
  }
  func.func @transform_3(%arg0: i32, %arg1: i32) -> (i32, i32, i32) {
    %c0_i32 = arith.constant 0 : i32
    %c0_i32_0 = arith.constant 0 : i32
    return %arg0, %arg1, %c0_i32 : i32, i32, i32
  }
}

</mosaic_0001>

<llo_original>
// kernel: stage_1_forward.18
$region0: #{stage_1_forward.18}
  #allocation0 [shape = 'u32[]', space=smem, size = 0x4, offset = 0x4, fixed_abs, tag = 'smem constant byte address 0x4 - core index']
  #allocation1 [shape = 'u32[144,128]{1,0:T(1,128)}', space=vmem, size = 0x12000, scoped, tag = 'internal scratch']
  %s0 = inlined_call_operand.vmem [shape: f32[2,576,128], index: 0, kind: input, shape index: {}]
  %s1 = inlined_call_operand.vmem [shape: bf16[128,512], index: 1, kind: input, shape index: {}]
  %s2 = inlined_call_operand.vmem [shape: f32[1,512], index: 2, kind: input, shape index: {}]
  %s3 = inlined_call_operand.vmem [shape: f32[2,576,512], index: 3, kind: output, shape index: {}]
  %s4 = sld [smem:[#allocation0]]
  $region45: #{stage_1_forward.18} parent=0
    _
  %s6 = ssub.s32 1, %s4
  %s7 = scalar_select 0, %s6, %s4
  loop: start=0, step=1, limit=6
  $region2: #{stage_1_forward.18} parent=0 // loop_pre_header
    _
  $region3: #{stage_1_forward.18} parent=0 // loop_header
    %s9 = sphi 0, %s13
    %p10 = scmp.ge.s32.totalorder %s9, 6
    %s16 = sphi 0, %s28
    %s17 = sphi 0, %s24
    %s18 = sphi 0, %s16
    %s19 = sphi 0, %s17
    %s20 = sphi 0, %s18
    %s21 = sphi 0, %s19
    %s33 = sphi 0, %s35
    %s36 = sphi 0, %s33
    %s37 = sphi 0, %s36
    %s53 = sphi 0, %s37
    %s57 = sphi 0, %s57
    %s59 = sphi 0, %s57
    %s60 = sphi 0, %s59
    %s74 = sphi 0, %s60
    %s78 = sphi 0, %s78
    %s80 = sphi 0, %s78
    %s81 = sphi 0, %s80
    %s95 = sphi 0, %s81
    %s103 = sphi 0, %s105
    %s106 = sphi 0, %s103
    %s107 = sphi 0, %s106
    %s123 = sphi 0, %s107
  $region4: #{stage_1_forward.18} parent=0 // loop_header_branch
    %12 = sbr.rel (%p10) target = $region8
  $region5: #{stage_1_forward.18} parent=0 // loop_body
    %s14 = ssub.s32 %s9, 1
    %s15 = ssub.s32 %s9, 2
    %s22 = sadd.s32 1, %s17
    %p23 = scmp.ge.s32.totalorder %s22, 2
    %s24 = scalar_select %p23, 0, %s22
    %s25 = sadd.s32 1, %s16
    %s26 = scalar_select %p23, %s25, %s16
    %p27 = scmp.ge.s32.totalorder %s26, 2
    %s28 = scalar_select %p27, 0, %s26
    %s29 = ssub.s32 %s16, %s28
    %s30 = ssub.s32 %s17, %s24
    %s31 = sor.u32 %s29, %s30
    %p32 = scmp.eq.s32.totalorder %s31, 0
    %s34 = sadd.s32 %s33, 1
    %s35 = scalar_select %p32, %s33, %s34
    %p38 = pneg %p32
    %p39 = scmp.eq.s32.totalorder %s9, 3
    %p40 = por %p38, %p39
    %p41 = scmp.ne.s32.totalorder %s33, %s36
    %p42 = scmp.eq.s32.totalorder %s9, 0
    %p43 = por %p41, %p42
    %p44 = scmp.ne.s32.totalorder %s33, %s36
    %p45 = scmp.eq.s32.totalorder %s14, 3
    %p46 = por %p44, %p45
    %p47 = scmp.ne.s32.totalorder %s36, %s37
    %p48 = scmp.eq.s32.totalorder %s14, 0
    %p49 = por %p47, %p48
    %p50 = scmp.ne.s32.totalorder %s36, %s37
    %p51 = scmp.eq.s32.totalorder %s15, 3
    %p52 = por %p50, %p51
    %p54 = scmp.ne.s32.totalorder %s37, %s53
    %p55 = scmp.eq.s32.totalorder %s15, 0
    %p56 = por %p54, %p55
    %s58 = sadd.s32 %s57, 1
    %p61 = scmp.eq.s32.totalorder %s9, 3
    %p62 = scmp.ne.s32.totalorder %s57, %s59
    %p63 = scmp.eq.s32.totalorder %s9, 0
    %p64 = por %p62, %p63
    %p65 = scmp.ne.s32.totalorder %s57, %s59
    %p66 = scmp.eq.s32.totalorder %s14, 3
    %p67 = por %p65, %p66
    %p68 = scmp.ne.s32.totalorder %s59, %s60
    %p69 = scmp.eq.s32.totalorder %s14, 0
    %p70 = por %p68, %p69
    %p71 = scmp.ne.s32.totalorder %s59, %s60
    %p72 = scmp.eq.s32.totalorder %s15, 3
    %p73 = por %p71, %p72
    %p75 = scmp.ne.s32.totalorder %s60, %s74
    %p76 = scmp.eq.s32.totalorder %s15, 0
    %p77 = por %p75, %p76
    %s79 = sadd.s32 %s78, 1
    %p82 = scmp.eq.s32.totalorder %s9, 3
    %p83 = scmp.ne.s32.totalorder %s78, %s80
    %p84 = scmp.eq.s32.totalorder %s9, 0
    %p85 = por %p83, %p84
    %p86 = scmp.ne.s32.totalorder %s78, %s80
    %p87 = scmp.eq.s32.totalorder %s14, 3
    %p88 = por %p86, %p87
    %p89 = scmp.ne.s32.totalorder %s80, %s81
    %p90 = scmp.eq.s32.totalorder %s14, 0
    %p91 = por %p89, %p90
    %p92 = scmp.ne.s32.totalorder %s80, %s81
    %p93 = scmp.eq.s32.totalorder %s15, 3
    %p94 = por %p92, %p93
    %p96 = scmp.ne.s32.totalorder %s81, %s95
    %p97 = scmp.eq.s32.totalorder %s15, 0
    %p98 = por %p96, %p97
    %s99 = ssub.s32 %s16, %s28
    %s100 = ssub.s32 %s17, %s24
    %s101 = sor.u32 %s99, %s100
    %p102 = scmp.eq.s32.totalorder %s101, 0
    %s104 = sadd.s32 %s103, 1
    %s105 = scalar_select %p102, %s103, %s104
    %p108 = pneg %p102
    %p109 = scmp.eq.s32.totalorder %s9, 3
    %p110 = por %p108, %p109
    %p111 = scmp.ne.s32.totalorder %s103, %s106
    %p112 = scmp.eq.s32.totalorder %s9, 0
    %p113 = por %p111, %p112
    %p114 = scmp.ne.s32.totalorder %s103, %s106
    %p115 = scmp.eq.s32.totalorder %s14, 3
    %p116 = por %p114, %p115
    %p117 = scmp.ne.s32.totalorder %s106, %s107
    %p118 = scmp.eq.s32.totalorder %s14, 0
    %p119 = por %p117, %p118
    %p120 = scmp.ne.s32.totalorder %s106, %s107
    %p121 = scmp.eq.s32.totalorder %s15, 3
    %p122 = por %p120, %p121
    %p124 = scmp.ne.s32.totalorder %s107, %s123
    %p125 = scmp.eq.s32.totalorder %s15, 0
    %p126 = por %p124, %p125
    %p127 = scmp.le.s32.totalorder 1, %s9
    %p128 = scmp.lt.s32.totalorder %s9, 5
    %p129 = pnand %p127, %p128
    %p130 = pneg %p129
    // Predicated region
    $region9: #{stage_1_forward.18} parent=5 // pred_check
      _
    $region10: #{stage_1_forward.18} parent=5 // pred_check_branch
      %132 = sbr.rel (%p129) target = $region12
    $region11: #{stage_1_forward.18} parent=5 // pred_region
      %s133 = ssub.s32 %s9, 1
      // Predicated region
      $region13: #{stage_1_forward.18} parent=11 // pred_check
        %p134 = pneg %p70
      $region14: #{stage_1_forward.18} parent=11 // pred_check_branch
        %136 = sbr.rel (%p134) target = $region16
      $region15: #{stage_1_forward.18} parent=11 // pred_region
        _
      $region16: #{stage_1_forward.18} parent=11 // pred_fallthru
        _
      // Predicated region
      $region17: #{stage_1_forward.18} parent=11 // pred_check
        %p137 = pneg %p91
      $region18: #{stage_1_forward.18} parent=11 // pred_check_branch
        %139 = sbr.rel (%p137) target = $region20
      $region19: #{stage_1_forward.18} parent=11 // pred_region
        _
      $region20: #{stage_1_forward.18} parent=11 // pred_fallthru
        _
    $region12: #{stage_1_forward.18} parent=5 // pred_fallthru
      _
    %p140 = scmp.lt.s32.totalorder %s9, 4
    // Predicated region
    $region21: #{stage_1_forward.18} parent=5 // pred_check
      %p141 = pneg %p140
    $region22: #{stage_1_forward.18} parent=5 // pred_check_branch
      %143 = sbr.rel (%p141) target = $region24
    $region23: #{stage_1_forward.18} parent=5 // pred_region
      // Predicated region
      $region25: #{stage_1_forward.18} parent=23 // pred_check
        %p144 = pneg %p43
      $region26: #{stage_1_forward.18} parent=23 // pred_check_branch
        %146 = sbr.rel (%p144) target = $region28
      $region27: #{stage_1_forward.18} parent=23 // pred_region
        %s147 = smul.u32 36, %s17
        %p148 = scmp.lt.s32.totalorder %s16, 1
        %s149 = scalar_select %p148, %s16, 1
        %p150 = scmp.lt.s32.totalorder %s147, 71
        %s151 = scalar_select %p150, %s147, 71
        %s152 = smul.addr %s149, 72
        %s153 = sadd.s32 %s151, %s152
        %s154 = smul.addr %s153, 8
        %s155 = scalar_lea.vmem %s0, %s154
        %s156 = smul.u32 36, %s17
      $region28: #{stage_1_forward.18} parent=23 // pred_fallthru
        _
    $region24: #{stage_1_forward.18} parent=5 // pred_fallthru
      _
    %p157 = scmp.le.s32.totalorder 1, %s9
    %p158 = scmp.lt.s32.totalorder %s9, 5
    %p159 = pnand %p157, %p158
    %p160 = pneg %p159
    // Predicated region
    $region29: #{stage_1_forward.18} parent=5 // pred_check
      _
    $region30: #{stage_1_forward.18} parent=5 // pred_check_branch
      %162 = sbr.rel (%p159) target = $region32
    $region31: #{stage_1_forward.18} parent=5 // pred_region
      %s163 = ssub.s32 %s9, 1
      %s164 = smul.u32 36, %s19
      %p165 = scmp.lt.s32.totalorder %s18, 1
      %s166 = scalar_select %p165, %s18, 1
      %p167 = scmp.lt.s32.totalorder %s164, 71
      %s168 = scalar_select %p167, %s164, 71
      %s169 = smul.addr %s166, 72
      %s170 = sadd.s32 %s168, %s169
      %s171 = smul.addr %s170, 8
      %s172 = scalar_lea.vmem %s0, %s171
      %p173 = pneg %p49
      %p174 = pneg %p46
      %p175 = pneg %p70
      %p176 = pneg %p67
      %p177 = pneg %p91
      %p178 = pneg %p88
      %p179 = pneg %p119
      %p180 = pneg %p116
      %s181 = smul.u32 36, %s19
      %p182 = scmp.lt.s32.totalorder %s18, 1
      %s183 = scalar_select %p182, %s18, 1
      %p184 = scmp.lt.s32.totalorder %s181, 71
      %s185 = scalar_select %p184, %s181, 71
      %s186 = smul.addr %s185, 4
      %s187 = smul.addr %s183, 288
      %s188 = sadd.s32 %s186, %s187
      %s189 = smul.addr %s188, 8
      %s190 = scalar_lea.vmem %s3, %s189
      %s191 = smul.u32 36, %s19
      %p192 = scmp.lt.s32.totalorder %s18, 1
      %s193 = scalar_select %p192, %s18, 1
      %p194 = scmp.lt.s32.totalorder %s191, 71
      %s195 = scalar_select %p194, %s191, 71
      %s196 = smul.addr %s193, 72
      %s197 = sadd.s32 %s195, %s196
      %s198 = smul.addr %s197, 8
      %s199 = scalar_lea.vmem %s0, %s198
      %s200 = smul.u32 36, %s19
      %s201 = smul.u32 36, %s19
      %p202 = scmp.lt.s32.totalorder %s18, 1
      %s203 = scalar_select %p202, %s18, 1
      %p204 = scmp.lt.s32.totalorder %s201, 71
      %s205 = scalar_select %p204, %s201, 71
      %s206 = smul.addr %s205, 4
      %s207 = smul.addr %s203, 288
      %s208 = sadd.s32 %s206, %s207
      %s209 = smul.addr %s208, 8
      %s210 = scalar_lea.vmem %s3, %s209
      %s211 = smul.u32 36, %s19
      %v213 = vld [vmem:[%s199] sm:$0xff]
      %v214 = vld [vmem:[%s199 + $0x8] sm:$0xff]
      %v215 = vld [vmem:[%s199 + $0x10] sm:$0xff]
      %v216 = vld [vmem:[%s199 + $0x18] sm:$0xff]
      %v217 = vld [vmem:[%s199 + $0x20] sm:$0xff]
      %v218 = vld [vmem:[%s199 + $0x28] sm:$0xff]
      %v219 = vld [vmem:[%s199 + $0x30] sm:$0xff]
      %v220 = vld [vmem:[%s199 + $0x38] sm:$0xff]
      %v221 = vld [vmem:[%s199 + $0x40] sm:$0xff]
      %v222 = vld [vmem:[%s199 + $0x48] sm:$0xff]
      %v223 = vld [vmem:[%s199 + $0x50] sm:$0xff]
      %v224 = vld [vmem:[%s199 + $0x58] sm:$0xff]
      %v225 = vld [vmem:[%s199 + $0x60] sm:$0xff]
      %v226 = vld [vmem:[%s199 + $0x68] sm:$0xff]
      %v227 = vld [vmem:[%s199 + $0x70] sm:$0xff]
      %v228 = vld [vmem:[%s199 + $0x78] sm:$0xff]
      %v229 = vld [vmem:[%s199 + $0x80] sm:$0xff]
      %v230 = vld [vmem:[%s199 + $0x88] sm:$0xff]
      %v231 = vld [vmem:[%s199 + $0x90] sm:$0xff]
      %v232 = vld [vmem:[%s199 + $0x98] sm:$0xff]
      %v233 = vld [vmem:[%s199 + $0xa0] sm:$0xff]
      %v234 = vld [vmem:[%s199 + $0xa8] sm:$0xff]
      %v235 = vld [vmem:[%s199 + $0xb0] sm:$0xff]
      %v236 = vld [vmem:[%s199 + $0xb8] sm:$0xff]
      %v237 = vld [vmem:[%s199 + $0xc0] sm:$0xff]
      %v238 = vld [vmem:[%s199 + $0xc8] sm:$0xff]
      %v239 = vld [vmem:[%s199 + $0xd0] sm:$0xff]
      %v240 = vld [vmem:[%s199 + $0xd8] sm:$0xff]
      %v241 = vld [vmem:[%s199 + $0xe0] sm:$0xff]
      %v242 = vld [vmem:[%s199 + $0xe8] sm:$0xff]
      %v243 = vld [vmem:[%s199 + $0xf0] sm:$0xff]
      %v244 = vld [vmem:[%s199 + $0xf8] sm:$0xff]
      %v245 = vld [vmem:[%s199 + $0x100] sm:$0xff]
      %v246 = vld [vmem:[%s199 + $0x108] sm:$0xff]
      %v247 = vld [vmem:[%s199 + $0x110] sm:$0xff]
      %v248 = vld [vmem:[%s199 + $0x118] sm:$0xff]
      %v249 = vpack.c.bf16 %v214, %v213
      %v250 = vpack.c.bf16 %v216, %v215
      %v251 = vpack.c.bf16 %v218, %v217
      %v252 = vpack.c.bf16 %v220, %v219
      %v253 = vpack.c.bf16 %v222, %v221
      %v254 = vpack.c.bf16 %v224, %v223
      %v255 = vpack.c.bf16 %v226, %v225
      %v256 = vpack.c.bf16 %v228, %v227
      %v257 = vpack.c.bf16 %v230, %v229
      %v258 = vpack.c.bf16 %v232, %v231
      %v259 = vpack.c.bf16 %v234, %v233
      %v260 = vpack.c.bf16 %v236, %v235
      %v261 = vpack.c.bf16 %v238, %v237
      %v262 = vpack.c.bf16 %v240, %v239
      %v263 = vpack.c.bf16 %v242, %v241
      %v264 = vpack.c.bf16 %v244, %v243
      %v265 = vpack.c.bf16 %v246, %v245
      %v266 = vpack.c.bf16 %v248, %v247
      %v267 = vld [vmem:[%s1] sm:$0xff]
      %v268 = vld [vmem:[%s1 + $0x8] sm:$0xff]
      %v269 = vld [vmem:[%s1 + $0x10] sm:$0xff]
      %v270 = vld [vmem:[%s1 + $0x18] sm:$0xff]
      %v271 = vld [vmem:[%s1 + $0x20] sm:$0xff]
      %v272 = vld [vmem:[%s1 + $0x28] sm:$0xff]
      %v273 = vld [vmem:[%s1 + $0x30] sm:$0xff]
      %v274 = vld [vmem:[%s1 + $0x38] sm:$0xff]
      %v275 = vld [vmem:[%s1 + $0x40] sm:$0xff]
      %v276 = vld [vmem:[%s1 + $0x48] sm:$0xff]
      %v277 = vld [vmem:[%s1 + $0x50] sm:$0xff]
      %v278 = vld [vmem:[%s1 + $0x58] sm:$0xff]
      %v279 = vld [vmem:[%s1 + $0x60] sm:$0xff]
      %v280 = vld [vmem:[%s1 + $0x68] sm:$0xff]
      %v281 = vld [vmem:[%s1 + $0x70] sm:$0xff]
      %v282 = vld [vmem:[%s1 + $0x78] sm:$0xff]
      %v283 = vld [vmem:[%s1 + $0x80] sm:$0xff]
      %v284 = vld [vmem:[%s1 + $0x88] sm:$0xff]
      %v285 = vld [vmem:[%s1 + $0x90] sm:$0xff]
      %v286 = vld [vmem:[%s1 + $0x98] sm:$0xff]
      %v287 = vld [vmem:[%s1 + $0xa0] sm:$0xff]
      %v288 = vld [vmem:[%s1 + $0xa8] sm:$0xff]
      %v289 = vld [vmem:[%s1 + $0xb0] sm:$0xff]
      %v290 = vld [vmem:[%s1 + $0xb8] sm:$0xff]
      %v291 = vld [vmem:[%s1 + $0xc0] sm:$0xff]
      %v292 = vld [vmem:[%s1 + $0xc8] sm:$0xff]
      %v293 = vld [vmem:[%s1 + $0xd0] sm:$0xff]
      %v294 = vld [vmem:[%s1 + $0xd8] sm:$0xff]
      %v295 = vld [vmem:[%s1 + $0xe0] sm:$0xff]
      %v296 = vld [vmem:[%s1 + $0xe8] sm:$0xff]
      %v297 = vld [vmem:[%s1 + $0xf0] sm:$0xff]
      %v298 = vld [vmem:[%s1 + $0xf8] sm:$0xff]
      %v299 = vld [vmem:[%s2] sm:$0xf]
      %v301 = vlaneseq
      %v302 = vshrl.u32 %v301, 7
      %v303 = vsub.s32 0, %v302
      %v304 = vrot.slane %v299, %v303
      %v305 = vlaneseq
      %v306 = vshrl.u32 %v305, 7
      %v307 = vsub.s32 1, %v306
      %v308 = vrot.slane %v299, %v307
      %v309 = vlaneseq
      %v310 = vshrl.u32 %v309, 7
      %v311 = vsub.s32 2, %v310
      %v312 = vrot.slane %v299, %v311
      %v313 = vlaneseq
      %v314 = vshrl.u32 %v313, 7
      %v315 = vsub.s32 3, %v314
      %v316 = vrot.slane %v299, %v315
      %v353 = vunpack.c.l.b16 %v267
      %v354 = vunpack.c.h.b16 %v267
      %v355 = vunpack.c.l.b16 %v268
      %v356 = vunpack.c.h.b16 %v268
      %v357 = vunpack.c.l.b16 %v269
      %v358 = vunpack.c.h.b16 %v269
      %v359 = vunpack.c.l.b16 %v270
      %v360 = vunpack.c.h.b16 %v270
      %v361 = vunpack.c.l.b16 %v271
      %v362 = vunpack.c.h.b16 %v271
      %v363 = vunpack.c.l.b16 %v272
      %v364 = vunpack.c.h.b16 %v272
      %v365 = vunpack.c.l.b16 %v273
      %v366 = vunpack.c.h.b16 %v273
      %v367 = vunpack.c.l.b16 %v274
      %v368 = vunpack.c.h.b16 %v274
      %v369 = vunpack.c.l.b16 %v275
      %v370 = vunpack.c.h.b16 %v275
      %v371 = vunpack.c.l.b16 %v276
      %v372 = vunpack.c.h.b16 %v276
      %v373 = vunpack.c.l.b16 %v277
      %v374 = vunpack.c.h.b16 %v277
      %v375 = vunpack.c.l.b16 %v278
      %v376 = vunpack.c.h.b16 %v278
      %v377 = vunpack.c.l.b16 %v279
      %v378 = vunpack.c.h.b16 %v279
      %v379 = vunpack.c.l.b16 %v280
      %v380 = vunpack.c.h.b16 %v280
      %v381 = vunpack.c.l.b16 %v281
      %v382 = vunpack.c.h.b16 %v281
      %v383 = vunpack.c.l.b16 %v282
      %v384 = vunpack.c.h.b16 %v282
      %v385 = vunpack.c.l.b16 %v283
      %v386 = vunpack.c.h.b16 %v283
      %v387 = vunpack.c.l.b16 %v284
      %v388 = vunpack.c.h.b16 %v284
      %v389 = vunpack.c.l.b16 %v285
      %v390 = vunpack.c.h.b16 %v285
      %v391 = vunpack.c.l.b16 %v286
      %v392 = vunpack.c.h.b16 %v286
      %v393 = vunpack.c.l.b16 %v287
      %v394 = vunpack.c.h.b16 %v287
      %v395 = vunpack.c.l.b16 %v288
      %v396 = vunpack.c.h.b16 %v288
      %v397 = vunpack.c.l.b16 %v289
      %v398 = vunpack.c.h.b16 %v289
      %v399 = vunpack.c.l.b16 %v290
      %v400 = vunpack.c.h.b16 %v290
      %v401 = vunpack.c.l.b16 %v291
      %v402 = vunpack.c.h.b16 %v291
      %v403 = vunpack.c.l.b16 %v292
      %v404 = vunpack.c.h.b16 %v292
      %v405 = vunpack.c.l.b16 %v293
      %v406 = vunpack.c.h.b16 %v293
      %v407 = vunpack.c.l.b16 %v294
      %v408 = vunpack.c.h.b16 %v294
      %v409 = vunpack.c.l.b16 %v295
      %v410 = vunpack.c.h.b16 %v295
      %v411 = vunpack.c.l.b16 %v296
      %v412 = vunpack.c.h.b16 %v296
      %v413 = vunpack.c.l.b16 %v297
      %v414 = vunpack.c.h.b16 %v297
      %v415 = vunpack.c.l.b16 %v298
      %v416 = vunpack.c.h.b16 %v298
      %v417 = vpack.c.b16 %v357, %v353
      %v418 = vpack.c.b16 %v358, %v354
      %v419 = vpack.c.b16 %v359, %v355
      %v420 = vpack.c.b16 %v360, %v356
      %v421 = vpack.c.b16 %v365, %v361
      %v422 = vpack.c.b16 %v366, %v362
      %v423 = vpack.c.b16 %v367, %v363
      %v424 = vpack.c.b16 %v368, %v364
      %v425 = vpack.c.b16 %v373, %v369
      %v426 = vpack.c.b16 %v374, %v370
      %v427 = vpack.c.b16 %v375, %v371
      %v428 = vpack.c.b16 %v376, %v372
      %v429 = vpack.c.b16 %v381, %v377
      %v430 = vpack.c.b16 %v382, %v378
      %v431 = vpack.c.b16 %v383, %v379
      %v432 = vpack.c.b16 %v384, %v380
      %v433 = vpack.c.b16 %v389, %v385
      %v434 = vpack.c.b16 %v390, %v386
      %v435 = vpack.c.b16 %v391, %v387
      %v436 = vpack.c.b16 %v392, %v388
      %v437 = vpack.c.b16 %v397, %v393
      %v438 = vpack.c.b16 %v398, %v394
      %v439 = vpack.c.b16 %v399, %v395
      %v440 = vpack.c.b16 %v400, %v396
      %v441 = vpack.c.b16 %v405, %v401
      %v442 = vpack.c.b16 %v406, %v402
      %v443 = vpack.c.b16 %v407, %v403
      %v444 = vpack.c.b16 %v408, %v404
      %v445 = vpack.c.b16 %v413, %v409
      %v446 = vpack.c.b16 %v414, %v410
      %v447 = vpack.c.b16 %v415, %v411
      %v448 = vpack.c.b16 %v416, %v412
      %481 = vmatprep.subr.bf16.mxu0 %v418
      %482 = vmatpush1.bf16.msra.mxu0 %v417
      %483 = vmatprep.subr.bf16.mxu0 %v422
      %484 = vmatpush1.bf16.msra.mxu0 %v421
      %485 = vmatprep.subr.bf16.mxu0 %v426
      %486 = vmatpush1.bf16.msra.mxu0 %v425
      %487 = vmatprep.subr.bf16.mxu0 %v430
      %488 = vmatpush1.bf16.msra.mxu0 %v429
      %489 = vmatprep.subr.bf16.mxu0 %v434
      %490 = vmatpush1.bf16.msra.mxu0 %v433
      %491 = vmatprep.subr.bf16.mxu0 %v438
      %492 = vmatpush1.bf16.msra.mxu0 %v437
      %493 = vmatprep.subr.bf16.mxu0 %v442
      %494 = vmatpush1.bf16.msra.mxu0 %v441
      %495 = vmatprep.subr.bf16.mxu0 %v446
      %496 = vmatpush1.bf16.msra.mxu0 %v445
      %497 = vmatprep.subr.bf16.mxu0 0
      %498 = vmatpush1.bf16.msra.mxu0 0
      %499 = vmatprep.subr.bf16.mxu0 0
      %500 = vmatpush1.bf16.msra.mxu0 0
      %501 = vmatprep.subr.bf16.mxu0 0
      %502 = vmatpush1.bf16.msra.mxu0 0
      %503 = vmatprep.subr.bf16.mxu0 0
      %504 = vmatpush1.bf16.msra.mxu0 0
      %505 = vmatprep.subr.bf16.mxu0 0
      %506 = vmatpush1.bf16.msra.mxu0 0
      %507 = vmatprep.subr.bf16.mxu0 0
      %508 = vmatpush1.bf16.msra.mxu0 0
      %509 = vmatprep.subr.bf16.mxu0 0
      %510 = vmatpush1.bf16.msra.mxu0 0
      %511 = vmatprep.subr.bf16.mxu0 0
      %512 = vmatpush1.bf16.msra.mxu0 0
      %513 = vmatprep.mubr.bf16.mxu0 0
      %514 = vmatmul.mubr.bf16.gmra.mrb[0].mxu0 %v249
      %v515 = vpop.f32.mrb[0].mxu0
      %v516 = vadd.f32 %v304, %v515
      %v517 = vpop.f32.mrb[0].mxu0
      %v518 = vadd.f32 %v308, %v517
      %v519 = vpop.f32.mrb[0].mxu0
      %v520 = vadd.f32 %v304, %v519
      %v521 = vpop.f32.mrb[0].mxu0
      %v522 = vadd.f32 %v308, %v521
      %523 = vmatprep.mubr.bf16.mxu0 0
      %524 = vmatmul.mubr.bf16.gmra.mrb[0].mxu0 %v250
      %v525 = vpop.f32.mrb[0].mxu0
      %v526 = vadd.f32 %v304, %v525
      %v527 = vpop.f32.mrb[0].mxu0
      %v528 = vadd.f32 %v308, %v527
      %v529 = vpop.f32.mrb[0].mxu0
      %v530 = vadd.f32 %v304, %v529
      %v531 = vpop.f32.mrb[0].mxu0
      %v532 = vadd.f32 %v308, %v531
      %533 = vmatprep.mubr.bf16.mxu0 0
      %534 = vmatmul.mubr.bf16.gmra.mrb[0].mxu0 %v251
      %v535 = vpop.f32.mrb[0].mxu0
      %v536 = vadd.f32 %v304, %v535
      %v537 = vpop.f32.mrb[0].mxu0
      %v538 = vadd.f32 %v308, %v537
      %v539 = vpop.f32.mrb[0].mxu0
      %v540 = vadd.f32 %v304, %v539
      %v541 = vpop.f32.mrb[0].mxu0
      %v542 = vadd.f32 %v308, %v541
      %543 = vmatprep.mubr.bf16.mxu0 0
      %544 = vmatmul.mubr.bf16.gmra.mrb[0].mxu0 %v252
      %v545 = vpop.f32.mrb[0].mxu0
      %v546 = vadd.f32 %v304, %v545
      %v547 = vpop.f32.mrb[0].mxu0
      %v548 = vadd.f32 %v308, %v547
      %v549 = vpop.f32.mrb[0].mxu0
      %v550 = vadd.f32 %v304, %v549
      %v551 = vpop.f32.mrb[0].mxu0
      %v552 = vadd.f32 %v308, %v551
      %553 = vmatprep.mubr.bf16.mxu0 0
      %554 = vmatmul.mubr.bf16.gmra.mrb[0].mxu0 %v253
      %v555 = vpop.f32.mrb[0].mxu0
      %v556 = vadd.f32 %v304, %v555
      %v557 = vpop.f32.mrb[0].mxu0
      %v558 = vadd.f32 %v308, %v557
      %v559 = vpop.f32.mrb[0].mxu0
      %v560 = vadd.f32 %v304, %v559
      %v561 = vpop.f32.mrb[0].mxu0
      %v562 = vadd.f32 %v308, %v561
      %563 = vmatprep.mubr.bf16.mxu0 0
      %564 = vmatmul.mubr.bf16.gmra.mrb[0].mxu0 %v254
      %v565 = vpop.f32.mrb[0].mxu0
      %v566 = vadd.f32 %v304, %v565
      %v567 = vpop.f32.mrb[0].mxu0
      %v568 = vadd.f32 %v308, %v567
      %v569 = vpop.f32.mrb[0].mxu0
      %v570 = vadd.f32 %v304, %v569
      %v571 = vpop.f32.mrb[0].mxu0
      %v572 = vadd.f32 %v308, %v571
      %573 = vmatprep.mubr.bf16.mxu0 0
      %574 = vmatmul.mubr.bf16.gmra.mrb[0].mxu0 %v255
      %v575 = vpop.f32.mrb[0].mxu0
      %v576 = vadd.f32 %v304, %v575
      %v577 = vpop.f32.mrb[0].mxu0
      %v578 = vadd.f32 %v308, %v577
      %v579 = vpop.f32.mrb[0].mxu0
      %v580 = vadd.f32 %v304, %v579
      %v581 = vpop.f32.mrb[0].mxu0
      %v582 = vadd.f32 %v308, %v581
      %583 = vmatprep.mubr.bf16.mxu0 0
      %584 = vmatmul.mubr.bf16.gmra.mrb[0].mxu0 %v256
      %v585 = vpop.f32.mrb[0].mxu0
      %v586 = vadd.f32 %v304, %v585
      %v587 = vpop.f32.mrb[0].mxu0
      %v588 = vadd.f32 %v308, %v587
      %v589 = vpop.f32.mrb[0].mxu0
      %v590 = vadd.f32 %v304, %v589
      %v591 = vpop.f32.mrb[0].mxu0
      %v592 = vadd.f32 %v308, %v591
      %593 = vmatprep.mubr.bf16.mxu0 0
      %594 = vmatmul.mubr.bf16.gmra.mrb[0].mxu0 %v257
      %v595 = vpop.f32.mrb[0].mxu0
      %v596 = vadd.f32 %v304, %v595
      %v597 = vpop.f32.mrb[0].mxu0
      %v598 = vadd.f32 %v308, %v597
      %v599 = vpop.f32.mrb[0].mxu0
      %v600 = vadd.f32 %v304, %v599
      %v601 = vpop.f32.mrb[0].mxu0
      %v602 = vadd.f32 %v308, %v601
      %603 = vmatprep.mubr.bf16.mxu0 0
      %604 = vmatmul.mubr.bf16.gmra.mrb[0].mxu0 %v258
      %v605 = vpop.f32.mrb[0].mxu0
      %v606 = vadd.f32 %v304, %v605
      %v607 = vpop.f32.mrb[0].mxu0
      %v608 = vadd.f32 %v308, %v607
      %v609 = vpop.f32.mrb[0].mxu0
      %v610 = vadd.f32 %v304, %v609
      %v611 = vpop.f32.mrb[0].mxu0
      %v612 = vadd.f32 %v308, %v611
      %613 = vmatprep.mubr.bf16.mxu0 0
      %614 = vmatmul.mubr.bf16.gmra.mrb[0].mxu0 %v259
      %v615 = vpop.f32.mrb[0].mxu0
      %v616 = vadd.f32 %v304, %v615
      %v617 = vpop.f32.mrb[0].mxu0
      %v618 = vadd.f32 %v308, %v617
      %v619 = vpop.f32.mrb[0].mxu0
      %v620 = vadd.f32 %v304, %v619
      %v621 = vpop.f32.mrb[0].mxu0
      %v622 = vadd.f32 %v308, %v621
      %623 = vmatprep.mubr.bf16.mxu0 0
      %624 = vmatmul.mubr.bf16.gmra.mrb[0].mxu0 %v260
      %v625 = vpop.f32.mrb[0].mxu0
      %v626 = vadd.f32 %v304, %v625
      %v627 = vpop.f32.mrb[0].mxu0
      %v628 = vadd.f32 %v308, %v627
      %v629 = vpop.f32.mrb[0].mxu0
      %v630 = vadd.f32 %v304, %v629
      %v631 = vpop.f32.mrb[0].mxu0
      %v632 = vadd.f32 %v308, %v631
      %633 = vmatprep.mubr.bf16.mxu0 0
      %634 = vmatmul.mubr.bf16.gmra.mrb[0].mxu0 %v261
      %v635 = vpop.f32.mrb[0].mxu0
      %v636 = vadd.f32 %v304, %v635
      %v637 = vpop.f32.mrb[0].mxu0
      %v638 = vadd.f32 %v308, %v637
      %v639 = vpop.f32.mrb[0].mxu0
      %v640 = vadd.f32 %v304, %v639
      %v641 = vpop.f32.mrb[0].mxu0
      %v642 = vadd.f32 %v308, %v641
      %643 = vmatprep.mubr.bf16.mxu0 0
      %644 = vmatmul.mubr.bf16.gmra.mrb[0].mxu0 %v262
      %v645 = vpop.f32.mrb[0].mxu0
      %v646 = vadd.f32 %v304, %v645
      %v647 = vpop.f32.mrb[0].mxu0
      %v648 = vadd.f32 %v308, %v647
      %v649 = vpop.f32.mrb[0].mxu0
      %v650 = vadd.f32 %v304, %v649
      %v651 = vpop.f32.mrb[0].mxu0
      %v652 = vadd.f32 %v308, %v651
      %653 = vmatprep.mubr.bf16.mxu0 0
      %654 = vmatmul.mubr.bf16.gmra.mrb[0].mxu0 %v263
      %v655 = vpop.f32.mrb[0].mxu0
      %v656 = vadd.f32 %v304, %v655
      %v657 = vpop.f32.mrb[0].mxu0
      %v658 = vadd.f32 %v308, %v657
      %v659 = vpop.f32.mrb[0].mxu0
      %v660 = vadd.f32 %v304, %v659
      %v661 = vpop.f32.mrb[0].mxu0
      %v662 = vadd.f32 %v308, %v661
      %663 = vmatprep.mubr.bf16.mxu0 0
      %664 = vmatmul.mubr.bf16.gmra.mrb[0].mxu0 %v264
      %v665 = vpop.f32.mrb[0].mxu0
      %v666 = vadd.f32 %v304, %v665
      %v667 = vpop.f32.mrb[0].mxu0
      %v668 = vadd.f32 %v308, %v667
      %v669 = vpop.f32.mrb[0].mxu0
      %v670 = vadd.f32 %v304, %v669
      %v671 = vpop.f32.mrb[0].mxu0
      %v672 = vadd.f32 %v308, %v671
      %673 = vmatprep.mubr.bf16.mxu0 0
      %674 = vmatmul.mubr.bf16.gmra.mrb[0].mxu0 %v265
      %v675 = vpop.f32.mrb[0].mxu0
      %v676 = vadd.f32 %v304, %v675
      %v677 = vpop.f32.mrb[0].mxu0
      %v678 = vadd.f32 %v308, %v677
      %v679 = vpop.f32.mrb[0].mxu0
      %v680 = vadd.f32 %v304, %v679
      %v681 = vpop.f32.mrb[0].mxu0
      %v682 = vadd.f32 %v308, %v681
      %683 = vmatprep.mubr.bf16.mxu0 0
      %684 = vmatmul.mubr.bf16.gmra.mrb[0].mxu0 %v266
      %v685 = vpop.f32.mrb[0].mxu0
      %v686 = vadd.f32 %v304, %v685
      %v687 = vpop.f32.mrb[0].mxu0
      %v688 = vadd.f32 %v308, %v687
      %v689 = vpop.f32.mrb[0].mxu0
      %v690 = vadd.f32 %v304, %v689
      %v691 = vpop.f32.mrb[0].mxu0
      %v692 = vadd.f32 %v308, %v691
      %693 = vdwg.mxu0
      %694 = vmatprep.subr.bf16.mxu0 %v420
      %695 = vmatpush1.bf16.msra.mxu0 %v419
      %696 = vmatprep.subr.bf16.mxu0 %v424
      %697 = vmatpush1.bf16.msra.mxu0 %v423
      %698 = vmatprep.subr.bf16.mxu0 %v428
      %699 = vmatpush1.bf16.msra.mxu0 %v427
      %700 = vmatprep.subr.bf16.mxu0 %v432
      %701 = vmatpush1.bf16.msra.mxu0 %v431
      %702 = vmatprep.subr.bf16.mxu0 %v436
      %703 = vmatpush1.bf16.msra.mxu0 %v435
      %704 = vmatprep.subr.bf16.mxu0 %v440
      %705 = vmatpush1.bf16.msra.mxu0 %v439
      %706 = vmatprep.subr.bf16.mxu0 %v444
      %707 = vmatpush1.bf16.msra.mxu0 %v443
      %708 = vmatprep.subr.bf16.mxu0 %v448
      %709 = vmatpush1.bf16.msra.mxu0 %v447
      %710 = vmatprep.subr.bf16.mxu0 0
      %711 = vmatpush1.bf16.msra.mxu0 0
      %712 = vmatprep.subr.bf16.mxu0 0
      %713 = vmatpush1.bf16.msra.mxu0 0
      %714 = vmatprep.subr.bf16.mxu0 0
      %715 = vmatpush1.bf16.msra.mxu0 0
      %716 = vmatprep.subr.bf16.mxu0 0
      %717 = vmatpush1.bf16.msra.mxu0 0
      %718 = vmatprep.subr.bf16.mxu0 0
      %719 = vmatpush1.bf16.msra.mxu0 0
      %720 = vmatprep.subr.bf16.mxu0 0
      %721 = vmatpush1.bf16.msra.mxu0 0
      %722 = vmatprep.subr.bf16.mxu0 0
      %723 = vmatpush1.bf16.msra.mxu0 0
      %724 = vmatprep.subr.bf16.mxu0 0
      %725 = vmatpush1.bf16.msra.mxu0 0
      %726 = vmatprep.mubr.bf16.mxu0 0
      %727 = vmatmul.mubr.bf16.gmra.mrb[0].mxu0 %v249
      %v728 = vpop.f32.mrb[0].mxu0
      %v729 = vadd.f32 %v312, %v728
      %v730 = vpop.f32.mrb[0].mxu0
      %v731 = vadd.f32 %v316, %v730
      %v732 = vpop.f32.mrb[0].mxu0
      %v733 = vadd.f32 %v312, %v732
      %v734 = vpop.f32.mrb[0].mxu0
      %v735 = vadd.f32 %v316, %v734
      %736 = vmatprep.mubr.bf16.mxu0 0
      %737 = vmatmul.mubr.bf16.gmra.mrb[0].mxu0 %v250
      %v738 = vpop.f32.mrb[0].mxu0
      %v739 = vadd.f32 %v312, %v738
      %v740 = vpop.f32.mrb[0].mxu0
      %v741 = vadd.f32 %v316, %v740
      %v742 = vpop.f32.mrb[0].mxu0
      %v743 = vadd.f32 %v312, %v742
      %v744 = vpop.f32.mrb[0].mxu0
      %v745 = vadd.f32 %v316, %v744
      %746 = vmatprep.mubr.bf16.mxu0 0
      %747 = vmatmul.mubr.bf16.gmra.mrb[0].mxu0 %v251
      %v748 = vpop.f32.mrb[0].mxu0
      %v749 = vadd.f32 %v312, %v748
      %v750 = vpop.f32.mrb[0].mxu0
      %v751 = vadd.f32 %v316, %v750
      %v752 = vpop.f32.mrb[0].mxu0
      %v753 = vadd.f32 %v312, %v752
      %v754 = vpop.f32.mrb[0].mxu0
      %v755 = vadd.f32 %v316, %v754
      %756 = vmatprep.mubr.bf16.mxu0 0
      %757 = vmatmul.mubr.bf16.gmra.mrb[0].mxu0 %v252
      %v758 = vpop.f32.mrb[0].mxu0
      %v759 = vadd.f32 %v312, %v758
      %v760 = vpop.f32.mrb[0].mxu0
      %v761 = vadd.f32 %v316, %v760
      %v762 = vpop.f32.mrb[0].mxu0
      %v763 = vadd.f32 %v312, %v762
      %v764 = vpop.f32.mrb[0].mxu0
      %v765 = vadd.f32 %v316, %v764
      %766 = vmatprep.mubr.bf16.mxu0 0
      %767 = vmatmul.mubr.bf16.gmra.mrb[0].mxu0 %v253
      %v768 = vpop.f32.mrb[0].mxu0
      %v769 = vadd.f32 %v312, %v768
      %v770 = vpop.f32.mrb[0].mxu0
      %v771 = vadd.f32 %v316, %v770
      %v772 = vpop.f32.mrb[0].mxu0
      %v773 = vadd.f32 %v312, %v772
      %v774 = vpop.f32.mrb[0].mxu0
      %v775 = vadd.f32 %v316, %v774
      %776 = vmatprep.mubr.bf16.mxu0 0
      %777 = vmatmul.mubr.bf16.gmra.mrb[0].mxu0 %v254
      %v778 = vpop.f32.mrb[0].mxu0
      %v779 = vadd.f32 %v312, %v778
      %v780 = vpop.f32.mrb[0].mxu0
      %v781 = vadd.f32 %v316, %v780
      %v782 = vpop.f32.mrb[0].mxu0
      %v783 = vadd.f32 %v312, %v782
      %v784 = vpop.f32.mrb[0].mxu0
      %v785 = vadd.f32 %v316, %v784
      %786 = vmatprep.mubr.bf16.mxu0 0
      %787 = vmatmul.mubr.bf16.gmra.mrb[0].mxu0 %v255
      %v788 = vpop.f32.mrb[0].mxu0
      %v789 = vadd.f32 %v312, %v788
      %v790 = vpop.f32.mrb[0].mxu0
      %v791 = vadd.f32 %v316, %v790
      %v792 = vpop.f32.mrb[0].mxu0
      %v793 = vadd.f32 %v312, %v792
      %v794 = vpop.f32.mrb[0].mxu0
      %v795 = vadd.f32 %v316, %v794
      %796 = vmatprep.mubr.bf16.mxu0 0
      %797 = vmatmul.mubr.bf16.gmra.mrb[0].mxu0 %v256
      %v798 = vpop.f32.mrb[0].mxu0
      %v799 = vadd.f32 %v312, %v798
      %v800 = vpop.f32.mrb[0].mxu0
      %v801 = vadd.f32 %v316, %v800
      %v802 = vpop.f32.mrb[0].mxu0
      %v803 = vadd.f32 %v312, %v802
      %v804 = vpop.f32.mrb[0].mxu0
      %v805 = vadd.f32 %v316, %v804
      %806 = vmatprep.mubr.bf16.mxu0 0
      %807 = vmatmul.mubr.bf16.gmra.mrb[0].mxu0 %v257
      %v808 = vpop.f32.mrb[0].mxu0
      %v809 = vadd.f32 %v312, %v808
      %v810 = vpop.f32.mrb[0].mxu0
      %v811 = vadd.f32 %v316, %v810
      %v812 = vpop.f32.mrb[0].mxu0
      %v813 = vadd.f32 %v312, %v812
      %v814 = vpop.f32.mrb[0].mxu0
      %v815 = vadd.f32 %v316, %v814
      %816 = vmatprep.mubr.bf16.mxu0 0
      %817 = vmatmul.mubr.bf16.gmra.mrb[0].mxu0 %v258
      %v818 = vpop.f32.mrb[0].mxu0
      %v819 = vadd.f32 %v312, %v818
      %v820 = vpop.f32.mrb[0].mxu0
      %v821 = vadd.f32 %v316, %v820
      %v822 = vpop.f32.mrb[0].mxu0
      %v823 = vadd.f32 %v312, %v822
      %v824 = vpop.f32.mrb[0].mxu0
      %v825 = vadd.f32 %v316, %v824
      %826 = vmatprep.mubr.bf16.mxu0 0
      %827 = vmatmul.mubr.bf16.gmra.mrb[0].mxu0 %v259
      %v828 = vpop.f32.mrb[0].mxu0
      %v829 = vadd.f32 %v312, %v828
      %v830 = vpop.f32.mrb[0].mxu0
      %v831 = vadd.f32 %v316, %v830
      %v832 = vpop.f32.mrb[0].mxu0
      %v833 = vadd.f32 %v312, %v832
      %v834 = vpop.f32.mrb[0].mxu0
      %v835 = vadd.f32 %v316, %v834
      %836 = vmatprep.mubr.bf16.mxu0 0
      %837 = vmatmul.mubr.bf16.gmra.mrb[0].mxu0 %v260
      %v838 = vpop.f32.mrb[0].mxu0
      %v839 = vadd.f32 %v312, %v838
      %v840 = vpop.f32.mrb[0].mxu0
      %v841 = vadd.f32 %v316, %v840
      %v842 = vpop.f32.mrb[0].mxu0
      %v843 = vadd.f32 %v312, %v842
      %v844 = vpop.f32.mrb[0].mxu0
      %v845 = vadd.f32 %v316, %v844
      %846 = vmatprep.mubr.bf16.mxu0 0
      %847 = vmatmul.mubr.bf16.gmra.mrb[0].mxu0 %v261
      %v848 = vpop.f32.mrb[0].mxu0
      %v849 = vadd.f32 %v312, %v848
      %v850 = vpop.f32.mrb[0].mxu0
      %v851 = vadd.f32 %v316, %v850
      %v852 = vpop.f32.mrb[0].mxu0
      %v853 = vadd.f32 %v312, %v852
      %v854 = vpop.f32.mrb[0].mxu0
      %v855 = vadd.f32 %v316, %v854
      %856 = vmatprep.mubr.bf16.mxu0 0
      %857 = vmatmul.mubr.bf16.gmra.mrb[0].mxu0 %v262
      %v858 = vpop.f32.mrb[0].mxu0
      %v859 = vadd.f32 %v312, %v858
      %v860 = vpop.f32.mrb[0].mxu0
      %v861 = vadd.f32 %v316, %v860
      %v862 = vpop.f32.mrb[0].mxu0
      %v863 = vadd.f32 %v312, %v862
      %v864 = vpop.f32.mrb[0].mxu0
      %v865 = vadd.f32 %v316, %v864
      %866 = vmatprep.mubr.bf16.mxu0 0
      %867 = vmatmul.mubr.bf16.gmra.mrb[0].mxu0 %v263
      %v868 = vpop.f32.mrb[0].mxu0
      %v869 = vadd.f32 %v312, %v868
      %v870 = vpop.f32.mrb[0].mxu0
      %v871 = vadd.f32 %v316, %v870
      %v872 = vpop.f32.mrb[0].mxu0
      %v873 = vadd.f32 %v312, %v872
      %v874 = vpop.f32.mrb[0].mxu0
      %v875 = vadd.f32 %v316, %v874
      %876 = vmatprep.mubr.bf16.mxu0 0
      %877 = vmatmul.mubr.bf16.gmra.mrb[0].mxu0 %v264
      %v878 = vpop.f32.mrb[0].mxu0
      %v879 = vadd.f32 %v312, %v878
      %v880 = vpop.f32.mrb[0].mxu0
      %v881 = vadd.f32 %v316, %v880
      %v882 = vpop.f32.mrb[0].mxu0
      %v883 = vadd.f32 %v312, %v882
      %v884 = vpop.f32.mrb[0].mxu0
      %v885 = vadd.f32 %v316, %v884
      %886 = vmatprep.mubr.bf16.mxu0 0
      %887 = vmatmul.mubr.bf16.gmra.mrb[0].mxu0 %v265
      %v888 = vpop.f32.mrb[0].mxu0
      %v889 = vadd.f32 %v312, %v888
      %v890 = vpop.f32.mrb[0].mxu0
      %v891 = vadd.f32 %v316, %v890
      %v892 = vpop.f32.mrb[0].mxu0
      %v893 = vadd.f32 %v312, %v892
      %v894 = vpop.f32.mrb[0].mxu0
      %v895 = vadd.f32 %v316, %v894
      %896 = vmatprep.mubr.bf16.mxu0 0
      %897 = vmatmul.mubr.bf16.gmra.mrb[0].mxu0 %v266
      %v898 = vpop.f32.mrb[0].mxu0
      %v899 = vadd.f32 %v312, %v898
      %v900 = vpop.f32.mrb[0].mxu0
      %v901 = vadd.f32 %v316, %v900
      %v902 = vpop.f32.mrb[0].mxu0
      %v903 = vadd.f32 %v312, %v902
      %v904 = vpop.f32.mrb[0].mxu0
      %v905 = vadd.f32 %v316, %v904
      %906 = vdwg.mxu0
      %v907 = vmax.f32 %v516, 0.0
      %v908 = vmax.f32 %v518, 0.0
      %v909 = vmax.f32 %v729, 0.0
      %v910 = vmax.f32 %v731, 0.0
      %v911 = vmax.f32 %v520, 0.0
      %v912 = vmax.f32 %v522, 0.0
      %v913 = vmax.f32 %v733, 0.0
      %v914 = vmax.f32 %v735, 0.0
      %v915 = vmax.f32 %v526, 0.0
      %v916 = vmax.f32 %v528, 0.0
      %v917 = vmax.f32 %v739, 0.0
      %v918 = vmax.f32 %v741, 0.0
      %v919 = vmax.f32 %v530, 0.0
      %v920 = vmax.f32 %v532, 0.0
      %v921 = vmax.f32 %v743, 0.0
      %v922 = vmax.f32 %v745, 0.0
      %v923 = vmax.f32 %v536, 0.0
      %v924 = vmax.f32 %v538, 0.0
      %v925 = vmax.f32 %v749, 0.0
      %v926 = vmax.f32 %v751, 0.0
      %v927 = vmax.f32 %v540, 0.0
      %v928 = vmax.f32 %v542, 0.0
      %v929 = vmax.f32 %v753, 0.0
      %v930 = vmax.f32 %v755, 0.0
      %v931 = vmax.f32 %v546, 0.0
      %v932 = vmax.f32 %v548, 0.0
      %v933 = vmax.f32 %v759, 0.0
      %v934 = vmax.f32 %v761, 0.0
      %v935 = vmax.f32 %v550, 0.0
      %v936 = vmax.f32 %v552, 0.0
      %v937 = vmax.f32 %v763, 0.0
      %v938 = vmax.f32 %v765, 0.0
      %v939 = vmax.f32 %v556, 0.0
      %v940 = vmax.f32 %v558, 0.0
      %v941 = vmax.f32 %v769, 0.0
      %v942 = vmax.f32 %v771, 0.0
      %v943 = vmax.f32 %v560, 0.0
      %v944 = vmax.f32 %v562, 0.0
      %v945 = vmax.f32 %v773, 0.0
      %v946 = vmax.f32 %v775, 0.0
      %v947 = vmax.f32 %v566, 0.0
      %v948 = vmax.f32 %v568, 0.0
      %v949 = vmax.f32 %v779, 0.0
      %v950 = vmax.f32 %v781, 0.0
      %v951 = vmax.f32 %v570, 0.0
      %v952 = vmax.f32 %v572, 0.0
      %v953 = vmax.f32 %v783, 0.0
      %v954 = vmax.f32 %v785, 0.0
      %v955 = vmax.f32 %v576, 0.0
      %v956 = vmax.f32 %v578, 0.0
      %v957 = vmax.f32 %v789, 0.0
      %v958 = vmax.f32 %v791, 0.0
      %v959 = vmax.f32 %v580, 0.0
      %v960 = vmax.f32 %v582, 0.0
      %v961 = vmax.f32 %v793, 0.0
      %v962 = vmax.f32 %v795, 0.0
      %v963 = vmax.f32 %v586, 0.0
      %v964 = vmax.f32 %v588, 0.0
      %v965 = vmax.f32 %v799, 0.0
      %v966 = vmax.f32 %v801, 0.0
      %v967 = vmax.f32 %v590, 0.0
      %v968 = vmax.f32 %v592, 0.0
      %v969 = vmax.f32 %v803, 0.0
      %v970 = vmax.f32 %v805, 0.0
      %v971 = vmax.f32 %v596, 0.0
      %v972 = vmax.f32 %v598, 0.0
      %v973 = vmax.f32 %v809, 0.0
      %v974 = vmax.f32 %v811, 0.0
      %v975 = vmax.f32 %v600, 0.0
      %v976 = vmax.f32 %v602, 0.0
      %v977 = vmax.f32 %v813, 0.0
      %v978 = vmax.f32 %v815, 0.0
      %v979 = vmax.f32 %v606, 0.0
      %v980 = vmax.f32 %v608, 0.0
      %v981 = vmax.f32 %v819, 0.0
      %v982 = vmax.f32 %v821, 0.0
      %v983 = vmax.f32 %v610, 0.0
      %v984 = vmax.f32 %v612, 0.0
      %v985 = vmax.f32 %v823, 0.0
      %v986 = vmax.f32 %v825, 0.0
      %v987 = vmax.f32 %v616, 0.0
      %v988 = vmax.f32 %v618, 0.0
      %v989 = vmax.f32 %v829, 0.0
      %v990 = vmax.f32 %v831, 0.0
      %v991 = vmax.f32 %v620, 0.0
      %v992 = vmax.f32 %v622, 0.0
      %v993 = vmax.f32 %v833, 0.0
      %v994 = vmax.f32 %v835, 0.0
      %v995 = vmax.f32 %v626, 0.0
      %v996 = vmax.f32 %v628, 0.0
      %v997 = vmax.f32 %v839, 0.0
      %v998 = vmax.f32 %v841, 0.0
      %v999 = vmax.f32 %v630, 0.0
      %v1000 = vmax.f32 %v632, 0.0
      %v1001 = vmax.f32 %v843, 0.0
      %v1002 = vmax.f32 %v845, 0.0
      %v1003 = vmax.f32 %v636, 0.0
      %v1004 = vmax.f32 %v638, 0.0
      %v1005 = vmax.f32 %v849, 0.0
      %v1006 = vmax.f32 %v851, 0.0
      %v1007 = vmax.f32 %v640, 0.0
      %v1008 = vmax.f32 %v642, 0.0
      %v1009 = vmax.f32 %v853, 0.0
      %v1010 = vmax.f32 %v855, 0.0
      %v1011 = vmax.f32 %v646, 0.0
      %v1012 = vmax.f32 %v648, 0.0
      %v1013 = vmax.f32 %v859, 0.0
      %v1014 = vmax.f32 %v861, 0.0
      %v1015 = vmax.f32 %v650, 0.0
      %v1016 = vmax.f32 %v652, 0.0
      %v1017 = vmax.f32 %v863, 0.0
      %v1018 = vmax.f32 %v865, 0.0
      %v1019 = vmax.f32 %v656, 0.0
      %v1020 = vmax.f32 %v658, 0.0
      %v1021 = vmax.f32 %v869, 0.0
      %v1022 = vmax.f32 %v871, 0.0
      %v1023 = vmax.f32 %v660, 0.0
      %v1024 = vmax.f32 %v662, 0.0
      %v1025 = vmax.f32 %v873, 0.0
      %v1026 = vmax.f32 %v875, 0.0
      %v1027 = vmax.f32 %v666, 0.0
      %v1028 = vmax.f32 %v668, 0.0
      %v1029 = vmax.f32 %v879, 0.0
      %v1030 = vmax.f32 %v881, 0.0
      %v1031 = vmax.f32 %v670, 0.0
      %v1032 = vmax.f32 %v672, 0.0
      %v1033 = vmax.f32 %v883, 0.0
      %v1034 = vmax.f32 %v885, 0.0
      %v1035 = vmax.f32 %v676, 0.0
      %v1036 = vmax.f32 %v678, 0.0
      %v1037 = vmax.f32 %v889, 0.0
      %v1038 = vmax.f32 %v891, 0.0
      %v1039 = vmax.f32 %v680, 0.0
      %v1040 = vmax.f32 %v682, 0.0
      %v1041 = vmax.f32 %v893, 0.0
      %v1042 = vmax.f32 %v895, 0.0
      %v1043 = vmax.f32 %v686, 0.0
      %v1044 = vmax.f32 %v688, 0.0
      %v1045 = vmax.f32 %v899, 0.0
      %v1046 = vmax.f32 %v901, 0.0
      %v1047 = vmax.f32 %v690, 0.0
      %v1048 = vmax.f32 %v692, 0.0
      %v1049 = vmax.f32 %v903, 0.0
      %v1050 = vmax.f32 %v905, 0.0
      %1051 = vst [vmem:[%s210] sm:$0xff] %v907
      %1052 = vst [vmem:[%s210 + $0x8] sm:$0xff] %v908
      %1053 = vst [vmem:[%s210 + $0x10] sm:$0xff] %v909
      %1054 = vst [vmem:[%s210 + $0x18] sm:$0xff] %v910
      %1055 = vst [vmem:[%s210 + $0x20] sm:$0xff] %v911
      %1056 = vst [vmem:[%s210 + $0x28] sm:$0xff] %v912
      %1057 = vst [vmem:[%s210 + $0x30] sm:$0xff] %v913
      %1058 = vst [vmem:[%s210 + $0x38] sm:$0xff] %v914
      %1059 = vst [vmem:[%s210 + $0x40] sm:$0xff] %v915
      %1060 = vst [vmem:[%s210 + $0x48] sm:$0xff] %v916
      %1061 = vst [vmem:[%s210 + $0x50] sm:$0xff] %v917
      %1062 = vst [vmem:[%s210 + $0x58] sm:$0xff] %v918
      %1063 = vst [vmem:[%s210 + $0x60] sm:$0xff] %v919
      %1064 = vst [vmem:[%s210 + $0x68] sm:$0xff] %v920
      %1065 = vst [vmem:[%s210 + $0x70] sm:$0xff] %v921
      %1066 = vst [vmem:[%s210 + $0x78] sm:$0xff] %v922
      %1067 = vst [vmem:[%s210 + $0x80] sm:$0xff] %v923
      %1068 = vst [vmem:[%s210 + $0x88] sm:$0xff] %v924
      %1069 = vst [vmem:[%s210 + $0x90] sm:$0xff] %v925
      %1070 = vst [vmem:[%s210 + $0x98] sm:$0xff] %v926
      %1071 = vst [vmem:[%s210 + $0xa0] sm:$0xff] %v927
      %1072 = vst [vmem:[%s210 + $0xa8] sm:$0xff] %v928
      %1073 = vst [vmem:[%s210 + $0xb0] sm:$0xff] %v929
      %1074 = vst [vmem:[%s210 + $0xb8] sm:$0xff] %v930
      %1075 = vst [vmem:[%s210 + $0xc0] sm:$0xff] %v931
      %1076 = vst [vmem:[%s210 + $0xc8] sm:$0xff] %v932
      %1077 = vst [vmem:[%s210 + $0xd0] sm:$0xff] %v933
      %1078 = vst [vmem:[%s210 + $0xd8] sm:$0xff] %v934
      %1079 = vst [vmem:[%s210 + $0xe0] sm:$0xff] %v935
      %1080 = vst [vmem:[%s210 + $0xe8] sm:$0xff] %v936
      %1081 = vst [vmem:[%s210 + $0xf0] sm:$0xff] %v937
      %1082 = vst [vmem:[%s210 + $0xf8] sm:$0xff] %v938
      %1083 = vst [vmem:[%s210 + $0x100] sm:$0xff] %v939
      %1084 = vst [vmem:[%s210 + $0x108] sm:$0xff] %v940
      %1085 = vst [vmem:[%s210 + $0x110] sm:$0xff] %v941
      %1086 = vst [vmem:[%s210 + $0x118] sm:$0xff] %v942
      %1087 = vst [vmem:[%s210 + $0x120] sm:$0xff] %v943
      %1088 = vst [vmem:[%s210 + $0x128] sm:$0xff] %v944
      %1089 = vst [vmem:[%s210 + $0x130] sm:$0xff] %v945
      %1090 = vst [vmem:[%s210 + $0x138] sm:$0xff] %v946
      %1091 = vst [vmem:[%s210 + $0x140] sm:$0xff] %v947
      %1092 = vst [vmem:[%s210 + $0x148] sm:$0xff] %v948
      %1093 = vst [vmem:[%s210 + $0x150] sm:$0xff] %v949
      %1094 = vst [vmem:[%s210 + $0x158] sm:$0xff] %v950
      %1095 = vst [vmem:[%s210 + $0x160] sm:$0xff] %v951
      %1096 = vst [vmem:[%s210 + $0x168] sm:$0xff] %v952
      %1097 = vst [vmem:[%s210 + $0x170] sm:$0xff] %v953
      %1098 = vst [vmem:[%s210 + $0x178] sm:$0xff] %v954
      %1099 = vst [vmem:[%s210 + $0x180] sm:$0xff] %v955
      %1100 = vst [vmem:[%s210 + $0x188] sm:$0xff] %v956
      %1101 = vst [vmem:[%s210 + $0x190] sm:$0xff] %v957
      %1102 = vst [vmem:[%s210 + $0x198] sm:$0xff] %v958
      %1103 = vst [vmem:[%s210 + $0x1a0] sm:$0xff] %v959
      %1104 = vst [vmem:[%s210 + $0x1a8] sm:$0xff] %v960
      %1105 = vst [vmem:[%s210 + $0x1b0] sm:$0xff] %v961
      %1106 = vst [vmem:[%s210 + $0x1b8] sm:$0xff] %v962
      %1107 = vst [vmem:[%s210 + $0x1c0] sm:$0xff] %v963
      %1108 = vst [vmem:[%s210 + $0x1c8] sm:$0xff] %v964
      %1109 = vst [vmem:[%s210 + $0x1d0] sm:$0xff] %v965
      %1110 = vst [vmem:[%s210 + $0x1d8] sm:$0xff] %v966
      %1111 = vst [vmem:[%s210 + $0x1e0] sm:$0xff] %v967
      %1112 = vst [vmem:[%s210 + $0x1e8] sm:$0xff] %v968
      %1113 = vst [vmem:[%s210 + $0x1f0] sm:$0xff] %v969
      %1114 = vst [vmem:[%s210 + $0x1f8] sm:$0xff] %v970
      %1115 = vst [vmem:[%s210 + $0x200] sm:$0xff] %v971
      %1116 = vst [vmem:[%s210 + $0x208] sm:$0xff] %v972
      %1117 = vst [vmem:[%s210 + $0x210] sm:$0xff] %v973
      %1118 = vst [vmem:[%s210 + $0x218] sm:$0xff] %v974
      %1119 = vst [vmem:[%s210 + $0x220] sm:$0xff] %v975
      %1120 = vst [vmem:[%s210 + $0x228] sm:$0xff] %v976
      %1121 = vst [vmem:[%s210 + $0x230] sm:$0xff] %v977
      %1122 = vst [vmem:[%s210 + $0x238] sm:$0xff] %v978
      %1123 = vst [vmem:[%s210 + $0x240] sm:$0xff] %v979
      %1124 = vst [vmem:[%s210 + $0x248] sm:$0xff] %v980
      %1125 = vst [vmem:[%s210 + $0x250] sm:$0xff] %v981
      %1126 = vst [vmem:[%s210 + $0x258] sm:$0xff] %v982
      %1127 = vst [vmem:[%s210 + $0x260] sm:$0xff] %v983
      %1128 = vst [vmem:[%s210 + $0x268] sm:$0xff] %v984
      %1129 = vst [vmem:[%s210 + $0x270] sm:$0xff] %v985
      %1130 = vst [vmem:[%s210 + $0x278] sm:$0xff] %v986
      %1131 = vst [vmem:[%s210 + $0x280] sm:$0xff] %v987
      %1132 = vst [vmem:[%s210 + $0x288] sm:$0xff] %v988
      %1133 = vst [vmem:[%s210 + $0x290] sm:$0xff] %v989
      %1134 = vst [vmem:[%s210 + $0x298] sm:$0xff] %v990
      %1135 = vst [vmem:[%s210 + $0x2a0] sm:$0xff] %v991
      %1136 = vst [vmem:[%s210 + $0x2a8] sm:$0xff] %v992
      %1137 = vst [vmem:[%s210 + $0x2b0] sm:$0xff] %v993
      %1138 = vst [vmem:[%s210 + $0x2b8] sm:$0xff] %v994
      %1139 = vst [vmem:[%s210 + $0x2c0] sm:$0xff] %v995
      %1140 = vst [vmem:[%s210 + $0x2c8] sm:$0xff] %v996
      %1141 = vst [vmem:[%s210 + $0x2d0] sm:$0xff] %v997
      %1142 = vst [vmem:[%s210 + $0x2d8] sm:$0xff] %v998
      %1143 = vst [vmem:[%s210 + $0x2e0] sm:$0xff] %v999
      %1144 = vst [vmem:[%s210 + $0x2e8] sm:$0xff] %v1000
      %1145 = vst [vmem:[%s210 + $0x2f0] sm:$0xff] %v1001
      %1146 = vst [vmem:[%s210 + $0x2f8] sm:$0xff] %v1002
      %1147 = vst [vmem:[%s210 + $0x300] sm:$0xff] %v1003
      %1148 = vst [vmem:[%s210 + $0x308] sm:$0xff] %v1004
      %1149 = vst [vmem:[%s210 + $0x310] sm:$0xff] %v1005
      %1150 = vst [vmem:[%s210 + $0x318] sm:$0xff] %v1006
      %1151 = vst [vmem:[%s210 + $0x320] sm:$0xff] %v1007
      %1152 = vst [vmem:[%s210 + $0x328] sm:$0xff] %v1008
      %1153 = vst [vmem:[%s210 + $0x330] sm:$0xff] %v1009
      %1154 = vst [vmem:[%s210 + $0x338] sm:$0xff] %v1010
      %1155 = vst [vmem:[%s210 + $0x340] sm:$0xff] %v1011
      %1156 = vst [vmem:[%s210 + $0x348] sm:$0xff] %v1012
      %1157 = vst [vmem:[%s210 + $0x350] sm:$0xff] %v1013
      %1158 = vst [vmem:[%s210 + $0x358] sm:$0xff] %v1014
      %1159 = vst [vmem:[%s210 + $0x360] sm:$0xff] %v1015
      %1160 = vst [vmem:[%s210 + $0x368] sm:$0xff] %v1016
      %1161 = vst [vmem:[%s210 + $0x370] sm:$0xff] %v1017
      %1162 = vst [vmem:[%s210 + $0x378] sm:$0xff] %v1018
      %1163 = vst [vmem:[%s210 + $0x380] sm:$0xff] %v1019
      %1164 = vst [vmem:[%s210 + $0x388] sm:$0xff] %v1020
      %1165 = vst [vmem:[%s210 + $0x390] sm:$0xff] %v1021
      %1166 = vst [vmem:[%s210 + $0x398] sm:$0xff] %v1022
      %1167 = vst [vmem:[%s210 + $0x3a0] sm:$0xff] %v1023
      %1168 = vst [vmem:[%s210 + $0x3a8] sm:$0xff] %v1024
      %1169 = vst [vmem:[%s210 + $0x3b0] sm:$0xff] %v1025
      %1170 = vst [vmem:[%s210 + $0x3b8] sm:$0xff] %v1026
      %1171 = vst [vmem:[%s210 + $0x3c0] sm:$0xff] %v1027
      %1172 = vst [vmem:[%s210 + $0x3c8] sm:$0xff] %v1028
      %1173 = vst [vmem:[%s210 + $0x3d0] sm:$0xff] %v1029
      %1174 = vst [vmem:[%s210 + $0x3d8] sm:$0xff] %v1030
      %1175 = vst [vmem:[%s210 + $0x3e0] sm:$0xff] %v1031
      %1176 = vst [vmem:[%s210 + $0x3e8] sm:$0xff] %v1032
      %1177 = vst [vmem:[%s210 + $0x3f0] sm:$0xff] %v1033
      %1178 = vst [vmem:[%s210 + $0x3f8] sm:$0xff] %v1034
      %1179 = vst [vmem:[%s210 + $0x400] sm:$0xff] %v1035
      %1180 = vst [vmem:[%s210 + $0x408] sm:$0xff] %v1036
      %1181 = vst [vmem:[%s210 + $0x410] sm:$0xff] %v1037
      %1182 = vst [vmem:[%s210 + $0x418] sm:$0xff] %v1038
      %1183 = vst [vmem:[%s210 + $0x420] sm:$0xff] %v1039
      %1184 = vst [vmem:[%s210 + $0x428] sm:$0xff] %v1040
      %1185 = vst [vmem:[%s210 + $0x430] sm:$0xff] %v1041
      %1186 = vst [vmem:[%s210 + $0x438] sm:$0xff] %v1042
      %1187 = vst [vmem:[%s210 + $0x440] sm:$0xff] %v1043
      %1188 = vst [vmem:[%s210 + $0x448] sm:$0xff] %v1044
      %1189 = vst [vmem:[%s210 + $0x450] sm:$0xff] %v1045
      %1190 = vst [vmem:[%s210 + $0x458] sm:$0xff] %v1046
      %1191 = vst [vmem:[%s210 + $0x460] sm:$0xff] %v1047
      %1192 = vst [vmem:[%s210 + $0x468] sm:$0xff] %v1048
      %1193 = vst [vmem:[%s210 + $0x470] sm:$0xff] %v1049
      %1194 = vst [vmem:[%s210 + $0x478] sm:$0xff] %v1050
      %s1195 = smul.u32 36, %s19
      %p1196 = scmp.lt.s32.totalorder %s18, 1
      %s1197 = scalar_select %p1196, %s18, 1
      %p1198 = scmp.lt.s32.totalorder %s1195, 71
      %s1199 = scalar_select %p1198, %s1195, 71
      %s1200 = smul.addr %s1199, 4
      %s1201 = smul.addr %s1197, 288
      %s1202 = sadd.s32 %s1200, %s1201
      %s1203 = smul.addr %s1202, 8
      %s1204 = scalar_lea.vmem %s3, %s1203
      // Predicated region
      $region33: #{stage_1_forward.18} parent=31 // pred_check
        %p1205 = pneg %p116
      $region34: #{stage_1_forward.18} parent=31 // pred_check_branch
        %1207 = sbr.rel (%p1205) target = $region36
      $region35: #{stage_1_forward.18} parent=31 // pred_region
        %s1208 = smul.u32 36, %s19
      $region36: #{stage_1_forward.18} parent=31 // pred_fallthru
        _
    $region32: #{stage_1_forward.18} parent=5 // pred_fallthru
      _
    %p1209 = scmp.le.s32.totalorder 2, %s9
    // Predicated region
    $region37: #{stage_1_forward.18} parent=5 // pred_check
      %p1210 = pneg %p1209
    $region38: #{stage_1_forward.18} parent=5 // pred_check_branch
      %1212 = sbr.rel (%p1210) target = $region40
    $region39: #{stage_1_forward.18} parent=5 // pred_region
      %s1213 = ssub.s32 %s9, 2
      // Predicated region
      $region41: #{stage_1_forward.18} parent=39 // pred_check
        %p1214 = pneg %p122
      $region42: #{stage_1_forward.18} parent=39 // pred_check_branch
        %1216 = sbr.rel (%p1214) target = $region44
      $region43: #{stage_1_forward.18} parent=39 // pred_region
        %s1217 = smul.u32 36, %s21
        %p1218 = scmp.lt.s32.totalorder %s20, 1
        %s1219 = scalar_select %p1218, %s20, 1
        %p1220 = scmp.lt.s32.totalorder %s1217, 71
        %s1221 = scalar_select %p1220, %s1217, 71
        %s1222 = smul.addr %s1221, 4
        %s1223 = smul.addr %s1219, 288
        %s1224 = sadd.s32 %s1222, %s1223
        %s1225 = smul.addr %s1224, 8
        %s1226 = scalar_lea.vmem %s3, %s1225
      $region44: #{stage_1_forward.18} parent=39 // pred_fallthru
        _
    $region40: #{stage_1_forward.18} parent=5 // pred_fallthru
      _
  $region6: #{stage_1_forward.18} parent=0 // loop_footer
    %s13 = sadd.s32 1, %s9
  $region7: #{stage_1_forward.18} parent=0 // loop_footer_branch
    %8 = sbr.rel target = $region3
  $region8: #{stage_1_forward.18} parent=0 // loop_exit
    _

// kernel: stage_1_forward.19
$region0: #{stage_1_forward.19}
  #allocation0 [shape = 'u32[]', space=smem, size = 0x4, offset = 0x4, fixed_abs, tag = 'smem constant byte address 0x4 - core index']
  #allocation1 [shape = 'u32[144,128]{1,0:T(1,128)}', space=vmem, size = 0x12000, scoped, tag = 'internal scratch']
  %s0 = inlined_call_operand.vmem [shape: f32[2,576,512], index: 0, kind: input, shape index: {}]
  %s1 = inlined_call_operand.vmem [shape: bf16[512,64], index: 1, kind: input, shape index: {}]
  %s2 = inlined_call_operand.vmem [shape: f32[1,64], index: 2, kind: input, shape index: {}]
  %s3 = inlined_call_operand.vmem [shape: f32[2,576,64], index: 3, kind: output, shape index: {}]
  %s4 = sld [smem:[#allocation0]]
  $region45: #{stage_1_forward.19} parent=0
    _
  %s6 = ssub.s32 1, %s4
  %s7 = scalar_select 0, %s6, %s4
  loop: start=0, step=1, limit=6
  $region2: #{stage_1_forward.19} parent=0 // loop_pre_header
    _
  $region3: #{stage_1_forward.19} parent=0 // loop_header
    %s9 = sphi 0, %s13
    %p10 = scmp.ge.s32.totalorder %s9, 6
    %s16 = sphi 0, %s28
    %s17 = sphi 0, %s24
    %s18 = sphi 0, %s16
    %s19 = sphi 0, %s17
    %s20 = sphi 0, %s18
    %s21 = sphi 0, %s19
    %s33 = sphi 0, %s35
    %s36 = sphi 0, %s33
    %s37 = sphi 0, %s36
    %s53 = sphi 0, %s37
    %s57 = sphi 0, %s57
    %s59 = sphi 0, %s57
    %s60 = sphi 0, %s59
    %s74 = sphi 0, %s60
    %s78 = sphi 0, %s78
    %s80 = sphi 0, %s78
    %s81 = sphi 0, %s80
    %s95 = sphi 0, %s81
    %s103 = sphi 0, %s105
    %s106 = sphi 0, %s103
    %s107 = sphi 0, %s106
    %s123 = sphi 0, %s107
  $region4: #{stage_1_forward.19} parent=0 // loop_header_branch
    %12 = sbr.rel (%p10) target = $region8
  $region5: #{stage_1_forward.19} parent=0 // loop_body
    %s14 = ssub.s32 %s9, 1
    %s15 = ssub.s32 %s9, 2
    %s22 = sadd.s32 1, %s17
    %p23 = scmp.ge.s32.totalorder %s22, 2
    %s24 = scalar_select %p23, 0, %s22
    %s25 = sadd.s32 1, %s16
    %s26 = scalar_select %p23, %s25, %s16
    %p27 = scmp.ge.s32.totalorder %s26, 2
    %s28 = scalar_select %p27, 0, %s26
    %s29 = ssub.s32 %s16, %s28
    %s30 = ssub.s32 %s17, %s24
    %s31 = sor.u32 %s29, %s30
    %p32 = scmp.eq.s32.totalorder %s31, 0
    %s34 = sadd.s32 %s33, 1
    %s35 = scalar_select %p32, %s33, %s34
    %p38 = pneg %p32
    %p39 = scmp.eq.s32.totalorder %s9, 3
    %p40 = por %p38, %p39
    %p41 = scmp.ne.s32.totalorder %s33, %s36
    %p42 = scmp.eq.s32.totalorder %s9, 0
    %p43 = por %p41, %p42
    %p44 = scmp.ne.s32.totalorder %s33, %s36
    %p45 = scmp.eq.s32.totalorder %s14, 3
    %p46 = por %p44, %p45
    %p47 = scmp.ne.s32.totalorder %s36, %s37
    %p48 = scmp.eq.s32.totalorder %s14, 0
    %p49 = por %p47, %p48
    %p50 = scmp.ne.s32.totalorder %s36, %s37
    %p51 = scmp.eq.s32.totalorder %s15, 3
    %p52 = por %p50, %p51
    %p54 = scmp.ne.s32.totalorder %s37, %s53
    %p55 = scmp.eq.s32.totalorder %s15, 0
    %p56 = por %p54, %p55
    %s58 = sadd.s32 %s57, 1
    %p61 = scmp.eq.s32.totalorder %s9, 3
    %p62 = scmp.ne.s32.totalorder %s57, %s59
    %p63 = scmp.eq.s32.totalorder %s9, 0
    %p64 = por %p62, %p63
    %p65 = scmp.ne.s32.totalorder %s57, %s59
    %p66 = scmp.eq.s32.totalorder %s14, 3
    %p67 = por %p65, %p66
    %p68 = scmp.ne.s32.totalorder %s59, %s60
    %p69 = scmp.eq.s32.totalorder %s14, 0
    %p70 = por %p68, %p69
    %p71 = scmp.ne.s32.totalorder %s59, %s60
    %p72 = scmp.eq.s32.totalorder %s15, 3
    %p73 = por %p71, %p72
    %p75 = scmp.ne.s32.totalorder %s60, %s74
    %p76 = scmp.eq.s32.totalorder %s15, 0
    %p77 = por %p75, %p76
    %s79 = sadd.s32 %s78, 1
    %p82 = scmp.eq.s32.totalorder %s9, 3
    %p83 = scmp.ne.s32.totalorder %s78, %s80
    %p84 = scmp.eq.s32.totalorder %s9, 0
    %p85 = por %p83, %p84
    %p86 = scmp.ne.s32.totalorder %s78, %s80
    %p87 = scmp.eq.s32.totalorder %s14, 3
    %p88 = por %p86, %p87
    %p89 = scmp.ne.s32.totalorder %s80, %s81
    %p90 = scmp.eq.s32.totalorder %s14, 0
    %p91 = por %p89, %p90
    %p92 = scmp.ne.s32.totalorder %s80, %s81
    %p93 = scmp.eq.s32.totalorder %s15, 3
    %p94 = por %p92, %p93
    %p96 = scmp.ne.s32.totalorder %s81, %s95
    %p97 = scmp.eq.s32.totalorder %s15, 0
    %p98 = por %p96, %p97
    %s99 = ssub.s32 %s16, %s28
    %s100 = ssub.s32 %s17, %s24
    %s101 = sor.u32 %s99, %s100
    %p102 = scmp.eq.s32.totalorder %s101, 0
    %s104 = sadd.s32 %s103, 1
    %s105 = scalar_select %p102, %s103, %s104
    %p108 = pneg %p102
    %p109 = scmp.eq.s32.totalorder %s9, 3
    %p110 = por %p108, %p109
    %p111 = scmp.ne.s32.totalorder %s103, %s106
    %p112 = scmp.eq.s32.totalorder %s9, 0
    %p113 = por %p111, %p112
    %p114 = scmp.ne.s32.totalorder %s103, %s106
    %p115 = scmp.eq.s32.totalorder %s14, 3
    %p116 = por %p114, %p115
    %p117 = scmp.ne.s32.totalorder %s106, %s107
    %p118 = scmp.eq.s32.totalorder %s14, 0
    %p119 = por %p117, %p118
    %p120 = scmp.ne.s32.totalorder %s106, %s107
    %p121 = scmp.eq.s32.totalorder %s15, 3
    %p122 = por %p120, %p121
    %p124 = scmp.ne.s32.totalorder %s107, %s123
    %p125 = scmp.eq.s32.totalorder %s15, 0
    %p126 = por %p124, %p125
    %p127 = scmp.le.s32.totalorder 1, %s9
    %p128 = scmp.lt.s32.totalorder %s9, 5
    %p129 = pnand %p127, %p128
    %p130 = pneg %p129
    // Predicated region
    $region9: #{stage_1_forward.19} parent=5 // pred_check
      _
    $region10: #{stage_1_forward.19} parent=5 // pred_check_branch
      %132 = sbr.rel (%p129) target = $region12
    $region11: #{stage_1_forward.19} parent=5 // pred_region
      %s133 = ssub.s32 %s9, 1
      // Predicated region
      $region13: #{stage_1_forward.19} parent=11 // pred_check
        %p134 = pneg %p70
      $region14: #{stage_1_forward.19} parent=11 // pred_check_branch
        %136 = sbr.rel (%p134) target = $region16
      $region15: #{stage_1_forward.19} parent=11 // pred_region
        _
      $region16: #{stage_1_forward.19} parent=11 // pred_fallthru
        _
      // Predicated region
      $region17: #{stage_1_forward.19} parent=11 // pred_check
        %p137 = pneg %p91
      $region18: #{stage_1_forward.19} parent=11 // pred_check_branch
        %139 = sbr.rel (%p137) target = $region20
      $region19: #{stage_1_forward.19} parent=11 // pred_region
        _
      $region20: #{stage_1_forward.19} parent=11 // pred_fallthru
        _
    $region12: #{stage_1_forward.19} parent=5 // pred_fallthru
      _
    %p140 = scmp.lt.s32.totalorder %s9, 4
    // Predicated region
    $region21: #{stage_1_forward.19} parent=5 // pred_check
      %p141 = pneg %p140
    $region22: #{stage_1_forward.19} parent=5 // pred_check_branch
      %143 = sbr.rel (%p141) target = $region24
    $region23: #{stage_1_forward.19} parent=5 // pred_region
      // Predicated region
      $region25: #{stage_1_forward.19} parent=23 // pred_check
        %p144 = pneg %p43
      $region26: #{stage_1_forward.19} parent=23 // pred_check_branch
        %146 = sbr.rel (%p144) target = $region28
      $region27: #{stage_1_forward.19} parent=23 // pred_region
        %s147 = smul.u32 36, %s17
        %p148 = scmp.lt.s32.totalorder %s16, 1
        %s149 = scalar_select %p148, %s16, 1
        %p150 = scmp.lt.s32.totalorder %s147, 71
        %s151 = scalar_select %p150, %s147, 71
        %s152 = smul.addr %s151, 4
        %s153 = smul.addr %s149, 288
        %s154 = sadd.s32 %s152, %s153
        %s155 = smul.addr %s154, 8
        %s156 = scalar_lea.vmem %s0, %s155
        %s157 = smul.u32 36, %s17
      $region28: #{stage_1_forward.19} parent=23 // pred_fallthru
        _
    $region24: #{stage_1_forward.19} parent=5 // pred_fallthru
      _
    %p158 = scmp.le.s32.totalorder 1, %s9
    %p159 = scmp.lt.s32.totalorder %s9, 5
    %p160 = pnand %p158, %p159
    %p161 = pneg %p160
    // Predicated region
    $region29: #{stage_1_forward.19} parent=5 // pred_check
      _
    $region30: #{stage_1_forward.19} parent=5 // pred_check_branch
      %163 = sbr.rel (%p160) target = $region32
    $region31: #{stage_1_forward.19} parent=5 // pred_region
      %s164 = ssub.s32 %s9, 1
      %s165 = smul.u32 36, %s19
      %p166 = scmp.lt.s32.totalorder %s18, 1
      %s167 = scalar_select %p166, %s18, 1
      %p168 = scmp.lt.s32.totalorder %s165, 71
      %s169 = scalar_select %p168, %s165, 71
      %s170 = smul.addr %s169, 4
      %s171 = smul.addr %s167, 288
      %s172 = sadd.s32 %s170, %s171
      %s173 = smul.addr %s172, 8
      %s174 = scalar_lea.vmem %s0, %s173
      %p175 = pneg %p49
      %p176 = pneg %p46
      %p177 = pneg %p70
      %p178 = pneg %p67
      %p179 = pneg %p91
      %p180 = pneg %p88
      %p181 = pneg %p119
      %p182 = pneg %p116
      %s183 = smul.u32 36, %s19
      %p184 = scmp.lt.s32.totalorder %s18, 1
      %s185 = scalar_select %p184, %s18, 1
      %p186 = scmp.lt.s32.totalorder %s183, 71
      %s187 = scalar_select %p186, %s183, 71
      %s188 = smul.addr %s185, 72
      %s189 = sadd.s32 %s187, %s188
      %s190 = smul.addr %s189, 8
      %s191 = scalar_lea.vmem %s3, %s190
      %s192 = smul.u32 36, %s19
      %p193 = scmp.lt.s32.totalorder %s18, 1
      %s194 = scalar_select %p193, %s18, 1
      %p195 = scmp.lt.s32.totalorder %s192, 71
      %s196 = scalar_select %p195, %s192, 71
      %s197 = smul.addr %s196, 4
      %s198 = smul.addr %s194, 288
      %s199 = sadd.s32 %s197, %s198
      %s200 = smul.addr %s199, 8
      %s201 = scalar_lea.vmem %s0, %s200
      %s202 = smul.u32 36, %s19
      %s203 = smul.u32 36, %s19
      %p204 = scmp.lt.s32.totalorder %s18, 1
      %s205 = scalar_select %p204, %s18, 1
      %p206 = scmp.lt.s32.totalorder %s203, 71
      %s207 = scalar_select %p206, %s203, 71
      %s208 = smul.addr %s205, 72
      %s209 = sadd.s32 %s207, %s208
      %s210 = smul.addr %s209, 8
      %s211 = scalar_lea.vmem %s3, %s210
      %s212 = smul.u32 36, %s19
      %v214 = vld [vmem:[%s201] sm:$0xff]
      %v215 = vld [vmem:[%s201 + $0x8] sm:$0xff]
      %v216 = vld [vmem:[%s201 + $0x10] sm:$0xff]
      %v217 = vld [vmem:[%s201 + $0x18] sm:$0xff]
      %v218 = vld [vmem:[%s201 + $0x20] sm:$0xff]
      %v219 = vld [vmem:[%s201 + $0x28] sm:$0xff]
      %v220 = vld [vmem:[%s201 + $0x30] sm:$0xff]
      %v221 = vld [vmem:[%s201 + $0x38] sm:$0xff]
      %v222 = vld [vmem:[%s201 + $0x40] sm:$0xff]
      %v223 = vld [vmem:[%s201 + $0x48] sm:$0xff]
      %v224 = vld [vmem:[%s201 + $0x50] sm:$0xff]
      %v225 = vld [vmem:[%s201 + $0x58] sm:$0xff]
      %v226 = vld [vmem:[%s201 + $0x60] sm:$0xff]
      %v227 = vld [vmem:[%s201 + $0x68] sm:$0xff]
      %v228 = vld [vmem:[%s201 + $0x70] sm:$0xff]
      %v229 = vld [vmem:[%s201 + $0x78] sm:$0xff]
      %v230 = vld [vmem:[%s201 + $0x80] sm:$0xff]
      %v231 = vld [vmem:[%s201 + $0x88] sm:$0xff]
      %v232 = vld [vmem:[%s201 + $0x90] sm:$0xff]
      %v233 = vld [vmem:[%s201 + $0x98] sm:$0xff]
      %v234 = vld [vmem:[%s201 + $0xa0] sm:$0xff]
      %v235 = vld [vmem:[%s201 + $0xa8] sm:$0xff]
      %v236 = vld [vmem:[%s201 + $0xb0] sm:$0xff]
      %v237 = vld [vmem:[%s201 + $0xb8] sm:$0xff]
      %v238 = vld [vmem:[%s201 + $0xc0] sm:$0xff]
      %v239 = vld [vmem:[%s201 + $0xc8] sm:$0xff]
      %v240 = vld [vmem:[%s201 + $0xd0] sm:$0xff]
      %v241 = vld [vmem:[%s201 + $0xd8] sm:$0xff]
      %v242 = vld [vmem:[%s201 + $0xe0] sm:$0xff]
      %v243 = vld [vmem:[%s201 + $0xe8] sm:$0xff]
      %v244 = vld [vmem:[%s201 + $0xf0] sm:$0xff]
      %v245 = vld [vmem:[%s201 + $0xf8] sm:$0xff]
      %v246 = vld [vmem:[%s201 + $0x100] sm:$0xff]
      %v247 = vld [vmem:[%s201 + $0x108] sm:$0xff]
      %v248 = vld [vmem:[%s201 + $0x110] sm:$0xff]
      %v249 = vld [vmem:[%s201 + $0x118] sm:$0xff]
      %v250 = vld [vmem:[%s201 + $0x120] sm:$0xff]
      %v251 = vld [vmem:[%s201 + $0x128] sm:$0xff]
      %v252 = vld [vmem:[%s201 + $0x130] sm:$0xff]
      %v253 = vld [vmem:[%s201 + $0x138] sm:$0xff]
      %v254 = vld [vmem:[%s201 + $0x140] sm:$0xff]
      %v255 = vld [vmem:[%s201 + $0x148] sm:$0xff]
      %v256 = vld [vmem:[%s201 + $0x150] sm:$0xff]
      %v257 = vld [vmem:[%s201 + $0x158] sm:$0xff]
      %v258 = vld [vmem:[%s201 + $0x160] sm:$0xff]
      %v259 = vld [vmem:[%s201 + $0x168] sm:$0xff]
      %v260 = vld [vmem:[%s201 + $0x170] sm:$0xff]
      %v261 = vld [vmem:[%s201 + $0x178] sm:$0xff]
      %v262 = vld [vmem:[%s201 + $0x180] sm:$0xff]
      %v263 = vld [vmem:[%s201 + $0x188] sm:$0xff]
      %v264 = vld [vmem:[%s201 + $0x190] sm:$0xff]
      %v265 = vld [vmem:[%s201 + $0x198] sm:$0xff]
      %v266 = vld [vmem:[%s201 + $0x1a0] sm:$0xff]
      %v267 = vld [vmem:[%s201 + $0x1a8] sm:$0xff]
      %v268 = vld [vmem:[%s201 + $0x1b0] sm:$0xff]
      %v269 = vld [vmem:[%s201 + $0x1b8] sm:$0xff]
      %v270 = vld [vmem:[%s201 + $0x1c0] sm:$0xff]
      %v271 = vld [vmem:[%s201 + $0x1c8] sm:$0xff]
      %v272 = vld [vmem:[%s201 + $0x1d0] sm:$0xff]
      %v273 = vld [vmem:[%s201 + $0x1d8] sm:$0xff]
      %v274 = vld [vmem:[%s201 + $0x1e0] sm:$0xff]
      %v275 = vld [vmem:[%s201 + $0x1e8] sm:$0xff]
      %v276 = vld [vmem:[%s201 + $0x1f0] sm:$0xff]
      %v277 = vld [vmem:[%s201 + $0x1f8] sm:$0xff]
      %v278 = vld [vmem:[%s201 + $0x200] sm:$0xff]
      %v279 = vld [vmem:[%s201 + $0x208] sm:$0xff]
      %v280 = vld [vmem:[%s201 + $0x210] sm:$0xff]
      %v281 = vld [vmem:[%s201 + $0x218] sm:$0xff]
      %v282 = vld [vmem:[%s201 + $0x220] sm:$0xff]
      %v283 = vld [vmem:[%s201 + $0x228] sm:$0xff]
      %v284 = vld [vmem:[%s201 + $0x230] sm:$0xff]
      %v285 = vld [vmem:[%s201 + $0x238] sm:$0xff]
      %v286 = vld [vmem:[%s201 + $0x240] sm:$0xff]
      %v287 = vld [vmem:[%s201 + $0x248] sm:$0xff]
      %v288 = vld [vmem:[%s201 + $0x250] sm:$0xff]
      %v289 = vld [vmem:[%s201 + $0x258] sm:$0xff]
      %v290 = vld [vmem:[%s201 + $0x260] sm:$0xff]
      %v291 = vld [vmem:[%s201 + $0x268] sm:$0xff]
      %v292 = vld [vmem:[%s201 + $0x270] sm:$0xff]
      %v293 = vld [vmem:[%s201 + $0x278] sm:$0xff]
      %v294 = vld [vmem:[%s201 + $0x280] sm:$0xff]
      %v295 = vld [vmem:[%s201 + $0x288] sm:$0xff]
      %v296 = vld [vmem:[%s201 + $0x290] sm:$0xff]
      %v297 = vld [vmem:[%s201 + $0x298] sm:$0xff]
      %v298 = vld [vmem:[%s201 + $0x2a0] sm:$0xff]
      %v299 = vld [vmem:[%s201 + $0x2a8] sm:$0xff]
      %v300 = vld [vmem:[%s201 + $0x2b0] sm:$0xff]
      %v301 = vld [vmem:[%s201 + $0x2b8] sm:$0xff]
      %v302 = vld [vmem:[%s201 + $0x2c0] sm:$0xff]
      %v303 = vld [vmem:[%s201 + $0x2c8] sm:$0xff]
      %v304 = vld [vmem:[%s201 + $0x2d0] sm:$0xff]
      %v305 = vld [vmem:[%s201 + $0x2d8] sm:$0xff]
      %v306 = vld [vmem:[%s201 + $0x2e0] sm:$0xff]
      %v307 = vld [vmem:[%s201 + $0x2e8] sm:$0xff]
      %v308 = vld [vmem:[%s201 + $0x2f0] sm:$0xff]
      %v309 = vld [vmem:[%s201 + $0x2f8] sm:$0xff]
      %v310 = vld [vmem:[%s201 + $0x300] sm:$0xff]
      %v311 = vld [vmem:[%s201 + $0x308] sm:$0xff]
      %v312 = vld [vmem:[%s201 + $0x310] sm:$0xff]
      %v313 = vld [vmem:[%s201 + $0x318] sm:$0xff]
      %v314 = vld [vmem:[%s201 + $0x320] sm:$0xff]
      %v315 = vld [vmem:[%s201 + $0x328] sm:$0xff]
      %v316 = vld [vmem:[%s201 + $0x330] sm:$0xff]
      %v317 = vld [vmem:[%s201 + $0x338] sm:$0xff]
      %v318 = vld [vmem:[%s201 + $0x340] sm:$0xff]
      %v319 = vld [vmem:[%s201 + $0x348] sm:$0xff]
      %v320 = vld [vmem:[%s201 + $0x350] sm:$0xff]
      %v321 = vld [vmem:[%s201 + $0x358] sm:$0xff]
      %v322 = vld [vmem:[%s201 + $0x360] sm:$0xff]
      %v323 = vld [vmem:[%s201 + $0x368] sm:$0xff]
      %v324 = vld [vmem:[%s201 + $0x370] sm:$0xff]
      %v325 = vld [vmem:[%s201 + $0x378] sm:$0xff]
      %v326 = vld [vmem:[%s201 + $0x380] sm:$0xff]
      %v327 = vld [vmem:[%s201 + $0x388] sm:$0xff]
      %v328 = vld [vmem:[%s201 + $0x390] sm:$0xff]
      %v329 = vld [vmem:[%s201 + $0x398] sm:$0xff]
      %v330 = vld [vmem:[%s201 + $0x3a0] sm:$0xff]
      %v331 = vld [vmem:[%s201 + $0x3a8] sm:$0xff]
      %v332 = vld [vmem:[%s201 + $0x3b0] sm:$0xff]
      %v333 = vld [vmem:[%s201 + $0x3b8] sm:$0xff]
      %v334 = vld [vmem:[%s201 + $0x3c0] sm:$0xff]
      %v335 = vld [vmem:[%s201 + $0x3c8] sm:$0xff]
      %v336 = vld [vmem:[%s201 + $0x3d0] sm:$0xff]
      %v337 = vld [vmem:[%s201 + $0x3d8] sm:$0xff]
      %v338 = vld [vmem:[%s201 + $0x3e0] sm:$0xff]
      %v339 = vld [vmem:[%s201 + $0x3e8] sm:$0xff]
      %v340 = vld [vmem:[%s201 + $0x3f0] sm:$0xff]
      %v341 = vld [vmem:[%s201 + $0x3f8] sm:$0xff]
      %v342 = vld [vmem:[%s201 + $0x400] sm:$0xff]
      %v343 = vld [vmem:[%s201 + $0x408] sm:$0xff]
      %v344 = vld [vmem:[%s201 + $0x410] sm:$0xff]
      %v345 = vld [vmem:[%s201 + $0x418] sm:$0xff]
      %v346 = vld [vmem:[%s201 + $0x420] sm:$0xff]
      %v347 = vld [vmem:[%s201 + $0x428] sm:$0xff]
      %v348 = vld [vmem:[%s201 + $0x430] sm:$0xff]
      %v349 = vld [vmem:[%s201 + $0x438] sm:$0xff]
      %v350 = vld [vmem:[%s201 + $0x440] sm:$0xff]
      %v351 = vld [vmem:[%s201 + $0x448] sm:$0xff]
      %v352 = vld [vmem:[%s201 + $0x450] sm:$0xff]
      %v353 = vld [vmem:[%s201 + $0x458] sm:$0xff]
      %v354 = vld [vmem:[%s201 + $0x460] sm:$0xff]
      %v355 = vld [vmem:[%s201 + $0x468] sm:$0xff]
      %v356 = vld [vmem:[%s201 + $0x470] sm:$0xff]
      %v357 = vld [vmem:[%s201 + $0x478] sm:$0xff]
      %v358 = vpack.c.bf16 %v218, %v214
      %v359 = vpack.c.bf16 %v219, %v215
      %v360 = vpack.c.bf16 %v220, %v216
      %v361 = vpack.c.bf16 %v221, %v217
      %v362 = vpack.c.bf16 %v226, %v222
      %v363 = vpack.c.bf16 %v227, %v223
      %v364 = vpack.c.bf16 %v228, %v224
      %v365 = vpack.c.bf16 %v229, %v225
      %v366 = vpack.c.bf16 %v234, %v230
      %v367 = vpack.c.bf16 %v235, %v231
      %v368 = vpack.c.bf16 %v236, %v232
      %v369 = vpack.c.bf16 %v237, %v233
      %v370 = vpack.c.bf16 %v242, %v238
      %v371 = vpack.c.bf16 %v243, %v239
      %v372 = vpack.c.bf16 %v244, %v240
      %v373 = vpack.c.bf16 %v245, %v241
      %v374 = vpack.c.bf16 %v250, %v246
      %v375 = vpack.c.bf16 %v251, %v247
      %v376 = vpack.c.bf16 %v252, %v248
      %v377 = vpack.c.bf16 %v253, %v249
      %v378 = vpack.c.bf16 %v258, %v254
      %v379 = vpack.c.bf16 %v259, %v255
      %v380 = vpack.c.bf16 %v260, %v256
      %v381 = vpack.c.bf16 %v261, %v257
      %v382 = vpack.c.bf16 %v266, %v262
      %v383 = vpack.c.bf16 %v267, %v263
      %v384 = vpack.c.bf16 %v268, %v264
      %v385 = vpack.c.bf16 %v269, %v265
      %v386 = vpack.c.bf16 %v274, %v270
      %v387 = vpack.c.bf16 %v275, %v271
      %v388 = vpack.c.bf16 %v276, %v272
      %v389 = vpack.c.bf16 %v277, %v273
      %v390 = vpack.c.bf16 %v282, %v278
      %v391 = vpack.c.bf16 %v283, %v279
      %v392 = vpack.c.bf16 %v284, %v280
      %v393 = vpack.c.bf16 %v285, %v281
      %v394 = vpack.c.bf16 %v290, %v286
      %v395 = vpack.c.bf16 %v291, %v287
      %v396 = vpack.c.bf16 %v292, %v288
      %v397 = vpack.c.bf16 %v293, %v289
      %v398 = vpack.c.bf16 %v298, %v294
      %v399 = vpack.c.bf16 %v299, %v295
      %v400 = vpack.c.bf16 %v300, %v296
      %v401 = vpack.c.bf16 %v301, %v297
      %v402 = vpack.c.bf16 %v306, %v302
      %v403 = vpack.c.bf16 %v307, %v303
      %v404 = vpack.c.bf16 %v308, %v304
      %v405 = vpack.c.bf16 %v309, %v305
      %v406 = vpack.c.bf16 %v314, %v310
      %v407 = vpack.c.bf16 %v315, %v311
      %v408 = vpack.c.bf16 %v316, %v312
      %v409 = vpack.c.bf16 %v317, %v313
      %v410 = vpack.c.bf16 %v322, %v318
      %v411 = vpack.c.bf16 %v323, %v319
      %v412 = vpack.c.bf16 %v324, %v320
      %v413 = vpack.c.bf16 %v325, %v321
      %v414 = vpack.c.bf16 %v330, %v326
      %v415 = vpack.c.bf16 %v331, %v327
      %v416 = vpack.c.bf16 %v332, %v328
      %v417 = vpack.c.bf16 %v333, %v329
      %v418 = vpack.c.bf16 %v338, %v334
      %v419 = vpack.c.bf16 %v339, %v335
      %v420 = vpack.c.bf16 %v340, %v336
      %v421 = vpack.c.bf16 %v341, %v337
      %v422 = vpack.c.bf16 %v346, %v342
      %v423 = vpack.c.bf16 %v347, %v343
      %v424 = vpack.c.bf16 %v348, %v344
      %v425 = vpack.c.bf16 %v349, %v345
      %v426 = vpack.c.bf16 %v354, %v350
      %v427 = vpack.c.bf16 %v355, %v351
      %v428 = vpack.c.bf16 %v356, %v352
      %v429 = vpack.c.bf16 %v357, %v353
      %v430 = vld [vmem:[%s1] sm:$0xf]
      %v431 = vld [vmem:[%s1 + $0x4] sm:$0xf]
      %v432 = vld [vmem:[%s1 + $0x8] sm:$0xf]
      %v433 = vld [vmem:[%s1 + $0xc] sm:$0xf]
      %v434 = vld [vmem:[%s1 + $0x10] sm:$0xf]
      %v435 = vld [vmem:[%s1 + $0x14] sm:$0xf]
      %v436 = vld [vmem:[%s1 + $0x18] sm:$0xf]
      %v437 = vld [vmem:[%s1 + $0x1c] sm:$0xf]
      %v438 = vld [vmem:[%s1 + $0x20] sm:$0xf]
      %v439 = vld [vmem:[%s1 + $0x24] sm:$0xf]
      %v440 = vld [vmem:[%s1 + $0x28] sm:$0xf]
      %v441 = vld [vmem:[%s1 + $0x2c] sm:$0xf]
      %v442 = vld [vmem:[%s1 + $0x30] sm:$0xf]
      %v443 = vld [vmem:[%s1 + $0x34] sm:$0xf]
      %v444 = vld [vmem:[%s1 + $0x38] sm:$0xf]
      %v445 = vld [vmem:[%s1 + $0x3c] sm:$0xf]
      %v446 = vld [vmem:[%s1 + $0x40] sm:$0xf]
      %v447 = vld [vmem:[%s1 + $0x44] sm:$0xf]
      %v448 = vld [vmem:[%s1 + $0x48] sm:$0xf]
      %v449 = vld [vmem:[%s1 + $0x4c] sm:$0xf]
      %v450 = vld [vmem:[%s1 + $0x50] sm:$0xf]
      %v451 = vld [vmem:[%s1 + $0x54] sm:$0xf]
      %v452 = vld [vmem:[%s1 + $0x58] sm:$0xf]
      %v453 = vld [vmem:[%s1 + $0x5c] sm:$0xf]
      %v454 = vld [vmem:[%s1 + $0x60] sm:$0xf]
      %v455 = vld [vmem:[%s1 + $0x64] sm:$0xf]
      %v456 = vld [vmem:[%s1 + $0x68] sm:$0xf]
      %v457 = vld [vmem:[%s1 + $0x6c] sm:$0xf]
      %v458 = vld [vmem:[%s1 + $0x70] sm:$0xf]
      %v459 = vld [vmem:[%s1 + $0x74] sm:$0xf]
      %v460 = vld [vmem:[%s1 + $0x78] sm:$0xf]
      %v461 = vld [vmem:[%s1 + $0x7c] sm:$0xf]
      %v462 = vld [vmem:[%s1 + $0x80] sm:$0xf]
      %v463 = vld [vmem:[%s1 + $0x84] sm:$0xf]
      %v464 = vld [vmem:[%s1 + $0x88] sm:$0xf]
      %v465 = vld [vmem:[%s1 + $0x8c] sm:$0xf]
      %v466 = vld [vmem:[%s1 + $0x90] sm:$0xf]
      %v467 = vld [vmem:[%s1 + $0x94] sm:$0xf]
      %v468 = vld [vmem:[%s1 + $0x98] sm:$0xf]
      %v469 = vld [vmem:[%s1 + $0x9c] sm:$0xf]
      %v470 = vld [vmem:[%s1 + $0xa0] sm:$0xf]
      %v471 = vld [vmem:[%s1 + $0xa4] sm:$0xf]
      %v472 = vld [vmem:[%s1 + $0xa8] sm:$0xf]
      %v473 = vld [vmem:[%s1 + $0xac] sm:$0xf]
      %v474 = vld [vmem:[%s1 + $0xb0] sm:$0xf]
      %v475 = vld [vmem:[%s1 + $0xb4] sm:$0xf]
      %v476 = vld [vmem:[%s1 + $0xb8] sm:$0xf]
      %v477 = vld [vmem:[%s1 + $0xbc] sm:$0xf]
      %v478 = vld [vmem:[%s1 + $0xc0] sm:$0xf]
      %v479 = vld [vmem:[%s1 + $0xc4] sm:$0xf]
      %v480 = vld [vmem:[%s1 + $0xc8] sm:$0xf]
      %v481 = vld [vmem:[%s1 + $0xcc] sm:$0xf]
      %v482 = vld [vmem:[%s1 + $0xd0] sm:$0xf]
      %v483 = vld [vmem:[%s1 + $0xd4] sm:$0xf]
      %v484 = vld [vmem:[%s1 + $0xd8] sm:$0xf]
      %v485 = vld [vmem:[%s1 + $0xdc] sm:$0xf]
      %v486 = vld [vmem:[%s1 + $0xe0] sm:$0xf]
      %v487 = vld [vmem:[%s1 + $0xe4] sm:$0xf]
      %v488 = vld [vmem:[%s1 + $0xe8] sm:$0xf]
      %v489 = vld [vmem:[%s1 + $0xec] sm:$0xf]
      %v490 = vld [vmem:[%s1 + $0xf0] sm:$0xf]
      %v491 = vld [vmem:[%s1 + $0xf4] sm:$0xf]
      %v492 = vld [vmem:[%s1 + $0xf8] sm:$0xf]
      %v493 = vld [vmem:[%s1 + $0xfc] sm:$0xf]
      %v494 = vld [vmem:[%s2] sm:$0x1]
      %v496 = vlaneseq
      %v497 = vshrl.u32 %v496, 7
      %v498 = vsub.s32 0, %v497
      %v499 = vrot.slane %v494, %v498
      %v565 = vunpack.c.l.b16 %v430
      %v566 = vunpack.c.l.b16 %v431
      %v567 = vunpack.c.l.b16 %v432
      %v568 = vunpack.c.l.b16 %v433
      %v569 = vunpack.c.l.b16 %v434
      %v570 = vunpack.c.l.b16 %v435
      %v571 = vunpack.c.l.b16 %v436
      %v572 = vunpack.c.l.b16 %v437
      %v573 = vunpack.c.l.b16 %v438
      %v574 = vunpack.c.l.b16 %v439
      %v575 = vunpack.c.l.b16 %v440
      %v576 = vunpack.c.l.b16 %v441
      %v577 = vunpack.c.l.b16 %v442
      %v578 = vunpack.c.l.b16 %v443
      %v579 = vunpack.c.l.b16 %v444
      %v580 = vunpack.c.l.b16 %v445
      %v581 = vunpack.c.l.b16 %v446
      %v582 = vunpack.c.l.b16 %v447
      %v583 = vunpack.c.l.b16 %v448
      %v584 = vunpack.c.l.b16 %v449
      %v585 = vunpack.c.l.b16 %v450
      %v586 = vunpack.c.l.b16 %v451
      %v587 = vunpack.c.l.b16 %v452
      %v588 = vunpack.c.l.b16 %v453
      %v589 = vunpack.c.l.b16 %v454
      %v590 = vunpack.c.l.b16 %v455
      %v591 = vunpack.c.l.b16 %v456
      %v592 = vunpack.c.l.b16 %v457
      %v593 = vunpack.c.l.b16 %v458
      %v594 = vunpack.c.l.b16 %v459
      %v595 = vunpack.c.l.b16 %v460
      %v596 = vunpack.c.l.b16 %v461
      %v597 = vunpack.c.l.b16 %v462
      %v598 = vunpack.c.l.b16 %v463
      %v599 = vunpack.c.l.b16 %v464
      %v600 = vunpack.c.l.b16 %v465
      %v601 = vunpack.c.l.b16 %v466
      %v602 = vunpack.c.l.b16 %v467
      %v603 = vunpack.c.l.b16 %v468
      %v604 = vunpack.c.l.b16 %v469
      %v605 = vunpack.c.l.b16 %v470
      %v606 = vunpack.c.l.b16 %v471
      %v607 = vunpack.c.l.b16 %v472
      %v608 = vunpack.c.l.b16 %v473
      %v609 = vunpack.c.l.b16 %v474
      %v610 = vunpack.c.l.b16 %v475
      %v611 = vunpack.c.l.b16 %v476
      %v612 = vunpack.c.l.b16 %v477
      %v613 = vunpack.c.l.b16 %v478
      %v614 = vunpack.c.l.b16 %v479
      %v615 = vunpack.c.l.b16 %v480
      %v616 = vunpack.c.l.b16 %v481
      %v617 = vunpack.c.l.b16 %v482
      %v618 = vunpack.c.l.b16 %v483
      %v619 = vunpack.c.l.b16 %v484
      %v620 = vunpack.c.l.b16 %v485
      %v621 = vunpack.c.l.b16 %v486
      %v622 = vunpack.c.l.b16 %v487
      %v623 = vunpack.c.l.b16 %v488
      %v624 = vunpack.c.l.b16 %v489
      %v625 = vunpack.c.l.b16 %v490
      %v626 = vunpack.c.l.b16 %v491
      %v627 = vunpack.c.l.b16 %v492
      %v628 = vunpack.c.l.b16 %v493
      %v629 = vpack.c.b16 %v566, %v565
      %v630 = vpack.c.b16 %v568, %v567
      %v631 = vpack.c.b16 %v570, %v569
      %v632 = vpack.c.b16 %v572, %v571
      %v633 = vpack.c.b16 %v574, %v573
      %v634 = vpack.c.b16 %v576, %v575
      %v635 = vpack.c.b16 %v578, %v577
      %v636 = vpack.c.b16 %v580, %v579
      %v637 = vpack.c.b16 %v582, %v581
      %v638 = vpack.c.b16 %v584, %v583
      %v639 = vpack.c.b16 %v586, %v585
      %v640 = vpack.c.b16 %v588, %v587
      %v641 = vpack.c.b16 %v590, %v589
      %v642 = vpack.c.b16 %v592, %v591
      %v643 = vpack.c.b16 %v594, %v593
      %v644 = vpack.c.b16 %v596, %v595
      %v645 = vpack.c.b16 %v598, %v597
      %v646 = vpack.c.b16 %v600, %v599
      %v647 = vpack.c.b16 %v602, %v601
      %v648 = vpack.c.b16 %v604, %v603
      %v649 = vpack.c.b16 %v606, %v605
      %v650 = vpack.c.b16 %v608, %v607
      %v651 = vpack.c.b16 %v610, %v609
      %v652 = vpack.c.b16 %v612, %v611
      %v653 = vpack.c.b16 %v614, %v613
      %v654 = vpack.c.b16 %v616, %v615
      %v655 = vpack.c.b16 %v618, %v617
      %v656 = vpack.c.b16 %v620, %v619
      %v657 = vpack.c.b16 %v622, %v621
      %v658 = vpack.c.b16 %v624, %v623
      %v659 = vpack.c.b16 %v626, %v625
      %v660 = vpack.c.b16 %v628, %v627
      %693 = vmatprep.subr.bf16.mxu0 0
      %694 = vmatpush1.bf16.msra.mxu0 %v629
      %695 = vmatprep.subr.bf16.mxu0 0
      %696 = vmatpush1.bf16.msra.mxu0 %v630
      %697 = vmatprep.subr.bf16.mxu0 0
      %698 = vmatpush1.bf16.msra.mxu0 %v631
      %699 = vmatprep.subr.bf16.mxu0 0
      %700 = vmatpush1.bf16.msra.mxu0 %v632
      %701 = vmatprep.subr.bf16.mxu0 0
      %702 = vmatpush1.bf16.msra.mxu0 %v633
      %703 = vmatprep.subr.bf16.mxu0 0
      %704 = vmatpush1.bf16.msra.mxu0 %v634
      %705 = vmatprep.subr.bf16.mxu0 0
      %706 = vmatpush1.bf16.msra.mxu0 %v635
      %707 = vmatprep.subr.bf16.mxu0 0
      %708 = vmatpush1.bf16.msra.mxu0 %v636
      %709 = vmatprep.subr.bf16.mxu0 0
      %710 = vmatpush1.bf16.msra.mxu0 %v637
      %711 = vmatprep.subr.bf16.mxu0 0
      %712 = vmatpush1.bf16.msra.mxu0 %v638
      %713 = vmatprep.subr.bf16.mxu0 0
      %714 = vmatpush1.bf16.msra.mxu0 %v639
      %715 = vmatprep.subr.bf16.mxu0 0
      %716 = vmatpush1.bf16.msra.mxu0 %v640
      %717 = vmatprep.subr.bf16.mxu0 0
      %718 = vmatpush1.bf16.msra.mxu0 %v641
      %719 = vmatprep.subr.bf16.mxu0 0
      %720 = vmatpush1.bf16.msra.mxu0 %v642
      %721 = vmatprep.subr.bf16.mxu0 0
      %722 = vmatpush1.bf16.msra.mxu0 %v643
      %723 = vmatprep.subr.bf16.mxu0 0
      %724 = vmatpush1.bf16.msra.mxu0 %v644
      %725 = vmatprep.mubr.bf16.mxu0 %v359
      %726 = vmatmul.mubr.bf16.gmra.mrb[0].mxu0 %v358
      %v727 = vpop.f32.mrb[0].mxu0
      %v728 = vadd.f32 %v499, %v727
      %v729 = vpop.f32.mrb[0].mxu0
      %v730 = vpop.f32.mrb[0].mxu0
      %v731 = vadd.f32 %v499, %v730
      %v732 = vpop.f32.mrb[0].mxu0
      %733 = vmatprep.mubr.bf16.mxu0 %v363
      %734 = vmatmul.mubr.bf16.gmra.mrb[0].mxu0 %v362
      %v735 = vpop.f32.mrb[0].mxu0
      %v736 = vadd.f32 %v499, %v735
      %v737 = vpop.f32.mrb[0].mxu0
      %v738 = vpop.f32.mrb[0].mxu0
      %v739 = vadd.f32 %v499, %v738
      %v740 = vpop.f32.mrb[0].mxu0
      %741 = vmatprep.mubr.bf16.mxu0 %v367
      %742 = vmatmul.mubr.bf16.gmra.mrb[0].mxu0 %v366
      %v743 = vpop.f32.mrb[0].mxu0
      %v744 = vadd.f32 %v499, %v743
      %v745 = vpop.f32.mrb[0].mxu0
      %v746 = vpop.f32.mrb[0].mxu0
      %v747 = vadd.f32 %v499, %v746
      %v748 = vpop.f32.mrb[0].mxu0
      %749 = vmatprep.mubr.bf16.mxu0 %v371
      %750 = vmatmul.mubr.bf16.gmra.mrb[0].mxu0 %v370
      %v751 = vpop.f32.mrb[0].mxu0
      %v752 = vadd.f32 %v499, %v751
      %v753 = vpop.f32.mrb[0].mxu0
      %v754 = vpop.f32.mrb[0].mxu0
      %v755 = vadd.f32 %v499, %v754
      %v756 = vpop.f32.mrb[0].mxu0
      %757 = vmatprep.mubr.bf16.mxu0 %v375
      %758 = vmatmul.mubr.bf16.gmra.mrb[0].mxu0 %v374
      %v759 = vpop.f32.mrb[0].mxu0
      %v760 = vadd.f32 %v499, %v759
      %v761 = vpop.f32.mrb[0].mxu0
      %v762 = vpop.f32.mrb[0].mxu0
      %v763 = vadd.f32 %v499, %v762
      %v764 = vpop.f32.mrb[0].mxu0
      %765 = vmatprep.mubr.bf16.mxu0 %v379
      %766 = vmatmul.mubr.bf16.gmra.mrb[0].mxu0 %v378
      %v767 = vpop.f32.mrb[0].mxu0
      %v768 = vadd.f32 %v499, %v767
      %v769 = vpop.f32.mrb[0].mxu0
      %v770 = vpop.f32.mrb[0].mxu0
      %v771 = vadd.f32 %v499, %v770
      %v772 = vpop.f32.mrb[0].mxu0
      %773 = vmatprep.mubr.bf16.mxu0 %v383
      %774 = vmatmul.mubr.bf16.gmra.mrb[0].mxu0 %v382
      %v775 = vpop.f32.mrb[0].mxu0
      %v776 = vadd.f32 %v499, %v775
      %v777 = vpop.f32.mrb[0].mxu0
      %v778 = vpop.f32.mrb[0].mxu0
      %v779 = vadd.f32 %v499, %v778
      %v780 = vpop.f32.mrb[0].mxu0
      %781 = vmatprep.mubr.bf16.mxu0 %v387
      %782 = vmatmul.mubr.bf16.gmra.mrb[0].mxu0 %v386
      %v783 = vpop.f32.mrb[0].mxu0
      %v784 = vadd.f32 %v499, %v783
      %v785 = vpop.f32.mrb[0].mxu0
      %v786 = vpop.f32.mrb[0].mxu0
      %v787 = vadd.f32 %v499, %v786
      %v788 = vpop.f32.mrb[0].mxu0
      %789 = vmatprep.mubr.bf16.mxu0 %v391
      %790 = vmatmul.mubr.bf16.gmra.mrb[0].mxu0 %v390
      %v791 = vpop.f32.mrb[0].mxu0
      %v792 = vadd.f32 %v499, %v791
      %v793 = vpop.f32.mrb[0].mxu0
      %v794 = vpop.f32.mrb[0].mxu0
      %v795 = vadd.f32 %v499, %v794
      %v796 = vpop.f32.mrb[0].mxu0
      %797 = vmatprep.mubr.bf16.mxu0 %v395
      %798 = vmatmul.mubr.bf16.gmra.mrb[0].mxu0 %v394
      %v799 = vpop.f32.mrb[0].mxu0
      %v800 = vadd.f32 %v499, %v799
      %v801 = vpop.f32.mrb[0].mxu0
      %v802 = vpop.f32.mrb[0].mxu0
      %v803 = vadd.f32 %v499, %v802
      %v804 = vpop.f32.mrb[0].mxu0
      %805 = vmatprep.mubr.bf16.mxu0 %v399
      %806 = vmatmul.mubr.bf16.gmra.mrb[0].mxu0 %v398
      %v807 = vpop.f32.mrb[0].mxu0
      %v808 = vadd.f32 %v499, %v807
      %v809 = vpop.f32.mrb[0].mxu0
      %v810 = vpop.f32.mrb[0].mxu0
      %v811 = vadd.f32 %v499, %v810
      %v812 = vpop.f32.mrb[0].mxu0
      %813 = vmatprep.mubr.bf16.mxu0 %v403
      %814 = vmatmul.mubr.bf16.gmra.mrb[0].mxu0 %v402
      %v815 = vpop.f32.mrb[0].mxu0
      %v816 = vadd.f32 %v499, %v815
      %v817 = vpop.f32.mrb[0].mxu0
      %v818 = vpop.f32.mrb[0].mxu0
      %v819 = vadd.f32 %v499, %v818
      %v820 = vpop.f32.mrb[0].mxu0
      %821 = vmatprep.mubr.bf16.mxu0 %v407
      %822 = vmatmul.mubr.bf16.gmra.mrb[0].mxu0 %v406
      %v823 = vpop.f32.mrb[0].mxu0
      %v824 = vadd.f32 %v499, %v823
      %v825 = vpop.f32.mrb[0].mxu0
      %v826 = vpop.f32.mrb[0].mxu0
      %v827 = vadd.f32 %v499, %v826
      %v828 = vpop.f32.mrb[0].mxu0
      %829 = vmatprep.mubr.bf16.mxu0 %v411
      %830 = vmatmul.mubr.bf16.gmra.mrb[0].mxu0 %v410
      %v831 = vpop.f32.mrb[0].mxu0
      %v832 = vadd.f32 %v499, %v831
      %v833 = vpop.f32.mrb[0].mxu0
      %v834 = vpop.f32.mrb[0].mxu0
      %v835 = vadd.f32 %v499, %v834
      %v836 = vpop.f32.mrb[0].mxu0
      %837 = vmatprep.mubr.bf16.mxu0 %v415
      %838 = vmatmul.mubr.bf16.gmra.mrb[0].mxu0 %v414
      %v839 = vpop.f32.mrb[0].mxu0
      %v840 = vadd.f32 %v499, %v839
      %v841 = vpop.f32.mrb[0].mxu0
      %v842 = vpop.f32.mrb[0].mxu0
      %v843 = vadd.f32 %v499, %v842
      %v844 = vpop.f32.mrb[0].mxu0
      %845 = vmatprep.mubr.bf16.mxu0 %v419
      %846 = vmatmul.mubr.bf16.gmra.mrb[0].mxu0 %v418
      %v847 = vpop.f32.mrb[0].mxu0
      %v848 = vadd.f32 %v499, %v847
      %v849 = vpop.f32.mrb[0].mxu0
      %v850 = vpop.f32.mrb[0].mxu0
      %v851 = vadd.f32 %v499, %v850
      %v852 = vpop.f32.mrb[0].mxu0
      %853 = vmatprep.mubr.bf16.mxu0 %v423
      %854 = vmatmul.mubr.bf16.gmra.mrb[0].mxu0 %v422
      %v855 = vpop.f32.mrb[0].mxu0
      %v856 = vadd.f32 %v499, %v855
      %v857 = vpop.f32.mrb[0].mxu0
      %v858 = vpop.f32.mrb[0].mxu0
      %v859 = vadd.f32 %v499, %v858
      %v860 = vpop.f32.mrb[0].mxu0
      %861 = vmatprep.mubr.bf16.mxu0 %v427
      %862 = vmatmul.mubr.bf16.gmra.mrb[0].mxu0 %v426
      %v863 = vpop.f32.mrb[0].mxu0
      %v864 = vadd.f32 %v499, %v863
      %v865 = vpop.f32.mrb[0].mxu0
      %v866 = vpop.f32.mrb[0].mxu0
      %v867 = vadd.f32 %v499, %v866
      %v868 = vpop.f32.mrb[0].mxu0
      %869 = vdwg.mxu0
      %870 = vmatprep.subr.bf16.mxu0 0
      %871 = vmatpush1.bf16.msra.mxu0 %v645
      %872 = vmatprep.subr.bf16.mxu0 0
      %873 = vmatpush1.bf16.msra.mxu0 %v646
      %874 = vmatprep.subr.bf16.mxu0 0
      %875 = vmatpush1.bf16.msra.mxu0 %v647
      %876 = vmatprep.subr.bf16.mxu0 0
      %877 = vmatpush1.bf16.msra.mxu0 %v648
      %878 = vmatprep.subr.bf16.mxu0 0
      %879 = vmatpush1.bf16.msra.mxu0 %v649
      %880 = vmatprep.subr.bf16.mxu0 0
      %881 = vmatpush1.bf16.msra.mxu0 %v650
      %882 = vmatprep.subr.bf16.mxu0 0
      %883 = vmatpush1.bf16.msra.mxu0 %v651
      %884 = vmatprep.subr.bf16.mxu0 0
      %885 = vmatpush1.bf16.msra.mxu0 %v652
      %886 = vmatprep.subr.bf16.mxu0 0
      %887 = vmatpush1.bf16.msra.mxu0 %v653
      %888 = vmatprep.subr.bf16.mxu0 0
      %889 = vmatpush1.bf16.msra.mxu0 %v654
      %890 = vmatprep.subr.bf16.mxu0 0
      %891 = vmatpush1.bf16.msra.mxu0 %v655
      %892 = vmatprep.subr.bf16.mxu0 0
      %893 = vmatpush1.bf16.msra.mxu0 %v656
      %894 = vmatprep.subr.bf16.mxu0 0
      %895 = vmatpush1.bf16.msra.mxu0 %v657
      %896 = vmatprep.subr.bf16.mxu0 0
      %897 = vmatpush1.bf16.msra.mxu0 %v658
      %898 = vmatprep.subr.bf16.mxu0 0
      %899 = vmatpush1.bf16.msra.mxu0 %v659
      %900 = vmatprep.subr.bf16.mxu0 0
      %901 = vmatpush1.bf16.msra.mxu0 %v660
      %902 = vmatprep.mubr.bf16.mxu0 %v361
      %903 = vmatmul.mubr.bf16.gmra.mrb[0].mxu0 %v360
      %v904 = vpop.f32.mrb[0].mxu0
      %v905 = vadd.f32 %v728, %v904
      %v906 = vpop.f32.mrb[0].mxu0
      %v907 = vpop.f32.mrb[0].mxu0
      %v908 = vadd.f32 %v731, %v907
      %v909 = vpop.f32.mrb[0].mxu0
      %910 = vmatprep.mubr.bf16.mxu0 %v365
      %911 = vmatmul.mubr.bf16.gmra.mrb[0].mxu0 %v364
      %v912 = vpop.f32.mrb[0].mxu0
      %v913 = vadd.f32 %v736, %v912
      %v914 = vpop.f32.mrb[0].mxu0
      %v915 = vpop.f32.mrb[0].mxu0
      %v916 = vadd.f32 %v739, %v915
      %v917 = vpop.f32.mrb[0].mxu0
      %918 = vmatprep.mubr.bf16.mxu0 %v369
      %919 = vmatmul.mubr.bf16.gmra.mrb[0].mxu0 %v368
      %v920 = vpop.f32.mrb[0].mxu0
      %v921 = vadd.f32 %v744, %v920
      %v922 = vpop.f32.mrb[0].mxu0
      %v923 = vpop.f32.mrb[0].mxu0
      %v924 = vadd.f32 %v747, %v923
      %v925 = vpop.f32.mrb[0].mxu0
      %926 = vmatprep.mubr.bf16.mxu0 %v373
      %927 = vmatmul.mubr.bf16.gmra.mrb[0].mxu0 %v372
      %v928 = vpop.f32.mrb[0].mxu0
      %v929 = vadd.f32 %v752, %v928
      %v930 = vpop.f32.mrb[0].mxu0
      %v931 = vpop.f32.mrb[0].mxu0
      %v932 = vadd.f32 %v755, %v931
      %v933 = vpop.f32.mrb[0].mxu0
      %934 = vmatprep.mubr.bf16.mxu0 %v377
      %935 = vmatmul.mubr.bf16.gmra.mrb[0].mxu0 %v376
      %v936 = vpop.f32.mrb[0].mxu0
      %v937 = vadd.f32 %v760, %v936
      %v938 = vpop.f32.mrb[0].mxu0
      %v939 = vpop.f32.mrb[0].mxu0
      %v940 = vadd.f32 %v763, %v939
      %v941 = vpop.f32.mrb[0].mxu0
      %942 = vmatprep.mubr.bf16.mxu0 %v381
      %943 = vmatmul.mubr.bf16.gmra.mrb[0].mxu0 %v380
      %v944 = vpop.f32.mrb[0].mxu0
      %v945 = vadd.f32 %v768, %v944
      %v946 = vpop.f32.mrb[0].mxu0
      %v947 = vpop.f32.mrb[0].mxu0
      %v948 = vadd.f32 %v771, %v947
      %v949 = vpop.f32.mrb[0].mxu0
      %950 = vmatprep.mubr.bf16.mxu0 %v385
      %951 = vmatmul.mubr.bf16.gmra.mrb[0].mxu0 %v384
      %v952 = vpop.f32.mrb[0].mxu0
      %v953 = vadd.f32 %v776, %v952
      %v954 = vpop.f32.mrb[0].mxu0
      %v955 = vpop.f32.mrb[0].mxu0
      %v956 = vadd.f32 %v779, %v955
      %v957 = vpop.f32.mrb[0].mxu0
      %958 = vmatprep.mubr.bf16.mxu0 %v389
      %959 = vmatmul.mubr.bf16.gmra.mrb[0].mxu0 %v388
      %v960 = vpop.f32.mrb[0].mxu0
      %v961 = vadd.f32 %v784, %v960
      %v962 = vpop.f32.mrb[0].mxu0
      %v963 = vpop.f32.mrb[0].mxu0
      %v964 = vadd.f32 %v787, %v963
      %v965 = vpop.f32.mrb[0].mxu0
      %966 = vmatprep.mubr.bf16.mxu0 %v393
      %967 = vmatmul.mubr.bf16.gmra.mrb[0].mxu0 %v392
      %v968 = vpop.f32.mrb[0].mxu0
      %v969 = vadd.f32 %v792, %v968
      %v970 = vpop.f32.mrb[0].mxu0
      %v971 = vpop.f32.mrb[0].mxu0
      %v972 = vadd.f32 %v795, %v971
      %v973 = vpop.f32.mrb[0].mxu0
      %974 = vmatprep.mubr.bf16.mxu0 %v397
      %975 = vmatmul.mubr.bf16.gmra.mrb[0].mxu0 %v396
      %v976 = vpop.f32.mrb[0].mxu0
      %v977 = vadd.f32 %v800, %v976
      %v978 = vpop.f32.mrb[0].mxu0
      %v979 = vpop.f32.mrb[0].mxu0
      %v980 = vadd.f32 %v803, %v979
      %v981 = vpop.f32.mrb[0].mxu0
      %982 = vmatprep.mubr.bf16.mxu0 %v401
      %983 = vmatmul.mubr.bf16.gmra.mrb[0].mxu0 %v400
      %v984 = vpop.f32.mrb[0].mxu0
      %v985 = vadd.f32 %v808, %v984
      %v986 = vpop.f32.mrb[0].mxu0
      %v987 = vpop.f32.mrb[0].mxu0
      %v988 = vadd.f32 %v811, %v987
      %v989 = vpop.f32.mrb[0].mxu0
      %990 = vmatprep.mubr.bf16.mxu0 %v405
      %991 = vmatmul.mubr.bf16.gmra.mrb[0].mxu0 %v404
      %v992 = vpop.f32.mrb[0].mxu0
      %v993 = vadd.f32 %v816, %v992
      %v994 = vpop.f32.mrb[0].mxu0
      %v995 = vpop.f32.mrb[0].mxu0
      %v996 = vadd.f32 %v819, %v995
      %v997 = vpop.f32.mrb[0].mxu0
      %998 = vmatprep.mubr.bf16.mxu0 %v409
      %999 = vmatmul.mubr.bf16.gmra.mrb[0].mxu0 %v408
      %v1000 = vpop.f32.mrb[0].mxu0
      %v1001 = vadd.f32 %v824, %v1000
      %v1002 = vpop.f32.mrb[0].mxu0
      %v1003 = vpop.f32.mrb[0].mxu0
      %v1004 = vadd.f32 %v827, %v1003
      %v1005 = vpop.f32.mrb[0].mxu0
      %1006 = vmatprep.mubr.bf16.mxu0 %v413
      %1007 = vmatmul.mubr.bf16.gmra.mrb[0].mxu0 %v412
      %v1008 = vpop.f32.mrb[0].mxu0
      %v1009 = vadd.f32 %v832, %v1008
      %v1010 = vpop.f32.mrb[0].mxu0
      %v1011 = vpop.f32.mrb[0].mxu0
      %v1012 = vadd.f32 %v835, %v1011
      %v1013 = vpop.f32.mrb[0].mxu0
      %1014 = vmatprep.mubr.bf16.mxu0 %v417
      %1015 = vmatmul.mubr.bf16.gmra.mrb[0].mxu0 %v416
      %v1016 = vpop.f32.mrb[0].mxu0
      %v1017 = vadd.f32 %v840, %v1016
      %v1018 = vpop.f32.mrb[0].mxu0
      %v1019 = vpop.f32.mrb[0].mxu0
      %v1020 = vadd.f32 %v843, %v1019
      %v1021 = vpop.f32.mrb[0].mxu0
      %1022 = vmatprep.mubr.bf16.mxu0 %v421
      %1023 = vmatmul.mubr.bf16.gmra.mrb[0].mxu0 %v420
      %v1024 = vpop.f32.mrb[0].mxu0
      %v1025 = vadd.f32 %v848, %v1024
      %v1026 = vpop.f32.mrb[0].mxu0
      %v1027 = vpop.f32.mrb[0].mxu0
      %v1028 = vadd.f32 %v851, %v1027
      %v1029 = vpop.f32.mrb[0].mxu0
      %1030 = vmatprep.mubr.bf16.mxu0 %v425
      %1031 = vmatmul.mubr.bf16.gmra.mrb[0].mxu0 %v424
      %v1032 = vpop.f32.mrb[0].mxu0
      %v1033 = vadd.f32 %v856, %v1032
      %v1034 = vpop.f32.mrb[0].mxu0
      %v1035 = vpop.f32.mrb[0].mxu0
      %v1036 = vadd.f32 %v859, %v1035
      %v1037 = vpop.f32.mrb[0].mxu0
      %1038 = vmatprep.mubr.bf16.mxu0 %v429
      %1039 = vmatmul.mubr.bf16.gmra.mrb[0].mxu0 %v428
      %v1040 = vpop.f32.mrb[0].mxu0
      %v1041 = vadd.f32 %v864, %v1040
      %v1042 = vpop.f32.mrb[0].mxu0
      %v1043 = vpop.f32.mrb[0].mxu0
      %v1044 = vadd.f32 %v867, %v1043
      %v1045 = vpop.f32.mrb[0].mxu0
      %1046 = vdwg.mxu0
      %vm1047 = vcmask 523264
      %1048 = vst.msk [vmem:[%s211] sm:$0xff] %vm1047, %v905
      %1049 = vst.msk [vmem:[%s211 + $0x8] sm:$0xff] %vm1047, %v908
      %1050 = vst.msk [vmem:[%s211 + $0x10] sm:$0xff] %vm1047, %v913
      %1051 = vst.msk [vmem:[%s211 + $0x18] sm:$0xff] %vm1047, %v916
      %1052 = vst.msk [vmem:[%s211 + $0x20] sm:$0xff] %vm1047, %v921
      %1053 = vst.msk [vmem:[%s211 + $0x28] sm:$0xff] %vm1047, %v924
      %1054 = vst.msk [vmem:[%s211 + $0x30] sm:$0xff] %vm1047, %v929
      %1055 = vst.msk [vmem:[%s211 + $0x38] sm:$0xff] %vm1047, %v932
      %1056 = vst.msk [vmem:[%s211 + $0x40] sm:$0xff] %vm1047, %v937
      %1057 = vst.msk [vmem:[%s211 + $0x48] sm:$0xff] %vm1047, %v940
      %1058 = vst.msk [vmem:[%s211 + $0x50] sm:$0xff] %vm1047, %v945
      %1059 = vst.msk [vmem:[%s211 + $0x58] sm:$0xff] %vm1047, %v948
      %1060 = vst.msk [vmem:[%s211 + $0x60] sm:$0xff] %vm1047, %v953
      %1061 = vst.msk [vmem:[%s211 + $0x68] sm:$0xff] %vm1047, %v956
      %1062 = vst.msk [vmem:[%s211 + $0x70] sm:$0xff] %vm1047, %v961
      %1063 = vst.msk [vmem:[%s211 + $0x78] sm:$0xff] %vm1047, %v964
      %1064 = vst.msk [vmem:[%s211 + $0x80] sm:$0xff] %vm1047, %v969
      %1065 = vst.msk [vmem:[%s211 + $0x88] sm:$0xff] %vm1047, %v972
      %1066 = vst.msk [vmem:[%s211 + $0x90] sm:$0xff] %vm1047, %v977
      %1067 = vst.msk [vmem:[%s211 + $0x98] sm:$0xff] %vm1047, %v980
      %1068 = vst.msk [vmem:[%s211 + $0xa0] sm:$0xff] %vm1047, %v985
      %1069 = vst.msk [vmem:[%s211 + $0xa8] sm:$0xff] %vm1047, %v988
      %1070 = vst.msk [vmem:[%s211 + $0xb0] sm:$0xff] %vm1047, %v993
      %1071 = vst.msk [vmem:[%s211 + $0xb8] sm:$0xff] %vm1047, %v996
      %1072 = vst.msk [vmem:[%s211 + $0xc0] sm:$0xff] %vm1047, %v1001
      %1073 = vst.msk [vmem:[%s211 + $0xc8] sm:$0xff] %vm1047, %v1004
      %1074 = vst.msk [vmem:[%s211 + $0xd0] sm:$0xff] %vm1047, %v1009
      %1075 = vst.msk [vmem:[%s211 + $0xd8] sm:$0xff] %vm1047, %v1012
      %1076 = vst.msk [vmem:[%s211 + $0xe0] sm:$0xff] %vm1047, %v1017
      %1077 = vst.msk [vmem:[%s211 + $0xe8] sm:$0xff] %vm1047, %v1020
      %1078 = vst.msk [vmem:[%s211 + $0xf0] sm:$0xff] %vm1047, %v1025
      %1079 = vst.msk [vmem:[%s211 + $0xf8] sm:$0xff] %vm1047, %v1028
      %1080 = vst.msk [vmem:[%s211 + $0x100] sm:$0xff] %vm1047, %v1033
      %1081 = vst.msk [vmem:[%s211 + $0x108] sm:$0xff] %vm1047, %v1036
      %1082 = vst.msk [vmem:[%s211 + $0x110] sm:$0xff] %vm1047, %v1041
      %1083 = vst.msk [vmem:[%s211 + $0x118] sm:$0xff] %vm1047, %v1044
      %s1084 = smul.u32 36, %s19
      %p1085 = scmp.lt.s32.totalorder %s18, 1
      %s1086 = scalar_select %p1085, %s18, 1
      %p1087 = scmp.lt.s32.totalorder %s1084, 71
      %s1088 = scalar_select %p1087, %s1084, 71
      %s1089 = smul.addr %s1086, 72
      %s1090 = sadd.s32 %s1088, %s1089
      %s1091 = smul.addr %s1090, 8
      %s1092 = scalar_lea.vmem %s3, %s1091
      // Predicated region
      $region33: #{stage_1_forward.19} parent=31 // pred_check
        %p1093 = pneg %p116
      $region34: #{stage_1_forward.19} parent=31 // pred_check_branch
        %1095 = sbr.rel (%p1093) target = $region36
      $region35: #{stage_1_forward.19} parent=31 // pred_region
        %s1096 = smul.u32 36, %s19
      $region36: #{stage_1_forward.19} parent=31 // pred_fallthru
        _
    $region32: #{stage_1_forward.19} parent=5 // pred_fallthru
      _
    %p1097 = scmp.le.s32.totalorder 2, %s9
    // Predicated region
    $region37: #{stage_1_forward.19} parent=5 // pred_check
      %p1098 = pneg %p1097
    $region38: #{stage_1_forward.19} parent=5 // pred_check_branch
      %1100 = sbr.rel (%p1098) target = $region40
    $region39: #{stage_1_forward.19} parent=5 // pred_region
      %s1101 = ssub.s32 %s9, 2
      // Predicated region
      $region41: #{stage_1_forward.19} parent=39 // pred_check
        %p1102 = pneg %p122
      $region42: #{stage_1_forward.19} parent=39 // pred_check_branch
        %1104 = sbr.rel (%p1102) target = $region44
      $region43: #{stage_1_forward.19} parent=39 // pred_region
        %s1105 = smul.u32 36, %s21
        %p1106 = scmp.lt.s32.totalorder %s20, 1
        %s1107 = scalar_select %p1106, %s20, 1
        %p1108 = scmp.lt.s32.totalorder %s1105, 71
        %s1109 = scalar_select %p1108, %s1105, 71
        %s1110 = smul.addr %s1107, 72
        %s1111 = sadd.s32 %s1109, %s1110
        %s1112 = smul.addr %s1111, 8
        %s1113 = scalar_lea.vmem %s3, %s1112
      $region44: #{stage_1_forward.19} parent=39 // pred_fallthru
        _
    $region40: #{stage_1_forward.19} parent=5 // pred_fallthru
      _
  $region6: #{stage_1_forward.19} parent=0 // loop_footer
    %s13 = sadd.s32 1, %s9
  $region7: #{stage_1_forward.19} parent=0 // loop_footer_branch
    %8 = sbr.rel target = $region3
  $region8: #{stage_1_forward.19} parent=0 // loop_exit
    _

// kernel: stage_1_forward.15
$region0: #{stage_1_forward.15}
  #allocation0 [shape = 'u32[]', space=smem, size = 0x4, offset = 0x4, fixed_abs, tag = 'smem constant byte address 0x4 - core index']
  #allocation1 [shape = 'u32[144,128]{1,0:T(1,128)}', space=vmem, size = 0x12000, scoped, tag = 'internal scratch']
  %s0 = inlined_call_operand.vmem [shape: f32[2,26,26,128], index: 0, kind: input, shape index: {}]
  %s1 = inlined_call_operand.hbm [shape: bf16[1152,128], index: 1, kind: input, shape index: {}]
  %s2 = inlined_call_operand.hbm [shape: f32[1,128], index: 2, kind: input, shape index: {}]
  %s3 = inlined_call_operand.vmem [shape: f32[2,24,24,128], index: 3, kind: output, shape index: {}]
  %s4 = sld [smem:[#allocation0]]
  $region53: #{stage_1_forward.15} parent=0
    _
  %s6 = ssub.s32 1, %s4
  %s7 = scalar_select 0, %s6, %s4
  $region1: #{stage_1_forward.15} parent=0
    #allocation2 [shape = 'u8[294912]{0}', space=vmem, size = 0x48000, scoped, tag = 'input window, operand 1, single buffered']
    #allocation3 [shape = 's32[2]{0}', space=sflag, size = 0x8, scoped, tag = 'scoped memory for stage_1_forward.15']
    #allocation4 [shape = 'u8[512]{0}', space=vmem, size = 0x400, scoped, tag = 'input window, operand 2, single buffered']
    #allocation5 [shape = 's32[1]{0}', space=sflag, size = 0x4, scoped, tag = 'scoped memory for stage_1_forward.15']
    %8 = vsyncpa [#allocation3], 0
    %9 = vsyncpa [#allocation5], 0
    loop: start=0, step=1, limit=6
    $region2: #{stage_1_forward.15} parent=1 // loop_pre_header
      _
    $region3: #{stage_1_forward.15} parent=1 // loop_header
      %s11 = sphi 0, %s15
      %p12 = scmp.ge.s32.totalorder %s11, 6
      %s18 = sphi 0, %s30
      %s19 = sphi 0, %s26
      %s20 = sphi 0, %s18
      %s21 = sphi 0, %s19
      %s22 = sphi 0, %s20
      %s23 = sphi 0, %s21
      %s33 = sphi 0, %s35
      %s36 = sphi 0, %s33
      %s37 = sphi 0, %s36
      %s53 = sphi 0, %s37
      %s57 = sphi 0, %s57
      %s59 = sphi 0, %s57
      %s60 = sphi 0, %s59
      %s74 = sphi 0, %s60
      %s78 = sphi 0, %s78
      %s80 = sphi 0, %s78
      %s81 = sphi 0, %s80
      %s95 = sphi 0, %s81
      %s103 = sphi 0, %s105
      %s106 = sphi 0, %s103
      %s107 = sphi 0, %s106
      %s123 = sphi 0, %s107
    $region4: #{stage_1_forward.15} parent=1 // loop_header_branch
      %14 = sbr.rel (%p12) target = $region8
    $region5: #{stage_1_forward.15} parent=1 // loop_body
      %s16 = ssub.s32 %s11, 1
      %s17 = ssub.s32 %s11, 2
      %s24 = sadd.s32 1, %s19
      %p25 = scmp.ge.s32.totalorder %s24, 2
      %s26 = scalar_select %p25, 0, %s24
      %s27 = sadd.s32 1, %s18
      %s28 = scalar_select %p25, %s27, %s18
      %p29 = scmp.ge.s32.totalorder %s28, 2
      %s30 = scalar_select %p29, 0, %s28
      %s31 = ssub.s32 %s18, %s30
      %p32 = scmp.eq.s32.totalorder %s31, 0
      %s34 = sadd.s32 %s33, 1
      %s35 = scalar_select %p32, %s33, %s34
      %p38 = pneg %p32
      %p39 = scmp.eq.s32.totalorder %s11, 3
      %p40 = por %p38, %p39
      %p41 = scmp.ne.s32.totalorder %s33, %s36
      %p42 = scmp.eq.s32.totalorder %s11, 0
      %p43 = por %p41, %p42
      %p44 = scmp.ne.s32.totalorder %s33, %s36
      %p45 = scmp.eq.s32.totalorder %s16, 3
      %p46 = por %p44, %p45
      %p47 = scmp.ne.s32.totalorder %s36, %s37
      %p48 = scmp.eq.s32.totalorder %s16, 0
      %p49 = por %p47, %p48
      %p50 = scmp.ne.s32.totalorder %s36, %s37
      %p51 = scmp.eq.s32.totalorder %s17, 3
      %p52 = por %p50, %p51
      %p54 = scmp.ne.s32.totalorder %s37, %s53
      %p55 = scmp.eq.s32.totalorder %s17, 0
      %p56 = por %p54, %p55
      %s58 = sadd.s32 %s57, 1
      %p61 = scmp.eq.s32.totalorder %s11, 3
      %p62 = scmp.ne.s32.totalorder %s57, %s59
      %p63 = scmp.eq.s32.totalorder %s11, 0
      %p64 = por %p62, %p63
      %p65 = scmp.ne.s32.totalorder %s57, %s59
      %p66 = scmp.eq.s32.totalorder %s16, 3
      %p67 = por %p65, %p66
      %p68 = scmp.ne.s32.totalorder %s59, %s60
      %p69 = scmp.eq.s32.totalorder %s16, 0
      %p70 = por %p68, %p69
      %p71 = scmp.ne.s32.totalorder %s59, %s60
      %p72 = scmp.eq.s32.totalorder %s17, 3
      %p73 = por %p71, %p72
      %p75 = scmp.ne.s32.totalorder %s60, %s74
      %p76 = scmp.eq.s32.totalorder %s17, 0
      %p77 = por %p75, %p76
      %s79 = sadd.s32 %s78, 1
      %p82 = scmp.eq.s32.totalorder %s11, 3
      %p83 = scmp.ne.s32.totalorder %s78, %s80
      %p84 = scmp.eq.s32.totalorder %s11, 0
      %p85 = por %p83, %p84
      %p86 = scmp.ne.s32.totalorder %s78, %s80
      %p87 = scmp.eq.s32.totalorder %s16, 3
      %p88 = por %p86, %p87
      %p89 = scmp.ne.s32.totalorder %s80, %s81
      %p90 = scmp.eq.s32.totalorder %s16, 0
      %p91 = por %p89, %p90
      %p92 = scmp.ne.s32.totalorder %s80, %s81
      %p93 = scmp.eq.s32.totalorder %s17, 3
      %p94 = por %p92, %p93
      %p96 = scmp.ne.s32.totalorder %s81, %s95
      %p97 = scmp.eq.s32.totalorder %s17, 0
      %p98 = por %p96, %p97
      %s99 = ssub.s32 %s18, %s30
      %s100 = ssub.s32 %s19, %s26
      %s101 = sor.u32 %s99, %s100
      %p102 = scmp.eq.s32.totalorder %s101, 0
      %s104 = sadd.s32 %s103, 1
      %s105 = scalar_select %p102, %s103, %s104
      %p108 = pneg %p102
      %p109 = scmp.eq.s32.totalorder %s11, 3
      %p110 = por %p108, %p109
      %p111 = scmp.ne.s32.totalorder %s103, %s106
      %p112 = scmp.eq.s32.totalorder %s11, 0
      %p113 = por %p111, %p112
      %p114 = scmp.ne.s32.totalorder %s103, %s106
      %p115 = scmp.eq.s32.totalorder %s16, 3
      %p116 = por %p114, %p115
      %p117 = scmp.ne.s32.totalorder %s106, %s107
      %p118 = scmp.eq.s32.totalorder %s16, 0
      %p119 = por %p117, %p118
      %p120 = scmp.ne.s32.totalorder %s106, %s107
      %p121 = scmp.eq.s32.totalorder %s17, 3
      %p122 = por %p120, %p121
      %p124 = scmp.ne.s32.totalorder %s107, %s123
      %p125 = scmp.eq.s32.totalorder %s17, 0
      %p126 = por %p124, %p125
      %p127 = scmp.le.s32.totalorder 1, %s11
      %p128 = scmp.lt.s32.totalorder %s11, 5
      %p129 = pnand %p127, %p128
      %p130 = pneg %p129
      // Predicated region
      $region9: #{stage_1_forward.15} parent=5 // pred_check
        _
      $region10: #{stage_1_forward.15} parent=5 // pred_check_branch
        %132 = sbr.rel (%p129) target = $region12
      $region11: #{stage_1_forward.15} parent=5 // pred_region
        %s133 = ssub.s32 %s11, 1
        // Predicated region
        $region13: #{stage_1_forward.15} parent=11 // pred_check
          %p134 = pneg %p70
        $region14: #{stage_1_forward.15} parent=11 // pred_check_branch
          %136 = sbr.rel (%p134) target = $region16
        $region15: #{stage_1_forward.15} parent=11 // pred_region
          %s138 = ssub.s32 9216, 9216
          %139 = vsyncadd [#allocation3], %s138
          %s140 = sshll.u32 [#allocation2], 4
          %s141 = int_to_ptr.vmem [resolvable:$true] %s140
          %146 = dma.hbm_to_vmem [thread:$0]  %s1, 9216, %s141, [#allocation3], 64, 64, 4
        $region16: #{stage_1_forward.15} parent=11 // pred_fallthru
          _
        // Predicated region
        $region17: #{stage_1_forward.15} parent=11 // pred_check
          %p147 = pneg %p91
        $region18: #{stage_1_forward.15} parent=11 // pred_check_branch
          %149 = sbr.rel (%p147) target = $region20
        $region19: #{stage_1_forward.15} parent=11 // pred_region
          %s151 = ssub.s32 16, 16
          %152 = vsyncadd [#allocation5], %s151
          %s154 = sshll.u32 [#allocation4], 4
          %s155 = int_to_ptr.vmem [resolvable:$true] %s154
          %157 = dma.hbm_to_vmem [thread:$0]  %s2, 16, %s155, [#allocation5]
        $region20: #{stage_1_forward.15} parent=11 // pred_fallthru
          _
      $region12: #{stage_1_forward.15} parent=5 // pred_fallthru
        _
      %p158 = scmp.lt.s32.totalorder %s11, 4
      // Predicated region
      $region21: #{stage_1_forward.15} parent=5 // pred_check
        %p159 = pneg %p158
      $region22: #{stage_1_forward.15} parent=5 // pred_check_branch
        %161 = sbr.rel (%p159) target = $region24
      $region23: #{stage_1_forward.15} parent=5 // pred_region
        // Predicated region
        $region25: #{stage_1_forward.15} parent=23 // pred_check
          %p162 = pneg %p43
        $region26: #{stage_1_forward.15} parent=23 // pred_check_branch
          %164 = sbr.rel (%p162) target = $region28
        $region27: #{stage_1_forward.15} parent=23 // pred_region
          %p165 = scmp.lt.s32.totalorder %s18, 1
          %s166 = scalar_select %p165, %s18, 1
          %s167 = smul.addr %s166, 104
          %s168 = smul.addr %s167, 8
          %s169 = scalar_lea.vmem %s0, %s168
        $region28: #{stage_1_forward.15} parent=23 // pred_fallthru
          _
      $region24: #{stage_1_forward.15} parent=5 // pred_fallthru
        _
      %p170 = scmp.le.s32.totalorder 1, %s11
      %p171 = scmp.lt.s32.totalorder %s11, 5
      %p172 = pnand %p170, %p171
      %p173 = pneg %p172
      // Predicated region
      $region29: #{stage_1_forward.15} parent=5 // pred_check
        _
      $region30: #{stage_1_forward.15} parent=5 // pred_check_branch
        %175 = sbr.rel (%p172) target = $region32
      $region31: #{stage_1_forward.15} parent=5 // pred_region
        %s176 = ssub.s32 %s11, 1
        // Predicated region
        $region33: #{stage_1_forward.15} parent=31 // pred_check
          %p177 = pneg %p70
        $region34: #{stage_1_forward.15} parent=31 // pred_check_branch
          %179 = sbr.rel (%p177) target = $region36
        $region35: #{stage_1_forward.15} parent=31 // pred_region
          %180 = dma.done [#allocation3], 9216
        $region36: #{stage_1_forward.15} parent=31 // pred_fallthru
          _
        // Predicated region
        $region37: #{stage_1_forward.15} parent=31 // pred_check
          %p181 = pneg %p91
        $region38: #{stage_1_forward.15} parent=31 // pred_check_branch
          %183 = sbr.rel (%p181) target = $region40
        $region39: #{stage_1_forward.15} parent=31 // pred_region
          %184 = dma.done [#allocation5], 16
        $region40: #{stage_1_forward.15} parent=31 // pred_fallthru
          _
        %p185 = scmp.lt.s32.totalorder %s20, 1
        %s186 = scalar_select %p185, %s20, 1
        %s187 = smul.addr %s186, 104
        %s188 = smul.addr %s187, 8
        %s189 = scalar_lea.vmem %s0, %s188
        %p190 = pneg %p49
        %p191 = pneg %p46
        %p192 = pneg %p70
        %p193 = pneg %p67
        %p194 = pneg %p91
        %p195 = pneg %p88
        %p196 = pneg %p119
        %p197 = pneg %p116
        %s198 = smul.u32 12, %s21
        %p199 = scmp.lt.s32.totalorder %s20, 1
        %s200 = scalar_select %p199, %s20, 1
        %p201 = scmp.lt.s32.totalorder %s198, 23
        %s202 = scalar_select %p201, %s198, 23
        %s203 = smul.addr %s202, 3
        %s204 = smul.addr %s200, 72
        %s205 = sadd.s32 %s203, %s204
        %s206 = smul.addr %s205, 8
        %s207 = scalar_lea.vmem %s3, %s206
        %p208 = scmp.lt.s32.totalorder %s20, 1
        %s209 = scalar_select %p208, %s20, 1
        %s210 = smul.addr %s209, 104
        %s211 = smul.addr %s210, 8
        %s212 = scalar_lea.vmem %s0, %s211
        %s213 = smul.u32 12, %s21
        %p214 = scmp.lt.s32.totalorder %s20, 1
        %s215 = scalar_select %p214, %s20, 1
        %p216 = scmp.lt.s32.totalorder %s213, 23
        %s217 = scalar_select %p216, %s213, 23
        %s218 = smul.addr %s217, 3
        %s219 = smul.addr %s215, 72
        %s220 = sadd.s32 %s218, %s219
        %s221 = smul.addr %s220, 8
        %s222 = scalar_lea.vmem %s3, %s221
        %s223 = smul.u32 12, %s21
        %s225 = smul.u32 %s21, 12
        %s226 = smul.u32 %s225, 32
        %s227 = scalar_lea.vmem %s212, %s226
        %v228 = vld [vmem:[%s227] sm:$0xff]
        %v229 = vld [vmem:[%s227 + $0x8] sm:$0xff]
        %v230 = vld [vmem:[%s227 + $0x10] sm:$0xff]
        %v231 = vld [vmem:[%s227 + $0x18] sm:$0x3]
        %v232 = vld [vmem:[%s227 + $0x20] sm:$0xff]
        %v233 = vld [vmem:[%s227 + $0x28] sm:$0xff]
        %v234 = vld [vmem:[%s227 + $0x30] sm:$0xff]
        %v235 = vld [vmem:[%s227 + $0x38] sm:$0x3]
        %v236 = vld [vmem:[%s227 + $0x40] sm:$0xff]
        %v237 = vld [vmem:[%s227 + $0x48] sm:$0xff]
        %v238 = vld [vmem:[%s227 + $0x50] sm:$0xff]
        %v239 = vld [vmem:[%s227 + $0x58] sm:$0x3]
        %v240 = vld [vmem:[%s227 + $0x60] sm:$0xff]
        %v241 = vld [vmem:[%s227 + $0x68] sm:$0xff]
        %v242 = vld [vmem:[%s227 + $0x70] sm:$0xff]
        %v243 = vld [vmem:[%s227 + $0x78] sm:$0x3]
        %v244 = vld [vmem:[%s227 + $0x80] sm:$0xff]
        %v245 = vld [vmem:[%s227 + $0x88] sm:$0xff]
        %v246 = vld [vmem:[%s227 + $0x90] sm:$0xff]
        %v247 = vld [vmem:[%s227 + $0x98] sm:$0x3]
        %v248 = vld [vmem:[%s227 + $0xa0] sm:$0xff]
        %v249 = vld [vmem:[%s227 + $0xa8] sm:$0xff]
        %v250 = vld [vmem:[%s227 + $0xb0] sm:$0xff]
        %v251 = vld [vmem:[%s227 + $0xb8] sm:$0x3]
        %v252 = vld [vmem:[%s227 + $0xc0] sm:$0xff]
        %v253 = vld [vmem:[%s227 + $0xc8] sm:$0xff]
        %v254 = vld [vmem:[%s227 + $0xd0] sm:$0xff]
        %v255 = vld [vmem:[%s227 + $0xd8] sm:$0x3]
        %v256 = vld [vmem:[%s227 + $0xe0] sm:$0xff]
        %v257 = vld [vmem:[%s227 + $0xe8] sm:$0xff]
        %v258 = vld [vmem:[%s227 + $0xf0] sm:$0xff]
        %v259 = vld [vmem:[%s227 + $0xf8] sm:$0x3]
        %v260 = vld [vmem:[%s227 + $0x100] sm:$0xff]
        %v261 = vld [vmem:[%s227 + $0x108] sm:$0xff]
        %v262 = vld [vmem:[%s227 + $0x110] sm:$0xff]
        %v263 = vld [vmem:[%s227 + $0x118] sm:$0x3]
        %v264 = vld [vmem:[%s227 + $0x120] sm:$0xff]
        %v265 = vld [vmem:[%s227 + $0x128] sm:$0xff]
        %v266 = vld [vmem:[%s227 + $0x130] sm:$0xff]
        %v267 = vld [vmem:[%s227 + $0x138] sm:$0x3]
        %v268 = vld [vmem:[%s227 + $0x140] sm:$0xff]
        %v269 = vld [vmem:[%s227 + $0x148] sm:$0xff]
        %v270 = vld [vmem:[%s227 + $0x150] sm:$0xff]
        %v271 = vld [vmem:[%s227 + $0x158] sm:$0x3]
        %v272 = vld [vmem:[%s227 + $0x160] sm:$0xff]
        %v273 = vld [vmem:[%s227 + $0x168] sm:$0xff]
        %v274 = vld [vmem:[%s227 + $0x170] sm:$0xff]
        %v275 = vld [vmem:[%s227 + $0x178] sm:$0x3]
        %v276 = vpack.c.bf16 %v229, %v228
        %v277 = vpack.c.bf16 %v231, %v230
        %v278 = vpack.c.bf16 %v233, %v232
        %v279 = vpack.c.bf16 %v235, %v234
        %v280 = vpack.c.bf16 %v237, %v236
        %v281 = vpack.c.bf16 %v239, %v238
        %v282 = vpack.c.bf16 %v241, %v240
        %v283 = vpack.c.bf16 %v243, %v242
        %v284 = vpack.c.bf16 %v245, %v244
        %v285 = vpack.c.bf16 %v247, %v246
        %v286 = vpack.c.bf16 %v249, %v248
        %v287 = vpack.c.bf16 %v251, %v250
        %v288 = vpack.c.bf16 %v253, %v252
        %v289 = vpack.c.bf16 %v255, %v254
        %v290 = vpack.c.bf16 %v257, %v256
        %v291 = vpack.c.bf16 %v259, %v258
        %v292 = vpack.c.bf16 %v261, %v260
        %v293 = vpack.c.bf16 %v263, %v262
        %v294 = vpack.c.bf16 %v265, %v264
        %v295 = vpack.c.bf16 %v267, %v266
        %v296 = vpack.c.bf16 %v269, %v268
        %v297 = vpack.c.bf16 %v271, %v270
        %v298 = vpack.c.bf16 %v273, %v272
        %v299 = vpack.c.bf16 %v275, %v274
        %s300 = sadd.s32 %s225, 1
        %s301 = smul.u32 %s300, 32
        %s302 = scalar_lea.vmem %s212, %s301
        %v303 = vld [vmem:[%s302] sm:$0xff]
        %v304 = vld [vmem:[%s302 + $0x8] sm:$0xff]
        %v305 = vld [vmem:[%s302 + $0x10] sm:$0xff]
        %v306 = vld [vmem:[%s302 + $0x18] sm:$0x3]
        %v307 = vld [vmem:[%s302 + $0x20] sm:$0xff]
        %v308 = vld [vmem:[%s302 + $0x28] sm:$0xff]
        %v309 = vld [vmem:[%s302 + $0x30] sm:$0xff]
        %v310 = vld [vmem:[%s302 + $0x38] sm:$0x3]
        %v311 = vld [vmem:[%s302 + $0x40] sm:$0xff]
        %v312 = vld [vmem:[%s302 + $0x48] sm:$0xff]
        %v313 = vld [vmem:[%s302 + $0x50] sm:$0xff]
        %v314 = vld [vmem:[%s302 + $0x58] sm:$0x3]
        %v315 = vld [vmem:[%s302 + $0x60] sm:$0xff]
        %v316 = vld [vmem:[%s302 + $0x68] sm:$0xff]
        %v317 = vld [vmem:[%s302 + $0x70] sm:$0xff]
        %v318 = vld [vmem:[%s302 + $0x78] sm:$0x3]
        %v319 = vld [vmem:[%s302 + $0x80] sm:$0xff]
        %v320 = vld [vmem:[%s302 + $0x88] sm:$0xff]
        %v321 = vld [vmem:[%s302 + $0x90] sm:$0xff]
        %v322 = vld [vmem:[%s302 + $0x98] sm:$0x3]
        %v323 = vld [vmem:[%s302 + $0xa0] sm:$0xff]
        %v324 = vld [vmem:[%s302 + $0xa8] sm:$0xff]
        %v325 = vld [vmem:[%s302 + $0xb0] sm:$0xff]
        %v326 = vld [vmem:[%s302 + $0xb8] sm:$0x3]
        %v327 = vld [vmem:[%s302 + $0xc0] sm:$0xff]
        %v328 = vld [vmem:[%s302 + $0xc8] sm:$0xff]
        %v329 = vld [vmem:[%s302 + $0xd0] sm:$0xff]
        %v330 = vld [vmem:[%s302 + $0xd8] sm:$0x3]
        %v331 = vld [vmem:[%s302 + $0xe0] sm:$0xff]
        %v332 = vld [vmem:[%s302 + $0xe8] sm:$0xff]
        %v333 = vld [vmem:[%s302 + $0xf0] sm:$0xff]
        %v334 = vld [vmem:[%s302 + $0xf8] sm:$0x3]
        %v335 = vld [vmem:[%s302 + $0x100] sm:$0xff]
        %v336 = vld [vmem:[%s302 + $0x108] sm:$0xff]
        %v337 = vld [vmem:[%s302 + $0x110] sm:$0xff]
        %v338 = vld [vmem:[%s302 + $0x118] sm:$0x3]
        %v339 = vld [vmem:[%s302 + $0x120] sm:$0xff]
        %v340 = vld [vmem:[%s302 + $0x128] sm:$0xff]
        %v341 = vld [vmem:[%s302 + $0x130] sm:$0xff]
        %v342 = vld [vmem:[%s302 + $0x138] sm:$0x3]
        %v343 = vld [vmem:[%s302 + $0x140] sm:$0xff]
        %v344 = vld [vmem:[%s302 + $0x148] sm:$0xff]
        %v345 = vld [vmem:[%s302 + $0x150] sm:$0xff]
        %v346 = vld [vmem:[%s302 + $0x158] sm:$0x3]
        %v347 = vld [vmem:[%s302 + $0x160] sm:$0xff]
        %v348 = vld [vmem:[%s302 + $0x168] sm:$0xff]
        %v349 = vld [vmem:[%s302 + $0x170] sm:$0xff]
        %v350 = vld [vmem:[%s302 + $0x178] sm:$0x3]
        %v351 = vpack.c.bf16 %v304, %v303
        %v352 = vpack.c.bf16 %v306, %v305
        %v353 = vpack.c.bf16 %v308, %v307
        %v354 = vpack.c.bf16 %v310, %v309
        %v355 = vpack.c.bf16 %v312, %v311
        %v356 = vpack.c.bf16 %v314, %v313
        %v357 = vpack.c.bf16 %v316, %v315
        %v358 = vpack.c.bf16 %v318, %v317
        %v359 = vpack.c.bf16 %v320, %v319
        %v360 = vpack.c.bf16 %v322, %v321
        %v361 = vpack.c.bf16 %v324, %v323
        %v362 = vpack.c.bf16 %v326, %v325
        %v363 = vpack.c.bf16 %v328, %v327
        %v364 = vpack.c.bf16 %v330, %v329
        %v365 = vpack.c.bf16 %v332, %v331
        %v366 = vpack.c.bf16 %v334, %v333
        %v367 = vpack.c.bf16 %v336, %v335
        %v368 = vpack.c.bf16 %v338, %v337
        %v369 = vpack.c.bf16 %v340, %v339
        %v370 = vpack.c.bf16 %v342, %v341
        %v371 = vpack.c.bf16 %v344, %v343
        %v372 = vpack.c.bf16 %v346, %v345
        %v373 = vpack.c.bf16 %v348, %v347
        %v374 = vpack.c.bf16 %v350, %v349
        %s375 = sadd.s32 %s225, 2
        %s376 = smul.u32 %s375, 32
        %s377 = scalar_lea.vmem %s212, %s376
        %v378 = vld [vmem:[%s377] sm:$0xff]
        %v379 = vld [vmem:[%s377 + $0x8] sm:$0xff]
        %v380 = vld [vmem:[%s377 + $0x10] sm:$0xff]
        %v381 = vld [vmem:[%s377 + $0x18] sm:$0x3]
        %v382 = vld [vmem:[%s377 + $0x20] sm:$0xff]
        %v383 = vld [vmem:[%s377 + $0x28] sm:$0xff]
        %v384 = vld [vmem:[%s377 + $0x30] sm:$0xff]
        %v385 = vld [vmem:[%s377 + $0x38] sm:$0x3]
        %v386 = vld [vmem:[%s377 + $0x40] sm:$0xff]
        %v387 = vld [vmem:[%s377 + $0x48] sm:$0xff]
        %v388 = vld [vmem:[%s377 + $0x50] sm:$0xff]
        %v389 = vld [vmem:[%s377 + $0x58] sm:$0x3]
        %v390 = vld [vmem:[%s377 + $0x60] sm:$0xff]
        %v391 = vld [vmem:[%s377 + $0x68] sm:$0xff]
        %v392 = vld [vmem:[%s377 + $0x70] sm:$0xff]
        %v393 = vld [vmem:[%s377 + $0x78] sm:$0x3]
        %v394 = vld [vmem:[%s377 + $0x80] sm:$0xff]
        %v395 = vld [vmem:[%s377 + $0x88] sm:$0xff]
        %v396 = vld [vmem:[%s377 + $0x90] sm:$0xff]
        %v397 = vld [vmem:[%s377 + $0x98] sm:$0x3]
        %v398 = vld [vmem:[%s377 + $0xa0] sm:$0xff]
        %v399 = vld [vmem:[%s377 + $0xa8] sm:$0xff]
        %v400 = vld [vmem:[%s377 + $0xb0] sm:$0xff]
        %v401 = vld [vmem:[%s377 + $0xb8] sm:$0x3]
        %v402 = vld [vmem:[%s377 + $0xc0] sm:$0xff]
        %v403 = vld [vmem:[%s377 + $0xc8] sm:$0xff]
        %v404 = vld [vmem:[%s377 + $0xd0] sm:$0xff]
        %v405 = vld [vmem:[%s377 + $0xd8] sm:$0x3]
        %v406 = vld [vmem:[%s377 + $0xe0] sm:$0xff]
        %v407 = vld [vmem:[%s377 + $0xe8] sm:$0xff]
        %v408 = vld [vmem:[%s377 + $0xf0] sm:$0xff]
        %v409 = vld [vmem:[%s377 + $0xf8] sm:$0x3]
        %v410 = vld [vmem:[%s377 + $0x100] sm:$0xff]
        %v411 = vld [vmem:[%s377 + $0x108] sm:$0xff]
        %v412 = vld [vmem:[%s377 + $0x110] sm:$0xff]
        %v413 = vld [vmem:[%s377 + $0x118] sm:$0x3]
        %v414 = vld [vmem:[%s377 + $0x120] sm:$0xff]
        %v415 = vld [vmem:[%s377 + $0x128] sm:$0xff]
        %v416 = vld [vmem:[%s377 + $0x130] sm:$0xff]
        %v417 = vld [vmem:[%s377 + $0x138] sm:$0x3]
        %v418 = vld [vmem:[%s377 + $0x140] sm:$0xff]
        %v419 = vld [vmem:[%s377 + $0x148] sm:$0xff]
        %v420 = vld [vmem:[%s377 + $0x150] sm:$0xff]
        %v421 = vld [vmem:[%s377 + $0x158] sm:$0x3]
        %v422 = vld [vmem:[%s377 + $0x160] sm:$0xff]
        %v423 = vld [vmem:[%s377 + $0x168] sm:$0xff]
        %v424 = vld [vmem:[%s377 + $0x170] sm:$0xff]
        %v425 = vld [vmem:[%s377 + $0x178] sm:$0x3]
        %v426 = vpack.c.bf16 %v379, %v378
        %v427 = vpack.c.bf16 %v381, %v380
        %v428 = vpack.c.bf16 %v383, %v382
        %v429 = vpack.c.bf16 %v385, %v384
        %v430 = vpack.c.bf16 %v387, %v386
        %v431 = vpack.c.bf16 %v389, %v388
        %v432 = vpack.c.bf16 %v391, %v390
        %v433 = vpack.c.bf16 %v393, %v392
        %v434 = vpack.c.bf16 %v395, %v394
        %v435 = vpack.c.bf16 %v397, %v396
        %v436 = vpack.c.bf16 %v399, %v398
        %v437 = vpack.c.bf16 %v401, %v400
        %v438 = vpack.c.bf16 %v403, %v402
        %v439 = vpack.c.bf16 %v405, %v404
        %v440 = vpack.c.bf16 %v407, %v406
        %v441 = vpack.c.bf16 %v409, %v408
        %v442 = vpack.c.bf16 %v411, %v410
        %v443 = vpack.c.bf16 %v413, %v412
        %v444 = vpack.c.bf16 %v415, %v414
        %v445 = vpack.c.bf16 %v417, %v416
        %v446 = vpack.c.bf16 %v419, %v418
        %v447 = vpack.c.bf16 %v421, %v420
        %v448 = vpack.c.bf16 %v423, %v422
        %v449 = vpack.c.bf16 %v425, %v424
        %vm450 = vsmask.f32 7424
        %v452 = vshrl.u32 %v276, 16
        %v454 = vshll.u32 %v276, 16
        %v456 = vrot.slane %v454, 1
        %v457 = vor.u32 %v452, %v456
        %v459 = vshll.u32 %v277, 16
        %v461 = vrot.slane %v459, 1
        %v462 = vsel %vm450, %v457, %v461
        %v463 = vshrl.u32 %v277, 16
        %v465 = vor.u32 %v463, %v461
        %v467 = vshrl.u32 %v278, 16
        %v469 = vshll.u32 %v278, 16
        %v471 = vrot.slane %v469, 1
        %v472 = vor.u32 %v467, %v471
        %v474 = vshll.u32 %v279, 16
        %v476 = vrot.slane %v474, 1
        %v477 = vsel %vm450, %v472, %v476
        %v478 = vshrl.u32 %v279, 16
        %v480 = vor.u32 %v478, %v476
        %v482 = vshrl.u32 %v280, 16
        %v484 = vshll.u32 %v280, 16
        %v486 = vrot.slane %v484, 1
        %v487 = vor.u32 %v482, %v486
        %v489 = vshll.u32 %v281, 16
        %v491 = vrot.slane %v489, 1
        %v492 = vsel %vm450, %v487, %v491
        %v493 = vshrl.u32 %v281, 16
        %v495 = vor.u32 %v493, %v491
        %v497 = vshrl.u32 %v282, 16
        %v499 = vshll.u32 %v282, 16
        %v501 = vrot.slane %v499, 1
        %v502 = vor.u32 %v497, %v501
        %v504 = vshll.u32 %v283, 16
        %v506 = vrot.slane %v504, 1
        %v507 = vsel %vm450, %v502, %v506
        %v508 = vshrl.u32 %v283, 16
        %v510 = vor.u32 %v508, %v506
        %v512 = vshrl.u32 %v284, 16
        %v514 = vshll.u32 %v284, 16
        %v516 = vrot.slane %v514, 1
        %v517 = vor.u32 %v512, %v516
        %v519 = vshll.u32 %v285, 16
        %v521 = vrot.slane %v519, 1
        %v522 = vsel %vm450, %v517, %v521
        %v523 = vshrl.u32 %v285, 16
        %v525 = vor.u32 %v523, %v521
        %v527 = vshrl.u32 %v286, 16
        %v529 = vshll.u32 %v286, 16
        %v531 = vrot.slane %v529, 1
        %v532 = vor.u32 %v527, %v531
        %v534 = vshll.u32 %v287, 16
        %v536 = vrot.slane %v534, 1
        %v537 = vsel %vm450, %v532, %v536
        %v538 = vshrl.u32 %v287, 16
        %v540 = vor.u32 %v538, %v536
        %v542 = vshrl.u32 %v288, 16
        %v544 = vshll.u32 %v288, 16
        %v546 = vrot.slane %v544, 1
        %v547 = vor.u32 %v542, %v546
        %v549 = vshll.u32 %v289, 16
        %v551 = vrot.slane %v549, 1
        %v552 = vsel %vm450, %v547, %v551
        %v553 = vshrl.u32 %v289, 16
        %v555 = vor.u32 %v553, %v551
        %v557 = vshrl.u32 %v290, 16
        %v559 = vshll.u32 %v290, 16
        %v561 = vrot.slane %v559, 1
        %v562 = vor.u32 %v557, %v561
        %v564 = vshll.u32 %v291, 16
        %v566 = vrot.slane %v564, 1
        %v567 = vsel %vm450, %v562, %v566
        %v568 = vshrl.u32 %v291, 16
        %v570 = vor.u32 %v568, %v566
        %v572 = vshrl.u32 %v292, 16
        %v574 = vshll.u32 %v292, 16
        %v576 = vrot.slane %v574, 1
        %v577 = vor.u32 %v572, %v576
        %v579 = vshll.u32 %v293, 16
        %v581 = vrot.slane %v579, 1
        %v582 = vsel %vm450, %v577, %v581
        %v583 = vshrl.u32 %v293, 16
        %v585 = vor.u32 %v583, %v581
        %v587 = vshrl.u32 %v294, 16
        %v589 = vshll.u32 %v294, 16
        %v591 = vrot.slane %v589, 1
        %v592 = vor.u32 %v587, %v591
        %v594 = vshll.u32 %v295, 16
        %v596 = vrot.slane %v594, 1
        %v597 = vsel %vm450, %v592, %v596
        %v598 = vshrl.u32 %v295, 16
        %v600 = vor.u32 %v598, %v596
        %v602 = vshrl.u32 %v296, 16
        %v604 = vshll.u32 %v296, 16
        %v606 = vrot.slane %v604, 1
        %v607 = vor.u32 %v602, %v606
        %v609 = vshll.u32 %v297, 16
        %v611 = vrot.slane %v609, 1
        %v612 = vsel %vm450, %v607, %v611
        %v613 = vshrl.u32 %v297, 16
        %v615 = vor.u32 %v613, %v611
        %v617 = vshrl.u32 %v298, 16
        %v619 = vshll.u32 %v298, 16
        %v621 = vrot.slane %v619, 1
        %v622 = vor.u32 %v617, %v621
        %v624 = vshll.u32 %v299, 16
        %v626 = vrot.slane %v624, 1
        %v627 = vsel %vm450, %v622, %v626
        %v628 = vshrl.u32 %v299, 16
        %v630 = vor.u32 %v628, %v626
        %vm655 = vcmask 1046528
        %v656 = vrot.slane %v276, 1
        %v657 = vrot.slane %v277, 1
        %v658 = vsel %vm655, %v656, %v657
        %v659 = vrot.slane %v278, 1
        %v660 = vrot.slane %v279, 1
        %v661 = vsel %vm655, %v659, %v660
        %v662 = vrot.slane %v280, 1
        %v663 = vrot.slane %v281, 1
        %v664 = vsel %vm655, %v662, %v663
        %v665 = vrot.slane %v282, 1
        %v666 = vrot.slane %v283, 1
        %v667 = vsel %vm655, %v665, %v666
        %v668 = vrot.slane %v284, 1
        %v669 = vrot.slane %v285, 1
        %v670 = vsel %vm655, %v668, %v669
        %v671 = vrot.slane %v286, 1
        %v672 = vrot.slane %v287, 1
        %v673 = vsel %vm655, %v671, %v672
        %v674 = vrot.slane %v288, 1
        %v675 = vrot.slane %v289, 1
        %v676 = vsel %vm655, %v674, %v675
        %v677 = vrot.slane %v290, 1
        %v678 = vrot.slane %v291, 1
        %v679 = vsel %vm655, %v677, %v678
        %v680 = vrot.slane %v292, 1
        %v681 = vrot.slane %v293, 1
        %v682 = vsel %vm655, %v680, %v681
        %v683 = vrot.slane %v294, 1
        %v684 = vrot.slane %v295, 1
        %v685 = vsel %vm655, %v683, %v684
        %v686 = vrot.slane %v296, 1
        %v687 = vrot.slane %v297, 1
        %v688 = vsel %vm655, %v686, %v687
        %v689 = vrot.slane %v298, 1
        %v690 = vrot.slane %v299, 1
        %v691 = vsel %vm655, %v689, %v690
        %v693 = vshrl.u32 %v351, 16
        %v695 = vshll.u32 %v351, 16
        %v697 = vrot.slane %v695, 1
        %v698 = vor.u32 %v693, %v697
        %v700 = vshll.u32 %v352, 16
        %v702 = vrot.slane %v700, 1
        %v703 = vsel %vm450, %v698, %v702
        %v704 = vshrl.u32 %v352, 16
        %v706 = vor.u32 %v704, %v702
        %v708 = vshrl.u32 %v353, 16
        %v710 = vshll.u32 %v353, 16
        %v712 = vrot.slane %v710, 1
        %v713 = vor.u32 %v708, %v712
        %v715 = vshll.u32 %v354, 16
        %v717 = vrot.slane %v715, 1
        %v718 = vsel %vm450, %v713, %v717
        %v719 = vshrl.u32 %v354, 16
        %v721 = vor.u32 %v719, %v717
        %v723 = vshrl.u32 %v355, 16
        %v725 = vshll.u32 %v355, 16
        %v727 = vrot.slane %v725, 1
        %v728 = vor.u32 %v723, %v727
        %v730 = vshll.u32 %v356, 16
        %v732 = vrot.slane %v730, 1
        %v733 = vsel %vm450, %v728, %v732
        %v734 = vshrl.u32 %v356, 16
        %v736 = vor.u32 %v734, %v732
        %v738 = vshrl.u32 %v357, 16
        %v740 = vshll.u32 %v357, 16
        %v742 = vrot.slane %v740, 1
        %v743 = vor.u32 %v738, %v742
        %v745 = vshll.u32 %v358, 16
        %v747 = vrot.slane %v745, 1
        %v748 = vsel %vm450, %v743, %v747
        %v749 = vshrl.u32 %v358, 16
        %v751 = vor.u32 %v749, %v747
        %v753 = vshrl.u32 %v359, 16
        %v755 = vshll.u32 %v359, 16
        %v757 = vrot.slane %v755, 1
        %v758 = vor.u32 %v753, %v757
        %v760 = vshll.u32 %v360, 16
        %v762 = vrot.slane %v760, 1
        %v763 = vsel %vm450, %v758, %v762
        %v764 = vshrl.u32 %v360, 16
        %v766 = vor.u32 %v764, %v762
        %v768 = vshrl.u32 %v361, 16
        %v770 = vshll.u32 %v361, 16
        %v772 = vrot.slane %v770, 1
        %v773 = vor.u32 %v768, %v772
        %v775 = vshll.u32 %v362, 16
        %v777 = vrot.slane %v775, 1
        %v778 = vsel %vm450, %v773, %v777
        %v779 = vshrl.u32 %v362, 16
        %v781 = vor.u32 %v779, %v777
        %v783 = vshrl.u32 %v363, 16
        %v785 = vshll.u32 %v363, 16
        %v787 = vrot.slane %v785, 1
        %v788 = vor.u32 %v783, %v787
        %v790 = vshll.u32 %v364, 16
        %v792 = vrot.slane %v790, 1
        %v793 = vsel %vm450, %v788, %v792
        %v794 = vshrl.u32 %v364, 16
        %v796 = vor.u32 %v794, %v792
        %v798 = vshrl.u32 %v365, 16
        %v800 = vshll.u32 %v365, 16
        %v802 = vrot.slane %v800, 1
        %v803 = vor.u32 %v798, %v802
        %v805 = vshll.u32 %v366, 16
        %v807 = vrot.slane %v805, 1
        %v808 = vsel %vm450, %v803, %v807
        %v809 = vshrl.u32 %v366, 16
        %v811 = vor.u32 %v809, %v807
        %v813 = vshrl.u32 %v367, 16
        %v815 = vshll.u32 %v367, 16
        %v817 = vrot.slane %v815, 1
        %v818 = vor.u32 %v813, %v817
        %v820 = vshll.u32 %v368, 16
        %v822 = vrot.slane %v820, 1
        %v823 = vsel %vm450, %v818, %v822
        %v824 = vshrl.u32 %v368, 16
        %v826 = vor.u32 %v824, %v822
        %v828 = vshrl.u32 %v369, 16
        %v830 = vshll.u32 %v369, 16
        %v832 = vrot.slane %v830, 1
        %v833 = vor.u32 %v828, %v832
        %v835 = vshll.u32 %v370, 16
        %v837 = vrot.slane %v835, 1
        %v838 = vsel %vm450, %v833, %v837
        %v839 = vshrl.u32 %v370, 16
        %v841 = vor.u32 %v839, %v837
        %v843 = vshrl.u32 %v371, 16
        %v845 = vshll.u32 %v371, 16
        %v847 = vrot.slane %v845, 1
        %v848 = vor.u32 %v843, %v847
        %v850 = vshll.u32 %v372, 16
        %v852 = vrot.slane %v850, 1
        %v853 = vsel %vm450, %v848, %v852
        %v854 = vshrl.u32 %v372, 16
        %v856 = vor.u32 %v854, %v852
        %v858 = vshrl.u32 %v373, 16
        %v860 = vshll.u32 %v373, 16
        %v862 = vrot.slane %v860, 1
        %v863 = vor.u32 %v858, %v862
        %v865 = vshll.u32 %v374, 16
        %v867 = vrot.slane %v865, 1
        %v868 = vsel %vm450, %v863, %v867
        %v869 = vshrl.u32 %v374, 16
        %v871 = vor.u32 %v869, %v867
        %v896 = vrot.slane %v351, 1
        %v897 = vrot.slane %v352, 1
        %v898 = vsel %vm655, %v896, %v897
        %v899 = vrot.slane %v353, 1
        %v900 = vrot.slane %v354, 1
        %v901 = vsel %vm655, %v899, %v900
        %v902 = vrot.slane %v355, 1
        %v903 = vrot.slane %v356, 1
        %v904 = vsel %vm655, %v902, %v903
        %v905 = vrot.slane %v357, 1
        %v906 = vrot.slane %v358, 1
        %v907 = vsel %vm655, %v905, %v906
        %v908 = vrot.slane %v359, 1
        %v909 = vrot.slane %v360, 1
        %v910 = vsel %vm655, %v908, %v909
        %v911 = vrot.slane %v361, 1
        %v912 = vrot.slane %v362, 1
        %v913 = vsel %vm655, %v911, %v912
        %v914 = vrot.slane %v363, 1
        %v915 = vrot.slane %v364, 1
        %v916 = vsel %vm655, %v914, %v915
        %v917 = vrot.slane %v365, 1
        %v918 = vrot.slane %v366, 1
        %v919 = vsel %vm655, %v917, %v918
        %v920 = vrot.slane %v367, 1
        %v921 = vrot.slane %v368, 1
        %v922 = vsel %vm655, %v920, %v921
        %v923 = vrot.slane %v369, 1
        %v924 = vrot.slane %v370, 1
        %v925 = vsel %vm655, %v923, %v924
        %v926 = vrot.slane %v371, 1
        %v927 = vrot.slane %v372, 1
        %v928 = vsel %vm655, %v926, %v927
        %v929 = vrot.slane %v373, 1
        %v930 = vrot.slane %v374, 1
        %v931 = vsel %vm655, %v929, %v930
        %v933 = vshrl.u32 %v426, 16
        %v935 = vshll.u32 %v426, 16
        %v937 = vrot.slane %v935, 1
        %v938 = vor.u32 %v933, %v937
        %v940 = vshll.u32 %v427, 16
        %v942 = vrot.slane %v940, 1
        %v943 = vsel %vm450, %v938, %v942
        %v944 = vshrl.u32 %v427, 16
        %v946 = vor.u32 %v944, %v942
        %v948 = vshrl.u32 %v428, 16
        %v950 = vshll.u32 %v428, 16
        %v952 = vrot.slane %v950, 1
        %v953 = vor.u32 %v948, %v952
        %v955 = vshll.u32 %v429, 16
        %v957 = vrot.slane %v955, 1
        %v958 = vsel %vm450, %v953, %v957
        %v959 = vshrl.u32 %v429, 16
        %v961 = vor.u32 %v959, %v957
        %v963 = vshrl.u32 %v430, 16
        %v965 = vshll.u32 %v430, 16
        %v967 = vrot.slane %v965, 1
        %v968 = vor.u32 %v963, %v967
        %v970 = vshll.u32 %v431, 16
        %v972 = vrot.slane %v970, 1
        %v973 = vsel %vm450, %v968, %v972
        %v974 = vshrl.u32 %v431, 16
        %v976 = vor.u32 %v974, %v972
        %v978 = vshrl.u32 %v432, 16
        %v980 = vshll.u32 %v432, 16
        %v982 = vrot.slane %v980, 1
        %v983 = vor.u32 %v978, %v982
        %v985 = vshll.u32 %v433, 16
        %v987 = vrot.slane %v985, 1
        %v988 = vsel %vm450, %v983, %v987
        %v989 = vshrl.u32 %v433, 16
        %v991 = vor.u32 %v989, %v987
        %v993 = vshrl.u32 %v434, 16
        %v995 = vshll.u32 %v434, 16
        %v997 = vrot.slane %v995, 1
        %v998 = vor.u32 %v993, %v997
        %v1000 = vshll.u32 %v435, 16
        %v1002 = vrot.slane %v1000, 1
        %v1003 = vsel %vm450, %v998, %v1002
        %v1004 = vshrl.u32 %v435, 16
        %v1006 = vor.u32 %v1004, %v1002
        %v1008 = vshrl.u32 %v436, 16
        %v1010 = vshll.u32 %v436, 16
        %v1012 = vrot.slane %v1010, 1
        %v1013 = vor.u32 %v1008, %v1012
        %v1015 = vshll.u32 %v437, 16
        %v1017 = vrot.slane %v1015, 1
        %v1018 = vsel %vm450, %v1013, %v1017
        %v1019 = vshrl.u32 %v437, 16
        %v1021 = vor.u32 %v1019, %v1017
        %v1023 = vshrl.u32 %v438, 16
        %v1025 = vshll.u32 %v438, 16
        %v1027 = vrot.slane %v1025, 1
        %v1028 = vor.u32 %v1023, %v1027
        %v1030 = vshll.u32 %v439, 16
        %v1032 = vrot.slane %v1030, 1
        %v1033 = vsel %vm450, %v1028, %v1032
        %v1034 = vshrl.u32 %v439, 16
        %v1036 = vor.u32 %v1034, %v1032
        %v1038 = vshrl.u32 %v440, 16
        %v1040 = vshll.u32 %v440, 16
        %v1042 = vrot.slane %v1040, 1
        %v1043 = vor.u32 %v1038, %v1042
        %v1045 = vshll.u32 %v441, 16
        %v1047 = vrot.slane %v1045, 1
        %v1048 = vsel %vm450, %v1043, %v1047
        %v1049 = vshrl.u32 %v441, 16
        %v1051 = vor.u32 %v1049, %v1047
        %v1053 = vshrl.u32 %v442, 16
        %v1055 = vshll.u32 %v442, 16
        %v1057 = vrot.slane %v1055, 1
        %v1058 = vor.u32 %v1053, %v1057
        %v1060 = vshll.u32 %v443, 16
        %v1062 = vrot.slane %v1060, 1
        %v1063 = vsel %vm450, %v1058, %v1062
        %v1064 = vshrl.u32 %v443, 16
        %v1066 = vor.u32 %v1064, %v1062
        %v1068 = vshrl.u32 %v444, 16
        %v1070 = vshll.u32 %v444, 16
        %v1072 = vrot.slane %v1070, 1
        %v1073 = vor.u32 %v1068, %v1072
        %v1075 = vshll.u32 %v445, 16
        %v1077 = vrot.slane %v1075, 1
        %v1078 = vsel %vm450, %v1073, %v1077
        %v1079 = vshrl.u32 %v445, 16
        %v1081 = vor.u32 %v1079, %v1077
        %v1083 = vshrl.u32 %v446, 16
        %v1085 = vshll.u32 %v446, 16
        %v1087 = vrot.slane %v1085, 1
        %v1088 = vor.u32 %v1083, %v1087
        %v1090 = vshll.u32 %v447, 16
        %v1092 = vrot.slane %v1090, 1
        %v1093 = vsel %vm450, %v1088, %v1092
        %v1094 = vshrl.u32 %v447, 16
        %v1096 = vor.u32 %v1094, %v1092
        %v1098 = vshrl.u32 %v448, 16
        %v1100 = vshll.u32 %v448, 16
        %v1102 = vrot.slane %v1100, 1
        %v1103 = vor.u32 %v1098, %v1102
        %v1105 = vshll.u32 %v449, 16
        %v1107 = vrot.slane %v1105, 1
        %v1108 = vsel %vm450, %v1103, %v1107
        %v1109 = vshrl.u32 %v449, 16
        %v1111 = vor.u32 %v1109, %v1107
        %v1136 = vrot.slane %v426, 1
        %v1137 = vrot.slane %v427, 1
        %v1138 = vsel %vm655, %v1136, %v1137
        %v1139 = vrot.slane %v428, 1
        %v1140 = vrot.slane %v429, 1
        %v1141 = vsel %vm655, %v1139, %v1140
        %v1142 = vrot.slane %v430, 1
        %v1143 = vrot.slane %v431, 1
        %v1144 = vsel %vm655, %v1142, %v1143
        %v1145 = vrot.slane %v432, 1
        %v1146 = vrot.slane %v433, 1
        %v1147 = vsel %vm655, %v1145, %v1146
        %v1148 = vrot.slane %v434, 1
        %v1149 = vrot.slane %v435, 1
        %v1150 = vsel %vm655, %v1148, %v1149
        %v1151 = vrot.slane %v436, 1
        %v1152 = vrot.slane %v437, 1
        %v1153 = vsel %vm655, %v1151, %v1152
        %v1154 = vrot.slane %v438, 1
        %v1155 = vrot.slane %v439, 1
        %v1156 = vsel %vm655, %v1154, %v1155
        %v1157 = vrot.slane %v440, 1
        %v1158 = vrot.slane %v441, 1
        %v1159 = vsel %vm655, %v1157, %v1158
        %v1160 = vrot.slane %v442, 1
        %v1161 = vrot.slane %v443, 1
        %v1162 = vsel %vm655, %v1160, %v1161
        %v1163 = vrot.slane %v444, 1
        %v1164 = vrot.slane %v445, 1
        %v1165 = vsel %vm655, %v1163, %v1164
        %v1166 = vrot.slane %v446, 1
        %v1167 = vrot.slane %v447, 1
        %v1168 = vsel %vm655, %v1166, %v1167
        %v1169 = vrot.slane %v448, 1
        %v1170 = vrot.slane %v449, 1
        %v1171 = vsel %vm655, %v1169, %v1170
        %v1172 = vunpack.c.l.b16 %v276
        %v1173 = vunpack.c.l.b16 %v462
        %v1174 = vunpack.c.l.b16 %v658
        %v1175 = vunpack.c.l.b16 %v351
        %v1176 = vunpack.c.l.b16 %v703
        %v1177 = vunpack.c.l.b16 %v898
        %v1178 = vunpack.c.l.b16 %v426
        %v1179 = vunpack.c.l.b16 %v943
        %v1180 = vunpack.c.l.b16 %v1138
        %v1181 = vunpack.c.h.b16 %v276
        %v1182 = vunpack.c.h.b16 %v462
        %v1183 = vunpack.c.h.b16 %v658
        %v1184 = vunpack.c.h.b16 %v351
        %v1185 = vunpack.c.h.b16 %v703
        %v1186 = vunpack.c.h.b16 %v898
        %v1187 = vunpack.c.h.b16 %v426
        %v1188 = vunpack.c.h.b16 %v943
        %v1189 = vunpack.c.h.b16 %v1138
        %v1190 = vunpack.c.l.b16 %v277
        %v1191 = vunpack.c.l.b16 %v465
        %v1192 = vunpack.c.l.b16 %v657
        %v1193 = vunpack.c.l.b16 %v352
        %v1194 = vunpack.c.l.b16 %v706
        %v1195 = vunpack.c.l.b16 %v897
        %v1196 = vunpack.c.l.b16 %v427
        %v1197 = vunpack.c.l.b16 %v946
        %v1198 = vunpack.c.l.b16 %v1137
        %v1199 = vunpack.c.l.b16 %v278
        %v1200 = vunpack.c.l.b16 %v477
        %v1201 = vunpack.c.l.b16 %v661
        %v1202 = vunpack.c.l.b16 %v353
        %v1203 = vunpack.c.l.b16 %v718
        %v1204 = vunpack.c.l.b16 %v901
        %v1205 = vunpack.c.l.b16 %v428
        %v1206 = vunpack.c.l.b16 %v958
        %v1207 = vunpack.c.l.b16 %v1141
        %v1208 = vunpack.c.h.b16 %v278
        %v1209 = vunpack.c.h.b16 %v477
        %v1210 = vunpack.c.h.b16 %v661
        %v1211 = vunpack.c.h.b16 %v353
        %v1212 = vunpack.c.h.b16 %v718
        %v1213 = vunpack.c.h.b16 %v901
        %v1214 = vunpack.c.h.b16 %v428
        %v1215 = vunpack.c.h.b16 %v958
        %v1216 = vunpack.c.h.b16 %v1141
        %v1217 = vunpack.c.l.b16 %v279
        %v1218 = vunpack.c.l.b16 %v480
        %v1219 = vunpack.c.l.b16 %v660
        %v1220 = vunpack.c.l.b16 %v354
        %v1221 = vunpack.c.l.b16 %v721
        %v1222 = vunpack.c.l.b16 %v900
        %v1223 = vunpack.c.l.b16 %v429
        %v1224 = vunpack.c.l.b16 %v961
        %v1225 = vunpack.c.l.b16 %v1140
        %v1226 = vunpack.c.l.b16 %v280
        %v1227 = vunpack.c.l.b16 %v492
        %v1228 = vunpack.c.l.b16 %v664
        %v1229 = vunpack.c.l.b16 %v355
        %v1230 = vunpack.c.l.b16 %v733
        %v1231 = vunpack.c.l.b16 %v904
        %v1232 = vunpack.c.l.b16 %v430
        %v1233 = vunpack.c.l.b16 %v973
        %v1234 = vunpack.c.l.b16 %v1144
        %v1235 = vunpack.c.h.b16 %v280
        %v1236 = vunpack.c.h.b16 %v492
        %v1237 = vunpack.c.h.b16 %v664
        %v1238 = vunpack.c.h.b16 %v355
        %v1239 = vunpack.c.h.b16 %v733
        %v1240 = vunpack.c.h.b16 %v904
        %v1241 = vunpack.c.h.b16 %v430
        %v1242 = vunpack.c.h.b16 %v973
        %v1243 = vunpack.c.h.b16 %v1144
        %v1244 = vunpack.c.l.b16 %v281
        %v1245 = vunpack.c.l.b16 %v495
        %v1246 = vunpack.c.l.b16 %v663
        %v1247 = vunpack.c.l.b16 %v356
        %v1248 = vunpack.c.l.b16 %v736
        %v1249 = vunpack.c.l.b16 %v903
        %v1250 = vunpack.c.l.b16 %v431
        %v1251 = vunpack.c.l.b16 %v976
        %v1252 = vunpack.c.l.b16 %v1143
        %v1253 = vunpack.c.l.b16 %v282
        %v1254 = vunpack.c.l.b16 %v507
        %v1255 = vunpack.c.l.b16 %v667
        %v1256 = vunpack.c.l.b16 %v357
        %v1257 = vunpack.c.l.b16 %v748
        %v1258 = vunpack.c.l.b16 %v907
        %v1259 = vunpack.c.l.b16 %v432
        %v1260 = vunpack.c.l.b16 %v988
        %v1261 = vunpack.c.l.b16 %v1147
        %v1262 = vunpack.c.h.b16 %v282
        %v1263 = vunpack.c.h.b16 %v507
        %v1264 = vunpack.c.h.b16 %v667
        %v1265 = vunpack.c.h.b16 %v357
        %v1266 = vunpack.c.h.b16 %v748
        %v1267 = vunpack.c.h.b16 %v907
        %v1268 = vunpack.c.h.b16 %v432
        %v1269 = vunpack.c.h.b16 %v988
        %v1270 = vunpack.c.h.b16 %v1147
        %v1271 = vunpack.c.l.b16 %v283
        %v1272 = vunpack.c.l.b16 %v510
        %v1273 = vunpack.c.l.b16 %v666
        %v1274 = vunpack.c.l.b16 %v358
        %v1275 = vunpack.c.l.b16 %v751
        %v1276 = vunpack.c.l.b16 %v906
        %v1277 = vunpack.c.l.b16 %v433
        %v1278 = vunpack.c.l.b16 %v991
        %v1279 = vunpack.c.l.b16 %v1146
        %v1280 = vunpack.c.l.b16 %v284
        %v1281 = vunpack.c.l.b16 %v522
        %v1282 = vunpack.c.l.b16 %v670
        %v1283 = vunpack.c.l.b16 %v359
        %v1284 = vunpack.c.l.b16 %v763
        %v1285 = vunpack.c.l.b16 %v910
        %v1286 = vunpack.c.l.b16 %v434
        %v1287 = vunpack.c.l.b16 %v1003
        %v1288 = vunpack.c.l.b16 %v1150
        %v1289 = vunpack.c.h.b16 %v284
        %v1290 = vunpack.c.h.b16 %v522
        %v1291 = vunpack.c.h.b16 %v670
        %v1292 = vunpack.c.h.b16 %v359
        %v1293 = vunpack.c.h.b16 %v763
        %v1294 = vunpack.c.h.b16 %v910
        %v1295 = vunpack.c.h.b16 %v434
        %v1296 = vunpack.c.h.b16 %v1003
        %v1297 = vunpack.c.h.b16 %v1150
        %v1298 = vunpack.c.l.b16 %v285
        %v1299 = vunpack.c.l.b16 %v525
        %v1300 = vunpack.c.l.b16 %v669
        %v1301 = vunpack.c.l.b16 %v360
        %v1302 = vunpack.c.l.b16 %v766
        %v1303 = vunpack.c.l.b16 %v909
        %v1304 = vunpack.c.l.b16 %v435
        %v1305 = vunpack.c.l.b16 %v1006
        %v1306 = vunpack.c.l.b16 %v1149
        %v1307 = vunpack.c.l.b16 %v286
        %v1308 = vunpack.c.l.b16 %v537
        %v1309 = vunpack.c.l.b16 %v673
        %v1310 = vunpack.c.l.b16 %v361
        %v1311 = vunpack.c.l.b16 %v778
        %v1312 = vunpack.c.l.b16 %v913
        %v1313 = vunpack.c.l.b16 %v436
        %v1314 = vunpack.c.l.b16 %v1018
        %v1315 = vunpack.c.l.b16 %v1153
        %v1316 = vunpack.c.h.b16 %v286
        %v1317 = vunpack.c.h.b16 %v537
        %v1318 = vunpack.c.h.b16 %v673
        %v1319 = vunpack.c.h.b16 %v361
        %v1320 = vunpack.c.h.b16 %v778
        %v1321 = vunpack.c.h.b16 %v913
        %v1322 = vunpack.c.h.b16 %v436
        %v1323 = vunpack.c.h.b16 %v1018
        %v1324 = vunpack.c.h.b16 %v1153
        %v1325 = vunpack.c.l.b16 %v287
        %v1326 = vunpack.c.l.b16 %v540
        %v1327 = vunpack.c.l.b16 %v672
        %v1328 = vunpack.c.l.b16 %v362
        %v1329 = vunpack.c.l.b16 %v781
        %v1330 = vunpack.c.l.b16 %v912
        %v1331 = vunpack.c.l.b16 %v437
        %v1332 = vunpack.c.l.b16 %v1021
        %v1333 = vunpack.c.l.b16 %v1152
        %v1334 = vunpack.c.l.b16 %v288
        %v1335 = vunpack.c.l.b16 %v552
        %v1336 = vunpack.c.l.b16 %v676
        %v1337 = vunpack.c.l.b16 %v363
        %v1338 = vunpack.c.l.b16 %v793
        %v1339 = vunpack.c.l.b16 %v916
        %v1340 = vunpack.c.l.b16 %v438
        %v1341 = vunpack.c.l.b16 %v1033
        %v1342 = vunpack.c.l.b16 %v1156
        %v1343 = vunpack.c.h.b16 %v288
        %v1344 = vunpack.c.h.b16 %v552
        %v1345 = vunpack.c.h.b16 %v676
        %v1346 = vunpack.c.h.b16 %v363
        %v1347 = vunpack.c.h.b16 %v793
        %v1348 = vunpack.c.h.b16 %v916
        %v1349 = vunpack.c.h.b16 %v438
        %v1350 = vunpack.c.h.b16 %v1033
        %v1351 = vunpack.c.h.b16 %v1156
        %v1352 = vunpack.c.l.b16 %v289
        %v1353 = vunpack.c.l.b16 %v555
        %v1354 = vunpack.c.l.b16 %v675
        %v1355 = vunpack.c.l.b16 %v364
        %v1356 = vunpack.c.l.b16 %v796
        %v1357 = vunpack.c.l.b16 %v915
        %v1358 = vunpack.c.l.b16 %v439
        %v1359 = vunpack.c.l.b16 %v1036
        %v1360 = vunpack.c.l.b16 %v1155
        %v1361 = vunpack.c.l.b16 %v290
        %v1362 = vunpack.c.l.b16 %v567
        %v1363 = vunpack.c.l.b16 %v679
        %v1364 = vunpack.c.l.b16 %v365
        %v1365 = vunpack.c.l.b16 %v808
        %v1366 = vunpack.c.l.b16 %v919
        %v1367 = vunpack.c.l.b16 %v440
        %v1368 = vunpack.c.l.b16 %v1048
        %v1369 = vunpack.c.l.b16 %v1159
        %v1370 = vunpack.c.h.b16 %v290
        %v1371 = vunpack.c.h.b16 %v567
        %v1372 = vunpack.c.h.b16 %v679
        %v1373 = vunpack.c.h.b16 %v365
        %v1374 = vunpack.c.h.b16 %v808
        %v1375 = vunpack.c.h.b16 %v919
        %v1376 = vunpack.c.h.b16 %v440
        %v1377 = vunpack.c.h.b16 %v1048
        %v1378 = vunpack.c.h.b16 %v1159
        %v1379 = vunpack.c.l.b16 %v291
        %v1380 = vunpack.c.l.b16 %v570
        %v1381 = vunpack.c.l.b16 %v678
        %v1382 = vunpack.c.l.b16 %v366
        %v1383 = vunpack.c.l.b16 %v811
        %v1384 = vunpack.c.l.b16 %v918
        %v1385 = vunpack.c.l.b16 %v441
        %v1386 = vunpack.c.l.b16 %v1051
        %v1387 = vunpack.c.l.b16 %v1158
        %v1388 = vunpack.c.l.b16 %v292
        %v1389 = vunpack.c.l.b16 %v582
        %v1390 = vunpack.c.l.b16 %v682
        %v1391 = vunpack.c.l.b16 %v367
        %v1392 = vunpack.c.l.b16 %v823
        %v1393 = vunpack.c.l.b16 %v922
        %v1394 = vunpack.c.l.b16 %v442
        %v1395 = vunpack.c.l.b16 %v1063
        %v1396 = vunpack.c.l.b16 %v1162
        %v1397 = vunpack.c.h.b16 %v292
        %v1398 = vunpack.c.h.b16 %v582
        %v1399 = vunpack.c.h.b16 %v682
        %v1400 = vunpack.c.h.b16 %v367
        %v1401 = vunpack.c.h.b16 %v823
        %v1402 = vunpack.c.h.b16 %v922
        %v1403 = vunpack.c.h.b16 %v442
        %v1404 = vunpack.c.h.b16 %v1063
        %v1405 = vunpack.c.h.b16 %v1162
        %v1406 = vunpack.c.l.b16 %v293
        %v1407 = vunpack.c.l.b16 %v585
        %v1408 = vunpack.c.l.b16 %v681
        %v1409 = vunpack.c.l.b16 %v368
        %v1410 = vunpack.c.l.b16 %v826
        %v1411 = vunpack.c.l.b16 %v921
        %v1412 = vunpack.c.l.b16 %v443
        %v1413 = vunpack.c.l.b16 %v1066
        %v1414 = vunpack.c.l.b16 %v1161
        %v1415 = vunpack.c.l.b16 %v294
        %v1416 = vunpack.c.l.b16 %v597
        %v1417 = vunpack.c.l.b16 %v685
        %v1418 = vunpack.c.l.b16 %v369
        %v1419 = vunpack.c.l.b16 %v838
        %v1420 = vunpack.c.l.b16 %v925
        %v1421 = vunpack.c.l.b16 %v444
        %v1422 = vunpack.c.l.b16 %v1078
        %v1423 = vunpack.c.l.b16 %v1165
        %v1424 = vunpack.c.h.b16 %v294
        %v1425 = vunpack.c.h.b16 %v597
        %v1426 = vunpack.c.h.b16 %v685
        %v1427 = vunpack.c.h.b16 %v369
        %v1428 = vunpack.c.h.b16 %v838
        %v1429 = vunpack.c.h.b16 %v925
        %v1430 = vunpack.c.h.b16 %v444
        %v1431 = vunpack.c.h.b16 %v1078
        %v1432 = vunpack.c.h.b16 %v1165
        %v1433 = vunpack.c.l.b16 %v295
        %v1434 = vunpack.c.l.b16 %v600
        %v1435 = vunpack.c.l.b16 %v684
        %v1436 = vunpack.c.l.b16 %v370
        %v1437 = vunpack.c.l.b16 %v841
        %v1438 = vunpack.c.l.b16 %v924
        %v1439 = vunpack.c.l.b16 %v445
        %v1440 = vunpack.c.l.b16 %v1081
        %v1441 = vunpack.c.l.b16 %v1164
        %v1442 = vunpack.c.l.b16 %v296
        %v1443 = vunpack.c.l.b16 %v612
        %v1444 = vunpack.c.l.b16 %v688
        %v1445 = vunpack.c.l.b16 %v371
        %v1446 = vunpack.c.l.b16 %v853
        %v1447 = vunpack.c.l.b16 %v928
        %v1448 = vunpack.c.l.b16 %v446
        %v1449 = vunpack.c.l.b16 %v1093
        %v1450 = vunpack.c.l.b16 %v1168
        %v1451 = vunpack.c.h.b16 %v296
        %v1452 = vunpack.c.h.b16 %v612
        %v1453 = vunpack.c.h.b16 %v688
        %v1454 = vunpack.c.h.b16 %v371
        %v1455 = vunpack.c.h.b16 %v853
        %v1456 = vunpack.c.h.b16 %v928
        %v1457 = vunpack.c.h.b16 %v446
        %v1458 = vunpack.c.h.b16 %v1093
        %v1459 = vunpack.c.h.b16 %v1168
        %v1460 = vunpack.c.l.b16 %v297
        %v1461 = vunpack.c.l.b16 %v615
        %v1462 = vunpack.c.l.b16 %v687
        %v1463 = vunpack.c.l.b16 %v372
        %v1464 = vunpack.c.l.b16 %v856
        %v1465 = vunpack.c.l.b16 %v927
        %v1466 = vunpack.c.l.b16 %v447
        %v1467 = vunpack.c.l.b16 %v1096
        %v1468 = vunpack.c.l.b16 %v1167
        %v1469 = vunpack.c.l.b16 %v298
        %v1470 = vunpack.c.l.b16 %v627
        %v1471 = vunpack.c.l.b16 %v691
        %v1472 = vunpack.c.l.b16 %v373
        %v1473 = vunpack.c.l.b16 %v868
        %v1474 = vunpack.c.l.b16 %v931
        %v1475 = vunpack.c.l.b16 %v448
        %v1476 = vunpack.c.l.b16 %v1108
        %v1477 = vunpack.c.l.b16 %v1171
        %v1478 = vunpack.c.h.b16 %v298
        %v1479 = vunpack.c.h.b16 %v627
        %v1480 = vunpack.c.h.b16 %v691
        %v1481 = vunpack.c.h.b16 %v373
        %v1482 = vunpack.c.h.b16 %v868
        %v1483 = vunpack.c.h.b16 %v931
        %v1484 = vunpack.c.h.b16 %v448
        %v1485 = vunpack.c.h.b16 %v1108
        %v1486 = vunpack.c.h.b16 %v1171
        %v1487 = vunpack.c.l.b16 %v299
        %v1488 = vunpack.c.l.b16 %v630
        %v1489 = vunpack.c.l.b16 %v690
        %v1490 = vunpack.c.l.b16 %v374
        %v1491 = vunpack.c.l.b16 %v871
        %v1492 = vunpack.c.l.b16 %v930
        %v1493 = vunpack.c.l.b16 %v449
        %v1494 = vunpack.c.l.b16 %v1111
        %v1495 = vunpack.c.l.b16 %v1170
        %v1496 = vld [vmem:[#allocation2] sm:$0xf]
        %v1497 = vld [vmem:[#allocation2 + $0x4] sm:$0xf]
        %v1498 = vld [vmem:[#allocation2 + $0x8] sm:$0xf]
        %v1499 = vld [vmem:[#allocation2 + $0xc] sm:$0xf]
        %v1500 = vld [vmem:[#allocation2 + $0x10] sm:$0xf]
        %v1501 = vld [vmem:[#allocation2 + $0x14] sm:$0xf]
        %v1502 = vld [vmem:[#allocation2 + $0x18] sm:$0xf]
        %v1503 = vld [vmem:[#allocation2 + $0x1c] sm:$0xf]
        %v1504 = vld [vmem:[#allocation2 + $0x20] sm:$0xf]
        %v1505 = vld [vmem:[#allocation2 + $0x24] sm:$0xf]
        %v1506 = vld [vmem:[#allocation2 + $0x28] sm:$0xf]
        %v1507 = vld [vmem:[#allocation2 + $0x2c] sm:$0xf]
        %v1508 = vld [vmem:[#allocation2 + $0x30] sm:$0xf]
        %v1509 = vld [vmem:[#allocation2 + $0x34] sm:$0xf]
        %v1510 = vld [vmem:[#allocation2 + $0x38] sm:$0xf]
        %v1511 = vld [vmem:[#allocation2 + $0x3c] sm:$0xf]
        %v1512 = vld [vmem:[#allocation2 + $0x40] sm:$0xf]
        %v1513 = vld [vmem:[#allocation2 + $0x44] sm:$0xf]
        %v1514 = vld [vmem:[#allocation2 + $0x48] sm:$0xf]
        %v1515 = vld [vmem:[#allocation2 + $0x4c] sm:$0xf]
        %v1516 = vld [vmem:[#allocation2 + $0x50] sm:$0xf]
        %v1517 = vld [vmem:[#allocation2 + $0x54] sm:$0xf]
        %v1518 = vld [vmem:[#allocation2 + $0x58] sm:$0xf]
        %v1519 = vld [vmem:[#allocation2 + $0x5c] sm:$0xf]
        %v1520 = vld [vmem:[#allocation2 + $0x60] sm:$0xf]
        %v1521 = vld [vmem:[#allocation2 + $0x64] sm:$0xf]
        %v1522 = vld [vmem:[#allocation2 + $0x68] sm:$0xf]
        %v1523 = vld [vmem:[#allocation2 + $0x6c] sm:$0xf]
        %v1524 = vld [vmem:[#allocation2 + $0x70] sm:$0xf]
        %v1525 = vld [vmem:[#allocation2 + $0x74] sm:$0xf]
        %v1526 = vld [vmem:[#allocation2 + $0x78] sm:$0xf]
        %v1527 = vld [vmem:[#allocation2 + $0x7c] sm:$0xf]
        %v1528 = vld [vmem:[#allocation2 + $0x80] sm:$0xf]
        %v1529 = vld [vmem:[#allocation2 + $0x84] sm:$0xf]
        %v1530 = vld [vmem:[#allocation2 + $0x88] sm:$0xf]
        %v1531 = vld [vmem:[#allocation2 + $0x8c] sm:$0xf]
        %v1532 = vld [vmem:[#allocation2 + $0x90] sm:$0xf]
        %v1533 = vld [vmem:[#allocation2 + $0x94] sm:$0xf]
        %v1534 = vld [vmem:[#allocation2 + $0x98] sm:$0xf]
        %v1535 = vld [vmem:[#allocation2 + $0x9c] sm:$0xf]
        %v1536 = vld [vmem:[#allocation2 + $0xa0] sm:$0xf]
        %v1537 = vld [vmem:[#allocation2 + $0xa4] sm:$0xf]
        %v1538 = vld [vmem:[#allocation2 + $0xa8] sm:$0xf]
        %v1539 = vld [vmem:[#allocation2 + $0xac] sm:$0xf]
        %v1540 = vld [vmem:[#allocation2 + $0xb0] sm:$0xf]
        %v1541 = vld [vmem:[#allocation2 + $0xb4] sm:$0xf]
        %v1542 = vld [vmem:[#allocation2 + $0xb8] sm:$0xf]
        %v1543 = vld [vmem:[#allocation2 + $0xbc] sm:$0xf]
        %v1544 = vld [vmem:[#allocation2 + $0xc0] sm:$0xf]
        %v1545 = vld [vmem:[#allocation2 + $0xc4] sm:$0xf]
        %v1546 = vld [vmem:[#allocation2 + $0xc8] sm:$0xf]
        %v1547 = vld [vmem:[#allocation2 + $0xcc] sm:$0xf]
        %v1548 = vld [vmem:[#allocation2 + $0xd0] sm:$0xf]
        %v1549 = vld [vmem:[#allocation2 + $0xd4] sm:$0xf]
        %v1550 = vld [vmem:[#allocation2 + $0xd8] sm:$0xf]
        %v1551 = vld [vmem:[#allocation2 + $0xdc] sm:$0xf]
        %v1552 = vld [vmem:[#allocation2 + $0xe0] sm:$0xf]
        %v1553 = vld [vmem:[#allocation2 + $0xe4] sm:$0xf]
        %v1554 = vld [vmem:[#allocation2 + $0xe8] sm:$0xf]
        %v1555 = vld [vmem:[#allocation2 + $0xec] sm:$0xf]
        %v1556 = vld [vmem:[#allocation2 + $0xf0] sm:$0xf]
        %v1557 = vld [vmem:[#allocation2 + $0xf4] sm:$0xf]
        %v1558 = vld [vmem:[#allocation2 + $0xf8] sm:$0xf]
        %v1559 = vld [vmem:[#allocation2 + $0xfc] sm:$0xf]
        %v1560 = vld [vmem:[#allocation2 + $0x100] sm:$0xf]
        %v1561 = vld [vmem:[#allocation2 + $0x104] sm:$0xf]
        %v1562 = vld [vmem:[#allocation2 + $0x108] sm:$0xf]
        %v1563 = vld [vmem:[#allocation2 + $0x10c] sm:$0xf]
        %v1564 = vld [vmem:[#allocation2 + $0x110] sm:$0xf]
        %v1565 = vld [vmem:[#allocation2 + $0x114] sm:$0xf]
        %v1566 = vld [vmem:[#allocation2 + $0x118] sm:$0xf]
        %v1567 = vld [vmem:[#allocation2 + $0x11c] sm:$0xf]
        %v1568 = vld [vmem:[#allocation2 + $0x120] sm:$0xf]
        %v1569 = vld [vmem:[#allocation2 + $0x124] sm:$0xf]
        %v1570 = vld [vmem:[#allocation2 + $0x128] sm:$0xf]
        %v1571 = vld [vmem:[#allocation2 + $0x12c] sm:$0xf]
        %v1572 = vld [vmem:[#allocation2 + $0x130] sm:$0xf]
        %v1573 = vld [vmem:[#allocation2 + $0x134] sm:$0xf]
        %v1574 = vld [vmem:[#allocation2 + $0x138] sm:$0xf]
        %v1575 = vld [vmem:[#allocation2 + $0x13c] sm:$0xf]
        %v1576 = vld [vmem:[#allocation2 + $0x140] sm:$0xf]
        %v1577 = vld [vmem:[#allocation2 + $0x144] sm:$0xf]
        %v1578 = vld [vmem:[#allocation2 + $0x148] sm:$0xf]
        %v1579 = vld [vmem:[#allocation2 + $0x14c] sm:$0xf]
        %v1580 = vld [vmem:[#allocation2 + $0x150] sm:$0xf]
        %v1581 = vld [vmem:[#allocation2 + $0x154] sm:$0xf]
        %v1582 = vld [vmem:[#allocation2 + $0x158] sm:$0xf]
        %v1583 = vld [vmem:[#allocation2 + $0x15c] sm:$0xf]
        %v1584 = vld [vmem:[#allocation2 + $0x160] sm:$0xf]
        %v1585 = vld [vmem:[#allocation2 + $0x164] sm:$0xf]
        %v1586 = vld [vmem:[#allocation2 + $0x168] sm:$0xf]
        %v1587 = vld [vmem:[#allocation2 + $0x16c] sm:$0xf]
        %v1588 = vld [vmem:[#allocation2 + $0x170] sm:$0xf]
        %v1589 = vld [vmem:[#allocation2 + $0x174] sm:$0xf]
        %v1590 = vld [vmem:[#allocation2 + $0x178] sm:$0xf]
        %v1591 = vld [vmem:[#allocation2 + $0x17c] sm:$0xf]
        %v1592 = vld [vmem:[#allocation2 + $0x180] sm:$0xf]
        %v1593 = vld [vmem:[#allocation2 + $0x184] sm:$0xf]
        %v1594 = vld [vmem:[#allocation2 + $0x188] sm:$0xf]
        %v1595 = vld [vmem:[#allocation2 + $0x18c] sm:$0xf]
        %v1596 = vld [vmem:[#allocation2 + $0x190] sm:$0xf]
        %v1597 = vld [vmem:[#allocation2 + $0x194] sm:$0xf]
        %v1598 = vld [vmem:[#allocation2 + $0x198] sm:$0xf]
        %v1599 = vld [vmem:[#allocation2 + $0x19c] sm:$0xf]
        %v1600 = vld [vmem:[#allocation2 + $0x1a0] sm:$0xf]
        %v1601 = vld [vmem:[#allocation2 + $0x1a4] sm:$0xf]
        %v1602 = vld [vmem:[#allocation2 + $0x1a8] sm:$0xf]
        %v1603 = vld [vmem:[#allocation2 + $0x1ac] sm:$0xf]
        %v1604 = vld [vmem:[#allocation2 + $0x1b0] sm:$0xf]
        %v1605 = vld [vmem:[#allocation2 + $0x1b4] sm:$0xf]
        %v1606 = vld [vmem:[#allocation2 + $0x1b8] sm:$0xf]
        %v1607 = vld [vmem:[#allocation2 + $0x1bc] sm:$0xf]
        %v1608 = vld [vmem:[#allocation2 + $0x1c0] sm:$0xf]
        %v1609 = vld [vmem:[#allocation2 + $0x1c4] sm:$0xf]
        %v1610 = vld [vmem:[#allocation2 + $0x1c8] sm:$0xf]
        %v1611 = vld [vmem:[#allocation2 + $0x1cc] sm:$0xf]
        %v1612 = vld [vmem:[#allocation2 + $0x1d0] sm:$0xf]
        %v1613 = vld [vmem:[#allocation2 + $0x1d4] sm:$0xf]
        %v1614 = vld [vmem:[#allocation2 + $0x1d8] sm:$0xf]
        %v1615 = vld [vmem:[#allocation2 + $0x1dc] sm:$0xf]
        %v1616 = vld [vmem:[#allocation2 + $0x1e0] sm:$0xf]
        %v1617 = vld [vmem:[#allocation2 + $0x1e4] sm:$0xf]
        %v1618 = vld [vmem:[#allocation2 + $0x1e8] sm:$0xf]
        %v1619 = vld [vmem:[#allocation2 + $0x1ec] sm:$0xf]
        %v1620 = vld [vmem:[#allocation2 + $0x1f0] sm:$0xf]
        %v1621 = vld [vmem:[#allocation2 + $0x1f4] sm:$0xf]
        %v1622 = vld [vmem:[#allocation2 + $0x1f8] sm:$0xf]
        %v1623 = vld [vmem:[#allocation2 + $0x1fc] sm:$0xf]
        %v1624 = vld [vmem:[#allocation2 + $0x200] sm:$0xf]
        %v1625 = vld [vmem:[#allocation2 + $0x204] sm:$0xf]
        %v1626 = vld [vmem:[#allocation2 + $0x208] sm:$0xf]
        %v1627 = vld [vmem:[#allocation2 + $0x20c] sm:$0xf]
        %v1628 = vld [vmem:[#allocation2 + $0x210] sm:$0xf]
        %v1629 = vld [vmem:[#allocation2 + $0x214] sm:$0xf]
        %v1630 = vld [vmem:[#allocation2 + $0x218] sm:$0xf]
        %v1631 = vld [vmem:[#allocation2 + $0x21c] sm:$0xf]
        %v1632 = vld [vmem:[#allocation2 + $0x220] sm:$0xf]
        %v1633 = vld [vmem:[#allocation2 + $0x224] sm:$0xf]
        %v1634 = vld [vmem:[#allocation2 + $0x228] sm:$0xf]
        %v1635 = vld [vmem:[#allocation2 + $0x22c] sm:$0xf]
        %v1636 = vld [vmem:[#allocation2 + $0x230] sm:$0xf]
        %v1637 = vld [vmem:[#allocation2 + $0x234] sm:$0xf]
        %v1638 = vld [vmem:[#allocation2 + $0x238] sm:$0xf]
        %v1639 = vld [vmem:[#allocation2 + $0x23c] sm:$0xf]
        %v1640 = vld [vmem:[#allocation4] sm:$0x1]
        %v1642 = vlaneseq
        %v1643 = vshrl.u32 %v1642, 7
        %v1644 = vsub.s32 0, %v1643
        %v1645 = vrot.slane %v1640, %v1644
        %v1647 = vpack.c.b16 %v1181, %v1172
        %v1648 = vpack.c.b16 %v1182, %v1173
        %v1649 = vpack.c.b16 %v1183, %v1174
        %v1650 = vpack.c.b16 %v1184, %v1175
        %v1651 = vpack.c.b16 %v1185, %v1176
        %v1652 = vpack.c.b16 %v1186, %v1177
        %v1653 = vpack.c.b16 %v1187, %v1178
        %v1654 = vpack.c.b16 %v1188, %v1179
        %v1655 = vpack.c.b16 %v1189, %v1180
        %v1656 = vpack.c.b16 %v1199, %v1190
        %v1657 = vpack.c.b16 %v1200, %v1191
        %v1658 = vpack.c.b16 %v1201, %v1192
        %v1659 = vpack.c.b16 %v1202, %v1193
        %v1660 = vpack.c.b16 %v1203, %v1194
        %v1661 = vpack.c.b16 %v1204, %v1195
        %v1662 = vpack.c.b16 %v1205, %v1196
        %v1663 = vpack.c.b16 %v1206, %v1197
        %v1664 = vpack.c.b16 %v1207, %v1198
        %v1665 = vpack.c.b16 %v1217, %v1208
        %v1666 = vpack.c.b16 %v1218, %v1209
        %v1667 = vpack.c.b16 %v1219, %v1210
        %v1668 = vpack.c.b16 %v1220, %v1211
        %v1669 = vpack.c.b16 %v1221, %v1212
        %v1670 = vpack.c.b16 %v1222, %v1213
        %v1671 = vpack.c.b16 %v1223, %v1214
        %v1672 = vpack.c.b16 %v1224, %v1215
        %v1673 = vpack.c.b16 %v1225, %v1216
        %v1674 = vpack.c.b16 %v1235, %v1226
        %v1675 = vpack.c.b16 %v1236, %v1227
        %v1676 = vpack.c.b16 %v1237, %v1228
        %v1677 = vpack.c.b16 %v1238, %v1229
        %v1678 = vpack.c.b16 %v1239, %v1230
        %v1679 = vpack.c.b16 %v1240, %v1231
        %v1680 = vpack.c.b16 %v1241, %v1232
        %v1681 = vpack.c.b16 %v1242, %v1233
        %v1682 = vpack.c.b16 %v1243, %v1234
        %v1683 = vpack.c.b16 %v1253, %v1244
        %v1684 = vpack.c.b16 %v1254, %v1245
        %v1685 = vpack.c.b16 %v1255, %v1246
        %v1686 = vpack.c.b16 %v1256, %v1247
        %v1687 = vpack.c.b16 %v1257, %v1248
        %v1688 = vpack.c.b16 %v1258, %v1249
        %v1689 = vpack.c.b16 %v1259, %v1250
        %v1690 = vpack.c.b16 %v1260, %v1251
        %v1691 = vpack.c.b16 %v1261, %v1252
        %v1692 = vpack.c.b16 %v1271, %v1262
        %v1693 = vpack.c.b16 %v1272, %v1263
        %v1694 = vpack.c.b16 %v1273, %v1264
        %v1695 = vpack.c.b16 %v1274, %v1265
        %v1696 = vpack.c.b16 %v1275, %v1266
        %v1697 = vpack.c.b16 %v1276, %v1267
        %v1698 = vpack.c.b16 %v1277, %v1268
        %v1699 = vpack.c.b16 %v1278, %v1269
        %v1700 = vpack.c.b16 %v1279, %v1270
        %v1701 = vpack.c.b16 %v1289, %v1280
        %v1702 = vpack.c.b16 %v1290, %v1281
        %v1703 = vpack.c.b16 %v1291, %v1282
        %v1704 = vpack.c.b16 %v1292, %v1283
        %v1705 = vpack.c.b16 %v1293, %v1284
        %v1706 = vpack.c.b16 %v1294, %v1285
        %v1707 = vpack.c.b16 %v1295, %v1286
        %v1708 = vpack.c.b16 %v1296, %v1287
        %v1709 = vpack.c.b16 %v1297, %v1288
        %v1710 = vpack.c.b16 %v1307, %v1298
        %v1711 = vpack.c.b16 %v1308, %v1299
        %v1712 = vpack.c.b16 %v1309, %v1300
        %v1713 = vpack.c.b16 %v1310, %v1301
        %v1714 = vpack.c.b16 %v1311, %v1302
        %v1715 = vpack.c.b16 %v1312, %v1303
        %v1716 = vpack.c.b16 %v1313, %v1304
        %v1717 = vpack.c.b16 %v1314, %v1305
        %v1718 = vpack.c.b16 %v1315, %v1306
        %v1719 = vpack.c.b16 %v1325, %v1316
        %v1720 = vpack.c.b16 %v1326, %v1317
        %v1721 = vpack.c.b16 %v1327, %v1318
        %v1722 = vpack.c.b16 %v1328, %v1319
        %v1723 = vpack.c.b16 %v1329, %v1320
        %v1724 = vpack.c.b16 %v1330, %v1321
        %v1725 = vpack.c.b16 %v1331, %v1322
        %v1726 = vpack.c.b16 %v1332, %v1323
        %v1727 = vpack.c.b16 %v1333, %v1324
        %v1728 = vpack.c.b16 %v1343, %v1334
        %v1729 = vpack.c.b16 %v1344, %v1335
        %v1730 = vpack.c.b16 %v1345, %v1336
        %v1731 = vpack.c.b16 %v1346, %v1337
        %v1732 = vpack.c.b16 %v1347, %v1338
        %v1733 = vpack.c.b16 %v1348, %v1339
        %v1734 = vpack.c.b16 %v1349, %v1340
        %v1735 = vpack.c.b16 %v1350, %v1341
        %v1736 = vpack.c.b16 %v1351, %v1342
        %v1737 = vpack.c.b16 %v1361, %v1352
        %v1738 = vpack.c.b16 %v1362, %v1353
        %v1739 = vpack.c.b16 %v1363, %v1354
        %v1740 = vpack.c.b16 %v1364, %v1355
        %v1741 = vpack.c.b16 %v1365, %v1356
        %v1742 = vpack.c.b16 %v1366, %v1357
        %v1743 = vpack.c.b16 %v1367, %v1358
        %v1744 = vpack.c.b16 %v1368, %v1359
        %v1745 = vpack.c.b16 %v1369, %v1360
        %v1746 = vpack.c.b16 %v1379, %v1370
        %v1747 = vpack.c.b16 %v1380, %v1371
        %v1748 = vpack.c.b16 %v1381, %v1372
        %v1749 = vpack.c.b16 %v1382, %v1373
        %v1750 = vpack.c.b16 %v1383, %v1374
        %v1751 = vpack.c.b16 %v1384, %v1375
        %v1752 = vpack.c.b16 %v1385, %v1376
        %v1753 = vpack.c.b16 %v1386, %v1377
        %v1754 = vpack.c.b16 %v1387, %v1378
        %v1755 = vpack.c.b16 %v1397, %v1388
        %v1756 = vpack.c.b16 %v1398, %v1389
        %v1757 = vpack.c.b16 %v1399, %v1390
        %v1758 = vpack.c.b16 %v1400, %v1391
        %v1759 = vpack.c.b16 %v1401, %v1392
        %v1760 = vpack.c.b16 %v1402, %v1393
        %v1761 = vpack.c.b16 %v1403, %v1394
        %v1762 = vpack.c.b16 %v1404, %v1395
        %v1763 = vpack.c.b16 %v1405, %v1396
        %v1764 = vpack.c.b16 %v1415, %v1406
        %v1765 = vpack.c.b16 %v1416, %v1407
        %v1766 = vpack.c.b16 %v1417, %v1408
        %v1767 = vpack.c.b16 %v1418, %v1409
        %v1768 = vpack.c.b16 %v1419, %v1410
        %v1769 = vpack.c.b16 %v1420, %v1411
        %v1770 = vpack.c.b16 %v1421, %v1412
        %v1771 = vpack.c.b16 %v1422, %v1413
        %v1772 = vpack.c.b16 %v1423, %v1414
        %v1773 = vpack.c.b16 %v1433, %v1424
        %v1774 = vpack.c.b16 %v1434, %v1425
        %v1775 = vpack.c.b16 %v1435, %v1426
        %v1776 = vpack.c.b16 %v1436, %v1427
        %v1777 = vpack.c.b16 %v1437, %v1428
        %v1778 = vpack.c.b16 %v1438, %v1429
        %v1779 = vpack.c.b16 %v1439, %v1430
        %v1780 = vpack.c.b16 %v1440, %v1431
        %v1781 = vpack.c.b16 %v1441, %v1432
        %v1782 = vpack.c.b16 %v1451, %v1442
        %v1783 = vpack.c.b16 %v1452, %v1443
        %v1784 = vpack.c.b16 %v1453, %v1444
        %v1785 = vpack.c.b16 %v1454, %v1445
        %v1786 = vpack.c.b16 %v1455, %v1446
        %v1787 = vpack.c.b16 %v1456, %v1447
        %v1788 = vpack.c.b16 %v1457, %v1448
        %v1789 = vpack.c.b16 %v1458, %v1449
        %v1790 = vpack.c.b16 %v1459, %v1450
        %v1791 = vpack.c.b16 %v1469, %v1460
        %v1792 = vpack.c.b16 %v1470, %v1461
        %v1793 = vpack.c.b16 %v1471, %v1462
        %v1794 = vpack.c.b16 %v1472, %v1463
        %v1795 = vpack.c.b16 %v1473, %v1464
        %v1796 = vpack.c.b16 %v1474, %v1465
        %v1797 = vpack.c.b16 %v1475, %v1466
        %v1798 = vpack.c.b16 %v1476, %v1467
        %v1799 = vpack.c.b16 %v1477, %v1468
        %v1800 = vpack.c.b16 %v1487, %v1478
        %v1801 = vpack.c.b16 %v1488, %v1479
        %v1802 = vpack.c.b16 %v1489, %v1480
        %v1803 = vpack.c.b16 %v1490, %v1481
        %v1804 = vpack.c.b16 %v1491, %v1482
        %v1805 = vpack.c.b16 %v1492, %v1483
        %v1806 = vpack.c.b16 %v1493, %v1484
        %v1807 = vpack.c.b16 %v1494, %v1485
        %v1808 = vpack.c.b16 %v1495, %v1486
        %v2115 = vunpack.c.l.b16 %v1496
        %v2116 = vunpack.c.l.b16 %v1497
        %v2117 = vunpack.c.l.b16 %v1498
        %v2118 = vunpack.c.l.b16 %v1499
        %v2119 = vunpack.c.l.b16 %v1500
        %v2120 = vunpack.c.l.b16 %v1501
        %v2121 = vunpack.c.l.b16 %v1502
        %v2122 = vunpack.c.l.b16 %v1503
        %v2123 = vunpack.c.l.b16 %v1504
        %v2124 = vunpack.c.l.b16 %v1505
        %v2125 = vunpack.c.l.b16 %v1506
        %v2126 = vunpack.c.l.b16 %v1507
        %v2127 = vunpack.c.l.b16 %v1508
        %v2128 = vunpack.c.l.b16 %v1509
        %v2129 = vunpack.c.l.b16 %v1510
        %v2130 = vunpack.c.l.b16 %v1511
        %v2131 = vunpack.c.l.b16 %v1512
        %v2132 = vunpack.c.l.b16 %v1513
        %v2133 = vunpack.c.l.b16 %v1514
        %v2134 = vunpack.c.l.b16 %v1515
        %v2135 = vunpack.c.l.b16 %v1516
        %v2136 = vunpack.c.l.b16 %v1517
        %v2137 = vunpack.c.l.b16 %v1518
        %v2138 = vunpack.c.l.b16 %v1519
        %v2139 = vunpack.c.l.b16 %v1520
        %v2140 = vunpack.c.l.b16 %v1521
        %v2141 = vunpack.c.l.b16 %v1522
        %v2142 = vunpack.c.l.b16 %v1523
        %v2143 = vunpack.c.l.b16 %v1524
        %v2144 = vunpack.c.l.b16 %v1525
        %v2145 = vunpack.c.l.b16 %v1526
        %v2146 = vunpack.c.l.b16 %v1527
        %v2147 = vunpack.c.l.b16 %v1528
        %v2148 = vunpack.c.l.b16 %v1529
        %v2149 = vunpack.c.l.b16 %v1530
        %v2150 = vunpack.c.l.b16 %v1531
        %v2151 = vunpack.c.l.b16 %v1532
        %v2152 = vunpack.c.l.b16 %v1533
        %v2153 = vunpack.c.l.b16 %v1534
        %v2154 = vunpack.c.l.b16 %v1535
        %v2155 = vunpack.c.l.b16 %v1536
        %v2156 = vunpack.c.l.b16 %v1537
        %v2157 = vunpack.c.l.b16 %v1538
        %v2158 = vunpack.c.l.b16 %v1539
        %v2159 = vunpack.c.l.b16 %v1540
        %v2160 = vunpack.c.l.b16 %v1541
        %v2161 = vunpack.c.l.b16 %v1542
        %v2162 = vunpack.c.l.b16 %v1543
        %v2163 = vunpack.c.l.b16 %v1544
        %v2164 = vunpack.c.l.b16 %v1545
        %v2165 = vunpack.c.l.b16 %v1546
        %v2166 = vunpack.c.l.b16 %v1547
        %v2167 = vunpack.c.l.b16 %v1548
        %v2168 = vunpack.c.l.b16 %v1549
        %v2169 = vunpack.c.l.b16 %v1550
        %v2170 = vunpack.c.l.b16 %v1551
        %v2171 = vunpack.c.l.b16 %v1552
        %v2172 = vunpack.c.l.b16 %v1553
        %v2173 = vunpack.c.l.b16 %v1554
        %v2174 = vunpack.c.l.b16 %v1555
        %v2175 = vunpack.c.l.b16 %v1556
        %v2176 = vunpack.c.l.b16 %v1557
        %v2177 = vunpack.c.l.b16 %v1558
        %v2178 = vunpack.c.l.b16 %v1559
        %v2179 = vunpack.c.l.b16 %v1560
        %v2180 = vunpack.c.l.b16 %v1561
        %v2181 = vunpack.c.l.b16 %v1562
        %v2182 = vunpack.c.l.b16 %v1563
        %v2183 = vunpack.c.l.b16 %v1564
        %v2184 = vunpack.c.l.b16 %v1565
        %v2185 = vunpack.c.l.b16 %v1566
        %v2186 = vunpack.c.l.b16 %v1567
        %v2187 = vunpack.c.l.b16 %v1568
        %v2188 = vunpack.c.l.b16 %v1569
        %v2189 = vunpack.c.l.b16 %v1570
        %v2190 = vunpack.c.l.b16 %v1571
        %v2191 = vunpack.c.l.b16 %v1572
        %v2192 = vunpack.c.l.b16 %v1573
        %v2193 = vunpack.c.l.b16 %v1574
        %v2194 = vunpack.c.l.b16 %v1575
        %v2195 = vunpack.c.l.b16 %v1576
        %v2196 = vunpack.c.l.b16 %v1577
        %v2197 = vunpack.c.l.b16 %v1578
        %v2198 = vunpack.c.l.b16 %v1579
        %v2199 = vunpack.c.l.b16 %v1580
        %v2200 = vunpack.c.l.b16 %v1581
        %v2201 = vunpack.c.l.b16 %v1582
        %v2202 = vunpack.c.l.b16 %v1583
        %v2203 = vunpack.c.l.b16 %v1584
        %v2204 = vunpack.c.l.b16 %v1585
        %v2205 = vunpack.c.l.b16 %v1586
        %v2206 = vunpack.c.l.b16 %v1587
        %v2207 = vunpack.c.l.b16 %v1588
        %v2208 = vunpack.c.l.b16 %v1589
        %v2209 = vunpack.c.l.b16 %v1590
        %v2210 = vunpack.c.l.b16 %v1591
        %v2211 = vunpack.c.l.b16 %v1592
        %v2212 = vunpack.c.l.b16 %v1593
        %v2213 = vunpack.c.l.b16 %v1594
        %v2214 = vunpack.c.l.b16 %v1595
        %v2215 = vunpack.c.l.b16 %v1596
        %v2216 = vunpack.c.l.b16 %v1597
        %v2217 = vunpack.c.l.b16 %v1598
        %v2218 = vunpack.c.l.b16 %v1599
        %v2219 = vunpack.c.l.b16 %v1600
        %v2220 = vunpack.c.l.b16 %v1601
        %v2221 = vunpack.c.l.b16 %v1602
        %v2222 = vunpack.c.l.b16 %v1603
        %v2223 = vunpack.c.l.b16 %v1604
        %v2224 = vunpack.c.l.b16 %v1605
        %v2225 = vunpack.c.l.b16 %v1606
        %v2226 = vunpack.c.l.b16 %v1607
        %v2227 = vunpack.c.l.b16 %v1608
        %v2228 = vunpack.c.l.b16 %v1609
        %v2229 = vunpack.c.l.b16 %v1610
        %v2230 = vunpack.c.l.b16 %v1611
        %v2231 = vunpack.c.l.b16 %v1612
        %v2232 = vunpack.c.l.b16 %v1613
        %v2233 = vunpack.c.l.b16 %v1614
        %v2234 = vunpack.c.l.b16 %v1615
        %v2235 = vunpack.c.l.b16 %v1616
        %v2236 = vunpack.c.l.b16 %v1617
        %v2237 = vunpack.c.l.b16 %v1618
        %v2238 = vunpack.c.l.b16 %v1619
        %v2239 = vunpack.c.l.b16 %v1620
        %v2240 = vunpack.c.l.b16 %v1621
        %v2241 = vunpack.c.l.b16 %v1622
        %v2242 = vunpack.c.l.b16 %v1623
        %v2243 = vunpack.c.l.b16 %v1624
        %v2244 = vunpack.c.l.b16 %v1625
        %v2245 = vunpack.c.l.b16 %v1626
        %v2246 = vunpack.c.l.b16 %v1627
        %v2247 = vunpack.c.l.b16 %v1628
        %v2248 = vunpack.c.l.b16 %v1629
        %v2249 = vunpack.c.l.b16 %v1630
        %v2250 = vunpack.c.l.b16 %v1631
        %v2251 = vunpack.c.l.b16 %v1632
        %v2252 = vunpack.c.l.b16 %v1633
        %v2253 = vunpack.c.l.b16 %v1634
        %v2254 = vunpack.c.l.b16 %v1635
        %v2255 = vunpack.c.l.b16 %v1636
        %v2256 = vunpack.c.l.b16 %v1637
        %v2257 = vunpack.c.l.b16 %v1638
        %v2258 = vunpack.c.l.b16 %v1639
        %v2259 = vpack.c.b16 %v2116, %v2115
        %v2260 = vpack.c.b16 %v2118, %v2117
        %v2261 = vpack.c.b16 %v2120, %v2119
        %v2262 = vpack.c.b16 %v2122, %v2121
        %v2263 = vpack.c.b16 %v2124, %v2123
        %v2264 = vpack.c.b16 %v2126, %v2125
        %v2265 = vpack.c.b16 %v2128, %v2127
        %v2266 = vpack.c.b16 %v2130, %v2129
        %v2267 = vpack.c.b16 %v2132, %v2131
        %v2268 = vpack.c.b16 %v2134, %v2133
        %v2269 = vpack.c.b16 %v2136, %v2135
        %v2270 = vpack.c.b16 %v2138, %v2137
        %v2271 = vpack.c.b16 %v2140, %v2139
        %v2272 = vpack.c.b16 %v2142, %v2141
        %v2273 = vpack.c.b16 %v2144, %v2143
        %v2274 = vpack.c.b16 %v2146, %v2145
        %v2275 = vpack.c.b16 %v2148, %v2147
        %v2276 = vpack.c.b16 %v2150, %v2149
        %v2277 = vpack.c.b16 %v2152, %v2151
        %v2278 = vpack.c.b16 %v2154, %v2153
        %v2279 = vpack.c.b16 %v2156, %v2155
        %v2280 = vpack.c.b16 %v2158, %v2157
        %v2281 = vpack.c.b16 %v2160, %v2159
        %v2282 = vpack.c.b16 %v2162, %v2161
        %v2283 = vpack.c.b16 %v2164, %v2163
        %v2284 = vpack.c.b16 %v2166, %v2165
        %v2285 = vpack.c.b16 %v2168, %v2167
        %v2286 = vpack.c.b16 %v2170, %v2169
        %v2287 = vpack.c.b16 %v2172, %v2171
        %v2288 = vpack.c.b16 %v2174, %v2173
        %v2289 = vpack.c.b16 %v2176, %v2175
        %v2290 = vpack.c.b16 %v2178, %v2177
        %v2291 = vpack.c.b16 %v2180, %v2179
        %v2292 = vpack.c.b16 %v2182, %v2181
        %v2293 = vpack.c.b16 %v2184, %v2183
        %v2294 = vpack.c.b16 %v2186, %v2185
        %v2295 = vpack.c.b16 %v2188, %v2187
        %v2296 = vpack.c.b16 %v2190, %v2189
        %v2297 = vpack.c.b16 %v2192, %v2191
        %v2298 = vpack.c.b16 %v2194, %v2193
        %v2299 = vpack.c.b16 %v2196, %v2195
        %v2300 = vpack.c.b16 %v2198, %v2197
        %v2301 = vpack.c.b16 %v2200, %v2199
        %v2302 = vpack.c.b16 %v2202, %v2201
        %v2303 = vpack.c.b16 %v2204, %v2203
        %v2304 = vpack.c.b16 %v2206, %v2205
        %v2305 = vpack.c.b16 %v2208, %v2207
        %v2306 = vpack.c.b16 %v2210, %v2209
        %v2307 = vpack.c.b16 %v2212, %v2211
        %v2308 = vpack.c.b16 %v2214, %v2213
        %v2309 = vpack.c.b16 %v2216, %v2215
        %v2310 = vpack.c.b16 %v2218, %v2217
        %v2311 = vpack.c.b16 %v2220, %v2219
        %v2312 = vpack.c.b16 %v2222, %v2221
        %v2313 = vpack.c.b16 %v2224, %v2223
        %v2314 = vpack.c.b16 %v2226, %v2225
        %v2315 = vpack.c.b16 %v2228, %v2227
        %v2316 = vpack.c.b16 %v2230, %v2229
        %v2317 = vpack.c.b16 %v2232, %v2231
        %v2318 = vpack.c.b16 %v2234, %v2233
        %v2319 = vpack.c.b16 %v2236, %v2235
        %v2320 = vpack.c.b16 %v2238, %v2237
        %v2321 = vpack.c.b16 %v2240, %v2239
        %v2322 = vpack.c.b16 %v2242, %v2241
        %v2323 = vpack.c.b16 %v2244, %v2243
        %v2324 = vpack.c.b16 %v2246, %v2245
        %v2325 = vpack.c.b16 %v2248, %v2247
        %v2326 = vpack.c.b16 %v2250, %v2249
        %v2327 = vpack.c.b16 %v2252, %v2251
        %v2328 = vpack.c.b16 %v2254, %v2253
        %v2329 = vpack.c.b16 %v2256, %v2255
        %v2330 = vpack.c.b16 %v2258, %v2257
        %2403 = vmatprep.subr.bf16.mxu0 0
        %2404 = vmatpush1.bf16.msra.mxu0 %v2259
        %2405 = vmatprep.subr.bf16.mxu0 0
        %2406 = vmatpush1.bf16.msra.mxu0 %v2260
        %2407 = vmatprep.subr.bf16.mxu0 0
        %2408 = vmatpush1.bf16.msra.mxu0 %v2261
        %2409 = vmatprep.subr.bf16.mxu0 0
        %2410 = vmatpush1.bf16.msra.mxu0 %v2262
        %2411 = vmatprep.subr.bf16.mxu0 0
        %2412 = vmatpush1.bf16.msra.mxu0 %v2263
        %2413 = vmatprep.subr.bf16.mxu0 0
        %2414 = vmatpush1.bf16.msra.mxu0 %v2264
        %2415 = vmatprep.subr.bf16.mxu0 0
        %2416 = vmatpush1.bf16.msra.mxu0 %v2265
        %2417 = vmatprep.subr.bf16.mxu0 0
        %2418 = vmatpush1.bf16.msra.mxu0 %v2266
        %2419 = vmatprep.subr.bf16.mxu0 0
        %2420 = vmatpush1.bf16.msra.mxu0 %v2267
        %2421 = vmatprep.subr.bf16.mxu0 0
        %2422 = vmatpush1.bf16.msra.mxu0 %v2268
        %2423 = vmatprep.subr.bf16.mxu0 0
        %2424 = vmatpush1.bf16.msra.mxu0 %v2269
        %2425 = vmatprep.subr.bf16.mxu0 0
        %2426 = vmatpush1.bf16.msra.mxu0 %v2270
        %2427 = vmatprep.subr.bf16.mxu0 0
        %2428 = vmatpush1.bf16.msra.mxu0 %v2271
        %2429 = vmatprep.subr.bf16.mxu0 0
        %2430 = vmatpush1.bf16.msra.mxu0 %v2272
        %2431 = vmatprep.subr.bf16.mxu0 0
        %2432 = vmatpush1.bf16.msra.mxu0 %v2273
        %2433 = vmatprep.subr.bf16.mxu0 0
        %2434 = vmatpush1.bf16.msra.mxu0 %v2274
        %2435 = vmatprep.mubr.bf16.mxu0 %v1648
        %2436 = vmatmul.mubr.bf16.gmra.mrb[0].mxu0 %v1647
        %v2437 = vpop.f32.mrb[0].mxu0
        %v2438 = vadd.f32 %v1645, %v2437
        %v2439 = vpop.f32.mrb[0].mxu0
        %v2440 = vpop.f32.mrb[0].mxu0
        %v2441 = vadd.f32 %v1645, %v2440
        %v2442 = vpop.f32.mrb[0].mxu0
        %2443 = vmatprep.mubr.bf16.mxu0 %v1657
        %2444 = vmatmul.mubr.bf16.gmra.mrb[0].mxu0 %v1656
        %v2445 = vpop.f32.mrb[0].mxu0
        %v2446 = vadd.f32 %v1645, %v2445
        %v2447 = vpop.f32.mrb[0].mxu0
        %v2448 = vpop.f32.mrb[0].mxu0
        %v2449 = vadd.f32 %v1645, %v2448
        %v2450 = vpop.f32.mrb[0].mxu0
        %2451 = vmatprep.mubr.bf16.mxu0 %v1666
        %2452 = vmatmul.mubr.bf16.gmra.mrb[0].mxu0 %v1665
        %v2453 = vpop.f32.mrb[0].mxu0
        %v2454 = vadd.f32 %v1645, %v2453
        %v2455 = vpop.f32.mrb[0].mxu0
        %v2456 = vpop.f32.mrb[0].mxu0
        %v2457 = vadd.f32 %v1645, %v2456
        %v2458 = vpop.f32.mrb[0].mxu0
        %2459 = vmatprep.mubr.bf16.mxu0 %v1675
        %2460 = vmatmul.mubr.bf16.gmra.mrb[0].mxu0 %v1674
        %v2461 = vpop.f32.mrb[0].mxu0
        %v2462 = vadd.f32 %v1645, %v2461
        %v2463 = vpop.f32.mrb[0].mxu0
        %v2464 = vpop.f32.mrb[0].mxu0
        %v2465 = vadd.f32 %v1645, %v2464
        %v2466 = vpop.f32.mrb[0].mxu0
        %2467 = vmatprep.mubr.bf16.mxu0 %v1684
        %2468 = vmatmul.mubr.bf16.gmra.mrb[0].mxu0 %v1683
        %v2469 = vpop.f32.mrb[0].mxu0
        %v2470 = vadd.f32 %v1645, %v2469
        %v2471 = vpop.f32.mrb[0].mxu0
        %v2472 = vpop.f32.mrb[0].mxu0
        %v2473 = vadd.f32 %v1645, %v2472
        %v2474 = vpop.f32.mrb[0].mxu0
        %2475 = vmatprep.mubr.bf16.mxu0 %v1693
        %2476 = vmatmul.mubr.bf16.gmra.mrb[0].mxu0 %v1692
        %v2477 = vpop.f32.mrb[0].mxu0
        %v2478 = vadd.f32 %v1645, %v2477
        %v2479 = vpop.f32.mrb[0].mxu0
        %v2480 = vpop.f32.mrb[0].mxu0
        %v2481 = vadd.f32 %v1645, %v2480
        %v2482 = vpop.f32.mrb[0].mxu0
        %2483 = vmatprep.mubr.bf16.mxu0 %v1702
        %2484 = vmatmul.mubr.bf16.gmra.mrb[0].mxu0 %v1701
        %v2485 = vpop.f32.mrb[0].mxu0
        %v2486 = vadd.f32 %v1645, %v2485
        %v2487 = vpop.f32.mrb[0].mxu0
        %v2488 = vpop.f32.mrb[0].mxu0
        %v2489 = vadd.f32 %v1645, %v2488
        %v2490 = vpop.f32.mrb[0].mxu0
        %2491 = vmatprep.mubr.bf16.mxu0 %v1711
        %2492 = vmatmul.mubr.bf16.gmra.mrb[0].mxu0 %v1710
        %v2493 = vpop.f32.mrb[0].mxu0
        %v2494 = vadd.f32 %v1645, %v2493
        %v2495 = vpop.f32.mrb[0].mxu0
        %v2496 = vpop.f32.mrb[0].mxu0
        %v2497 = vadd.f32 %v1645, %v2496
        %v2498 = vpop.f32.mrb[0].mxu0
        %2499 = vmatprep.mubr.bf16.mxu0 %v1720
        %2500 = vmatmul.mubr.bf16.gmra.mrb[0].mxu0 %v1719
        %v2501 = vpop.f32.mrb[0].mxu0
        %v2502 = vadd.f32 %v1645, %v2501
        %v2503 = vpop.f32.mrb[0].mxu0
        %v2504 = vpop.f32.mrb[0].mxu0
        %v2505 = vadd.f32 %v1645, %v2504
        %v2506 = vpop.f32.mrb[0].mxu0
        %2507 = vmatprep.mubr.bf16.mxu0 %v1729
        %2508 = vmatmul.mubr.bf16.gmra.mrb[0].mxu0 %v1728
        %v2509 = vpop.f32.mrb[0].mxu0
        %v2510 = vadd.f32 %v1645, %v2509
        %v2511 = vpop.f32.mrb[0].mxu0
        %v2512 = vpop.f32.mrb[0].mxu0
        %v2513 = vadd.f32 %v1645, %v2512
        %v2514 = vpop.f32.mrb[0].mxu0
        %2515 = vmatprep.mubr.bf16.mxu0 %v1738
        %2516 = vmatmul.mubr.bf16.gmra.mrb[0].mxu0 %v1737
        %v2517 = vpop.f32.mrb[0].mxu0
        %v2518 = vadd.f32 %v1645, %v2517
        %v2519 = vpop.f32.mrb[0].mxu0
        %v2520 = vpop.f32.mrb[0].mxu0
        %v2521 = vadd.f32 %v1645, %v2520
        %v2522 = vpop.f32.mrb[0].mxu0
        %2523 = vmatprep.mubr.bf16.mxu0 %v1747
        %2524 = vmatmul.mubr.bf16.gmra.mrb[0].mxu0 %v1746
        %v2525 = vpop.f32.mrb[0].mxu0
        %v2526 = vadd.f32 %v1645, %v2525
        %v2527 = vpop.f32.mrb[0].mxu0
        %v2528 = vpop.f32.mrb[0].mxu0
        %v2529 = vadd.f32 %v1645, %v2528
        %v2530 = vpop.f32.mrb[0].mxu0
        %2531 = vmatprep.mubr.bf16.mxu0 %v1756
        %2532 = vmatmul.mubr.bf16.gmra.mrb[0].mxu0 %v1755
        %v2533 = vpop.f32.mrb[0].mxu0
        %v2534 = vadd.f32 %v1645, %v2533
        %v2535 = vpop.f32.mrb[0].mxu0
        %v2536 = vpop.f32.mrb[0].mxu0
        %v2537 = vadd.f32 %v1645, %v2536
        %v2538 = vpop.f32.mrb[0].mxu0
        %2539 = vmatprep.mubr.bf16.mxu0 %v1765
        %2540 = vmatmul.mubr.bf16.gmra.mrb[0].mxu0 %v1764
        %v2541 = vpop.f32.mrb[0].mxu0
        %v2542 = vadd.f32 %v1645, %v2541
        %v2543 = vpop.f32.mrb[0].mxu0
        %v2544 = vpop.f32.mrb[0].mxu0
        %v2545 = vadd.f32 %v1645, %v2544
        %v2546 = vpop.f32.mrb[0].mxu0
        %2547 = vmatprep.mubr.bf16.mxu0 %v1774
        %2548 = vmatmul.mubr.bf16.gmra.mrb[0].mxu0 %v1773
        %v2549 = vpop.f32.mrb[0].mxu0
        %v2550 = vadd.f32 %v1645, %v2549
        %v2551 = vpop.f32.mrb[0].mxu0
        %v2552 = vpop.f32.mrb[0].mxu0
        %v2553 = vadd.f32 %v1645, %v2552
        %v2554 = vpop.f32.mrb[0].mxu0
        %2555 = vmatprep.mubr.bf16.mxu0 %v1783
        %2556 = vmatmul.mubr.bf16.gmra.mrb[0].mxu0 %v1782
        %v2557 = vpop.f32.mrb[0].mxu0
        %v2558 = vadd.f32 %v1645, %v2557
        %v2559 = vpop.f32.mrb[0].mxu0
        %v2560 = vpop.f32.mrb[0].mxu0
        %v2561 = vadd.f32 %v1645, %v2560
        %v2562 = vpop.f32.mrb[0].mxu0
        %2563 = vmatprep.mubr.bf16.mxu0 %v1792
        %2564 = vmatmul.mubr.bf16.gmra.mrb[0].mxu0 %v1791
        %v2565 = vpop.f32.mrb[0].mxu0
        %v2566 = vadd.f32 %v1645, %v2565
        %v2567 = vpop.f32.mrb[0].mxu0
        %v2568 = vpop.f32.mrb[0].mxu0
        %v2569 = vadd.f32 %v1645, %v2568
        %v2570 = vpop.f32.mrb[0].mxu0
        %2571 = vmatprep.mubr.bf16.mxu0 %v1801
        %2572 = vmatmul.mubr.bf16.gmra.mrb[0].mxu0 %v1800
        %v2573 = vpop.f32.mrb[0].mxu0
        %v2574 = vadd.f32 %v1645, %v2573
        %v2575 = vpop.f32.mrb[0].mxu0
        %v2576 = vpop.f32.mrb[0].mxu0
        %v2577 = vadd.f32 %v1645, %v2576
        %v2578 = vpop.f32.mrb[0].mxu0
        %2579 = vdwg.mxu0
        %2580 = vmatprep.subr.bf16.mxu0 0
        %2581 = vmatpush1.bf16.msra.mxu0 %v2275
        %2582 = vmatprep.subr.bf16.mxu0 0
        %2583 = vmatpush1.bf16.msra.mxu0 %v2276
        %2584 = vmatprep.subr.bf16.mxu0 0
        %2585 = vmatpush1.bf16.msra.mxu0 %v2277
        %2586 = vmatprep.subr.bf16.mxu0 0
        %2587 = vmatpush1.bf16.msra.mxu0 %v2278
        %2588 = vmatprep.subr.bf16.mxu0 0
        %2589 = vmatpush1.bf16.msra.mxu0 %v2279
        %2590 = vmatprep.subr.bf16.mxu0 0
        %2591 = vmatpush1.bf16.msra.mxu0 %v2280
        %2592 = vmatprep.subr.bf16.mxu0 0
        %2593 = vmatpush1.bf16.msra.mxu0 %v2281
        %2594 = vmatprep.subr.bf16.mxu0 0
        %2595 = vmatpush1.bf16.msra.mxu0 %v2282
        %2596 = vmatprep.subr.bf16.mxu0 0
        %2597 = vmatpush1.bf16.msra.mxu0 %v2283
        %2598 = vmatprep.subr.bf16.mxu0 0
        %2599 = vmatpush1.bf16.msra.mxu0 %v2284
        %2600 = vmatprep.subr.bf16.mxu0 0
        %2601 = vmatpush1.bf16.msra.mxu0 %v2285
        %2602 = vmatprep.subr.bf16.mxu0 0
        %2603 = vmatpush1.bf16.msra.mxu0 %v2286
        %2604 = vmatprep.subr.bf16.mxu0 0
        %2605 = vmatpush1.bf16.msra.mxu0 %v2287
        %2606 = vmatprep.subr.bf16.mxu0 0
        %2607 = vmatpush1.bf16.msra.mxu0 %v2288
        %2608 = vmatprep.subr.bf16.mxu0 0
        %2609 = vmatpush1.bf16.msra.mxu0 %v2289
        %2610 = vmatprep.subr.bf16.mxu0 0
        %2611 = vmatpush1.bf16.msra.mxu0 %v2290
        %2612 = vmatprep.mubr.bf16.mxu0 %v1650
        %2613 = vmatmul.mubr.bf16.gmra.mrb[0].mxu0 %v1649
        %v2614 = vpop.f32.mrb[0].mxu0
        %v2615 = vadd.f32 %v2438, %v2614
        %v2616 = vpop.f32.mrb[0].mxu0
        %v2617 = vpop.f32.mrb[0].mxu0
        %v2618 = vadd.f32 %v2441, %v2617
        %v2619 = vpop.f32.mrb[0].mxu0
        %2620 = vmatprep.mubr.bf16.mxu0 %v1659
        %2621 = vmatmul.mubr.bf16.gmra.mrb[0].mxu0 %v1658
        %v2622 = vpop.f32.mrb[0].mxu0
        %v2623 = vadd.f32 %v2446, %v2622
        %v2624 = vpop.f32.mrb[0].mxu0
        %v2625 = vpop.f32.mrb[0].mxu0
        %v2626 = vadd.f32 %v2449, %v2625
        %v2627 = vpop.f32.mrb[0].mxu0
        %2628 = vmatprep.mubr.bf16.mxu0 %v1668
        %2629 = vmatmul.mubr.bf16.gmra.mrb[0].mxu0 %v1667
        %v2630 = vpop.f32.mrb[0].mxu0
        %v2631 = vadd.f32 %v2454, %v2630
        %v2632 = vpop.f32.mrb[0].mxu0
        %v2633 = vpop.f32.mrb[0].mxu0
        %v2634 = vadd.f32 %v2457, %v2633
        %v2635 = vpop.f32.mrb[0].mxu0
        %2636 = vmatprep.mubr.bf16.mxu0 %v1677
        %2637 = vmatmul.mubr.bf16.gmra.mrb[0].mxu0 %v1676
        %v2638 = vpop.f32.mrb[0].mxu0
        %v2639 = vadd.f32 %v2462, %v2638
        %v2640 = vpop.f32.mrb[0].mxu0
        %v2641 = vpop.f32.mrb[0].mxu0
        %v2642 = vadd.f32 %v2465, %v2641
        %v2643 = vpop.f32.mrb[0].mxu0
        %2644 = vmatprep.mubr.bf16.mxu0 %v1686
        %2645 = vmatmul.mubr.bf16.gmra.mrb[0].mxu0 %v1685
        %v2646 = vpop.f32.mrb[0].mxu0
        %v2647 = vadd.f32 %v2470, %v2646
        %v2648 = vpop.f32.mrb[0].mxu0
        %v2649 = vpop.f32.mrb[0].mxu0
        %v2650 = vadd.f32 %v2473, %v2649
        %v2651 = vpop.f32.mrb[0].mxu0
        %2652 = vmatprep.mubr.bf16.mxu0 %v1695
        %2653 = vmatmul.mubr.bf16.gmra.mrb[0].mxu0 %v1694
        %v2654 = vpop.f32.mrb[0].mxu0
        %v2655 = vadd.f32 %v2478, %v2654
        %v2656 = vpop.f32.mrb[0].mxu0
        %v2657 = vpop.f32.mrb[0].mxu0
        %v2658 = vadd.f32 %v2481, %v2657
        %v2659 = vpop.f32.mrb[0].mxu0
        %2660 = vmatprep.mubr.bf16.mxu0 %v1704
        %2661 = vmatmul.mubr.bf16.gmra.mrb[0].mxu0 %v1703
        %v2662 = vpop.f32.mrb[0].mxu0
        %v2663 = vadd.f32 %v2486, %v2662
        %v2664 = vpop.f32.mrb[0].mxu0
        %v2665 = vpop.f32.mrb[0].mxu0
        %v2666 = vadd.f32 %v2489, %v2665
        %v2667 = vpop.f32.mrb[0].mxu0
        %2668 = vmatprep.mubr.bf16.mxu0 %v1713
        %2669 = vmatmul.mubr.bf16.gmra.mrb[0].mxu0 %v1712
        %v2670 = vpop.f32.mrb[0].mxu0
        %v2671 = vadd.f32 %v2494, %v2670
        %v2672 = vpop.f32.mrb[0].mxu0
        %v2673 = vpop.f32.mrb[0].mxu0
        %v2674 = vadd.f32 %v2497, %v2673
        %v2675 = vpop.f32.mrb[0].mxu0
        %2676 = vmatprep.mubr.bf16.mxu0 %v1722
        %2677 = vmatmul.mubr.bf16.gmra.mrb[0].mxu0 %v1721
        %v2678 = vpop.f32.mrb[0].mxu0
        %v2679 = vadd.f32 %v2502, %v2678
        %v2680 = vpop.f32.mrb[0].mxu0
        %v2681 = vpop.f32.mrb[0].mxu0
        %v2682 = vadd.f32 %v2505, %v2681
        %v2683 = vpop.f32.mrb[0].mxu0
        %2684 = vmatprep.mubr.bf16.mxu0 %v1731
        %2685 = vmatmul.mubr.bf16.gmra.mrb[0].mxu0 %v1730
        %v2686 = vpop.f32.mrb[0].mxu0
        %v2687 = vadd.f32 %v2510, %v2686
        %v2688 = vpop.f32.mrb[0].mxu0
        %v2689 = vpop.f32.mrb[0].mxu0
        %v2690 = vadd.f32 %v2513, %v2689
        %v2691 = vpop.f32.mrb[0].mxu0
        %2692 = vmatprep.mubr.bf16.mxu0 %v1740
        %2693 = vmatmul.mubr.bf16.gmra.mrb[0].mxu0 %v1739
        %v2694 = vpop.f32.mrb[0].mxu0
        %v2695 = vadd.f32 %v2518, %v2694
        %v2696 = vpop.f32.mrb[0].mxu0
        %v2697 = vpop.f32.mrb[0].mxu0
        %v2698 = vadd.f32 %v2521, %v2697
        %v2699 = vpop.f32.mrb[0].mxu0
        %2700 = vmatprep.mubr.bf16.mxu0 %v1749
        %2701 = vmatmul.mubr.bf16.gmra.mrb[0].mxu0 %v1748
        %v2702 = vpop.f32.mrb[0].mxu0
        %v2703 = vadd.f32 %v2526, %v2702
        %v2704 = vpop.f32.mrb[0].mxu0
        %v2705 = vpop.f32.mrb[0].mxu0
        %v2706 = vadd.f32 %v2529, %v2705
        %v2707 = vpop.f32.mrb[0].mxu0
        %2708 = vmatprep.mubr.bf16.mxu0 %v1758
        %2709 = vmatmul.mubr.bf16.gmra.mrb[0].mxu0 %v1757
        %v2710 = vpop.f32.mrb[0].mxu0
        %v2711 = vadd.f32 %v2534, %v2710
        %v2712 = vpop.f32.mrb[0].mxu0
        %v2713 = vpop.f32.mrb[0].mxu0
        %v2714 = vadd.f32 %v2537, %v2713
        %v2715 = vpop.f32.mrb[0].mxu0
        %2716 = vmatprep.mubr.bf16.mxu0 %v1767
        %2717 = vmatmul.mubr.bf16.gmra.mrb[0].mxu0 %v1766
        %v2718 = vpop.f32.mrb[0].mxu0
        %v2719 = vadd.f32 %v2542, %v2718
        %v2720 = vpop.f32.mrb[0].mxu0
        %v2721 = vpop.f32.mrb[0].mxu0
        %v2722 = vadd.f32 %v2545, %v2721
        %v2723 = vpop.f32.mrb[0].mxu0
        %2724 = vmatprep.mubr.bf16.mxu0 %v1776
        %2725 = vmatmul.mubr.bf16.gmra.mrb[0].mxu0 %v1775
        %v2726 = vpop.f32.mrb[0].mxu0
        %v2727 = vadd.f32 %v2550, %v2726
        %v2728 = vpop.f32.mrb[0].mxu0
        %v2729 = vpop.f32.mrb[0].mxu0
        %v2730 = vadd.f32 %v2553, %v2729
        %v2731 = vpop.f32.mrb[0].mxu0
        %2732 = vmatprep.mubr.bf16.mxu0 %v1785
        %2733 = vmatmul.mubr.bf16.gmra.mrb[0].mxu0 %v1784
        %v2734 = vpop.f32.mrb[0].mxu0
        %v2735 = vadd.f32 %v2558, %v2734
        %v2736 = vpop.f32.mrb[0].mxu0
        %v2737 = vpop.f32.mrb[0].mxu0
        %v2738 = vadd.f32 %v2561, %v2737
        %v2739 = vpop.f32.mrb[0].mxu0
        %2740 = vmatprep.mubr.bf16.mxu0 %v1794
        %2741 = vmatmul.mubr.bf16.gmra.mrb[0].mxu0 %v1793
        %v2742 = vpop.f32.mrb[0].mxu0
        %v2743 = vadd.f32 %v2566, %v2742
        %v2744 = vpop.f32.mrb[0].mxu0
        %v2745 = vpop.f32.mrb[0].mxu0
        %v2746 = vadd.f32 %v2569, %v2745
        %v2747 = vpop.f32.mrb[0].mxu0
        %2748 = vmatprep.mubr.bf16.mxu0 %v1803
        %2749 = vmatmul.mubr.bf16.gmra.mrb[0].mxu0 %v1802
        %v2750 = vpop.f32.mrb[0].mxu0
        %v2751 = vadd.f32 %v2574, %v2750
        %v2752 = vpop.f32.mrb[0].mxu0
        %v2753 = vpop.f32.mrb[0].mxu0
        %v2754 = vadd.f32 %v2577, %v2753
        %v2755 = vpop.f32.mrb[0].mxu0
        %2756 = vdwg.mxu0
        %2757 = vmatprep.subr.bf16.mxu0 0
        %2758 = vmatpush1.bf16.msra.mxu0 %v2291
        %2759 = vmatprep.subr.bf16.mxu0 0
        %2760 = vmatpush1.bf16.msra.mxu0 %v2292
        %2761 = vmatprep.subr.bf16.mxu0 0
        %2762 = vmatpush1.bf16.msra.mxu0 %v2293
        %2763 = vmatprep.subr.bf16.mxu0 0
        %2764 = vmatpush1.bf16.msra.mxu0 %v2294
        %2765 = vmatprep.subr.bf16.mxu0 0
        %2766 = vmatpush1.bf16.msra.mxu0 %v2295
        %2767 = vmatprep.subr.bf16.mxu0 0
        %2768 = vmatpush1.bf16.msra.mxu0 %v2296
        %2769 = vmatprep.subr.bf16.mxu0 0
        %2770 = vmatpush1.bf16.msra.mxu0 %v2297
        %2771 = vmatprep.subr.bf16.mxu0 0
        %2772 = vmatpush1.bf16.msra.mxu0 %v2298
        %2773 = vmatprep.subr.bf16.mxu0 0
        %2774 = vmatpush1.bf16.msra.mxu0 %v2299
        %2775 = vmatprep.subr.bf16.mxu0 0
        %2776 = vmatpush1.bf16.msra.mxu0 %v2300
        %2777 = vmatprep.subr.bf16.mxu0 0
        %2778 = vmatpush1.bf16.msra.mxu0 %v2301
        %2779 = vmatprep.subr.bf16.mxu0 0
        %2780 = vmatpush1.bf16.msra.mxu0 %v2302
        %2781 = vmatprep.subr.bf16.mxu0 0
        %2782 = vmatpush1.bf16.msra.mxu0 %v2303
        %2783 = vmatprep.subr.bf16.mxu0 0
        %2784 = vmatpush1.bf16.msra.mxu0 %v2304
        %2785 = vmatprep.subr.bf16.mxu0 0
        %2786 = vmatpush1.bf16.msra.mxu0 %v2305
        %2787 = vmatprep.subr.bf16.mxu0 0
        %2788 = vmatpush1.bf16.msra.mxu0 %v2306
        %2789 = vmatprep.mubr.bf16.mxu0 %v1652
        %2790 = vmatmul.mubr.bf16.gmra.mrb[0].mxu0 %v1651
        %v2791 = vpop.f32.mrb[0].mxu0
        %v2792 = vadd.f32 %v2615, %v2791
        %v2793 = vpop.f32.mrb[0].mxu0
        %v2794 = vpop.f32.mrb[0].mxu0
        %v2795 = vadd.f32 %v2618, %v2794
        %v2796 = vpop.f32.mrb[0].mxu0
        %2797 = vmatprep.mubr.bf16.mxu0 %v1661
        %2798 = vmatmul.mubr.bf16.gmra.mrb[0].mxu0 %v1660
        %v2799 = vpop.f32.mrb[0].mxu0
        %v2800 = vadd.f32 %v2623, %v2799
        %v2801 = vpop.f32.mrb[0].mxu0
        %v2802 = vpop.f32.mrb[0].mxu0
        %v2803 = vadd.f32 %v2626, %v2802
        %v2804 = vpop.f32.mrb[0].mxu0
        %2805 = vmatprep.mubr.bf16.mxu0 %v1670
        %2806 = vmatmul.mubr.bf16.gmra.mrb[0].mxu0 %v1669
        %v2807 = vpop.f32.mrb[0].mxu0
        %v2808 = vadd.f32 %v2631, %v2807
        %v2809 = vpop.f32.mrb[0].mxu0
        %v2810 = vpop.f32.mrb[0].mxu0
        %v2811 = vadd.f32 %v2634, %v2810
        %v2812 = vpop.f32.mrb[0].mxu0
        %2813 = vmatprep.mubr.bf16.mxu0 %v1679
        %2814 = vmatmul.mubr.bf16.gmra.mrb[0].mxu0 %v1678
        %v2815 = vpop.f32.mrb[0].mxu0
        %v2816 = vadd.f32 %v2639, %v2815
        %v2817 = vpop.f32.mrb[0].mxu0
        %v2818 = vpop.f32.mrb[0].mxu0
        %v2819 = vadd.f32 %v2642, %v2818
        %v2820 = vpop.f32.mrb[0].mxu0
        %2821 = vmatprep.mubr.bf16.mxu0 %v1688
        %2822 = vmatmul.mubr.bf16.gmra.mrb[0].mxu0 %v1687
        %v2823 = vpop.f32.mrb[0].mxu0
        %v2824 = vadd.f32 %v2647, %v2823
        %v2825 = vpop.f32.mrb[0].mxu0
        %v2826 = vpop.f32.mrb[0].mxu0
        %v2827 = vadd.f32 %v2650, %v2826
        %v2828 = vpop.f32.mrb[0].mxu0
        %2829 = vmatprep.mubr.bf16.mxu0 %v1697
        %2830 = vmatmul.mubr.bf16.gmra.mrb[0].mxu0 %v1696
        %v2831 = vpop.f32.mrb[0].mxu0
        %v2832 = vadd.f32 %v2655, %v2831
        %v2833 = vpop.f32.mrb[0].mxu0
        %v2834 = vpop.f32.mrb[0].mxu0
        %v2835 = vadd.f32 %v2658, %v2834
        %v2836 = vpop.f32.mrb[0].mxu0
        %2837 = vmatprep.mubr.bf16.mxu0 %v1706
        %2838 = vmatmul.mubr.bf16.gmra.mrb[0].mxu0 %v1705
        %v2839 = vpop.f32.mrb[0].mxu0
        %v2840 = vadd.f32 %v2663, %v2839
        %v2841 = vpop.f32.mrb[0].mxu0
        %v2842 = vpop.f32.mrb[0].mxu0
        %v2843 = vadd.f32 %v2666, %v2842
        %v2844 = vpop.f32.mrb[0].mxu0
        %2845 = vmatprep.mubr.bf16.mxu0 %v1715
        %2846 = vmatmul.mubr.bf16.gmra.mrb[0].mxu0 %v1714
        %v2847 = vpop.f32.mrb[0].mxu0
        %v2848 = vadd.f32 %v2671, %v2847
        %v2849 = vpop.f32.mrb[0].mxu0
        %v2850 = vpop.f32.mrb[0].mxu0
        %v2851 = vadd.f32 %v2674, %v2850
        %v2852 = vpop.f32.mrb[0].mxu0
        %2853 = vmatprep.mubr.bf16.mxu0 %v1724
        %2854 = vmatmul.mubr.bf16.gmra.mrb[0].mxu0 %v1723
        %v2855 = vpop.f32.mrb[0].mxu0
        %v2856 = vadd.f32 %v2679, %v2855
        %v2857 = vpop.f32.mrb[0].mxu0
        %v2858 = vpop.f32.mrb[0].mxu0
        %v2859 = vadd.f32 %v2682, %v2858
        %v2860 = vpop.f32.mrb[0].mxu0
        %2861 = vmatprep.mubr.bf16.mxu0 %v1733
        %2862 = vmatmul.mubr.bf16.gmra.mrb[0].mxu0 %v1732
        %v2863 = vpop.f32.mrb[0].mxu0
        %v2864 = vadd.f32 %v2687, %v2863
        %v2865 = vpop.f32.mrb[0].mxu0
        %v2866 = vpop.f32.mrb[0].mxu0
        %v2867 = vadd.f32 %v2690, %v2866
        %v2868 = vpop.f32.mrb[0].mxu0
        %2869 = vmatprep.mubr.bf16.mxu0 %v1742
        %2870 = vmatmul.mubr.bf16.gmra.mrb[0].mxu0 %v1741
        %v2871 = vpop.f32.mrb[0].mxu0
        %v2872 = vadd.f32 %v2695, %v2871
        %v2873 = vpop.f32.mrb[0].mxu0
        %v2874 = vpop.f32.mrb[0].mxu0
        %v2875 = vadd.f32 %v2698, %v2874
        %v2876 = vpop.f32.mrb[0].mxu0
        %2877 = vmatprep.mubr.bf16.mxu0 %v1751
        %2878 = vmatmul.mubr.bf16.gmra.mrb[0].mxu0 %v1750
        %v2879 = vpop.f32.mrb[0].mxu0
        %v2880 = vadd.f32 %v2703, %v2879
        %v2881 = vpop.f32.mrb[0].mxu0
        %v2882 = vpop.f32.mrb[0].mxu0
        %v2883 = vadd.f32 %v2706, %v2882
        %v2884 = vpop.f32.mrb[0].mxu0
        %2885 = vmatprep.mubr.bf16.mxu0 %v1760
        %2886 = vmatmul.mubr.bf16.gmra.mrb[0].mxu0 %v1759
        %v2887 = vpop.f32.mrb[0].mxu0
        %v2888 = vadd.f32 %v2711, %v2887
        %v2889 = vpop.f32.mrb[0].mxu0
        %v2890 = vpop.f32.mrb[0].mxu0
        %v2891 = vadd.f32 %v2714, %v2890
        %v2892 = vpop.f32.mrb[0].mxu0
        %2893 = vmatprep.mubr.bf16.mxu0 %v1769
        %2894 = vmatmul.mubr.bf16.gmra.mrb[0].mxu0 %v1768
        %v2895 = vpop.f32.mrb[0].mxu0
        %v2896 = vadd.f32 %v2719, %v2895
        %v2897 = vpop.f32.mrb[0].mxu0
        %v2898 = vpop.f32.mrb[0].mxu0
        %v2899 = vadd.f32 %v2722, %v2898
        %v2900 = vpop.f32.mrb[0].mxu0
        %2901 = vmatprep.mubr.bf16.mxu0 %v1778
        %2902 = vmatmul.mubr.bf16.gmra.mrb[0].mxu0 %v1777
        %v2903 = vpop.f32.mrb[0].mxu0
        %v2904 = vadd.f32 %v2727, %v2903
        %v2905 = vpop.f32.mrb[0].mxu0
        %v2906 = vpop.f32.mrb[0].mxu0
        %v2907 = vadd.f32 %v2730, %v2906
        %v2908 = vpop.f32.mrb[0].mxu0
        %2909 = vmatprep.mubr.bf16.mxu0 %v1787
        %2910 = vmatmul.mubr.bf16.gmra.mrb[0].mxu0 %v1786
        %v2911 = vpop.f32.mrb[0].mxu0
        %v2912 = vadd.f32 %v2735, %v2911
        %v2913 = vpop.f32.mrb[0].mxu0
        %v2914 = vpop.f32.mrb[0].mxu0
        %v2915 = vadd.f32 %v2738, %v2914
        %v2916 = vpop.f32.mrb[0].mxu0
        %2917 = vmatprep.mubr.bf16.mxu0 %v1796
        %2918 = vmatmul.mubr.bf16.gmra.mrb[0].mxu0 %v1795
        %v2919 = vpop.f32.mrb[0].mxu0
        %v2920 = vadd.f32 %v2743, %v2919
        %v2921 = vpop.f32.mrb[0].mxu0
        %v2922 = vpop.f32.mrb[0].mxu0
        %v2923 = vadd.f32 %v2746, %v2922
        %v2924 = vpop.f32.mrb[0].mxu0
        %2925 = vmatprep.mubr.bf16.mxu0 %v1805
        %2926 = vmatmul.mubr.bf16.gmra.mrb[0].mxu0 %v1804
        %v2927 = vpop.f32.mrb[0].mxu0
        %v2928 = vadd.f32 %v2751, %v2927
        %v2929 = vpop.f32.mrb[0].mxu0
        %v2930 = vpop.f32.mrb[0].mxu0
        %v2931 = vadd.f32 %v2754, %v2930
        %v2932 = vpop.f32.mrb[0].mxu0
        %2933 = vdwg.mxu0
        %2934 = vmatprep.subr.bf16.mxu0 0
        %2935 = vmatpush1.bf16.msra.mxu0 %v2307
        %2936 = vmatprep.subr.bf16.mxu0 0
        %2937 = vmatpush1.bf16.msra.mxu0 %v2308
        %2938 = vmatprep.subr.bf16.mxu0 0
        %2939 = vmatpush1.bf16.msra.mxu0 %v2309
        %2940 = vmatprep.subr.bf16.mxu0 0
        %2941 = vmatpush1.bf16.msra.mxu0 %v2310
        %2942 = vmatprep.subr.bf16.mxu0 0
        %2943 = vmatpush1.bf16.msra.mxu0 %v2311
        %2944 = vmatprep.subr.bf16.mxu0 0
        %2945 = vmatpush1.bf16.msra.mxu0 %v2312
        %2946 = vmatprep.subr.bf16.mxu0 0
        %2947 = vmatpush1.bf16.msra.mxu0 %v2313
        %2948 = vmatprep.subr.bf16.mxu0 0
        %2949 = vmatpush1.bf16.msra.mxu0 %v2314
        %2950 = vmatprep.subr.bf16.mxu0 0
        %2951 = vmatpush1.bf16.msra.mxu0 %v2315
        %2952 = vmatprep.subr.bf16.mxu0 0
        %2953 = vmatpush1.bf16.msra.mxu0 %v2316
        %2954 = vmatprep.subr.bf16.mxu0 0
        %2955 = vmatpush1.bf16.msra.mxu0 %v2317
        %2956 = vmatprep.subr.bf16.mxu0 0
        %2957 = vmatpush1.bf16.msra.mxu0 %v2318
        %2958 = vmatprep.subr.bf16.mxu0 0
        %2959 = vmatpush1.bf16.msra.mxu0 %v2319
        %2960 = vmatprep.subr.bf16.mxu0 0
        %2961 = vmatpush1.bf16.msra.mxu0 %v2320
        %2962 = vmatprep.subr.bf16.mxu0 0
        %2963 = vmatpush1.bf16.msra.mxu0 %v2321
        %2964 = vmatprep.subr.bf16.mxu0 0
        %2965 = vmatpush1.bf16.msra.mxu0 %v2322
        %2966 = vmatprep.mubr.bf16.mxu0 %v1654
        %2967 = vmatmul.mubr.bf16.gmra.mrb[0].mxu0 %v1653
        %v2968 = vpop.f32.mrb[0].mxu0
        %v2969 = vadd.f32 %v2792, %v2968
        %v2970 = vpop.f32.mrb[0].mxu0
        %v2971 = vpop.f32.mrb[0].mxu0
        %v2972 = vadd.f32 %v2795, %v2971
        %v2973 = vpop.f32.mrb[0].mxu0
        %2974 = vmatprep.mubr.bf16.mxu0 %v1663
        %2975 = vmatmul.mubr.bf16.gmra.mrb[0].mxu0 %v1662
        %v2976 = vpop.f32.mrb[0].mxu0
        %v2977 = vadd.f32 %v2800, %v2976
        %v2978 = vpop.f32.mrb[0].mxu0
        %v2979 = vpop.f32.mrb[0].mxu0
        %v2980 = vadd.f32 %v2803, %v2979
        %v2981 = vpop.f32.mrb[0].mxu0
        %2982 = vmatprep.mubr.bf16.mxu0 %v1672
        %2983 = vmatmul.mubr.bf16.gmra.mrb[0].mxu0 %v1671
        %v2984 = vpop.f32.mrb[0].mxu0
        %v2985 = vadd.f32 %v2808, %v2984
        %v2986 = vpop.f32.mrb[0].mxu0
        %v2987 = vpop.f32.mrb[0].mxu0
        %v2988 = vadd.f32 %v2811, %v2987
        %v2989 = vpop.f32.mrb[0].mxu0
        %2990 = vmatprep.mubr.bf16.mxu0 %v1681
        %2991 = vmatmul.mubr.bf16.gmra.mrb[0].mxu0 %v1680
        %v2992 = vpop.f32.mrb[0].mxu0
        %v2993 = vadd.f32 %v2816, %v2992
        %v2994 = vpop.f32.mrb[0].mxu0
        %v2995 = vpop.f32.mrb[0].mxu0
        %v2996 = vadd.f32 %v2819, %v2995
        %v2997 = vpop.f32.mrb[0].mxu0
        %2998 = vmatprep.mubr.bf16.mxu0 %v1690
        %2999 = vmatmul.mubr.bf16.gmra.mrb[0].mxu0 %v1689
        %v3000 = vpop.f32.mrb[0].mxu0
        %v3001 = vadd.f32 %v2824, %v3000
        %v3002 = vpop.f32.mrb[0].mxu0
        %v3003 = vpop.f32.mrb[0].mxu0
        %v3004 = vadd.f32 %v2827, %v3003
        %v3005 = vpop.f32.mrb[0].mxu0
        %3006 = vmatprep.mubr.bf16.mxu0 %v1699
        %3007 = vmatmul.mubr.bf16.gmra.mrb[0].mxu0 %v1698
        %v3008 = vpop.f32.mrb[0].mxu0
        %v3009 = vadd.f32 %v2832, %v3008
        %v3010 = vpop.f32.mrb[0].mxu0
        %v3011 = vpop.f32.mrb[0].mxu0
        %v3012 = vadd.f32 %v2835, %v3011
        %v3013 = vpop.f32.mrb[0].mxu0
        %3014 = vmatprep.mubr.bf16.mxu0 %v1708
        %3015 = vmatmul.mubr.bf16.gmra.mrb[0].mxu0 %v1707
        %v3016 = vpop.f32.mrb[0].mxu0
        %v3017 = vadd.f32 %v2840, %v3016
        %v3018 = vpop.f32.mrb[0].mxu0
        %v3019 = vpop.f32.mrb[0].mxu0
        %v3020 = vadd.f32 %v2843, %v3019
        %v3021 = vpop.f32.mrb[0].mxu0
        %3022 = vmatprep.mubr.bf16.mxu0 %v1717
        %3023 = vmatmul.mubr.bf16.gmra.mrb[0].mxu0 %v1716
        %v3024 = vpop.f32.mrb[0].mxu0
        %v3025 = vadd.f32 %v2848, %v3024
        %v3026 = vpop.f32.mrb[0].mxu0
        %v3027 = vpop.f32.mrb[0].mxu0
        %v3028 = vadd.f32 %v2851, %v3027
        %v3029 = vpop.f32.mrb[0].mxu0
        %3030 = vmatprep.mubr.bf16.mxu0 %v1726
        %3031 = vmatmul.mubr.bf16.gmra.mrb[0].mxu0 %v1725
        %v3032 = vpop.f32.mrb[0].mxu0
        %v3033 = vadd.f32 %v2856, %v3032
        %v3034 = vpop.f32.mrb[0].mxu0
        %v3035 = vpop.f32.mrb[0].mxu0
        %v3036 = vadd.f32 %v2859, %v3035
        %v3037 = vpop.f32.mrb[0].mxu0
        %3038 = vmatprep.mubr.bf16.mxu0 %v1735
        %3039 = vmatmul.mubr.bf16.gmra.mrb[0].mxu0 %v1734
        %v3040 = vpop.f32.mrb[0].mxu0
        %v3041 = vadd.f32 %v2864, %v3040
        %v3042 = vpop.f32.mrb[0].mxu0
        %v3043 = vpop.f32.mrb[0].mxu0
        %v3044 = vadd.f32 %v2867, %v3043
        %v3045 = vpop.f32.mrb[0].mxu0
        %3046 = vmatprep.mubr.bf16.mxu0 %v1744
        %3047 = vmatmul.mubr.bf16.gmra.mrb[0].mxu0 %v1743
        %v3048 = vpop.f32.mrb[0].mxu0
        %v3049 = vadd.f32 %v2872, %v3048
        %v3050 = vpop.f32.mrb[0].mxu0
        %v3051 = vpop.f32.mrb[0].mxu0
        %v3052 = vadd.f32 %v2875, %v3051
        %v3053 = vpop.f32.mrb[0].mxu0
        %3054 = vmatprep.mubr.bf16.mxu0 %v1753
        %3055 = vmatmul.mubr.bf16.gmra.mrb[0].mxu0 %v1752
        %v3056 = vpop.f32.mrb[0].mxu0
        %v3057 = vadd.f32 %v2880, %v3056
        %v3058 = vpop.f32.mrb[0].mxu0
        %v3059 = vpop.f32.mrb[0].mxu0
        %v3060 = vadd.f32 %v2883, %v3059
        %v3061 = vpop.f32.mrb[0].mxu0
        %3062 = vmatprep.mubr.bf16.mxu0 %v1762
        %3063 = vmatmul.mubr.bf16.gmra.mrb[0].mxu0 %v1761
        %v3064 = vpop.f32.mrb[0].mxu0
        %v3065 = vadd.f32 %v2888, %v3064
        %v3066 = vpop.f32.mrb[0].mxu0
        %v3067 = vpop.f32.mrb[0].mxu0
        %v3068 = vadd.f32 %v2891, %v3067
        %v3069 = vpop.f32.mrb[0].mxu0
        %3070 = vmatprep.mubr.bf16.mxu0 %v1771
        %3071 = vmatmul.mubr.bf16.gmra.mrb[0].mxu0 %v1770
        %v3072 = vpop.f32.mrb[0].mxu0
        %v3073 = vadd.f32 %v2896, %v3072
        %v3074 = vpop.f32.mrb[0].mxu0
        %v3075 = vpop.f32.mrb[0].mxu0
        %v3076 = vadd.f32 %v2899, %v3075
        %v3077 = vpop.f32.mrb[0].mxu0
        %3078 = vmatprep.mubr.bf16.mxu0 %v1780
        %3079 = vmatmul.mubr.bf16.gmra.mrb[0].mxu0 %v1779
        %v3080 = vpop.f32.mrb[0].mxu0
        %v3081 = vadd.f32 %v2904, %v3080
        %v3082 = vpop.f32.mrb[0].mxu0
        %v3083 = vpop.f32.mrb[0].mxu0
        %v3084 = vadd.f32 %v2907, %v3083
        %v3085 = vpop.f32.mrb[0].mxu0
        %3086 = vmatprep.mubr.bf16.mxu0 %v1789
        %3087 = vmatmul.mubr.bf16.gmra.mrb[0].mxu0 %v1788
        %v3088 = vpop.f32.mrb[0].mxu0
        %v3089 = vadd.f32 %v2912, %v3088
        %v3090 = vpop.f32.mrb[0].mxu0
        %v3091 = vpop.f32.mrb[0].mxu0
        %v3092 = vadd.f32 %v2915, %v3091
        %v3093 = vpop.f32.mrb[0].mxu0
        %3094 = vmatprep.mubr.bf16.mxu0 %v1798
        %3095 = vmatmul.mubr.bf16.gmra.mrb[0].mxu0 %v1797
        %v3096 = vpop.f32.mrb[0].mxu0
        %v3097 = vadd.f32 %v2920, %v3096
        %v3098 = vpop.f32.mrb[0].mxu0
        %v3099 = vpop.f32.mrb[0].mxu0
        %v3100 = vadd.f32 %v2923, %v3099
        %v3101 = vpop.f32.mrb[0].mxu0
        %3102 = vmatprep.mubr.bf16.mxu0 %v1807
        %3103 = vmatmul.mubr.bf16.gmra.mrb[0].mxu0 %v1806
        %v3104 = vpop.f32.mrb[0].mxu0
        %v3105 = vadd.f32 %v2928, %v3104
        %v3106 = vpop.f32.mrb[0].mxu0
        %v3107 = vpop.f32.mrb[0].mxu0
        %v3108 = vadd.f32 %v2931, %v3107
        %v3109 = vpop.f32.mrb[0].mxu0
        %3110 = vdwg.mxu0
        %3111 = vmatprep.subr.bf16.mxu0 0
        %3112 = vmatpush1.bf16.msra.mxu0 %v2323
        %3113 = vmatprep.subr.bf16.mxu0 0
        %3114 = vmatpush1.bf16.msra.mxu0 %v2324
        %3115 = vmatprep.subr.bf16.mxu0 0
        %3116 = vmatpush1.bf16.msra.mxu0 %v2325
        %3117 = vmatprep.subr.bf16.mxu0 0
        %3118 = vmatpush1.bf16.msra.mxu0 %v2326
        %3119 = vmatprep.subr.bf16.mxu0 0
        %3120 = vmatpush1.bf16.msra.mxu0 %v2327
        %3121 = vmatprep.subr.bf16.mxu0 0
        %3122 = vmatpush1.bf16.msra.mxu0 %v2328
        %3123 = vmatprep.subr.bf16.mxu0 0
        %3124 = vmatpush1.bf16.msra.mxu0 %v2329
        %3125 = vmatprep.subr.bf16.mxu0 0
        %3126 = vmatpush1.bf16.msra.mxu0 %v2330
        %3127 = vmatprep.subr.bf16.mxu0 0
        %3128 = vmatpush1.bf16.msra.mxu0 0
        %3129 = vmatprep.subr.bf16.mxu0 0
        %3130 = vmatpush1.bf16.msra.mxu0 0
        %3131 = vmatprep.subr.bf16.mxu0 0
        %3132 = vmatpush1.bf16.msra.mxu0 0
        %3133 = vmatprep.subr.bf16.mxu0 0
        %3134 = vmatpush1.bf16.msra.mxu0 0
        %3135 = vmatprep.subr.bf16.mxu0 0
        %3136 = vmatpush1.bf16.msra.mxu0 0
        %3137 = vmatprep.subr.bf16.mxu0 0
        %3138 = vmatpush1.bf16.msra.mxu0 0
        %3139 = vmatprep.subr.bf16.mxu0 0
        %3140 = vmatpush1.bf16.msra.mxu0 0
        %3141 = vmatprep.subr.bf16.mxu0 0
        %3142 = vmatpush1.bf16.msra.mxu0 0
        %3143 = vmatprep.mubr.bf16.mxu0 0
        %3144 = vmatmul.mubr.bf16.gmra.mrb[0].mxu0 %v1655
        %v3145 = vpop.f32.mrb[0].mxu0
        %v3146 = vadd.f32 %v2969, %v3145
        %v3147 = vpop.f32.mrb[0].mxu0
        %v3148 = vpop.f32.mrb[0].mxu0
        %v3149 = vadd.f32 %v2972, %v3148
        %v3150 = vpop.f32.mrb[0].mxu0
        %3151 = vmatprep.mubr.bf16.mxu0 0
        %3152 = vmatmul.mubr.bf16.gmra.mrb[0].mxu0 %v1664
        %v3153 = vpop.f32.mrb[0].mxu0
        %v3154 = vadd.f32 %v2977, %v3153
        %v3155 = vpop.f32.mrb[0].mxu0
        %v3156 = vpop.f32.mrb[0].mxu0
        %v3157 = vadd.f32 %v2980, %v3156
        %v3158 = vpop.f32.mrb[0].mxu0
        %3159 = vmatprep.mubr.bf16.mxu0 0
        %3160 = vmatmul.mubr.bf16.gmra.mrb[0].mxu0 %v1673
        %v3161 = vpop.f32.mrb[0].mxu0
        %v3162 = vadd.f32 %v2985, %v3161
        %v3163 = vpop.f32.mrb[0].mxu0
        %v3164 = vpop.f32.mrb[0].mxu0
        %v3165 = vadd.f32 %v2988, %v3164
        %v3166 = vpop.f32.mrb[0].mxu0
        %3167 = vmatprep.mubr.bf16.mxu0 0
        %3168 = vmatmul.mubr.bf16.gmra.mrb[0].mxu0 %v1682
        %v3169 = vpop.f32.mrb[0].mxu0
        %v3170 = vadd.f32 %v2993, %v3169
        %v3171 = vpop.f32.mrb[0].mxu0
        %v3172 = vpop.f32.mrb[0].mxu0
        %v3173 = vadd.f32 %v2996, %v3172
        %v3174 = vpop.f32.mrb[0].mxu0
        %3175 = vmatprep.mubr.bf16.mxu0 0
        %3176 = vmatmul.mubr.bf16.gmra.mrb[0].mxu0 %v1691
        %v3177 = vpop.f32.mrb[0].mxu0
        %v3178 = vadd.f32 %v3001, %v3177
        %v3179 = vpop.f32.mrb[0].mxu0
        %v3180 = vpop.f32.mrb[0].mxu0
        %v3181 = vadd.f32 %v3004, %v3180
        %v3182 = vpop.f32.mrb[0].mxu0
        %3183 = vmatprep.mubr.bf16.mxu0 0
        %3184 = vmatmul.mubr.bf16.gmra.mrb[0].mxu0 %v1700
        %v3185 = vpop.f32.mrb[0].mxu0
        %v3186 = vadd.f32 %v3009, %v3185
        %v3187 = vpop.f32.mrb[0].mxu0
        %v3188 = vpop.f32.mrb[0].mxu0
        %v3189 = vadd.f32 %v3012, %v3188
        %v3190 = vpop.f32.mrb[0].mxu0
        %3191 = vmatprep.mubr.bf16.mxu0 0
        %3192 = vmatmul.mubr.bf16.gmra.mrb[0].mxu0 %v1709
        %v3193 = vpop.f32.mrb[0].mxu0
        %v3194 = vadd.f32 %v3017, %v3193
        %v3195 = vpop.f32.mrb[0].mxu0
        %v3196 = vpop.f32.mrb[0].mxu0
        %v3197 = vadd.f32 %v3020, %v3196
        %v3198 = vpop.f32.mrb[0].mxu0
        %3199 = vmatprep.mubr.bf16.mxu0 0
        %3200 = vmatmul.mubr.bf16.gmra.mrb[0].mxu0 %v1718
        %v3201 = vpop.f32.mrb[0].mxu0
        %v3202 = vadd.f32 %v3025, %v3201
        %v3203 = vpop.f32.mrb[0].mxu0
        %v3204 = vpop.f32.mrb[0].mxu0
        %v3205 = vadd.f32 %v3028, %v3204
        %v3206 = vpop.f32.mrb[0].mxu0
        %3207 = vmatprep.mubr.bf16.mxu0 0
        %3208 = vmatmul.mubr.bf16.gmra.mrb[0].mxu0 %v1727
        %v3209 = vpop.f32.mrb[0].mxu0
        %v3210 = vadd.f32 %v3033, %v3209
        %v3211 = vpop.f32.mrb[0].mxu0
        %v3212 = vpop.f32.mrb[0].mxu0
        %v3213 = vadd.f32 %v3036, %v3212
        %v3214 = vpop.f32.mrb[0].mxu0
        %3215 = vmatprep.mubr.bf16.mxu0 0
        %3216 = vmatmul.mubr.bf16.gmra.mrb[0].mxu0 %v1736
        %v3217 = vpop.f32.mrb[0].mxu0
        %v3218 = vadd.f32 %v3041, %v3217
        %v3219 = vpop.f32.mrb[0].mxu0
        %v3220 = vpop.f32.mrb[0].mxu0
        %v3221 = vadd.f32 %v3044, %v3220
        %v3222 = vpop.f32.mrb[0].mxu0
        %3223 = vmatprep.mubr.bf16.mxu0 0
        %3224 = vmatmul.mubr.bf16.gmra.mrb[0].mxu0 %v1745
        %v3225 = vpop.f32.mrb[0].mxu0
        %v3226 = vadd.f32 %v3049, %v3225
        %v3227 = vpop.f32.mrb[0].mxu0
        %v3228 = vpop.f32.mrb[0].mxu0
        %v3229 = vadd.f32 %v3052, %v3228
        %v3230 = vpop.f32.mrb[0].mxu0
        %3231 = vmatprep.mubr.bf16.mxu0 0
        %3232 = vmatmul.mubr.bf16.gmra.mrb[0].mxu0 %v1754
        %v3233 = vpop.f32.mrb[0].mxu0
        %v3234 = vadd.f32 %v3057, %v3233
        %v3235 = vpop.f32.mrb[0].mxu0
        %v3236 = vpop.f32.mrb[0].mxu0
        %v3237 = vadd.f32 %v3060, %v3236
        %v3238 = vpop.f32.mrb[0].mxu0
        %3239 = vmatprep.mubr.bf16.mxu0 0
        %3240 = vmatmul.mubr.bf16.gmra.mrb[0].mxu0 %v1763
        %v3241 = vpop.f32.mrb[0].mxu0
        %v3242 = vadd.f32 %v3065, %v3241
        %v3243 = vpop.f32.mrb[0].mxu0
        %v3244 = vpop.f32.mrb[0].mxu0
        %v3245 = vadd.f32 %v3068, %v3244
        %v3246 = vpop.f32.mrb[0].mxu0
        %3247 = vmatprep.mubr.bf16.mxu0 0
        %3248 = vmatmul.mubr.bf16.gmra.mrb[0].mxu0 %v1772
        %v3249 = vpop.f32.mrb[0].mxu0
        %v3250 = vadd.f32 %v3073, %v3249
        %v3251 = vpop.f32.mrb[0].mxu0
        %v3252 = vpop.f32.mrb[0].mxu0
        %v3253 = vadd.f32 %v3076, %v3252
        %v3254 = vpop.f32.mrb[0].mxu0
        %3255 = vmatprep.mubr.bf16.mxu0 0
        %3256 = vmatmul.mubr.bf16.gmra.mrb[0].mxu0 %v1781
        %v3257 = vpop.f32.mrb[0].mxu0
        %v3258 = vadd.f32 %v3081, %v3257
        %v3259 = vpop.f32.mrb[0].mxu0
        %v3260 = vpop.f32.mrb[0].mxu0
        %v3261 = vadd.f32 %v3084, %v3260
        %v3262 = vpop.f32.mrb[0].mxu0
        %3263 = vmatprep.mubr.bf16.mxu0 0
        %3264 = vmatmul.mubr.bf16.gmra.mrb[0].mxu0 %v1790
        %v3265 = vpop.f32.mrb[0].mxu0
        %v3266 = vadd.f32 %v3089, %v3265
        %v3267 = vpop.f32.mrb[0].mxu0
        %v3268 = vpop.f32.mrb[0].mxu0
        %v3269 = vadd.f32 %v3092, %v3268
        %v3270 = vpop.f32.mrb[0].mxu0
        %3271 = vmatprep.mubr.bf16.mxu0 0
        %3272 = vmatmul.mubr.bf16.gmra.mrb[0].mxu0 %v1799
        %v3273 = vpop.f32.mrb[0].mxu0
        %v3274 = vadd.f32 %v3097, %v3273
        %v3275 = vpop.f32.mrb[0].mxu0
        %v3276 = vpop.f32.mrb[0].mxu0
        %v3277 = vadd.f32 %v3100, %v3276
        %v3278 = vpop.f32.mrb[0].mxu0
        %3279 = vmatprep.mubr.bf16.mxu0 0
        %3280 = vmatmul.mubr.bf16.gmra.mrb[0].mxu0 %v1808
        %v3281 = vpop.f32.mrb[0].mxu0
        %v3282 = vadd.f32 %v3105, %v3281
        %v3283 = vpop.f32.mrb[0].mxu0
        %v3284 = vpop.f32.mrb[0].mxu0
        %v3285 = vadd.f32 %v3108, %v3284
        %v3286 = vpop.f32.mrb[0].mxu0
        %3287 = vdwg.mxu0
        %v3288 = vmax.f32 %v3146, 0.0
        %v3289 = vmax.f32 %v3149, 0.0
        %v3290 = vmax.f32 %v3154, 0.0
        %v3291 = vmax.f32 %v3157, 0.0
        %v3292 = vmax.f32 %v3162, 0.0
        %v3293 = vmax.f32 %v3165, 0.0
        %v3294 = vmax.f32 %v3170, 0.0
        %v3295 = vmax.f32 %v3173, 0.0
        %v3296 = vmax.f32 %v3178, 0.0
        %v3297 = vmax.f32 %v3181, 0.0
        %v3298 = vmax.f32 %v3186, 0.0
        %v3299 = vmax.f32 %v3189, 0.0
        %v3300 = vmax.f32 %v3194, 0.0
        %v3301 = vmax.f32 %v3197, 0.0
        %v3302 = vmax.f32 %v3202, 0.0
        %v3303 = vmax.f32 %v3205, 0.0
        %v3304 = vmax.f32 %v3210, 0.0
        %v3305 = vmax.f32 %v3213, 0.0
        %v3306 = vmax.f32 %v3218, 0.0
        %v3307 = vmax.f32 %v3221, 0.0
        %v3308 = vmax.f32 %v3226, 0.0
        %v3309 = vmax.f32 %v3229, 0.0
        %v3310 = vmax.f32 %v3234, 0.0
        %v3311 = vmax.f32 %v3237, 0.0
        %v3312 = vmax.f32 %v3242, 0.0
        %v3313 = vmax.f32 %v3245, 0.0
        %v3314 = vmax.f32 %v3250, 0.0
        %v3315 = vmax.f32 %v3253, 0.0
        %v3316 = vmax.f32 %v3258, 0.0
        %v3317 = vmax.f32 %v3261, 0.0
        %v3318 = vmax.f32 %v3266, 0.0
        %v3319 = vmax.f32 %v3269, 0.0
        %v3320 = vmax.f32 %v3274, 0.0
        %v3321 = vmax.f32 %v3277, 0.0
        %v3322 = vmax.f32 %v3282, 0.0
        %v3323 = vmax.f32 %v3285, 0.0
        %3324 = vst [vmem:[%s222] sm:$0xff] %v3288
        %3325 = vst [vmem:[%s222 + $0x8] sm:$0xff] %v3289
        %3326 = vst [vmem:[%s222 + $0x10] sm:$0xff] %v3290
        %3327 = vst [vmem:[%s222 + $0x18] sm:$0xff] %v3291
        %3328 = vst [vmem:[%s222 + $0x20] sm:$0xff] %v3292
        %3329 = vst [vmem:[%s222 + $0x28] sm:$0xff] %v3293
        %3330 = vst [vmem:[%s222 + $0x30] sm:$0xff] %v3294
        %3331 = vst [vmem:[%s222 + $0x38] sm:$0xff] %v3295
        %3332 = vst [vmem:[%s222 + $0x40] sm:$0xff] %v3296
        %3333 = vst [vmem:[%s222 + $0x48] sm:$0xff] %v3297
        %3334 = vst [vmem:[%s222 + $0x50] sm:$0xff] %v3298
        %3335 = vst [vmem:[%s222 + $0x58] sm:$0xff] %v3299
        %3336 = vst [vmem:[%s222 + $0x60] sm:$0xff] %v3300
        %3337 = vst [vmem:[%s222 + $0x68] sm:$0xff] %v3301
        %3338 = vst [vmem:[%s222 + $0x70] sm:$0xff] %v3302
        %3339 = vst [vmem:[%s222 + $0x78] sm:$0xff] %v3303
        %3340 = vst [vmem:[%s222 + $0x80] sm:$0xff] %v3304
        %3341 = vst [vmem:[%s222 + $0x88] sm:$0xff] %v3305
        %3342 = vst [vmem:[%s222 + $0x90] sm:$0xff] %v3306
        %3343 = vst [vmem:[%s222 + $0x98] sm:$0xff] %v3307
        %3344 = vst [vmem:[%s222 + $0xa0] sm:$0xff] %v3308
        %3345 = vst [vmem:[%s222 + $0xa8] sm:$0xff] %v3309
        %3346 = vst [vmem:[%s222 + $0xb0] sm:$0xff] %v3310
        %3347 = vst [vmem:[%s222 + $0xb8] sm:$0xff] %v3311
        %3348 = vst [vmem:[%s222 + $0xc0] sm:$0xff] %v3312
        %3349 = vst [vmem:[%s222 + $0xc8] sm:$0xff] %v3313
        %3350 = vst [vmem:[%s222 + $0xd0] sm:$0xff] %v3314
        %3351 = vst [vmem:[%s222 + $0xd8] sm:$0xff] %v3315
        %3352 = vst [vmem:[%s222 + $0xe0] sm:$0xff] %v3316
        %3353 = vst [vmem:[%s222 + $0xe8] sm:$0xff] %v3317
        %3354 = vst [vmem:[%s222 + $0xf0] sm:$0xff] %v3318
        %3355 = vst [vmem:[%s222 + $0xf8] sm:$0xff] %v3319
        %3356 = vst [vmem:[%s222 + $0x100] sm:$0xff] %v3320
        %3357 = vst [vmem:[%s222 + $0x108] sm:$0xff] %v3321
        %3358 = vst [vmem:[%s222 + $0x110] sm:$0xff] %v3322
        %3359 = vst [vmem:[%s222 + $0x118] sm:$0xff] %v3323
        %s3360 = smul.u32 12, %s21
        %p3361 = scmp.lt.s32.totalorder %s20, 1
        %s3362 = scalar_select %p3361, %s20, 1
        %p3363 = scmp.lt.s32.totalorder %s3360, 23
        %s3364 = scalar_select %p3363, %s3360, 23
        %s3365 = smul.addr %s3364, 3
        %s3366 = smul.addr %s3362, 72
        %s3367 = sadd.s32 %s3365, %s3366
        %s3368 = smul.addr %s3367, 8
        %s3369 = scalar_lea.vmem %s3, %s3368
        // Predicated region
        $region41: #{stage_1_forward.15} parent=31 // pred_check
          %p3370 = pneg %p116
        $region42: #{stage_1_forward.15} parent=31 // pred_check_branch
          %3372 = sbr.rel (%p3370) target = $region44
        $region43: #{stage_1_forward.15} parent=31 // pred_region
          %s3373 = smul.u32 12, %s21
        $region44: #{stage_1_forward.15} parent=31 // pred_fallthru
          _
      $region32: #{stage_1_forward.15} parent=5 // pred_fallthru
        _
      %p3374 = scmp.le.s32.totalorder 2, %s11
      // Predicated region
      $region45: #{stage_1_forward.15} parent=5 // pred_check
        %p3375 = pneg %p3374
      $region46: #{stage_1_forward.15} parent=5 // pred_check_branch
        %3377 = sbr.rel (%p3375) target = $region48
      $region47: #{stage_1_forward.15} parent=5 // pred_region
        %s3378 = ssub.s32 %s11, 2
        // Predicated region
        $region49: #{stage_1_forward.15} parent=47 // pred_check
          %p3379 = pneg %p122
        $region50: #{stage_1_forward.15} parent=47 // pred_check_branch
          %3381 = sbr.rel (%p3379) target = $region52
        $region51: #{stage_1_forward.15} parent=47 // pred_region
          %s3382 = smul.u32 12, %s23
          %p3383 = scmp.lt.s32.totalorder %s22, 1
          %s3384 = scalar_select %p3383, %s22, 1
          %p3385 = scmp.lt.s32.totalorder %s3382, 23
          %s3386 = scalar_select %p3385, %s3382, 23
          %s3387 = smul.addr %s3386, 3
          %s3388 = smul.addr %s3384, 72
          %s3389 = sadd.s32 %s3387, %s3388
          %s3390 = smul.addr %s3389, 8
          %s3391 = scalar_lea.vmem %s3, %s3390
        $region52: #{stage_1_forward.15} parent=47 // pred_fallthru
          _
      $region48: #{stage_1_forward.15} parent=5 // pred_fallthru
        _
    $region6: #{stage_1_forward.15} parent=1 // loop_footer
      %s15 = sadd.s32 1, %s11
    $region7: #{stage_1_forward.15} parent=1 // loop_footer_branch
      %10 = sbr.rel target = $region3
    $region8: #{stage_1_forward.15} parent=1 // loop_exit
      _
    %3392 = vsyncpa [#allocation3], 1
    %s3393 = scalar_lea.sflag [#allocation3], 1
    %3394 = vsyncpa %s3393, 1
    %3395 = vsyncpa [#allocation5], 1

// kernel: stage_1_forward.10
$region0: #{stage_1_forward.10}
  #allocation0 [shape = 'u32[]', space=smem, size = 0x4, offset = 0x4, fixed_abs, tag = 'smem constant byte address 0x4 - core index']
  #allocation1 [shape = 'u32[144,128]{1,0:T(1,128)}', space=vmem, size = 0x12000, scoped, tag = 'internal scratch']
  %s0 = inlined_call_operand.vmem [shape: f32[2,26,26,128], index: 0, kind: input, shape index: {}]
  %s1 = inlined_call_operand.vmem [shape: bf16[1152,128], index: 1, kind: input, shape index: {}]
  %s2 = inlined_call_operand.vmem [shape: f32[1,128], index: 2, kind: input, shape index: {}]
  %s3 = inlined_call_operand.vmem [shape: f32[2,24,24,128], index: 3, kind: output, shape index: {}]
  %s4 = sld [smem:[#allocation0]]
  $region45: #{stage_1_forward.10} parent=0
    _
  %s6 = ssub.s32 1, %s4
  %s7 = scalar_select 0, %s6, %s4
  loop: start=0, step=1, limit=6
  $region2: #{stage_1_forward.10} parent=0 // loop_pre_header
    _
  $region3: #{stage_1_forward.10} parent=0 // loop_header
    %s9 = sphi 0, %s13
    %p10 = scmp.ge.s32.totalorder %s9, 6
    %s16 = sphi 0, %s28
    %s17 = sphi 0, %s24
    %s18 = sphi 0, %s16
    %s19 = sphi 0, %s17
    %s20 = sphi 0, %s18
    %s21 = sphi 0, %s19
    %s31 = sphi 0, %s33
    %s34 = sphi 0, %s31
    %s35 = sphi 0, %s34
    %s51 = sphi 0, %s35
    %s55 = sphi 0, %s55
    %s57 = sphi 0, %s55
    %s58 = sphi 0, %s57
    %s72 = sphi 0, %s58
    %s76 = sphi 0, %s76
    %s78 = sphi 0, %s76
    %s79 = sphi 0, %s78
    %s93 = sphi 0, %s79
    %s101 = sphi 0, %s103
    %s104 = sphi 0, %s101
    %s105 = sphi 0, %s104
    %s121 = sphi 0, %s105
  $region4: #{stage_1_forward.10} parent=0 // loop_header_branch
    %12 = sbr.rel (%p10) target = $region8
  $region5: #{stage_1_forward.10} parent=0 // loop_body
    %s14 = ssub.s32 %s9, 1
    %s15 = ssub.s32 %s9, 2
    %s22 = sadd.s32 1, %s17
    %p23 = scmp.ge.s32.totalorder %s22, 2
    %s24 = scalar_select %p23, 0, %s22
    %s25 = sadd.s32 1, %s16
    %s26 = scalar_select %p23, %s25, %s16
    %p27 = scmp.ge.s32.totalorder %s26, 2
    %s28 = scalar_select %p27, 0, %s26
    %s29 = ssub.s32 %s16, %s28
    %p30 = scmp.eq.s32.totalorder %s29, 0
    %s32 = sadd.s32 %s31, 1
    %s33 = scalar_select %p30, %s31, %s32
    %p36 = pneg %p30
    %p37 = scmp.eq.s32.totalorder %s9, 3
    %p38 = por %p36, %p37
    %p39 = scmp.ne.s32.totalorder %s31, %s34
    %p40 = scmp.eq.s32.totalorder %s9, 0
    %p41 = por %p39, %p40
    %p42 = scmp.ne.s32.totalorder %s31, %s34
    %p43 = scmp.eq.s32.totalorder %s14, 3
    %p44 = por %p42, %p43
    %p45 = scmp.ne.s32.totalorder %s34, %s35
    %p46 = scmp.eq.s32.totalorder %s14, 0
    %p47 = por %p45, %p46
    %p48 = scmp.ne.s32.totalorder %s34, %s35
    %p49 = scmp.eq.s32.totalorder %s15, 3
    %p50 = por %p48, %p49
    %p52 = scmp.ne.s32.totalorder %s35, %s51
    %p53 = scmp.eq.s32.totalorder %s15, 0
    %p54 = por %p52, %p53
    %s56 = sadd.s32 %s55, 1
    %p59 = scmp.eq.s32.totalorder %s9, 3
    %p60 = scmp.ne.s32.totalorder %s55, %s57
    %p61 = scmp.eq.s32.totalorder %s9, 0
    %p62 = por %p60, %p61
    %p63 = scmp.ne.s32.totalorder %s55, %s57
    %p64 = scmp.eq.s32.totalorder %s14, 3
    %p65 = por %p63, %p64
    %p66 = scmp.ne.s32.totalorder %s57, %s58
    %p67 = scmp.eq.s32.totalorder %s14, 0
    %p68 = por %p66, %p67
    %p69 = scmp.ne.s32.totalorder %s57, %s58
    %p70 = scmp.eq.s32.totalorder %s15, 3
    %p71 = por %p69, %p70
    %p73 = scmp.ne.s32.totalorder %s58, %s72
    %p74 = scmp.eq.s32.totalorder %s15, 0
    %p75 = por %p73, %p74
    %s77 = sadd.s32 %s76, 1
    %p80 = scmp.eq.s32.totalorder %s9, 3
    %p81 = scmp.ne.s32.totalorder %s76, %s78
    %p82 = scmp.eq.s32.totalorder %s9, 0
    %p83 = por %p81, %p82
    %p84 = scmp.ne.s32.totalorder %s76, %s78
    %p85 = scmp.eq.s32.totalorder %s14, 3
    %p86 = por %p84, %p85
    %p87 = scmp.ne.s32.totalorder %s78, %s79
    %p88 = scmp.eq.s32.totalorder %s14, 0
    %p89 = por %p87, %p88
    %p90 = scmp.ne.s32.totalorder %s78, %s79
    %p91 = scmp.eq.s32.totalorder %s15, 3
    %p92 = por %p90, %p91
    %p94 = scmp.ne.s32.totalorder %s79, %s93
    %p95 = scmp.eq.s32.totalorder %s15, 0
    %p96 = por %p94, %p95
    %s97 = ssub.s32 %s16, %s28
    %s98 = ssub.s32 %s17, %s24
    %s99 = sor.u32 %s97, %s98
    %p100 = scmp.eq.s32.totalorder %s99, 0
    %s102 = sadd.s32 %s101, 1
    %s103 = scalar_select %p100, %s101, %s102
    %p106 = pneg %p100
    %p107 = scmp.eq.s32.totalorder %s9, 3
    %p108 = por %p106, %p107
    %p109 = scmp.ne.s32.totalorder %s101, %s104
    %p110 = scmp.eq.s32.totalorder %s9, 0
    %p111 = por %p109, %p110
    %p112 = scmp.ne.s32.totalorder %s101, %s104
    %p113 = scmp.eq.s32.totalorder %s14, 3
    %p114 = por %p112, %p113
    %p115 = scmp.ne.s32.totalorder %s104, %s105
    %p116 = scmp.eq.s32.totalorder %s14, 0
    %p117 = por %p115, %p116
    %p118 = scmp.ne.s32.totalorder %s104, %s105
    %p119 = scmp.eq.s32.totalorder %s15, 3
    %p120 = por %p118, %p119
    %p122 = scmp.ne.s32.totalorder %s105, %s121
    %p123 = scmp.eq.s32.totalorder %s15, 0
    %p124 = por %p122, %p123
    %p125 = scmp.le.s32.totalorder 1, %s9
    %p126 = scmp.lt.s32.totalorder %s9, 5
    %p127 = pnand %p125, %p126
    %p128 = pneg %p127
    // Predicated region
    $region9: #{stage_1_forward.10} parent=5 // pred_check
      _
    $region10: #{stage_1_forward.10} parent=5 // pred_check_branch
      %130 = sbr.rel (%p127) target = $region12
    $region11: #{stage_1_forward.10} parent=5 // pred_region
      %s131 = ssub.s32 %s9, 1
      // Predicated region
      $region13: #{stage_1_forward.10} parent=11 // pred_check
        %p132 = pneg %p68
      $region14: #{stage_1_forward.10} parent=11 // pred_check_branch
        %134 = sbr.rel (%p132) target = $region16
      $region15: #{stage_1_forward.10} parent=11 // pred_region
        _
      $region16: #{stage_1_forward.10} parent=11 // pred_fallthru
        _
      // Predicated region
      $region17: #{stage_1_forward.10} parent=11 // pred_check
        %p135 = pneg %p89
      $region18: #{stage_1_forward.10} parent=11 // pred_check_branch
        %137 = sbr.rel (%p135) target = $region20
      $region19: #{stage_1_forward.10} parent=11 // pred_region
        _
      $region20: #{stage_1_forward.10} parent=11 // pred_fallthru
        _
    $region12: #{stage_1_forward.10} parent=5 // pred_fallthru
      _
    %p138 = scmp.lt.s32.totalorder %s9, 4
    // Predicated region
    $region21: #{stage_1_forward.10} parent=5 // pred_check
      %p139 = pneg %p138
    $region22: #{stage_1_forward.10} parent=5 // pred_check_branch
      %141 = sbr.rel (%p139) target = $region24
    $region23: #{stage_1_forward.10} parent=5 // pred_region
      // Predicated region
      $region25: #{stage_1_forward.10} parent=23 // pred_check
        %p142 = pneg %p41
      $region26: #{stage_1_forward.10} parent=23 // pred_check_branch
        %144 = sbr.rel (%p142) target = $region28
      $region27: #{stage_1_forward.10} parent=23 // pred_region
        %p145 = scmp.lt.s32.totalorder %s16, 1
        %s146 = scalar_select %p145, %s16, 1
        %s147 = smul.addr %s146, 104
        %s148 = smul.addr %s147, 8
        %s149 = scalar_lea.vmem %s0, %s148
      $region28: #{stage_1_forward.10} parent=23 // pred_fallthru
        _
    $region24: #{stage_1_forward.10} parent=5 // pred_fallthru
      _
    %p150 = scmp.le.s32.totalorder 1, %s9
    %p151 = scmp.lt.s32.totalorder %s9, 5
    %p152 = pnand %p150, %p151
    %p153 = pneg %p152
    // Predicated region
    $region29: #{stage_1_forward.10} parent=5 // pred_check
      _
    $region30: #{stage_1_forward.10} parent=5 // pred_check_branch
      %155 = sbr.rel (%p152) target = $region32
    $region31: #{stage_1_forward.10} parent=5 // pred_region
      %s156 = ssub.s32 %s9, 1
      %p157 = scmp.lt.s32.totalorder %s18, 1
      %s158 = scalar_select %p157, %s18, 1
      %s159 = smul.addr %s158, 104
      %s160 = smul.addr %s159, 8
      %s161 = scalar_lea.vmem %s0, %s160
      %p162 = pneg %p47
      %p163 = pneg %p44
      %p164 = pneg %p68
      %p165 = pneg %p65
      %p166 = pneg %p89
      %p167 = pneg %p86
      %p168 = pneg %p117
      %p169 = pneg %p114
      %s170 = smul.u32 12, %s19
      %p171 = scmp.lt.s32.totalorder %s18, 1
      %s172 = scalar_select %p171, %s18, 1
      %p173 = scmp.lt.s32.totalorder %s170, 23
      %s174 = scalar_select %p173, %s170, 23
      %s175 = smul.addr %s174, 3
      %s176 = smul.addr %s172, 72
      %s177 = sadd.s32 %s175, %s176
      %s178 = smul.addr %s177, 8
      %s179 = scalar_lea.vmem %s3, %s178
      %p180 = scmp.lt.s32.totalorder %s18, 1
      %s181 = scalar_select %p180, %s18, 1
      %s182 = smul.addr %s181, 104
      %s183 = smul.addr %s182, 8
      %s184 = scalar_lea.vmem %s0, %s183
      %s185 = smul.u32 12, %s19
      %p186 = scmp.lt.s32.totalorder %s18, 1
      %s187 = scalar_select %p186, %s18, 1
      %p188 = scmp.lt.s32.totalorder %s185, 23
      %s189 = scalar_select %p188, %s185, 23
      %s190 = smul.addr %s189, 3
      %s191 = smul.addr %s187, 72
      %s192 = sadd.s32 %s190, %s191
      %s193 = smul.addr %s192, 8
      %s194 = scalar_lea.vmem %s3, %s193
      %s195 = smul.u32 12, %s19
      %s197 = smul.u32 %s19, 12
      %s198 = smul.u32 %s197, 32
      %s199 = scalar_lea.vmem %s184, %s198
      %v200 = vld [vmem:[%s199] sm:$0xff]
      %v201 = vld [vmem:[%s199 + $0x8] sm:$0xff]
      %v202 = vld [vmem:[%s199 + $0x10] sm:$0xff]
      %v203 = vld [vmem:[%s199 + $0x18] sm:$0x3]
      %v204 = vld [vmem:[%s199 + $0x20] sm:$0xff]
      %v205 = vld [vmem:[%s199 + $0x28] sm:$0xff]
      %v206 = vld [vmem:[%s199 + $0x30] sm:$0xff]
      %v207 = vld [vmem:[%s199 + $0x38] sm:$0x3]
      %v208 = vld [vmem:[%s199 + $0x40] sm:$0xff]
      %v209 = vld [vmem:[%s199 + $0x48] sm:$0xff]
      %v210 = vld [vmem:[%s199 + $0x50] sm:$0xff]
      %v211 = vld [vmem:[%s199 + $0x58] sm:$0x3]
      %v212 = vld [vmem:[%s199 + $0x60] sm:$0xff]
      %v213 = vld [vmem:[%s199 + $0x68] sm:$0xff]
      %v214 = vld [vmem:[%s199 + $0x70] sm:$0xff]
      %v215 = vld [vmem:[%s199 + $0x78] sm:$0x3]
      %v216 = vld [vmem:[%s199 + $0x80] sm:$0xff]
      %v217 = vld [vmem:[%s199 + $0x88] sm:$0xff]
      %v218 = vld [vmem:[%s199 + $0x90] sm:$0xff]
      %v219 = vld [vmem:[%s199 + $0x98] sm:$0x3]
      %v220 = vld [vmem:[%s199 + $0xa0] sm:$0xff]
      %v221 = vld [vmem:[%s199 + $0xa8] sm:$0xff]
      %v222 = vld [vmem:[%s199 + $0xb0] sm:$0xff]
      %v223 = vld [vmem:[%s199 + $0xb8] sm:$0x3]
      %v224 = vld [vmem:[%s199 + $0xc0] sm:$0xff]
      %v225 = vld [vmem:[%s199 + $0xc8] sm:$0xff]
      %v226 = vld [vmem:[%s199 + $0xd0] sm:$0xff]
      %v227 = vld [vmem:[%s199 + $0xd8] sm:$0x3]
      %v228 = vld [vmem:[%s199 + $0xe0] sm:$0xff]
      %v229 = vld [vmem:[%s199 + $0xe8] sm:$0xff]
      %v230 = vld [vmem:[%s199 + $0xf0] sm:$0xff]
      %v231 = vld [vmem:[%s199 + $0xf8] sm:$0x3]
      %v232 = vld [vmem:[%s199 + $0x100] sm:$0xff]
      %v233 = vld [vmem:[%s199 + $0x108] sm:$0xff]
      %v234 = vld [vmem:[%s199 + $0x110] sm:$0xff]
      %v235 = vld [vmem:[%s199 + $0x118] sm:$0x3]
      %v236 = vld [vmem:[%s199 + $0x120] sm:$0xff]
      %v237 = vld [vmem:[%s199 + $0x128] sm:$0xff]
      %v238 = vld [vmem:[%s199 + $0x130] sm:$0xff]
      %v239 = vld [vmem:[%s199 + $0x138] sm:$0x3]
      %v240 = vld [vmem:[%s199 + $0x140] sm:$0xff]
      %v241 = vld [vmem:[%s199 + $0x148] sm:$0xff]
      %v242 = vld [vmem:[%s199 + $0x150] sm:$0xff]
      %v243 = vld [vmem:[%s199 + $0x158] sm:$0x3]
      %v244 = vld [vmem:[%s199 + $0x160] sm:$0xff]
      %v245 = vld [vmem:[%s199 + $0x168] sm:$0xff]
      %v246 = vld [vmem:[%s199 + $0x170] sm:$0xff]
      %v247 = vld [vmem:[%s199 + $0x178] sm:$0x3]
      %v248 = vpack.c.bf16 %v201, %v200
      %v249 = vpack.c.bf16 %v203, %v202
      %v250 = vpack.c.bf16 %v205, %v204
      %v251 = vpack.c.bf16 %v207, %v206
      %v252 = vpack.c.bf16 %v209, %v208
      %v253 = vpack.c.bf16 %v211, %v210
      %v254 = vpack.c.bf16 %v213, %v212
      %v255 = vpack.c.bf16 %v215, %v214
      %v256 = vpack.c.bf16 %v217, %v216
      %v257 = vpack.c.bf16 %v219, %v218
      %v258 = vpack.c.bf16 %v221, %v220
      %v259 = vpack.c.bf16 %v223, %v222
      %v260 = vpack.c.bf16 %v225, %v224
      %v261 = vpack.c.bf16 %v227, %v226
      %v262 = vpack.c.bf16 %v229, %v228
      %v263 = vpack.c.bf16 %v231, %v230
      %v264 = vpack.c.bf16 %v233, %v232
      %v265 = vpack.c.bf16 %v235, %v234
      %v266 = vpack.c.bf16 %v237, %v236
      %v267 = vpack.c.bf16 %v239, %v238
      %v268 = vpack.c.bf16 %v241, %v240
      %v269 = vpack.c.bf16 %v243, %v242
      %v270 = vpack.c.bf16 %v245, %v244
      %v271 = vpack.c.bf16 %v247, %v246
      %s272 = sadd.s32 %s197, 1
      %s273 = smul.u32 %s272, 32
      %s274 = scalar_lea.vmem %s184, %s273
      %v275 = vld [vmem:[%s274] sm:$0xff]
      %v276 = vld [vmem:[%s274 + $0x8] sm:$0xff]
      %v277 = vld [vmem:[%s274 + $0x10] sm:$0xff]
      %v278 = vld [vmem:[%s274 + $0x18] sm:$0x3]
      %v279 = vld [vmem:[%s274 + $0x20] sm:$0xff]
      %v280 = vld [vmem:[%s274 + $0x28] sm:$0xff]
      %v281 = vld [vmem:[%s274 + $0x30] sm:$0xff]
      %v282 = vld [vmem:[%s274 + $0x38] sm:$0x3]
      %v283 = vld [vmem:[%s274 + $0x40] sm:$0xff]
      %v284 = vld [vmem:[%s274 + $0x48] sm:$0xff]
      %v285 = vld [vmem:[%s274 + $0x50] sm:$0xff]
      %v286 = vld [vmem:[%s274 + $0x58] sm:$0x3]
      %v287 = vld [vmem:[%s274 + $0x60] sm:$0xff]
      %v288 = vld [vmem:[%s274 + $0x68] sm:$0xff]
      %v289 = vld [vmem:[%s274 + $0x70] sm:$0xff]
      %v290 = vld [vmem:[%s274 + $0x78] sm:$0x3]
      %v291 = vld [vmem:[%s274 + $0x80] sm:$0xff]
      %v292 = vld [vmem:[%s274 + $0x88] sm:$0xff]
      %v293 = vld [vmem:[%s274 + $0x90] sm:$0xff]
      %v294 = vld [vmem:[%s274 + $0x98] sm:$0x3]
      %v295 = vld [vmem:[%s274 + $0xa0] sm:$0xff]
      %v296 = vld [vmem:[%s274 + $0xa8] sm:$0xff]
      %v297 = vld [vmem:[%s274 + $0xb0] sm:$0xff]
      %v298 = vld [vmem:[%s274 + $0xb8] sm:$0x3]
      %v299 = vld [vmem:[%s274 + $0xc0] sm:$0xff]
      %v300 = vld [vmem:[%s274 + $0xc8] sm:$0xff]
      %v301 = vld [vmem:[%s274 + $0xd0] sm:$0xff]
      %v302 = vld [vmem:[%s274 + $0xd8] sm:$0x3]
      %v303 = vld [vmem:[%s274 + $0xe0] sm:$0xff]
      %v304 = vld [vmem:[%s274 + $0xe8] sm:$0xff]
      %v305 = vld [vmem:[%s274 + $0xf0] sm:$0xff]
      %v306 = vld [vmem:[%s274 + $0xf8] sm:$0x3]
      %v307 = vld [vmem:[%s274 + $0x100] sm:$0xff]
      %v308 = vld [vmem:[%s274 + $0x108] sm:$0xff]
      %v309 = vld [vmem:[%s274 + $0x110] sm:$0xff]
      %v310 = vld [vmem:[%s274 + $0x118] sm:$0x3]
      %v311 = vld [vmem:[%s274 + $0x120] sm:$0xff]
      %v312 = vld [vmem:[%s274 + $0x128] sm:$0xff]
      %v313 = vld [vmem:[%s274 + $0x130] sm:$0xff]
      %v314 = vld [vmem:[%s274 + $0x138] sm:$0x3]
      %v315 = vld [vmem:[%s274 + $0x140] sm:$0xff]
      %v316 = vld [vmem:[%s274 + $0x148] sm:$0xff]
      %v317 = vld [vmem:[%s274 + $0x150] sm:$0xff]
      %v318 = vld [vmem:[%s274 + $0x158] sm:$0x3]
      %v319 = vld [vmem:[%s274 + $0x160] sm:$0xff]
      %v320 = vld [vmem:[%s274 + $0x168] sm:$0xff]
      %v321 = vld [vmem:[%s274 + $0x170] sm:$0xff]
      %v322 = vld [vmem:[%s274 + $0x178] sm:$0x3]
      %v323 = vpack.c.bf16 %v276, %v275
      %v324 = vpack.c.bf16 %v278, %v277
      %v325 = vpack.c.bf16 %v280, %v279
      %v326 = vpack.c.bf16 %v282, %v281
      %v327 = vpack.c.bf16 %v284, %v283
      %v328 = vpack.c.bf16 %v286, %v285
      %v329 = vpack.c.bf16 %v288, %v287
      %v330 = vpack.c.bf16 %v290, %v289
      %v331 = vpack.c.bf16 %v292, %v291
      %v332 = vpack.c.bf16 %v294, %v293
      %v333 = vpack.c.bf16 %v296, %v295
      %v334 = vpack.c.bf16 %v298, %v297
      %v335 = vpack.c.bf16 %v300, %v299
      %v336 = vpack.c.bf16 %v302, %v301
      %v337 = vpack.c.bf16 %v304, %v303
      %v338 = vpack.c.bf16 %v306, %v305
      %v339 = vpack.c.bf16 %v308, %v307
      %v340 = vpack.c.bf16 %v310, %v309
      %v341 = vpack.c.bf16 %v312, %v311
      %v342 = vpack.c.bf16 %v314, %v313
      %v343 = vpack.c.bf16 %v316, %v315
      %v344 = vpack.c.bf16 %v318, %v317
      %v345 = vpack.c.bf16 %v320, %v319
      %v346 = vpack.c.bf16 %v322, %v321
      %s347 = sadd.s32 %s197, 2
      %s348 = smul.u32 %s347, 32
      %s349 = scalar_lea.vmem %s184, %s348
      %v350 = vld [vmem:[%s349] sm:$0xff]
      %v351 = vld [vmem:[%s349 + $0x8] sm:$0xff]
      %v352 = vld [vmem:[%s349 + $0x10] sm:$0xff]
      %v353 = vld [vmem:[%s349 + $0x18] sm:$0x3]
      %v354 = vld [vmem:[%s349 + $0x20] sm:$0xff]
      %v355 = vld [vmem:[%s349 + $0x28] sm:$0xff]
      %v356 = vld [vmem:[%s349 + $0x30] sm:$0xff]
      %v357 = vld [vmem:[%s349 + $0x38] sm:$0x3]
      %v358 = vld [vmem:[%s349 + $0x40] sm:$0xff]
      %v359 = vld [vmem:[%s349 + $0x48] sm:$0xff]
      %v360 = vld [vmem:[%s349 + $0x50] sm:$0xff]
      %v361 = vld [vmem:[%s349 + $0x58] sm:$0x3]
      %v362 = vld [vmem:[%s349 + $0x60] sm:$0xff]
      %v363 = vld [vmem:[%s349 + $0x68] sm:$0xff]
      %v364 = vld [vmem:[%s349 + $0x70] sm:$0xff]
      %v365 = vld [vmem:[%s349 + $0x78] sm:$0x3]
      %v366 = vld [vmem:[%s349 + $0x80] sm:$0xff]
      %v367 = vld [vmem:[%s349 + $0x88] sm:$0xff]
      %v368 = vld [vmem:[%s349 + $0x90] sm:$0xff]
      %v369 = vld [vmem:[%s349 + $0x98] sm:$0x3]
      %v370 = vld [vmem:[%s349 + $0xa0] sm:$0xff]
      %v371 = vld [vmem:[%s349 + $0xa8] sm:$0xff]
      %v372 = vld [vmem:[%s349 + $0xb0] sm:$0xff]
      %v373 = vld [vmem:[%s349 + $0xb8] sm:$0x3]
      %v374 = vld [vmem:[%s349 + $0xc0] sm:$0xff]
      %v375 = vld [vmem:[%s349 + $0xc8] sm:$0xff]
      %v376 = vld [vmem:[%s349 + $0xd0] sm:$0xff]
      %v377 = vld [vmem:[%s349 + $0xd8] sm:$0x3]
      %v378 = vld [vmem:[%s349 + $0xe0] sm:$0xff]
      %v379 = vld [vmem:[%s349 + $0xe8] sm:$0xff]
      %v380 = vld [vmem:[%s349 + $0xf0] sm:$0xff]
      %v381 = vld [vmem:[%s349 + $0xf8] sm:$0x3]
      %v382 = vld [vmem:[%s349 + $0x100] sm:$0xff]
      %v383 = vld [vmem:[%s349 + $0x108] sm:$0xff]
      %v384 = vld [vmem:[%s349 + $0x110] sm:$0xff]
      %v385 = vld [vmem:[%s349 + $0x118] sm:$0x3]
      %v386 = vld [vmem:[%s349 + $0x120] sm:$0xff]
      %v387 = vld [vmem:[%s349 + $0x128] sm:$0xff]
      %v388 = vld [vmem:[%s349 + $0x130] sm:$0xff]
      %v389 = vld [vmem:[%s349 + $0x138] sm:$0x3]
      %v390 = vld [vmem:[%s349 + $0x140] sm:$0xff]
      %v391 = vld [vmem:[%s349 + $0x148] sm:$0xff]
      %v392 = vld [vmem:[%s349 + $0x150] sm:$0xff]
      %v393 = vld [vmem:[%s349 + $0x158] sm:$0x3]
      %v394 = vld [vmem:[%s349 + $0x160] sm:$0xff]
      %v395 = vld [vmem:[%s349 + $0x168] sm:$0xff]
      %v396 = vld [vmem:[%s349 + $0x170] sm:$0xff]
      %v397 = vld [vmem:[%s349 + $0x178] sm:$0x3]
      %v398 = vpack.c.bf16 %v351, %v350
      %v399 = vpack.c.bf16 %v353, %v352
      %v400 = vpack.c.bf16 %v355, %v354
      %v401 = vpack.c.bf16 %v357, %v356
      %v402 = vpack.c.bf16 %v359, %v358
      %v403 = vpack.c.bf16 %v361, %v360
      %v404 = vpack.c.bf16 %v363, %v362
      %v405 = vpack.c.bf16 %v365, %v364
      %v406 = vpack.c.bf16 %v367, %v366
      %v407 = vpack.c.bf16 %v369, %v368
      %v408 = vpack.c.bf16 %v371, %v370
      %v409 = vpack.c.bf16 %v373, %v372
      %v410 = vpack.c.bf16 %v375, %v374
      %v411 = vpack.c.bf16 %v377, %v376
      %v412 = vpack.c.bf16 %v379, %v378
      %v413 = vpack.c.bf16 %v381, %v380
      %v414 = vpack.c.bf16 %v383, %v382
      %v415 = vpack.c.bf16 %v385, %v384
      %v416 = vpack.c.bf16 %v387, %v386
      %v417 = vpack.c.bf16 %v389, %v388
      %v418 = vpack.c.bf16 %v391, %v390
      %v419 = vpack.c.bf16 %v393, %v392
      %v420 = vpack.c.bf16 %v395, %v394
      %v421 = vpack.c.bf16 %v397, %v396
      %vm422 = vsmask.f32 7424
      %v424 = vshrl.u32 %v248, 16
      %v426 = vshll.u32 %v248, 16
      %v428 = vrot.slane %v426, 1
      %v429 = vor.u32 %v424, %v428
      %v431 = vshll.u32 %v249, 16
      %v433 = vrot.slane %v431, 1
      %v434 = vsel %vm422, %v429, %v433
      %v435 = vshrl.u32 %v249, 16
      %v437 = vor.u32 %v435, %v433
      %v439 = vshrl.u32 %v250, 16
      %v441 = vshll.u32 %v250, 16
      %v443 = vrot.slane %v441, 1
      %v444 = vor.u32 %v439, %v443
      %v446 = vshll.u32 %v251, 16
      %v448 = vrot.slane %v446, 1
      %v449 = vsel %vm422, %v444, %v448
      %v450 = vshrl.u32 %v251, 16
      %v452 = vor.u32 %v450, %v448
      %v454 = vshrl.u32 %v252, 16
      %v456 = vshll.u32 %v252, 16
      %v458 = vrot.slane %v456, 1
      %v459 = vor.u32 %v454, %v458
      %v461 = vshll.u32 %v253, 16
      %v463 = vrot.slane %v461, 1
      %v464 = vsel %vm422, %v459, %v463
      %v465 = vshrl.u32 %v253, 16
      %v467 = vor.u32 %v465, %v463
      %v469 = vshrl.u32 %v254, 16
      %v471 = vshll.u32 %v254, 16
      %v473 = vrot.slane %v471, 1
      %v474 = vor.u32 %v469, %v473
      %v476 = vshll.u32 %v255, 16
      %v478 = vrot.slane %v476, 1
      %v479 = vsel %vm422, %v474, %v478
      %v480 = vshrl.u32 %v255, 16
      %v482 = vor.u32 %v480, %v478
      %v484 = vshrl.u32 %v256, 16
      %v486 = vshll.u32 %v256, 16
      %v488 = vrot.slane %v486, 1
      %v489 = vor.u32 %v484, %v488
      %v491 = vshll.u32 %v257, 16
      %v493 = vrot.slane %v491, 1
      %v494 = vsel %vm422, %v489, %v493
      %v495 = vshrl.u32 %v257, 16
      %v497 = vor.u32 %v495, %v493
      %v499 = vshrl.u32 %v258, 16
      %v501 = vshll.u32 %v258, 16
      %v503 = vrot.slane %v501, 1
      %v504 = vor.u32 %v499, %v503
      %v506 = vshll.u32 %v259, 16
      %v508 = vrot.slane %v506, 1
      %v509 = vsel %vm422, %v504, %v508
      %v510 = vshrl.u32 %v259, 16
      %v512 = vor.u32 %v510, %v508
      %v514 = vshrl.u32 %v260, 16
      %v516 = vshll.u32 %v260, 16
      %v518 = vrot.slane %v516, 1
      %v519 = vor.u32 %v514, %v518
      %v521 = vshll.u32 %v261, 16
      %v523 = vrot.slane %v521, 1
      %v524 = vsel %vm422, %v519, %v523
      %v525 = vshrl.u32 %v261, 16
      %v527 = vor.u32 %v525, %v523
      %v529 = vshrl.u32 %v262, 16
      %v531 = vshll.u32 %v262, 16
      %v533 = vrot.slane %v531, 1
      %v534 = vor.u32 %v529, %v533
      %v536 = vshll.u32 %v263, 16
      %v538 = vrot.slane %v536, 1
      %v539 = vsel %vm422, %v534, %v538
      %v540 = vshrl.u32 %v263, 16
      %v542 = vor.u32 %v540, %v538
      %v544 = vshrl.u32 %v264, 16
      %v546 = vshll.u32 %v264, 16
      %v548 = vrot.slane %v546, 1
      %v549 = vor.u32 %v544, %v548
      %v551 = vshll.u32 %v265, 16
      %v553 = vrot.slane %v551, 1
      %v554 = vsel %vm422, %v549, %v553
      %v555 = vshrl.u32 %v265, 16
      %v557 = vor.u32 %v555, %v553
      %v559 = vshrl.u32 %v266, 16
      %v561 = vshll.u32 %v266, 16
      %v563 = vrot.slane %v561, 1
      %v564 = vor.u32 %v559, %v563
      %v566 = vshll.u32 %v267, 16
      %v568 = vrot.slane %v566, 1
      %v569 = vsel %vm422, %v564, %v568
      %v570 = vshrl.u32 %v267, 16
      %v572 = vor.u32 %v570, %v568
      %v574 = vshrl.u32 %v268, 16
      %v576 = vshll.u32 %v268, 16
      %v578 = vrot.slane %v576, 1
      %v579 = vor.u32 %v574, %v578
      %v581 = vshll.u32 %v269, 16
      %v583 = vrot.slane %v581, 1
      %v584 = vsel %vm422, %v579, %v583
      %v585 = vshrl.u32 %v269, 16
      %v587 = vor.u32 %v585, %v583
      %v589 = vshrl.u32 %v270, 16
      %v591 = vshll.u32 %v270, 16
      %v593 = vrot.slane %v591, 1
      %v594 = vor.u32 %v589, %v593
      %v596 = vshll.u32 %v271, 16
      %v598 = vrot.slane %v596, 1
      %v599 = vsel %vm422, %v594, %v598
      %v600 = vshrl.u32 %v271, 16
      %v602 = vor.u32 %v600, %v598
      %vm627 = vcmask 1046528
      %v628 = vrot.slane %v248, 1
      %v629 = vrot.slane %v249, 1
      %v630 = vsel %vm627, %v628, %v629
      %v631 = vrot.slane %v250, 1
      %v632 = vrot.slane %v251, 1
      %v633 = vsel %vm627, %v631, %v632
      %v634 = vrot.slane %v252, 1
      %v635 = vrot.slane %v253, 1
      %v636 = vsel %vm627, %v634, %v635
      %v637 = vrot.slane %v254, 1
      %v638 = vrot.slane %v255, 1
      %v639 = vsel %vm627, %v637, %v638
      %v640 = vrot.slane %v256, 1
      %v641 = vrot.slane %v257, 1
      %v642 = vsel %vm627, %v640, %v641
      %v643 = vrot.slane %v258, 1
      %v644 = vrot.slane %v259, 1
      %v645 = vsel %vm627, %v643, %v644
      %v646 = vrot.slane %v260, 1
      %v647 = vrot.slane %v261, 1
      %v648 = vsel %vm627, %v646, %v647
      %v649 = vrot.slane %v262, 1
      %v650 = vrot.slane %v263, 1
      %v651 = vsel %vm627, %v649, %v650
      %v652 = vrot.slane %v264, 1
      %v653 = vrot.slane %v265, 1
      %v654 = vsel %vm627, %v652, %v653
      %v655 = vrot.slane %v266, 1
      %v656 = vrot.slane %v267, 1
      %v657 = vsel %vm627, %v655, %v656
      %v658 = vrot.slane %v268, 1
      %v659 = vrot.slane %v269, 1
      %v660 = vsel %vm627, %v658, %v659
      %v661 = vrot.slane %v270, 1
      %v662 = vrot.slane %v271, 1
      %v663 = vsel %vm627, %v661, %v662
      %v665 = vshrl.u32 %v323, 16
      %v667 = vshll.u32 %v323, 16
      %v669 = vrot.slane %v667, 1
      %v670 = vor.u32 %v665, %v669
      %v672 = vshll.u32 %v324, 16
      %v674 = vrot.slane %v672, 1
      %v675 = vsel %vm422, %v670, %v674
      %v676 = vshrl.u32 %v324, 16
      %v678 = vor.u32 %v676, %v674
      %v680 = vshrl.u32 %v325, 16
      %v682 = vshll.u32 %v325, 16
      %v684 = vrot.slane %v682, 1
      %v685 = vor.u32 %v680, %v684
      %v687 = vshll.u32 %v326, 16
      %v689 = vrot.slane %v687, 1
      %v690 = vsel %vm422, %v685, %v689
      %v691 = vshrl.u32 %v326, 16
      %v693 = vor.u32 %v691, %v689
      %v695 = vshrl.u32 %v327, 16
      %v697 = vshll.u32 %v327, 16
      %v699 = vrot.slane %v697, 1
      %v700 = vor.u32 %v695, %v699
      %v702 = vshll.u32 %v328, 16
      %v704 = vrot.slane %v702, 1
      %v705 = vsel %vm422, %v700, %v704
      %v706 = vshrl.u32 %v328, 16
      %v708 = vor.u32 %v706, %v704
      %v710 = vshrl.u32 %v329, 16
      %v712 = vshll.u32 %v329, 16
      %v714 = vrot.slane %v712, 1
      %v715 = vor.u32 %v710, %v714
      %v717 = vshll.u32 %v330, 16
      %v719 = vrot.slane %v717, 1
      %v720 = vsel %vm422, %v715, %v719
      %v721 = vshrl.u32 %v330, 16
      %v723 = vor.u32 %v721, %v719
      %v725 = vshrl.u32 %v331, 16
      %v727 = vshll.u32 %v331, 16
      %v729 = vrot.slane %v727, 1
      %v730 = vor.u32 %v725, %v729
      %v732 = vshll.u32 %v332, 16
      %v734 = vrot.slane %v732, 1
      %v735 = vsel %vm422, %v730, %v734
      %v736 = vshrl.u32 %v332, 16
      %v738 = vor.u32 %v736, %v734
      %v740 = vshrl.u32 %v333, 16
      %v742 = vshll.u32 %v333, 16
      %v744 = vrot.slane %v742, 1
      %v745 = vor.u32 %v740, %v744
      %v747 = vshll.u32 %v334, 16
      %v749 = vrot.slane %v747, 1
      %v750 = vsel %vm422, %v745, %v749
      %v751 = vshrl.u32 %v334, 16
      %v753 = vor.u32 %v751, %v749
      %v755 = vshrl.u32 %v335, 16
      %v757 = vshll.u32 %v335, 16
      %v759 = vrot.slane %v757, 1
      %v760 = vor.u32 %v755, %v759
      %v762 = vshll.u32 %v336, 16
      %v764 = vrot.slane %v762, 1
      %v765 = vsel %vm422, %v760, %v764
      %v766 = vshrl.u32 %v336, 16
      %v768 = vor.u32 %v766, %v764
      %v770 = vshrl.u32 %v337, 16
      %v772 = vshll.u32 %v337, 16
      %v774 = vrot.slane %v772, 1
      %v775 = vor.u32 %v770, %v774
      %v777 = vshll.u32 %v338, 16
      %v779 = vrot.slane %v777, 1
      %v780 = vsel %vm422, %v775, %v779
      %v781 = vshrl.u32 %v338, 16
      %v783 = vor.u32 %v781, %v779
      %v785 = vshrl.u32 %v339, 16
      %v787 = vshll.u32 %v339, 16
      %v789 = vrot.slane %v787, 1
      %v790 = vor.u32 %v785, %v789
      %v792 = vshll.u32 %v340, 16
      %v794 = vrot.slane %v792, 1
      %v795 = vsel %vm422, %v790, %v794
      %v796 = vshrl.u32 %v340, 16
      %v798 = vor.u32 %v796, %v794
      %v800 = vshrl.u32 %v341, 16
      %v802 = vshll.u32 %v341, 16
      %v804 = vrot.slane %v802, 1
      %v805 = vor.u32 %v800, %v804
      %v807 = vshll.u32 %v342, 16
      %v809 = vrot.slane %v807, 1
      %v810 = vsel %vm422, %v805, %v809
      %v811 = vshrl.u32 %v342, 16
      %v813 = vor.u32 %v811, %v809
      %v815 = vshrl.u32 %v343, 16
      %v817 = vshll.u32 %v343, 16
      %v819 = vrot.slane %v817, 1
      %v820 = vor.u32 %v815, %v819
      %v822 = vshll.u32 %v344, 16
      %v824 = vrot.slane %v822, 1
      %v825 = vsel %vm422, %v820, %v824
      %v826 = vshrl.u32 %v344, 16
      %v828 = vor.u32 %v826, %v824
      %v830 = vshrl.u32 %v345, 16
      %v832 = vshll.u32 %v345, 16
      %v834 = vrot.slane %v832, 1
      %v835 = vor.u32 %v830, %v834
      %v837 = vshll.u32 %v346, 16
      %v839 = vrot.slane %v837, 1
      %v840 = vsel %vm422, %v835, %v839
      %v841 = vshrl.u32 %v346, 16
      %v843 = vor.u32 %v841, %v839
      %v868 = vrot.slane %v323, 1
      %v869 = vrot.slane %v324, 1
      %v870 = vsel %vm627, %v868, %v869
      %v871 = vrot.slane %v325, 1
      %v872 = vrot.slane %v326, 1
      %v873 = vsel %vm627, %v871, %v872
      %v874 = vrot.slane %v327, 1
      %v875 = vrot.slane %v328, 1
      %v876 = vsel %vm627, %v874, %v875
      %v877 = vrot.slane %v329, 1
      %v878 = vrot.slane %v330, 1
      %v879 = vsel %vm627, %v877, %v878
      %v880 = vrot.slane %v331, 1
      %v881 = vrot.slane %v332, 1
      %v882 = vsel %vm627, %v880, %v881
      %v883 = vrot.slane %v333, 1
      %v884 = vrot.slane %v334, 1
      %v885 = vsel %vm627, %v883, %v884
      %v886 = vrot.slane %v335, 1
      %v887 = vrot.slane %v336, 1
      %v888 = vsel %vm627, %v886, %v887
      %v889 = vrot.slane %v337, 1
      %v890 = vrot.slane %v338, 1
      %v891 = vsel %vm627, %v889, %v890
      %v892 = vrot.slane %v339, 1
      %v893 = vrot.slane %v340, 1
      %v894 = vsel %vm627, %v892, %v893
      %v895 = vrot.slane %v341, 1
      %v896 = vrot.slane %v342, 1
      %v897 = vsel %vm627, %v895, %v896
      %v898 = vrot.slane %v343, 1
      %v899 = vrot.slane %v344, 1
      %v900 = vsel %vm627, %v898, %v899
      %v901 = vrot.slane %v345, 1
      %v902 = vrot.slane %v346, 1
      %v903 = vsel %vm627, %v901, %v902
      %v905 = vshrl.u32 %v398, 16
      %v907 = vshll.u32 %v398, 16
      %v909 = vrot.slane %v907, 1
      %v910 = vor.u32 %v905, %v909
      %v912 = vshll.u32 %v399, 16
      %v914 = vrot.slane %v912, 1
      %v915 = vsel %vm422, %v910, %v914
      %v916 = vshrl.u32 %v399, 16
      %v918 = vor.u32 %v916, %v914
      %v920 = vshrl.u32 %v400, 16
      %v922 = vshll.u32 %v400, 16
      %v924 = vrot.slane %v922, 1
      %v925 = vor.u32 %v920, %v924
      %v927 = vshll.u32 %v401, 16
      %v929 = vrot.slane %v927, 1
      %v930 = vsel %vm422, %v925, %v929
      %v931 = vshrl.u32 %v401, 16
      %v933 = vor.u32 %v931, %v929
      %v935 = vshrl.u32 %v402, 16
      %v937 = vshll.u32 %v402, 16
      %v939 = vrot.slane %v937, 1
      %v940 = vor.u32 %v935, %v939
      %v942 = vshll.u32 %v403, 16
      %v944 = vrot.slane %v942, 1
      %v945 = vsel %vm422, %v940, %v944
      %v946 = vshrl.u32 %v403, 16
      %v948 = vor.u32 %v946, %v944
      %v950 = vshrl.u32 %v404, 16
      %v952 = vshll.u32 %v404, 16
      %v954 = vrot.slane %v952, 1
      %v955 = vor.u32 %v950, %v954
      %v957 = vshll.u32 %v405, 16
      %v959 = vrot.slane %v957, 1
      %v960 = vsel %vm422, %v955, %v959
      %v961 = vshrl.u32 %v405, 16
      %v963 = vor.u32 %v961, %v959
      %v965 = vshrl.u32 %v406, 16
      %v967 = vshll.u32 %v406, 16
      %v969 = vrot.slane %v967, 1
      %v970 = vor.u32 %v965, %v969
      %v972 = vshll.u32 %v407, 16
      %v974 = vrot.slane %v972, 1
      %v975 = vsel %vm422, %v970, %v974
      %v976 = vshrl.u32 %v407, 16
      %v978 = vor.u32 %v976, %v974
      %v980 = vshrl.u32 %v408, 16
      %v982 = vshll.u32 %v408, 16
      %v984 = vrot.slane %v982, 1
      %v985 = vor.u32 %v980, %v984
      %v987 = vshll.u32 %v409, 16
      %v989 = vrot.slane %v987, 1
      %v990 = vsel %vm422, %v985, %v989
      %v991 = vshrl.u32 %v409, 16
      %v993 = vor.u32 %v991, %v989
      %v995 = vshrl.u32 %v410, 16
      %v997 = vshll.u32 %v410, 16
      %v999 = vrot.slane %v997, 1
      %v1000 = vor.u32 %v995, %v999
      %v1002 = vshll.u32 %v411, 16
      %v1004 = vrot.slane %v1002, 1
      %v1005 = vsel %vm422, %v1000, %v1004
      %v1006 = vshrl.u32 %v411, 16
      %v1008 = vor.u32 %v1006, %v1004
      %v1010 = vshrl.u32 %v412, 16
      %v1012 = vshll.u32 %v412, 16
      %v1014 = vrot.slane %v1012, 1
      %v1015 = vor.u32 %v1010, %v1014
      %v1017 = vshll.u32 %v413, 16
      %v1019 = vrot.slane %v1017, 1
      %v1020 = vsel %vm422, %v1015, %v1019
      %v1021 = vshrl.u32 %v413, 16
      %v1023 = vor.u32 %v1021, %v1019
      %v1025 = vshrl.u32 %v414, 16
      %v1027 = vshll.u32 %v414, 16
      %v1029 = vrot.slane %v1027, 1
      %v1030 = vor.u32 %v1025, %v1029
      %v1032 = vshll.u32 %v415, 16
      %v1034 = vrot.slane %v1032, 1
      %v1035 = vsel %vm422, %v1030, %v1034
      %v1036 = vshrl.u32 %v415, 16
      %v1038 = vor.u32 %v1036, %v1034
      %v1040 = vshrl.u32 %v416, 16
      %v1042 = vshll.u32 %v416, 16
      %v1044 = vrot.slane %v1042, 1
      %v1045 = vor.u32 %v1040, %v1044
      %v1047 = vshll.u32 %v417, 16
      %v1049 = vrot.slane %v1047, 1
      %v1050 = vsel %vm422, %v1045, %v1049
      %v1051 = vshrl.u32 %v417, 16
      %v1053 = vor.u32 %v1051, %v1049
      %v1055 = vshrl.u32 %v418, 16
      %v1057 = vshll.u32 %v418, 16
      %v1059 = vrot.slane %v1057, 1
      %v1060 = vor.u32 %v1055, %v1059
      %v1062 = vshll.u32 %v419, 16
      %v1064 = vrot.slane %v1062, 1
      %v1065 = vsel %vm422, %v1060, %v1064
      %v1066 = vshrl.u32 %v419, 16
      %v1068 = vor.u32 %v1066, %v1064
      %v1070 = vshrl.u32 %v420, 16
      %v1072 = vshll.u32 %v420, 16
      %v1074 = vrot.slane %v1072, 1
      %v1075 = vor.u32 %v1070, %v1074
      %v1077 = vshll.u32 %v421, 16
      %v1079 = vrot.slane %v1077, 1
      %v1080 = vsel %vm422, %v1075, %v1079
      %v1081 = vshrl.u32 %v421, 16
      %v1083 = vor.u32 %v1081, %v1079
      %v1108 = vrot.slane %v398, 1
      %v1109 = vrot.slane %v399, 1
      %v1110 = vsel %vm627, %v1108, %v1109
      %v1111 = vrot.slane %v400, 1
      %v1112 = vrot.slane %v401, 1
      %v1113 = vsel %vm627, %v1111, %v1112
      %v1114 = vrot.slane %v402, 1
      %v1115 = vrot.slane %v403, 1
      %v1116 = vsel %vm627, %v1114, %v1115
      %v1117 = vrot.slane %v404, 1
      %v1118 = vrot.slane %v405, 1
      %v1119 = vsel %vm627, %v1117, %v1118
      %v1120 = vrot.slane %v406, 1
      %v1121 = vrot.slane %v407, 1
      %v1122 = vsel %vm627, %v1120, %v1121
      %v1123 = vrot.slane %v408, 1
      %v1124 = vrot.slane %v409, 1
      %v1125 = vsel %vm627, %v1123, %v1124
      %v1126 = vrot.slane %v410, 1
      %v1127 = vrot.slane %v411, 1
      %v1128 = vsel %vm627, %v1126, %v1127
      %v1129 = vrot.slane %v412, 1
      %v1130 = vrot.slane %v413, 1
      %v1131 = vsel %vm627, %v1129, %v1130
      %v1132 = vrot.slane %v414, 1
      %v1133 = vrot.slane %v415, 1
      %v1134 = vsel %vm627, %v1132, %v1133
      %v1135 = vrot.slane %v416, 1
      %v1136 = vrot.slane %v417, 1
      %v1137 = vsel %vm627, %v1135, %v1136
      %v1138 = vrot.slane %v418, 1
      %v1139 = vrot.slane %v419, 1
      %v1140 = vsel %vm627, %v1138, %v1139
      %v1141 = vrot.slane %v420, 1
      %v1142 = vrot.slane %v421, 1
      %v1143 = vsel %vm627, %v1141, %v1142
      %v1144 = vunpack.c.l.b16 %v248
      %v1145 = vunpack.c.l.b16 %v434
      %v1146 = vunpack.c.l.b16 %v630
      %v1147 = vunpack.c.l.b16 %v323
      %v1148 = vunpack.c.l.b16 %v675
      %v1149 = vunpack.c.l.b16 %v870
      %v1150 = vunpack.c.l.b16 %v398
      %v1151 = vunpack.c.l.b16 %v915
      %v1152 = vunpack.c.l.b16 %v1110
      %v1153 = vunpack.c.h.b16 %v248
      %v1154 = vunpack.c.h.b16 %v434
      %v1155 = vunpack.c.h.b16 %v630
      %v1156 = vunpack.c.h.b16 %v323
      %v1157 = vunpack.c.h.b16 %v675
      %v1158 = vunpack.c.h.b16 %v870
      %v1159 = vunpack.c.h.b16 %v398
      %v1160 = vunpack.c.h.b16 %v915
      %v1161 = vunpack.c.h.b16 %v1110
      %v1162 = vunpack.c.l.b16 %v249
      %v1163 = vunpack.c.l.b16 %v437
      %v1164 = vunpack.c.l.b16 %v629
      %v1165 = vunpack.c.l.b16 %v324
      %v1166 = vunpack.c.l.b16 %v678
      %v1167 = vunpack.c.l.b16 %v869
      %v1168 = vunpack.c.l.b16 %v399
      %v1169 = vunpack.c.l.b16 %v918
      %v1170 = vunpack.c.l.b16 %v1109
      %v1171 = vunpack.c.l.b16 %v250
      %v1172 = vunpack.c.l.b16 %v449
      %v1173 = vunpack.c.l.b16 %v633
      %v1174 = vunpack.c.l.b16 %v325
      %v1175 = vunpack.c.l.b16 %v690
      %v1176 = vunpack.c.l.b16 %v873
      %v1177 = vunpack.c.l.b16 %v400
      %v1178 = vunpack.c.l.b16 %v930
      %v1179 = vunpack.c.l.b16 %v1113
      %v1180 = vunpack.c.h.b16 %v250
      %v1181 = vunpack.c.h.b16 %v449
      %v1182 = vunpack.c.h.b16 %v633
      %v1183 = vunpack.c.h.b16 %v325
      %v1184 = vunpack.c.h.b16 %v690
      %v1185 = vunpack.c.h.b16 %v873
      %v1186 = vunpack.c.h.b16 %v400
      %v1187 = vunpack.c.h.b16 %v930
      %v1188 = vunpack.c.h.b16 %v1113
      %v1189 = vunpack.c.l.b16 %v251
      %v1190 = vunpack.c.l.b16 %v452
      %v1191 = vunpack.c.l.b16 %v632
      %v1192 = vunpack.c.l.b16 %v326
      %v1193 = vunpack.c.l.b16 %v693
      %v1194 = vunpack.c.l.b16 %v872
      %v1195 = vunpack.c.l.b16 %v401
      %v1196 = vunpack.c.l.b16 %v933
      %v1197 = vunpack.c.l.b16 %v1112
      %v1198 = vunpack.c.l.b16 %v252
      %v1199 = vunpack.c.l.b16 %v464
      %v1200 = vunpack.c.l.b16 %v636
      %v1201 = vunpack.c.l.b16 %v327
      %v1202 = vunpack.c.l.b16 %v705
      %v1203 = vunpack.c.l.b16 %v876
      %v1204 = vunpack.c.l.b16 %v402
      %v1205 = vunpack.c.l.b16 %v945
      %v1206 = vunpack.c.l.b16 %v1116
      %v1207 = vunpack.c.h.b16 %v252
      %v1208 = vunpack.c.h.b16 %v464
      %v1209 = vunpack.c.h.b16 %v636
      %v1210 = vunpack.c.h.b16 %v327
      %v1211 = vunpack.c.h.b16 %v705
      %v1212 = vunpack.c.h.b16 %v876
      %v1213 = vunpack.c.h.b16 %v402
      %v1214 = vunpack.c.h.b16 %v945
      %v1215 = vunpack.c.h.b16 %v1116
      %v1216 = vunpack.c.l.b16 %v253
      %v1217 = vunpack.c.l.b16 %v467
      %v1218 = vunpack.c.l.b16 %v635
      %v1219 = vunpack.c.l.b16 %v328
      %v1220 = vunpack.c.l.b16 %v708
      %v1221 = vunpack.c.l.b16 %v875
      %v1222 = vunpack.c.l.b16 %v403
      %v1223 = vunpack.c.l.b16 %v948
      %v1224 = vunpack.c.l.b16 %v1115
      %v1225 = vunpack.c.l.b16 %v254
      %v1226 = vunpack.c.l.b16 %v479
      %v1227 = vunpack.c.l.b16 %v639
      %v1228 = vunpack.c.l.b16 %v329
      %v1229 = vunpack.c.l.b16 %v720
      %v1230 = vunpack.c.l.b16 %v879
      %v1231 = vunpack.c.l.b16 %v404
      %v1232 = vunpack.c.l.b16 %v960
      %v1233 = vunpack.c.l.b16 %v1119
      %v1234 = vunpack.c.h.b16 %v254
      %v1235 = vunpack.c.h.b16 %v479
      %v1236 = vunpack.c.h.b16 %v639
      %v1237 = vunpack.c.h.b16 %v329
      %v1238 = vunpack.c.h.b16 %v720
      %v1239 = vunpack.c.h.b16 %v879
      %v1240 = vunpack.c.h.b16 %v404
      %v1241 = vunpack.c.h.b16 %v960
      %v1242 = vunpack.c.h.b16 %v1119
      %v1243 = vunpack.c.l.b16 %v255
      %v1244 = vunpack.c.l.b16 %v482
      %v1245 = vunpack.c.l.b16 %v638
      %v1246 = vunpack.c.l.b16 %v330
      %v1247 = vunpack.c.l.b16 %v723
      %v1248 = vunpack.c.l.b16 %v878
      %v1249 = vunpack.c.l.b16 %v405
      %v1250 = vunpack.c.l.b16 %v963
      %v1251 = vunpack.c.l.b16 %v1118
      %v1252 = vunpack.c.l.b16 %v256
      %v1253 = vunpack.c.l.b16 %v494
      %v1254 = vunpack.c.l.b16 %v642
      %v1255 = vunpack.c.l.b16 %v331
      %v1256 = vunpack.c.l.b16 %v735
      %v1257 = vunpack.c.l.b16 %v882
      %v1258 = vunpack.c.l.b16 %v406
      %v1259 = vunpack.c.l.b16 %v975
      %v1260 = vunpack.c.l.b16 %v1122
      %v1261 = vunpack.c.h.b16 %v256
      %v1262 = vunpack.c.h.b16 %v494
      %v1263 = vunpack.c.h.b16 %v642
      %v1264 = vunpack.c.h.b16 %v331
      %v1265 = vunpack.c.h.b16 %v735
      %v1266 = vunpack.c.h.b16 %v882
      %v1267 = vunpack.c.h.b16 %v406
      %v1268 = vunpack.c.h.b16 %v975
      %v1269 = vunpack.c.h.b16 %v1122
      %v1270 = vunpack.c.l.b16 %v257
      %v1271 = vunpack.c.l.b16 %v497
      %v1272 = vunpack.c.l.b16 %v641
      %v1273 = vunpack.c.l.b16 %v332
      %v1274 = vunpack.c.l.b16 %v738
      %v1275 = vunpack.c.l.b16 %v881
      %v1276 = vunpack.c.l.b16 %v407
      %v1277 = vunpack.c.l.b16 %v978
      %v1278 = vunpack.c.l.b16 %v1121
      %v1279 = vunpack.c.l.b16 %v258
      %v1280 = vunpack.c.l.b16 %v509
      %v1281 = vunpack.c.l.b16 %v645
      %v1282 = vunpack.c.l.b16 %v333
      %v1283 = vunpack.c.l.b16 %v750
      %v1284 = vunpack.c.l.b16 %v885
      %v1285 = vunpack.c.l.b16 %v408
      %v1286 = vunpack.c.l.b16 %v990
      %v1287 = vunpack.c.l.b16 %v1125
      %v1288 = vunpack.c.h.b16 %v258
      %v1289 = vunpack.c.h.b16 %v509
      %v1290 = vunpack.c.h.b16 %v645
      %v1291 = vunpack.c.h.b16 %v333
      %v1292 = vunpack.c.h.b16 %v750
      %v1293 = vunpack.c.h.b16 %v885
      %v1294 = vunpack.c.h.b16 %v408
      %v1295 = vunpack.c.h.b16 %v990
      %v1296 = vunpack.c.h.b16 %v1125
      %v1297 = vunpack.c.l.b16 %v259
      %v1298 = vunpack.c.l.b16 %v512
      %v1299 = vunpack.c.l.b16 %v644
      %v1300 = vunpack.c.l.b16 %v334
      %v1301 = vunpack.c.l.b16 %v753
      %v1302 = vunpack.c.l.b16 %v884
      %v1303 = vunpack.c.l.b16 %v409
      %v1304 = vunpack.c.l.b16 %v993
      %v1305 = vunpack.c.l.b16 %v1124
      %v1306 = vunpack.c.l.b16 %v260
      %v1307 = vunpack.c.l.b16 %v524
      %v1308 = vunpack.c.l.b16 %v648
      %v1309 = vunpack.c.l.b16 %v335
      %v1310 = vunpack.c.l.b16 %v765
      %v1311 = vunpack.c.l.b16 %v888
      %v1312 = vunpack.c.l.b16 %v410
      %v1313 = vunpack.c.l.b16 %v1005
      %v1314 = vunpack.c.l.b16 %v1128
      %v1315 = vunpack.c.h.b16 %v260
      %v1316 = vunpack.c.h.b16 %v524
      %v1317 = vunpack.c.h.b16 %v648
      %v1318 = vunpack.c.h.b16 %v335
      %v1319 = vunpack.c.h.b16 %v765
      %v1320 = vunpack.c.h.b16 %v888
      %v1321 = vunpack.c.h.b16 %v410
      %v1322 = vunpack.c.h.b16 %v1005
      %v1323 = vunpack.c.h.b16 %v1128
      %v1324 = vunpack.c.l.b16 %v261
      %v1325 = vunpack.c.l.b16 %v527
      %v1326 = vunpack.c.l.b16 %v647
      %v1327 = vunpack.c.l.b16 %v336
      %v1328 = vunpack.c.l.b16 %v768
      %v1329 = vunpack.c.l.b16 %v887
      %v1330 = vunpack.c.l.b16 %v411
      %v1331 = vunpack.c.l.b16 %v1008
      %v1332 = vunpack.c.l.b16 %v1127
      %v1333 = vunpack.c.l.b16 %v262
      %v1334 = vunpack.c.l.b16 %v539
      %v1335 = vunpack.c.l.b16 %v651
      %v1336 = vunpack.c.l.b16 %v337
      %v1337 = vunpack.c.l.b16 %v780
      %v1338 = vunpack.c.l.b16 %v891
      %v1339 = vunpack.c.l.b16 %v412
      %v1340 = vunpack.c.l.b16 %v1020
      %v1341 = vunpack.c.l.b16 %v1131
      %v1342 = vunpack.c.h.b16 %v262
      %v1343 = vunpack.c.h.b16 %v539
      %v1344 = vunpack.c.h.b16 %v651
      %v1345 = vunpack.c.h.b16 %v337
      %v1346 = vunpack.c.h.b16 %v780
      %v1347 = vunpack.c.h.b16 %v891
      %v1348 = vunpack.c.h.b16 %v412
      %v1349 = vunpack.c.h.b16 %v1020
      %v1350 = vunpack.c.h.b16 %v1131
      %v1351 = vunpack.c.l.b16 %v263
      %v1352 = vunpack.c.l.b16 %v542
      %v1353 = vunpack.c.l.b16 %v650
      %v1354 = vunpack.c.l.b16 %v338
      %v1355 = vunpack.c.l.b16 %v783
      %v1356 = vunpack.c.l.b16 %v890
      %v1357 = vunpack.c.l.b16 %v413
      %v1358 = vunpack.c.l.b16 %v1023
      %v1359 = vunpack.c.l.b16 %v1130
      %v1360 = vunpack.c.l.b16 %v264
      %v1361 = vunpack.c.l.b16 %v554
      %v1362 = vunpack.c.l.b16 %v654
      %v1363 = vunpack.c.l.b16 %v339
      %v1364 = vunpack.c.l.b16 %v795
      %v1365 = vunpack.c.l.b16 %v894
      %v1366 = vunpack.c.l.b16 %v414
      %v1367 = vunpack.c.l.b16 %v1035
      %v1368 = vunpack.c.l.b16 %v1134
      %v1369 = vunpack.c.h.b16 %v264
      %v1370 = vunpack.c.h.b16 %v554
      %v1371 = vunpack.c.h.b16 %v654
      %v1372 = vunpack.c.h.b16 %v339
      %v1373 = vunpack.c.h.b16 %v795
      %v1374 = vunpack.c.h.b16 %v894
      %v1375 = vunpack.c.h.b16 %v414
      %v1376 = vunpack.c.h.b16 %v1035
      %v1377 = vunpack.c.h.b16 %v1134
      %v1378 = vunpack.c.l.b16 %v265
      %v1379 = vunpack.c.l.b16 %v557
      %v1380 = vunpack.c.l.b16 %v653
      %v1381 = vunpack.c.l.b16 %v340
      %v1382 = vunpack.c.l.b16 %v798
      %v1383 = vunpack.c.l.b16 %v893
      %v1384 = vunpack.c.l.b16 %v415
      %v1385 = vunpack.c.l.b16 %v1038
      %v1386 = vunpack.c.l.b16 %v1133
      %v1387 = vunpack.c.l.b16 %v266
      %v1388 = vunpack.c.l.b16 %v569
      %v1389 = vunpack.c.l.b16 %v657
      %v1390 = vunpack.c.l.b16 %v341
      %v1391 = vunpack.c.l.b16 %v810
      %v1392 = vunpack.c.l.b16 %v897
      %v1393 = vunpack.c.l.b16 %v416
      %v1394 = vunpack.c.l.b16 %v1050
      %v1395 = vunpack.c.l.b16 %v1137
      %v1396 = vunpack.c.h.b16 %v266
      %v1397 = vunpack.c.h.b16 %v569
      %v1398 = vunpack.c.h.b16 %v657
      %v1399 = vunpack.c.h.b16 %v341
      %v1400 = vunpack.c.h.b16 %v810
      %v1401 = vunpack.c.h.b16 %v897
      %v1402 = vunpack.c.h.b16 %v416
      %v1403 = vunpack.c.h.b16 %v1050
      %v1404 = vunpack.c.h.b16 %v1137
      %v1405 = vunpack.c.l.b16 %v267
      %v1406 = vunpack.c.l.b16 %v572
      %v1407 = vunpack.c.l.b16 %v656
      %v1408 = vunpack.c.l.b16 %v342
      %v1409 = vunpack.c.l.b16 %v813
      %v1410 = vunpack.c.l.b16 %v896
      %v1411 = vunpack.c.l.b16 %v417
      %v1412 = vunpack.c.l.b16 %v1053
      %v1413 = vunpack.c.l.b16 %v1136
      %v1414 = vunpack.c.l.b16 %v268
      %v1415 = vunpack.c.l.b16 %v584
      %v1416 = vunpack.c.l.b16 %v660
      %v1417 = vunpack.c.l.b16 %v343
      %v1418 = vunpack.c.l.b16 %v825
      %v1419 = vunpack.c.l.b16 %v900
      %v1420 = vunpack.c.l.b16 %v418
      %v1421 = vunpack.c.l.b16 %v1065
      %v1422 = vunpack.c.l.b16 %v1140
      %v1423 = vunpack.c.h.b16 %v268
      %v1424 = vunpack.c.h.b16 %v584
      %v1425 = vunpack.c.h.b16 %v660
      %v1426 = vunpack.c.h.b16 %v343
      %v1427 = vunpack.c.h.b16 %v825
      %v1428 = vunpack.c.h.b16 %v900
      %v1429 = vunpack.c.h.b16 %v418
      %v1430 = vunpack.c.h.b16 %v1065
      %v1431 = vunpack.c.h.b16 %v1140
      %v1432 = vunpack.c.l.b16 %v269
      %v1433 = vunpack.c.l.b16 %v587
      %v1434 = vunpack.c.l.b16 %v659
      %v1435 = vunpack.c.l.b16 %v344
      %v1436 = vunpack.c.l.b16 %v828
      %v1437 = vunpack.c.l.b16 %v899
      %v1438 = vunpack.c.l.b16 %v419
      %v1439 = vunpack.c.l.b16 %v1068
      %v1440 = vunpack.c.l.b16 %v1139
      %v1441 = vunpack.c.l.b16 %v270
      %v1442 = vunpack.c.l.b16 %v599
      %v1443 = vunpack.c.l.b16 %v663
      %v1444 = vunpack.c.l.b16 %v345
      %v1445 = vunpack.c.l.b16 %v840
      %v1446 = vunpack.c.l.b16 %v903
      %v1447 = vunpack.c.l.b16 %v420
      %v1448 = vunpack.c.l.b16 %v1080
      %v1449 = vunpack.c.l.b16 %v1143
      %v1450 = vunpack.c.h.b16 %v270
      %v1451 = vunpack.c.h.b16 %v599
      %v1452 = vunpack.c.h.b16 %v663
      %v1453 = vunpack.c.h.b16 %v345
      %v1454 = vunpack.c.h.b16 %v840
      %v1455 = vunpack.c.h.b16 %v903
      %v1456 = vunpack.c.h.b16 %v420
      %v1457 = vunpack.c.h.b16 %v1080
      %v1458 = vunpack.c.h.b16 %v1143
      %v1459 = vunpack.c.l.b16 %v271
      %v1460 = vunpack.c.l.b16 %v602
      %v1461 = vunpack.c.l.b16 %v662
      %v1462 = vunpack.c.l.b16 %v346
      %v1463 = vunpack.c.l.b16 %v843
      %v1464 = vunpack.c.l.b16 %v902
      %v1465 = vunpack.c.l.b16 %v421
      %v1466 = vunpack.c.l.b16 %v1083
      %v1467 = vunpack.c.l.b16 %v1142
      %v1468 = vld [vmem:[%s1] sm:$0xf]
      %v1469 = vld [vmem:[%s1 + $0x4] sm:$0xf]
      %v1470 = vld [vmem:[%s1 + $0x8] sm:$0xf]
      %v1471 = vld [vmem:[%s1 + $0xc] sm:$0xf]
      %v1472 = vld [vmem:[%s1 + $0x10] sm:$0xf]
      %v1473 = vld [vmem:[%s1 + $0x14] sm:$0xf]
      %v1474 = vld [vmem:[%s1 + $0x18] sm:$0xf]
      %v1475 = vld [vmem:[%s1 + $0x1c] sm:$0xf]
      %v1476 = vld [vmem:[%s1 + $0x20] sm:$0xf]
      %v1477 = vld [vmem:[%s1 + $0x24] sm:$0xf]
      %v1478 = vld [vmem:[%s1 + $0x28] sm:$0xf]
      %v1479 = vld [vmem:[%s1 + $0x2c] sm:$0xf]
      %v1480 = vld [vmem:[%s1 + $0x30] sm:$0xf]
      %v1481 = vld [vmem:[%s1 + $0x34] sm:$0xf]
      %v1482 = vld [vmem:[%s1 + $0x38] sm:$0xf]
      %v1483 = vld [vmem:[%s1 + $0x3c] sm:$0xf]
      %v1484 = vld [vmem:[%s1 + $0x40] sm:$0xf]
      %v1485 = vld [vmem:[%s1 + $0x44] sm:$0xf]
      %v1486 = vld [vmem:[%s1 + $0x48] sm:$0xf]
      %v1487 = vld [vmem:[%s1 + $0x4c] sm:$0xf]
      %v1488 = vld [vmem:[%s1 + $0x50] sm:$0xf]
      %v1489 = vld [vmem:[%s1 + $0x54] sm:$0xf]
      %v1490 = vld [vmem:[%s1 + $0x58] sm:$0xf]
      %v1491 = vld [vmem:[%s1 + $0x5c] sm:$0xf]
      %v1492 = vld [vmem:[%s1 + $0x60] sm:$0xf]
      %v1493 = vld [vmem:[%s1 + $0x64] sm:$0xf]
      %v1494 = vld [vmem:[%s1 + $0x68] sm:$0xf]
      %v1495 = vld [vmem:[%s1 + $0x6c] sm:$0xf]
      %v1496 = vld [vmem:[%s1 + $0x70] sm:$0xf]
      %v1497 = vld [vmem:[%s1 + $0x74] sm:$0xf]
      %v1498 = vld [vmem:[%s1 + $0x78] sm:$0xf]
      %v1499 = vld [vmem:[%s1 + $0x7c] sm:$0xf]
      %v1500 = vld [vmem:[%s1 + $0x80] sm:$0xf]
      %v1501 = vld [vmem:[%s1 + $0x84] sm:$0xf]
      %v1502 = vld [vmem:[%s1 + $0x88] sm:$0xf]
      %v1503 = vld [vmem:[%s1 + $0x8c] sm:$0xf]
      %v1504 = vld [vmem:[%s1 + $0x90] sm:$0xf]
      %v1505 = vld [vmem:[%s1 + $0x94] sm:$0xf]
      %v1506 = vld [vmem:[%s1 + $0x98] sm:$0xf]
      %v1507 = vld [vmem:[%s1 + $0x9c] sm:$0xf]
      %v1508 = vld [vmem:[%s1 + $0xa0] sm:$0xf]
      %v1509 = vld [vmem:[%s1 + $0xa4] sm:$0xf]
      %v1510 = vld [vmem:[%s1 + $0xa8] sm:$0xf]
      %v1511 = vld [vmem:[%s1 + $0xac] sm:$0xf]
      %v1512 = vld [vmem:[%s1 + $0xb0] sm:$0xf]
      %v1513 = vld [vmem:[%s1 + $0xb4] sm:$0xf]
      %v1514 = vld [vmem:[%s1 + $0xb8] sm:$0xf]
      %v1515 = vld [vmem:[%s1 + $0xbc] sm:$0xf]
      %v1516 = vld [vmem:[%s1 + $0xc0] sm:$0xf]
      %v1517 = vld [vmem:[%s1 + $0xc4] sm:$0xf]
      %v1518 = vld [vmem:[%s1 + $0xc8] sm:$0xf]
      %v1519 = vld [vmem:[%s1 + $0xcc] sm:$0xf]
      %v1520 = vld [vmem:[%s1 + $0xd0] sm:$0xf]
      %v1521 = vld [vmem:[%s1 + $0xd4] sm:$0xf]
      %v1522 = vld [vmem:[%s1 + $0xd8] sm:$0xf]
      %v1523 = vld [vmem:[%s1 + $0xdc] sm:$0xf]
      %v1524 = vld [vmem:[%s1 + $0xe0] sm:$0xf]
      %v1525 = vld [vmem:[%s1 + $0xe4] sm:$0xf]
      %v1526 = vld [vmem:[%s1 + $0xe8] sm:$0xf]
      %v1527 = vld [vmem:[%s1 + $0xec] sm:$0xf]
      %v1528 = vld [vmem:[%s1 + $0xf0] sm:$0xf]
      %v1529 = vld [vmem:[%s1 + $0xf4] sm:$0xf]
      %v1530 = vld [vmem:[%s1 + $0xf8] sm:$0xf]
      %v1531 = vld [vmem:[%s1 + $0xfc] sm:$0xf]
      %v1532 = vld [vmem:[%s1 + $0x100] sm:$0xf]
      %v1533 = vld [vmem:[%s1 + $0x104] sm:$0xf]
      %v1534 = vld [vmem:[%s1 + $0x108] sm:$0xf]
      %v1535 = vld [vmem:[%s1 + $0x10c] sm:$0xf]
      %v1536 = vld [vmem:[%s1 + $0x110] sm:$0xf]
      %v1537 = vld [vmem:[%s1 + $0x114] sm:$0xf]
      %v1538 = vld [vmem:[%s1 + $0x118] sm:$0xf]
      %v1539 = vld [vmem:[%s1 + $0x11c] sm:$0xf]
      %v1540 = vld [vmem:[%s1 + $0x120] sm:$0xf]
      %v1541 = vld [vmem:[%s1 + $0x124] sm:$0xf]
      %v1542 = vld [vmem:[%s1 + $0x128] sm:$0xf]
      %v1543 = vld [vmem:[%s1 + $0x12c] sm:$0xf]
      %v1544 = vld [vmem:[%s1 + $0x130] sm:$0xf]
      %v1545 = vld [vmem:[%s1 + $0x134] sm:$0xf]
      %v1546 = vld [vmem:[%s1 + $0x138] sm:$0xf]
      %v1547 = vld [vmem:[%s1 + $0x13c] sm:$0xf]
      %v1548 = vld [vmem:[%s1 + $0x140] sm:$0xf]
      %v1549 = vld [vmem:[%s1 + $0x144] sm:$0xf]
      %v1550 = vld [vmem:[%s1 + $0x148] sm:$0xf]
      %v1551 = vld [vmem:[%s1 + $0x14c] sm:$0xf]
      %v1552 = vld [vmem:[%s1 + $0x150] sm:$0xf]
      %v1553 = vld [vmem:[%s1 + $0x154] sm:$0xf]
      %v1554 = vld [vmem:[%s1 + $0x158] sm:$0xf]
      %v1555 = vld [vmem:[%s1 + $0x15c] sm:$0xf]
      %v1556 = vld [vmem:[%s1 + $0x160] sm:$0xf]
      %v1557 = vld [vmem:[%s1 + $0x164] sm:$0xf]
      %v1558 = vld [vmem:[%s1 + $0x168] sm:$0xf]
      %v1559 = vld [vmem:[%s1 + $0x16c] sm:$0xf]
      %v1560 = vld [vmem:[%s1 + $0x170] sm:$0xf]
      %v1561 = vld [vmem:[%s1 + $0x174] sm:$0xf]
      %v1562 = vld [vmem:[%s1 + $0x178] sm:$0xf]
      %v1563 = vld [vmem:[%s1 + $0x17c] sm:$0xf]
      %v1564 = vld [vmem:[%s1 + $0x180] sm:$0xf]
      %v1565 = vld [vmem:[%s1 + $0x184] sm:$0xf]
      %v1566 = vld [vmem:[%s1 + $0x188] sm:$0xf]
      %v1567 = vld [vmem:[%s1 + $0x18c] sm:$0xf]
      %v1568 = vld [vmem:[%s1 + $0x190] sm:$0xf]
      %v1569 = vld [vmem:[%s1 + $0x194] sm:$0xf]
      %v1570 = vld [vmem:[%s1 + $0x198] sm:$0xf]
      %v1571 = vld [vmem:[%s1 + $0x19c] sm:$0xf]
      %v1572 = vld [vmem:[%s1 + $0x1a0] sm:$0xf]
      %v1573 = vld [vmem:[%s1 + $0x1a4] sm:$0xf]
      %v1574 = vld [vmem:[%s1 + $0x1a8] sm:$0xf]
      %v1575 = vld [vmem:[%s1 + $0x1ac] sm:$0xf]
      %v1576 = vld [vmem:[%s1 + $0x1b0] sm:$0xf]
      %v1577 = vld [vmem:[%s1 + $0x1b4] sm:$0xf]
      %v1578 = vld [vmem:[%s1 + $0x1b8] sm:$0xf]
      %v1579 = vld [vmem:[%s1 + $0x1bc] sm:$0xf]
      %v1580 = vld [vmem:[%s1 + $0x1c0] sm:$0xf]
      %v1581 = vld [vmem:[%s1 + $0x1c4] sm:$0xf]
      %v1582 = vld [vmem:[%s1 + $0x1c8] sm:$0xf]
      %v1583 = vld [vmem:[%s1 + $0x1cc] sm:$0xf]
      %v1584 = vld [vmem:[%s1 + $0x1d0] sm:$0xf]
      %v1585 = vld [vmem:[%s1 + $0x1d4] sm:$0xf]
      %v1586 = vld [vmem:[%s1 + $0x1d8] sm:$0xf]
      %v1587 = vld [vmem:[%s1 + $0x1dc] sm:$0xf]
      %v1588 = vld [vmem:[%s1 + $0x1e0] sm:$0xf]
      %v1589 = vld [vmem:[%s1 + $0x1e4] sm:$0xf]
      %v1590 = vld [vmem:[%s1 + $0x1e8] sm:$0xf]
      %v1591 = vld [vmem:[%s1 + $0x1ec] sm:$0xf]
      %v1592 = vld [vmem:[%s1 + $0x1f0] sm:$0xf]
      %v1593 = vld [vmem:[%s1 + $0x1f4] sm:$0xf]
      %v1594 = vld [vmem:[%s1 + $0x1f8] sm:$0xf]
      %v1595 = vld [vmem:[%s1 + $0x1fc] sm:$0xf]
      %v1596 = vld [vmem:[%s1 + $0x200] sm:$0xf]
      %v1597 = vld [vmem:[%s1 + $0x204] sm:$0xf]
      %v1598 = vld [vmem:[%s1 + $0x208] sm:$0xf]
      %v1599 = vld [vmem:[%s1 + $0x20c] sm:$0xf]
      %v1600 = vld [vmem:[%s1 + $0x210] sm:$0xf]
      %v1601 = vld [vmem:[%s1 + $0x214] sm:$0xf]
      %v1602 = vld [vmem:[%s1 + $0x218] sm:$0xf]
      %v1603 = vld [vmem:[%s1 + $0x21c] sm:$0xf]
      %v1604 = vld [vmem:[%s1 + $0x220] sm:$0xf]
      %v1605 = vld [vmem:[%s1 + $0x224] sm:$0xf]
      %v1606 = vld [vmem:[%s1 + $0x228] sm:$0xf]
      %v1607 = vld [vmem:[%s1 + $0x22c] sm:$0xf]
      %v1608 = vld [vmem:[%s1 + $0x230] sm:$0xf]
      %v1609 = vld [vmem:[%s1 + $0x234] sm:$0xf]
      %v1610 = vld [vmem:[%s1 + $0x238] sm:$0xf]
      %v1611 = vld [vmem:[%s1 + $0x23c] sm:$0xf]
      %v1612 = vld [vmem:[%s2] sm:$0x1]
      %v1614 = vlaneseq
      %v1615 = vshrl.u32 %v1614, 7
      %v1616 = vsub.s32 0, %v1615
      %v1617 = vrot.slane %v1612, %v1616
      %v1619 = vpack.c.b16 %v1153, %v1144
      %v1620 = vpack.c.b16 %v1154, %v1145
      %v1621 = vpack.c.b16 %v1155, %v1146
      %v1622 = vpack.c.b16 %v1156, %v1147
      %v1623 = vpack.c.b16 %v1157, %v1148
      %v1624 = vpack.c.b16 %v1158, %v1149
      %v1625 = vpack.c.b16 %v1159, %v1150
      %v1626 = vpack.c.b16 %v1160, %v1151
      %v1627 = vpack.c.b16 %v1161, %v1152
      %v1628 = vpack.c.b16 %v1171, %v1162
      %v1629 = vpack.c.b16 %v1172, %v1163
      %v1630 = vpack.c.b16 %v1173, %v1164
      %v1631 = vpack.c.b16 %v1174, %v1165
      %v1632 = vpack.c.b16 %v1175, %v1166
      %v1633 = vpack.c.b16 %v1176, %v1167
      %v1634 = vpack.c.b16 %v1177, %v1168
      %v1635 = vpack.c.b16 %v1178, %v1169
      %v1636 = vpack.c.b16 %v1179, %v1170
      %v1637 = vpack.c.b16 %v1189, %v1180
      %v1638 = vpack.c.b16 %v1190, %v1181
      %v1639 = vpack.c.b16 %v1191, %v1182
      %v1640 = vpack.c.b16 %v1192, %v1183
      %v1641 = vpack.c.b16 %v1193, %v1184
      %v1642 = vpack.c.b16 %v1194, %v1185
      %v1643 = vpack.c.b16 %v1195, %v1186
      %v1644 = vpack.c.b16 %v1196, %v1187
      %v1645 = vpack.c.b16 %v1197, %v1188
      %v1646 = vpack.c.b16 %v1207, %v1198
      %v1647 = vpack.c.b16 %v1208, %v1199
      %v1648 = vpack.c.b16 %v1209, %v1200
      %v1649 = vpack.c.b16 %v1210, %v1201
      %v1650 = vpack.c.b16 %v1211, %v1202
      %v1651 = vpack.c.b16 %v1212, %v1203
      %v1652 = vpack.c.b16 %v1213, %v1204
      %v1653 = vpack.c.b16 %v1214, %v1205
      %v1654 = vpack.c.b16 %v1215, %v1206
      %v1655 = vpack.c.b16 %v1225, %v1216
      %v1656 = vpack.c.b16 %v1226, %v1217
      %v1657 = vpack.c.b16 %v1227, %v1218
      %v1658 = vpack.c.b16 %v1228, %v1219
      %v1659 = vpack.c.b16 %v1229, %v1220
      %v1660 = vpack.c.b16 %v1230, %v1221
      %v1661 = vpack.c.b16 %v1231, %v1222
      %v1662 = vpack.c.b16 %v1232, %v1223
      %v1663 = vpack.c.b16 %v1233, %v1224
      %v1664 = vpack.c.b16 %v1243, %v1234
      %v1665 = vpack.c.b16 %v1244, %v1235
      %v1666 = vpack.c.b16 %v1245, %v1236
      %v1667 = vpack.c.b16 %v1246, %v1237
      %v1668 = vpack.c.b16 %v1247, %v1238
      %v1669 = vpack.c.b16 %v1248, %v1239
      %v1670 = vpack.c.b16 %v1249, %v1240
      %v1671 = vpack.c.b16 %v1250, %v1241
      %v1672 = vpack.c.b16 %v1251, %v1242
      %v1673 = vpack.c.b16 %v1261, %v1252
      %v1674 = vpack.c.b16 %v1262, %v1253
      %v1675 = vpack.c.b16 %v1263, %v1254
      %v1676 = vpack.c.b16 %v1264, %v1255
      %v1677 = vpack.c.b16 %v1265, %v1256
      %v1678 = vpack.c.b16 %v1266, %v1257
      %v1679 = vpack.c.b16 %v1267, %v1258
      %v1680 = vpack.c.b16 %v1268, %v1259
      %v1681 = vpack.c.b16 %v1269, %v1260
      %v1682 = vpack.c.b16 %v1279, %v1270
      %v1683 = vpack.c.b16 %v1280, %v1271
      %v1684 = vpack.c.b16 %v1281, %v1272
      %v1685 = vpack.c.b16 %v1282, %v1273
      %v1686 = vpack.c.b16 %v1283, %v1274
      %v1687 = vpack.c.b16 %v1284, %v1275
      %v1688 = vpack.c.b16 %v1285, %v1276
      %v1689 = vpack.c.b16 %v1286, %v1277
      %v1690 = vpack.c.b16 %v1287, %v1278
      %v1691 = vpack.c.b16 %v1297, %v1288
      %v1692 = vpack.c.b16 %v1298, %v1289
      %v1693 = vpack.c.b16 %v1299, %v1290
      %v1694 = vpack.c.b16 %v1300, %v1291
      %v1695 = vpack.c.b16 %v1301, %v1292
      %v1696 = vpack.c.b16 %v1302, %v1293
      %v1697 = vpack.c.b16 %v1303, %v1294
      %v1698 = vpack.c.b16 %v1304, %v1295
      %v1699 = vpack.c.b16 %v1305, %v1296
      %v1700 = vpack.c.b16 %v1315, %v1306
      %v1701 = vpack.c.b16 %v1316, %v1307
      %v1702 = vpack.c.b16 %v1317, %v1308
      %v1703 = vpack.c.b16 %v1318, %v1309
      %v1704 = vpack.c.b16 %v1319, %v1310
      %v1705 = vpack.c.b16 %v1320, %v1311
      %v1706 = vpack.c.b16 %v1321, %v1312
      %v1707 = vpack.c.b16 %v1322, %v1313
      %v1708 = vpack.c.b16 %v1323, %v1314
      %v1709 = vpack.c.b16 %v1333, %v1324
      %v1710 = vpack.c.b16 %v1334, %v1325
      %v1711 = vpack.c.b16 %v1335, %v1326
      %v1712 = vpack.c.b16 %v1336, %v1327
      %v1713 = vpack.c.b16 %v1337, %v1328
      %v1714 = vpack.c.b16 %v1338, %v1329
      %v1715 = vpack.c.b16 %v1339, %v1330
      %v1716 = vpack.c.b16 %v1340, %v1331
      %v1717 = vpack.c.b16 %v1341, %v1332
      %v1718 = vpack.c.b16 %v1351, %v1342
      %v1719 = vpack.c.b16 %v1352, %v1343
      %v1720 = vpack.c.b16 %v1353, %v1344
      %v1721 = vpack.c.b16 %v1354, %v1345
      %v1722 = vpack.c.b16 %v1355, %v1346
      %v1723 = vpack.c.b16 %v1356, %v1347
      %v1724 = vpack.c.b16 %v1357, %v1348
      %v1725 = vpack.c.b16 %v1358, %v1349
      %v1726 = vpack.c.b16 %v1359, %v1350
      %v1727 = vpack.c.b16 %v1369, %v1360
      %v1728 = vpack.c.b16 %v1370, %v1361
      %v1729 = vpack.c.b16 %v1371, %v1362
      %v1730 = vpack.c.b16 %v1372, %v1363
      %v1731 = vpack.c.b16 %v1373, %v1364
      %v1732 = vpack.c.b16 %v1374, %v1365
      %v1733 = vpack.c.b16 %v1375, %v1366
      %v1734 = vpack.c.b16 %v1376, %v1367
      %v1735 = vpack.c.b16 %v1377, %v1368
      %v1736 = vpack.c.b16 %v1387, %v1378
      %v1737 = vpack.c.b16 %v1388, %v1379
      %v1738 = vpack.c.b16 %v1389, %v1380
      %v1739 = vpack.c.b16 %v1390, %v1381
      %v1740 = vpack.c.b16 %v1391, %v1382
      %v1741 = vpack.c.b16 %v1392, %v1383
      %v1742 = vpack.c.b16 %v1393, %v1384
      %v1743 = vpack.c.b16 %v1394, %v1385
      %v1744 = vpack.c.b16 %v1395, %v1386
      %v1745 = vpack.c.b16 %v1405, %v1396
      %v1746 = vpack.c.b16 %v1406, %v1397
      %v1747 = vpack.c.b16 %v1407, %v1398
      %v1748 = vpack.c.b16 %v1408, %v1399
      %v1749 = vpack.c.b16 %v1409, %v1400
      %v1750 = vpack.c.b16 %v1410, %v1401
      %v1751 = vpack.c.b16 %v1411, %v1402
      %v1752 = vpack.c.b16 %v1412, %v1403
      %v1753 = vpack.c.b16 %v1413, %v1404
      %v1754 = vpack.c.b16 %v1423, %v1414
      %v1755 = vpack.c.b16 %v1424, %v1415
      %v1756 = vpack.c.b16 %v1425, %v1416
      %v1757 = vpack.c.b16 %v1426, %v1417
      %v1758 = vpack.c.b16 %v1427, %v1418
      %v1759 = vpack.c.b16 %v1428, %v1419
      %v1760 = vpack.c.b16 %v1429, %v1420
      %v1761 = vpack.c.b16 %v1430, %v1421
      %v1762 = vpack.c.b16 %v1431, %v1422
      %v1763 = vpack.c.b16 %v1441, %v1432
      %v1764 = vpack.c.b16 %v1442, %v1433
      %v1765 = vpack.c.b16 %v1443, %v1434
      %v1766 = vpack.c.b16 %v1444, %v1435
      %v1767 = vpack.c.b16 %v1445, %v1436
      %v1768 = vpack.c.b16 %v1446, %v1437
      %v1769 = vpack.c.b16 %v1447, %v1438
      %v1770 = vpack.c.b16 %v1448, %v1439
      %v1771 = vpack.c.b16 %v1449, %v1440
      %v1772 = vpack.c.b16 %v1459, %v1450
      %v1773 = vpack.c.b16 %v1460, %v1451
      %v1774 = vpack.c.b16 %v1461, %v1452
      %v1775 = vpack.c.b16 %v1462, %v1453
      %v1776 = vpack.c.b16 %v1463, %v1454
      %v1777 = vpack.c.b16 %v1464, %v1455
      %v1778 = vpack.c.b16 %v1465, %v1456
      %v1779 = vpack.c.b16 %v1466, %v1457
      %v1780 = vpack.c.b16 %v1467, %v1458
      %v2087 = vunpack.c.l.b16 %v1468
      %v2088 = vunpack.c.l.b16 %v1469
      %v2089 = vunpack.c.l.b16 %v1470
      %v2090 = vunpack.c.l.b16 %v1471
      %v2091 = vunpack.c.l.b16 %v1472
      %v2092 = vunpack.c.l.b16 %v1473
      %v2093 = vunpack.c.l.b16 %v1474
      %v2094 = vunpack.c.l.b16 %v1475
      %v2095 = vunpack.c.l.b16 %v1476
      %v2096 = vunpack.c.l.b16 %v1477
      %v2097 = vunpack.c.l.b16 %v1478
      %v2098 = vunpack.c.l.b16 %v1479
      %v2099 = vunpack.c.l.b16 %v1480
      %v2100 = vunpack.c.l.b16 %v1481
      %v2101 = vunpack.c.l.b16 %v1482
      %v2102 = vunpack.c.l.b16 %v1483
      %v2103 = vunpack.c.l.b16 %v1484
      %v2104 = vunpack.c.l.b16 %v1485
      %v2105 = vunpack.c.l.b16 %v1486
      %v2106 = vunpack.c.l.b16 %v1487
      %v2107 = vunpack.c.l.b16 %v1488
      %v2108 = vunpack.c.l.b16 %v1489
      %v2109 = vunpack.c.l.b16 %v1490
      %v2110 = vunpack.c.l.b16 %v1491
      %v2111 = vunpack.c.l.b16 %v1492
      %v2112 = vunpack.c.l.b16 %v1493
      %v2113 = vunpack.c.l.b16 %v1494
      %v2114 = vunpack.c.l.b16 %v1495
      %v2115 = vunpack.c.l.b16 %v1496
      %v2116 = vunpack.c.l.b16 %v1497
      %v2117 = vunpack.c.l.b16 %v1498
      %v2118 = vunpack.c.l.b16 %v1499
      %v2119 = vunpack.c.l.b16 %v1500
      %v2120 = vunpack.c.l.b16 %v1501
      %v2121 = vunpack.c.l.b16 %v1502
      %v2122 = vunpack.c.l.b16 %v1503
      %v2123 = vunpack.c.l.b16 %v1504
      %v2124 = vunpack.c.l.b16 %v1505
      %v2125 = vunpack.c.l.b16 %v1506
      %v2126 = vunpack.c.l.b16 %v1507
      %v2127 = vunpack.c.l.b16 %v1508
      %v2128 = vunpack.c.l.b16 %v1509
      %v2129 = vunpack.c.l.b16 %v1510
      %v2130 = vunpack.c.l.b16 %v1511
      %v2131 = vunpack.c.l.b16 %v1512
      %v2132 = vunpack.c.l.b16 %v1513
      %v2133 = vunpack.c.l.b16 %v1514
      %v2134 = vunpack.c.l.b16 %v1515
      %v2135 = vunpack.c.l.b16 %v1516
      %v2136 = vunpack.c.l.b16 %v1517
      %v2137 = vunpack.c.l.b16 %v1518
      %v2138 = vunpack.c.l.b16 %v1519
      %v2139 = vunpack.c.l.b16 %v1520
      %v2140 = vunpack.c.l.b16 %v1521
      %v2141 = vunpack.c.l.b16 %v1522
      %v2142 = vunpack.c.l.b16 %v1523
      %v2143 = vunpack.c.l.b16 %v1524
      %v2144 = vunpack.c.l.b16 %v1525
      %v2145 = vunpack.c.l.b16 %v1526
      %v2146 = vunpack.c.l.b16 %v1527
      %v2147 = vunpack.c.l.b16 %v1528
      %v2148 = vunpack.c.l.b16 %v1529
      %v2149 = vunpack.c.l.b16 %v1530
      %v2150 = vunpack.c.l.b16 %v1531
      %v2151 = vunpack.c.l.b16 %v1532
      %v2152 = vunpack.c.l.b16 %v1533
      %v2153 = vunpack.c.l.b16 %v1534
      %v2154 = vunpack.c.l.b16 %v1535
      %v2155 = vunpack.c.l.b16 %v1536
      %v2156 = vunpack.c.l.b16 %v1537
      %v2157 = vunpack.c.l.b16 %v1538
      %v2158 = vunpack.c.l.b16 %v1539
      %v2159 = vunpack.c.l.b16 %v1540
      %v2160 = vunpack.c.l.b16 %v1541
      %v2161 = vunpack.c.l.b16 %v1542
      %v2162 = vunpack.c.l.b16 %v1543
      %v2163 = vunpack.c.l.b16 %v1544
      %v2164 = vunpack.c.l.b16 %v1545
      %v2165 = vunpack.c.l.b16 %v1546
      %v2166 = vunpack.c.l.b16 %v1547
      %v2167 = vunpack.c.l.b16 %v1548
      %v2168 = vunpack.c.l.b16 %v1549
      %v2169 = vunpack.c.l.b16 %v1550
      %v2170 = vunpack.c.l.b16 %v1551
      %v2171 = vunpack.c.l.b16 %v1552
      %v2172 = vunpack.c.l.b16 %v1553
      %v2173 = vunpack.c.l.b16 %v1554
      %v2174 = vunpack.c.l.b16 %v1555
      %v2175 = vunpack.c.l.b16 %v1556
      %v2176 = vunpack.c.l.b16 %v1557
      %v2177 = vunpack.c.l.b16 %v1558
      %v2178 = vunpack.c.l.b16 %v1559
      %v2179 = vunpack.c.l.b16 %v1560
      %v2180 = vunpack.c.l.b16 %v1561
      %v2181 = vunpack.c.l.b16 %v1562
      %v2182 = vunpack.c.l.b16 %v1563
      %v2183 = vunpack.c.l.b16 %v1564
      %v2184 = vunpack.c.l.b16 %v1565
      %v2185 = vunpack.c.l.b16 %v1566
      %v2186 = vunpack.c.l.b16 %v1567
      %v2187 = vunpack.c.l.b16 %v1568
      %v2188 = vunpack.c.l.b16 %v1569
      %v2189 = vunpack.c.l.b16 %v1570
      %v2190 = vunpack.c.l.b16 %v1571
      %v2191 = vunpack.c.l.b16 %v1572
      %v2192 = vunpack.c.l.b16 %v1573
      %v2193 = vunpack.c.l.b16 %v1574
      %v2194 = vunpack.c.l.b16 %v1575
      %v2195 = vunpack.c.l.b16 %v1576
      %v2196 = vunpack.c.l.b16 %v1577
      %v2197 = vunpack.c.l.b16 %v1578
      %v2198 = vunpack.c.l.b16 %v1579
      %v2199 = vunpack.c.l.b16 %v1580
      %v2200 = vunpack.c.l.b16 %v1581
      %v2201 = vunpack.c.l.b16 %v1582
      %v2202 = vunpack.c.l.b16 %v1583
      %v2203 = vunpack.c.l.b16 %v1584
      %v2204 = vunpack.c.l.b16 %v1585
      %v2205 = vunpack.c.l.b16 %v1586
      %v2206 = vunpack.c.l.b16 %v1587
      %v2207 = vunpack.c.l.b16 %v1588
      %v2208 = vunpack.c.l.b16 %v1589
      %v2209 = vunpack.c.l.b16 %v1590
      %v2210 = vunpack.c.l.b16 %v1591
      %v2211 = vunpack.c.l.b16 %v1592
      %v2212 = vunpack.c.l.b16 %v1593
      %v2213 = vunpack.c.l.b16 %v1594
      %v2214 = vunpack.c.l.b16 %v1595
      %v2215 = vunpack.c.l.b16 %v1596
      %v2216 = vunpack.c.l.b16 %v1597
      %v2217 = vunpack.c.l.b16 %v1598
      %v2218 = vunpack.c.l.b16 %v1599
      %v2219 = vunpack.c.l.b16 %v1600
      %v2220 = vunpack.c.l.b16 %v1601
      %v2221 = vunpack.c.l.b16 %v1602
      %v2222 = vunpack.c.l.b16 %v1603
      %v2223 = vunpack.c.l.b16 %v1604
      %v2224 = vunpack.c.l.b16 %v1605
      %v2225 = vunpack.c.l.b16 %v1606
      %v2226 = vunpack.c.l.b16 %v1607
      %v2227 = vunpack.c.l.b16 %v1608
      %v2228 = vunpack.c.l.b16 %v1609
      %v2229 = vunpack.c.l.b16 %v1610
      %v2230 = vunpack.c.l.b16 %v1611
      %v2231 = vpack.c.b16 %v2088, %v2087
      %v2232 = vpack.c.b16 %v2090, %v2089
      %v2233 = vpack.c.b16 %v2092, %v2091
      %v2234 = vpack.c.b16 %v2094, %v2093
      %v2235 = vpack.c.b16 %v2096, %v2095
      %v2236 = vpack.c.b16 %v2098, %v2097
      %v2237 = vpack.c.b16 %v2100, %v2099
      %v2238 = vpack.c.b16 %v2102, %v2101
      %v2239 = vpack.c.b16 %v2104, %v2103
      %v2240 = vpack.c.b16 %v2106, %v2105
      %v2241 = vpack.c.b16 %v2108, %v2107
      %v2242 = vpack.c.b16 %v2110, %v2109
      %v2243 = vpack.c.b16 %v2112, %v2111
      %v2244 = vpack.c.b16 %v2114, %v2113
      %v2245 = vpack.c.b16 %v2116, %v2115
      %v2246 = vpack.c.b16 %v2118, %v2117
      %v2247 = vpack.c.b16 %v2120, %v2119
      %v2248 = vpack.c.b16 %v2122, %v2121
      %v2249 = vpack.c.b16 %v2124, %v2123
      %v2250 = vpack.c.b16 %v2126, %v2125
      %v2251 = vpack.c.b16 %v2128, %v2127
      %v2252 = vpack.c.b16 %v2130, %v2129
      %v2253 = vpack.c.b16 %v2132, %v2131
      %v2254 = vpack.c.b16 %v2134, %v2133
      %v2255 = vpack.c.b16 %v2136, %v2135
      %v2256 = vpack.c.b16 %v2138, %v2137
      %v2257 = vpack.c.b16 %v2140, %v2139
      %v2258 = vpack.c.b16 %v2142, %v2141
      %v2259 = vpack.c.b16 %v2144, %v2143
      %v2260 = vpack.c.b16 %v2146, %v2145
      %v2261 = vpack.c.b16 %v2148, %v2147
      %v2262 = vpack.c.b16 %v2150, %v2149
      %v2263 = vpack.c.b16 %v2152, %v2151
      %v2264 = vpack.c.b16 %v2154, %v2153
      %v2265 = vpack.c.b16 %v2156, %v2155
      %v2266 = vpack.c.b16 %v2158, %v2157
      %v2267 = vpack.c.b16 %v2160, %v2159
      %v2268 = vpack.c.b16 %v2162, %v2161
      %v2269 = vpack.c.b16 %v2164, %v2163
      %v2270 = vpack.c.b16 %v2166, %v2165
      %v2271 = vpack.c.b16 %v2168, %v2167
      %v2272 = vpack.c.b16 %v2170, %v2169
      %v2273 = vpack.c.b16 %v2172, %v2171
      %v2274 = vpack.c.b16 %v2174, %v2173
      %v2275 = vpack.c.b16 %v2176, %v2175
      %v2276 = vpack.c.b16 %v2178, %v2177
      %v2277 = vpack.c.b16 %v2180, %v2179
      %v2278 = vpack.c.b16 %v2182, %v2181
      %v2279 = vpack.c.b16 %v2184, %v2183
      %v2280 = vpack.c.b16 %v2186, %v2185
      %v2281 = vpack.c.b16 %v2188, %v2187
      %v2282 = vpack.c.b16 %v2190, %v2189
      %v2283 = vpack.c.b16 %v2192, %v2191
      %v2284 = vpack.c.b16 %v2194, %v2193
      %v2285 = vpack.c.b16 %v2196, %v2195
      %v2286 = vpack.c.b16 %v2198, %v2197
      %v2287 = vpack.c.b16 %v2200, %v2199
      %v2288 = vpack.c.b16 %v2202, %v2201
      %v2289 = vpack.c.b16 %v2204, %v2203
      %v2290 = vpack.c.b16 %v2206, %v2205
      %v2291 = vpack.c.b16 %v2208, %v2207
      %v2292 = vpack.c.b16 %v2210, %v2209
      %v2293 = vpack.c.b16 %v2212, %v2211
      %v2294 = vpack.c.b16 %v2214, %v2213
      %v2295 = vpack.c.b16 %v2216, %v2215
      %v2296 = vpack.c.b16 %v2218, %v2217
      %v2297 = vpack.c.b16 %v2220, %v2219
      %v2298 = vpack.c.b16 %v2222, %v2221
      %v2299 = vpack.c.b16 %v2224, %v2223
      %v2300 = vpack.c.b16 %v2226, %v2225
      %v2301 = vpack.c.b16 %v2228, %v2227
      %v2302 = vpack.c.b16 %v2230, %v2229
      %2375 = vmatprep.subr.bf16.mxu0 0
      %2376 = vmatpush1.bf16.msra.mxu0 %v2231
      %2377 = vmatprep.subr.bf16.mxu0 0
      %2378 = vmatpush1.bf16.msra.mxu0 %v2232
      %2379 = vmatprep.subr.bf16.mxu0 0
      %2380 = vmatpush1.bf16.msra.mxu0 %v2233
      %2381 = vmatprep.subr.bf16.mxu0 0
      %2382 = vmatpush1.bf16.msra.mxu0 %v2234
      %2383 = vmatprep.subr.bf16.mxu0 0
      %2384 = vmatpush1.bf16.msra.mxu0 %v2235
      %2385 = vmatprep.subr.bf16.mxu0 0
      %2386 = vmatpush1.bf16.msra.mxu0 %v2236
      %2387 = vmatprep.subr.bf16.mxu0 0
      %2388 = vmatpush1.bf16.msra.mxu0 %v2237
      %2389 = vmatprep.subr.bf16.mxu0 0
      %2390 = vmatpush1.bf16.msra.mxu0 %v2238
      %2391 = vmatprep.subr.bf16.mxu0 0
      %2392 = vmatpush1.bf16.msra.mxu0 %v2239
      %2393 = vmatprep.subr.bf16.mxu0 0
      %2394 = vmatpush1.bf16.msra.mxu0 %v2240
      %2395 = vmatprep.subr.bf16.mxu0 0
      %2396 = vmatpush1.bf16.msra.mxu0 %v2241
      %2397 = vmatprep.subr.bf16.mxu0 0
      %2398 = vmatpush1.bf16.msra.mxu0 %v2242
      %2399 = vmatprep.subr.bf16.mxu0 0
      %2400 = vmatpush1.bf16.msra.mxu0 %v2243
      %2401 = vmatprep.subr.bf16.mxu0 0
      %2402 = vmatpush1.bf16.msra.mxu0 %v2244
      %2403 = vmatprep.subr.bf16.mxu0 0
      %2404 = vmatpush1.bf16.msra.mxu0 %v2245
      %2405 = vmatprep.subr.bf16.mxu0 0
      %2406 = vmatpush1.bf16.msra.mxu0 %v2246
      %2407 = vmatprep.mubr.bf16.mxu0 %v1620
      %2408 = vmatmul.mubr.bf16.gmra.mrb[0].mxu0 %v1619
      %v2409 = vpop.f32.mrb[0].mxu0
      %v2410 = vadd.f32 %v1617, %v2409
      %v2411 = vpop.f32.mrb[0].mxu0
      %v2412 = vpop.f32.mrb[0].mxu0
      %v2413 = vadd.f32 %v1617, %v2412
      %v2414 = vpop.f32.mrb[0].mxu0
      %2415 = vmatprep.mubr.bf16.mxu0 %v1629
      %2416 = vmatmul.mubr.bf16.gmra.mrb[0].mxu0 %v1628
      %v2417 = vpop.f32.mrb[0].mxu0
      %v2418 = vadd.f32 %v1617, %v2417
      %v2419 = vpop.f32.mrb[0].mxu0
      %v2420 = vpop.f32.mrb[0].mxu0
      %v2421 = vadd.f32 %v1617, %v2420
      %v2422 = vpop.f32.mrb[0].mxu0
      %2423 = vmatprep.mubr.bf16.mxu0 %v1638
      %2424 = vmatmul.mubr.bf16.gmra.mrb[0].mxu0 %v1637
      %v2425 = vpop.f32.mrb[0].mxu0
      %v2426 = vadd.f32 %v1617, %v2425
      %v2427 = vpop.f32.mrb[0].mxu0
      %v2428 = vpop.f32.mrb[0].mxu0
      %v2429 = vadd.f32 %v1617, %v2428
      %v2430 = vpop.f32.mrb[0].mxu0
      %2431 = vmatprep.mubr.bf16.mxu0 %v1647
      %2432 = vmatmul.mubr.bf16.gmra.mrb[0].mxu0 %v1646
      %v2433 = vpop.f32.mrb[0].mxu0
      %v2434 = vadd.f32 %v1617, %v2433
      %v2435 = vpop.f32.mrb[0].mxu0
      %v2436 = vpop.f32.mrb[0].mxu0
      %v2437 = vadd.f32 %v1617, %v2436
      %v2438 = vpop.f32.mrb[0].mxu0
      %2439 = vmatprep.mubr.bf16.mxu0 %v1656
      %2440 = vmatmul.mubr.bf16.gmra.mrb[0].mxu0 %v1655
      %v2441 = vpop.f32.mrb[0].mxu0
      %v2442 = vadd.f32 %v1617, %v2441
      %v2443 = vpop.f32.mrb[0].mxu0
      %v2444 = vpop.f32.mrb[0].mxu0
      %v2445 = vadd.f32 %v1617, %v2444
      %v2446 = vpop.f32.mrb[0].mxu0
      %2447 = vmatprep.mubr.bf16.mxu0 %v1665
      %2448 = vmatmul.mubr.bf16.gmra.mrb[0].mxu0 %v1664
      %v2449 = vpop.f32.mrb[0].mxu0
      %v2450 = vadd.f32 %v1617, %v2449
      %v2451 = vpop.f32.mrb[0].mxu0
      %v2452 = vpop.f32.mrb[0].mxu0
      %v2453 = vadd.f32 %v1617, %v2452
      %v2454 = vpop.f32.mrb[0].mxu0
      %2455 = vmatprep.mubr.bf16.mxu0 %v1674
      %2456 = vmatmul.mubr.bf16.gmra.mrb[0].mxu0 %v1673
      %v2457 = vpop.f32.mrb[0].mxu0
      %v2458 = vadd.f32 %v1617, %v2457
      %v2459 = vpop.f32.mrb[0].mxu0
      %v2460 = vpop.f32.mrb[0].mxu0
      %v2461 = vadd.f32 %v1617, %v2460
      %v2462 = vpop.f32.mrb[0].mxu0
      %2463 = vmatprep.mubr.bf16.mxu0 %v1683
      %2464 = vmatmul.mubr.bf16.gmra.mrb[0].mxu0 %v1682
      %v2465 = vpop.f32.mrb[0].mxu0
      %v2466 = vadd.f32 %v1617, %v2465
      %v2467 = vpop.f32.mrb[0].mxu0
      %v2468 = vpop.f32.mrb[0].mxu0
      %v2469 = vadd.f32 %v1617, %v2468
      %v2470 = vpop.f32.mrb[0].mxu0
      %2471 = vmatprep.mubr.bf16.mxu0 %v1692
      %2472 = vmatmul.mubr.bf16.gmra.mrb[0].mxu0 %v1691
      %v2473 = vpop.f32.mrb[0].mxu0
      %v2474 = vadd.f32 %v1617, %v2473
      %v2475 = vpop.f32.mrb[0].mxu0
      %v2476 = vpop.f32.mrb[0].mxu0
      %v2477 = vadd.f32 %v1617, %v2476
      %v2478 = vpop.f32.mrb[0].mxu0
      %2479 = vmatprep.mubr.bf16.mxu0 %v1701
      %2480 = vmatmul.mubr.bf16.gmra.mrb[0].mxu0 %v1700
      %v2481 = vpop.f32.mrb[0].mxu0
      %v2482 = vadd.f32 %v1617, %v2481
      %v2483 = vpop.f32.mrb[0].mxu0
      %v2484 = vpop.f32.mrb[0].mxu0
      %v2485 = vadd.f32 %v1617, %v2484
      %v2486 = vpop.f32.mrb[0].mxu0
      %2487 = vmatprep.mubr.bf16.mxu0 %v1710
      %2488 = vmatmul.mubr.bf16.gmra.mrb[0].mxu0 %v1709
      %v2489 = vpop.f32.mrb[0].mxu0
      %v2490 = vadd.f32 %v1617, %v2489
      %v2491 = vpop.f32.mrb[0].mxu0
      %v2492 = vpop.f32.mrb[0].mxu0
      %v2493 = vadd.f32 %v1617, %v2492
      %v2494 = vpop.f32.mrb[0].mxu0
      %2495 = vmatprep.mubr.bf16.mxu0 %v1719
      %2496 = vmatmul.mubr.bf16.gmra.mrb[0].mxu0 %v1718
      %v2497 = vpop.f32.mrb[0].mxu0
      %v2498 = vadd.f32 %v1617, %v2497
      %v2499 = vpop.f32.mrb[0].mxu0
      %v2500 = vpop.f32.mrb[0].mxu0
      %v2501 = vadd.f32 %v1617, %v2500
      %v2502 = vpop.f32.mrb[0].mxu0
      %2503 = vmatprep.mubr.bf16.mxu0 %v1728
      %2504 = vmatmul.mubr.bf16.gmra.mrb[0].mxu0 %v1727
      %v2505 = vpop.f32.mrb[0].mxu0
      %v2506 = vadd.f32 %v1617, %v2505
      %v2507 = vpop.f32.mrb[0].mxu0
      %v2508 = vpop.f32.mrb[0].mxu0
      %v2509 = vadd.f32 %v1617, %v2508
      %v2510 = vpop.f32.mrb[0].mxu0
      %2511 = vmatprep.mubr.bf16.mxu0 %v1737
      %2512 = vmatmul.mubr.bf16.gmra.mrb[0].mxu0 %v1736
      %v2513 = vpop.f32.mrb[0].mxu0
      %v2514 = vadd.f32 %v1617, %v2513
      %v2515 = vpop.f32.mrb[0].mxu0
      %v2516 = vpop.f32.mrb[0].mxu0
      %v2517 = vadd.f32 %v1617, %v2516
      %v2518 = vpop.f32.mrb[0].mxu0
      %2519 = vmatprep.mubr.bf16.mxu0 %v1746
      %2520 = vmatmul.mubr.bf16.gmra.mrb[0].mxu0 %v1745
      %v2521 = vpop.f32.mrb[0].mxu0
      %v2522 = vadd.f32 %v1617, %v2521
      %v2523 = vpop.f32.mrb[0].mxu0
      %v2524 = vpop.f32.mrb[0].mxu0
      %v2525 = vadd.f32 %v1617, %v2524
      %v2526 = vpop.f32.mrb[0].mxu0
      %2527 = vmatprep.mubr.bf16.mxu0 %v1755
      %2528 = vmatmul.mubr.bf16.gmra.mrb[0].mxu0 %v1754
      %v2529 = vpop.f32.mrb[0].mxu0
      %v2530 = vadd.f32 %v1617, %v2529
      %v2531 = vpop.f32.mrb[0].mxu0
      %v2532 = vpop.f32.mrb[0].mxu0
      %v2533 = vadd.f32 %v1617, %v2532
      %v2534 = vpop.f32.mrb[0].mxu0
      %2535 = vmatprep.mubr.bf16.mxu0 %v1764
      %2536 = vmatmul.mubr.bf16.gmra.mrb[0].mxu0 %v1763
      %v2537 = vpop.f32.mrb[0].mxu0
      %v2538 = vadd.f32 %v1617, %v2537
      %v2539 = vpop.f32.mrb[0].mxu0
      %v2540 = vpop.f32.mrb[0].mxu0
      %v2541 = vadd.f32 %v1617, %v2540
      %v2542 = vpop.f32.mrb[0].mxu0
      %2543 = vmatprep.mubr.bf16.mxu0 %v1773
      %2544 = vmatmul.mubr.bf16.gmra.mrb[0].mxu0 %v1772
      %v2545 = vpop.f32.mrb[0].mxu0
      %v2546 = vadd.f32 %v1617, %v2545
      %v2547 = vpop.f32.mrb[0].mxu0
      %v2548 = vpop.f32.mrb[0].mxu0
      %v2549 = vadd.f32 %v1617, %v2548
      %v2550 = vpop.f32.mrb[0].mxu0
      %2551 = vdwg.mxu0
      %2552 = vmatprep.subr.bf16.mxu0 0
      %2553 = vmatpush1.bf16.msra.mxu0 %v2247
      %2554 = vmatprep.subr.bf16.mxu0 0
      %2555 = vmatpush1.bf16.msra.mxu0 %v2248
      %2556 = vmatprep.subr.bf16.mxu0 0
      %2557 = vmatpush1.bf16.msra.mxu0 %v2249
      %2558 = vmatprep.subr.bf16.mxu0 0
      %2559 = vmatpush1.bf16.msra.mxu0 %v2250
      %2560 = vmatprep.subr.bf16.mxu0 0
      %2561 = vmatpush1.bf16.msra.mxu0 %v2251
      %2562 = vmatprep.subr.bf16.mxu0 0
      %2563 = vmatpush1.bf16.msra.mxu0 %v2252
      %2564 = vmatprep.subr.bf16.mxu0 0
      %2565 = vmatpush1.bf16.msra.mxu0 %v2253
      %2566 = vmatprep.subr.bf16.mxu0 0
      %2567 = vmatpush1.bf16.msra.mxu0 %v2254
      %2568 = vmatprep.subr.bf16.mxu0 0
      %2569 = vmatpush1.bf16.msra.mxu0 %v2255
      %2570 = vmatprep.subr.bf16.mxu0 0
      %2571 = vmatpush1.bf16.msra.mxu0 %v2256
      %2572 = vmatprep.subr.bf16.mxu0 0
      %2573 = vmatpush1.bf16.msra.mxu0 %v2257
      %2574 = vmatprep.subr.bf16.mxu0 0
      %2575 = vmatpush1.bf16.msra.mxu0 %v2258
      %2576 = vmatprep.subr.bf16.mxu0 0
      %2577 = vmatpush1.bf16.msra.mxu0 %v2259
      %2578 = vmatprep.subr.bf16.mxu0 0
      %2579 = vmatpush1.bf16.msra.mxu0 %v2260
      %2580 = vmatprep.subr.bf16.mxu0 0
      %2581 = vmatpush1.bf16.msra.mxu0 %v2261
      %2582 = vmatprep.subr.bf16.mxu0 0
      %2583 = vmatpush1.bf16.msra.mxu0 %v2262
      %2584 = vmatprep.mubr.bf16.mxu0 %v1622
      %2585 = vmatmul.mubr.bf16.gmra.mrb[0].mxu0 %v1621
      %v2586 = vpop.f32.mrb[0].mxu0
      %v2587 = vadd.f32 %v2410, %v2586
      %v2588 = vpop.f32.mrb[0].mxu0
      %v2589 = vpop.f32.mrb[0].mxu0
      %v2590 = vadd.f32 %v2413, %v2589
      %v2591 = vpop.f32.mrb[0].mxu0
      %2592 = vmatprep.mubr.bf16.mxu0 %v1631
      %2593 = vmatmul.mubr.bf16.gmra.mrb[0].mxu0 %v1630
      %v2594 = vpop.f32.mrb[0].mxu0
      %v2595 = vadd.f32 %v2418, %v2594
      %v2596 = vpop.f32.mrb[0].mxu0
      %v2597 = vpop.f32.mrb[0].mxu0
      %v2598 = vadd.f32 %v2421, %v2597
      %v2599 = vpop.f32.mrb[0].mxu0
      %2600 = vmatprep.mubr.bf16.mxu0 %v1640
      %2601 = vmatmul.mubr.bf16.gmra.mrb[0].mxu0 %v1639
      %v2602 = vpop.f32.mrb[0].mxu0
      %v2603 = vadd.f32 %v2426, %v2602
      %v2604 = vpop.f32.mrb[0].mxu0
      %v2605 = vpop.f32.mrb[0].mxu0
      %v2606 = vadd.f32 %v2429, %v2605
      %v2607 = vpop.f32.mrb[0].mxu0
      %2608 = vmatprep.mubr.bf16.mxu0 %v1649
      %2609 = vmatmul.mubr.bf16.gmra.mrb[0].mxu0 %v1648
      %v2610 = vpop.f32.mrb[0].mxu0
      %v2611 = vadd.f32 %v2434, %v2610
      %v2612 = vpop.f32.mrb[0].mxu0
      %v2613 = vpop.f32.mrb[0].mxu0
      %v2614 = vadd.f32 %v2437, %v2613
      %v2615 = vpop.f32.mrb[0].mxu0
      %2616 = vmatprep.mubr.bf16.mxu0 %v1658
      %2617 = vmatmul.mubr.bf16.gmra.mrb[0].mxu0 %v1657
      %v2618 = vpop.f32.mrb[0].mxu0
      %v2619 = vadd.f32 %v2442, %v2618
      %v2620 = vpop.f32.mrb[0].mxu0
      %v2621 = vpop.f32.mrb[0].mxu0
      %v2622 = vadd.f32 %v2445, %v2621
      %v2623 = vpop.f32.mrb[0].mxu0
      %2624 = vmatprep.mubr.bf16.mxu0 %v1667
      %2625 = vmatmul.mubr.bf16.gmra.mrb[0].mxu0 %v1666
      %v2626 = vpop.f32.mrb[0].mxu0
      %v2627 = vadd.f32 %v2450, %v2626
      %v2628 = vpop.f32.mrb[0].mxu0
      %v2629 = vpop.f32.mrb[0].mxu0
      %v2630 = vadd.f32 %v2453, %v2629
      %v2631 = vpop.f32.mrb[0].mxu0
      %2632 = vmatprep.mubr.bf16.mxu0 %v1676
      %2633 = vmatmul.mubr.bf16.gmra.mrb[0].mxu0 %v1675
      %v2634 = vpop.f32.mrb[0].mxu0
      %v2635 = vadd.f32 %v2458, %v2634
      %v2636 = vpop.f32.mrb[0].mxu0
      %v2637 = vpop.f32.mrb[0].mxu0
      %v2638 = vadd.f32 %v2461, %v2637
      %v2639 = vpop.f32.mrb[0].mxu0
      %2640 = vmatprep.mubr.bf16.mxu0 %v1685
      %2641 = vmatmul.mubr.bf16.gmra.mrb[0].mxu0 %v1684
      %v2642 = vpop.f32.mrb[0].mxu0
      %v2643 = vadd.f32 %v2466, %v2642
      %v2644 = vpop.f32.mrb[0].mxu0
      %v2645 = vpop.f32.mrb[0].mxu0
      %v2646 = vadd.f32 %v2469, %v2645
      %v2647 = vpop.f32.mrb[0].mxu0
      %2648 = vmatprep.mubr.bf16.mxu0 %v1694
      %2649 = vmatmul.mubr.bf16.gmra.mrb[0].mxu0 %v1693
      %v2650 = vpop.f32.mrb[0].mxu0
      %v2651 = vadd.f32 %v2474, %v2650
      %v2652 = vpop.f32.mrb[0].mxu0
      %v2653 = vpop.f32.mrb[0].mxu0
      %v2654 = vadd.f32 %v2477, %v2653
      %v2655 = vpop.f32.mrb[0].mxu0
      %2656 = vmatprep.mubr.bf16.mxu0 %v1703
      %2657 = vmatmul.mubr.bf16.gmra.mrb[0].mxu0 %v1702
      %v2658 = vpop.f32.mrb[0].mxu0
      %v2659 = vadd.f32 %v2482, %v2658
      %v2660 = vpop.f32.mrb[0].mxu0
      %v2661 = vpop.f32.mrb[0].mxu0
      %v2662 = vadd.f32 %v2485, %v2661
      %v2663 = vpop.f32.mrb[0].mxu0
      %2664 = vmatprep.mubr.bf16.mxu0 %v1712
      %2665 = vmatmul.mubr.bf16.gmra.mrb[0].mxu0 %v1711
      %v2666 = vpop.f32.mrb[0].mxu0
      %v2667 = vadd.f32 %v2490, %v2666
      %v2668 = vpop.f32.mrb[0].mxu0
      %v2669 = vpop.f32.mrb[0].mxu0
      %v2670 = vadd.f32 %v2493, %v2669
      %v2671 = vpop.f32.mrb[0].mxu0
      %2672 = vmatprep.mubr.bf16.mxu0 %v1721
      %2673 = vmatmul.mubr.bf16.gmra.mrb[0].mxu0 %v1720
      %v2674 = vpop.f32.mrb[0].mxu0
      %v2675 = vadd.f32 %v2498, %v2674
      %v2676 = vpop.f32.mrb[0].mxu0
      %v2677 = vpop.f32.mrb[0].mxu0
      %v2678 = vadd.f32 %v2501, %v2677
      %v2679 = vpop.f32.mrb[0].mxu0
      %2680 = vmatprep.mubr.bf16.mxu0 %v1730
      %2681 = vmatmul.mubr.bf16.gmra.mrb[0].mxu0 %v1729
      %v2682 = vpop.f32.mrb[0].mxu0
      %v2683 = vadd.f32 %v2506, %v2682
      %v2684 = vpop.f32.mrb[0].mxu0
      %v2685 = vpop.f32.mrb[0].mxu0
      %v2686 = vadd.f32 %v2509, %v2685
      %v2687 = vpop.f32.mrb[0].mxu0
      %2688 = vmatprep.mubr.bf16.mxu0 %v1739
      %2689 = vmatmul.mubr.bf16.gmra.mrb[0].mxu0 %v1738
      %v2690 = vpop.f32.mrb[0].mxu0
      %v2691 = vadd.f32 %v2514, %v2690
      %v2692 = vpop.f32.mrb[0].mxu0
      %v2693 = vpop.f32.mrb[0].mxu0
      %v2694 = vadd.f32 %v2517, %v2693
      %v2695 = vpop.f32.mrb[0].mxu0
      %2696 = vmatprep.mubr.bf16.mxu0 %v1748
      %2697 = vmatmul.mubr.bf16.gmra.mrb[0].mxu0 %v1747
      %v2698 = vpop.f32.mrb[0].mxu0
      %v2699 = vadd.f32 %v2522, %v2698
      %v2700 = vpop.f32.mrb[0].mxu0
      %v2701 = vpop.f32.mrb[0].mxu0
      %v2702 = vadd.f32 %v2525, %v2701
      %v2703 = vpop.f32.mrb[0].mxu0
      %2704 = vmatprep.mubr.bf16.mxu0 %v1757
      %2705 = vmatmul.mubr.bf16.gmra.mrb[0].mxu0 %v1756
      %v2706 = vpop.f32.mrb[0].mxu0
      %v2707 = vadd.f32 %v2530, %v2706
      %v2708 = vpop.f32.mrb[0].mxu0
      %v2709 = vpop.f32.mrb[0].mxu0
      %v2710 = vadd.f32 %v2533, %v2709
      %v2711 = vpop.f32.mrb[0].mxu0
      %2712 = vmatprep.mubr.bf16.mxu0 %v1766
      %2713 = vmatmul.mubr.bf16.gmra.mrb[0].mxu0 %v1765
      %v2714 = vpop.f32.mrb[0].mxu0
      %v2715 = vadd.f32 %v2538, %v2714
      %v2716 = vpop.f32.mrb[0].mxu0
      %v2717 = vpop.f32.mrb[0].mxu0
      %v2718 = vadd.f32 %v2541, %v2717
      %v2719 = vpop.f32.mrb[0].mxu0
      %2720 = vmatprep.mubr.bf16.mxu0 %v1775
      %2721 = vmatmul.mubr.bf16.gmra.mrb[0].mxu0 %v1774
      %v2722 = vpop.f32.mrb[0].mxu0
      %v2723 = vadd.f32 %v2546, %v2722
      %v2724 = vpop.f32.mrb[0].mxu0
      %v2725 = vpop.f32.mrb[0].mxu0
      %v2726 = vadd.f32 %v2549, %v2725
      %v2727 = vpop.f32.mrb[0].mxu0
      %2728 = vdwg.mxu0
      %2729 = vmatprep.subr.bf16.mxu0 0
      %2730 = vmatpush1.bf16.msra.mxu0 %v2263
      %2731 = vmatprep.subr.bf16.mxu0 0
      %2732 = vmatpush1.bf16.msra.mxu0 %v2264
      %2733 = vmatprep.subr.bf16.mxu0 0
      %2734 = vmatpush1.bf16.msra.mxu0 %v2265
      %2735 = vmatprep.subr.bf16.mxu0 0
      %2736 = vmatpush1.bf16.msra.mxu0 %v2266
      %2737 = vmatprep.subr.bf16.mxu0 0
      %2738 = vmatpush1.bf16.msra.mxu0 %v2267
      %2739 = vmatprep.subr.bf16.mxu0 0
      %2740 = vmatpush1.bf16.msra.mxu0 %v2268
      %2741 = vmatprep.subr.bf16.mxu0 0
      %2742 = vmatpush1.bf16.msra.mxu0 %v2269
      %2743 = vmatprep.subr.bf16.mxu0 0
      %2744 = vmatpush1.bf16.msra.mxu0 %v2270
      %2745 = vmatprep.subr.bf16.mxu0 0
      %2746 = vmatpush1.bf16.msra.mxu0 %v2271
      %2747 = vmatprep.subr.bf16.mxu0 0
      %2748 = vmatpush1.bf16.msra.mxu0 %v2272
      %2749 = vmatprep.subr.bf16.mxu0 0
      %2750 = vmatpush1.bf16.msra.mxu0 %v2273
      %2751 = vmatprep.subr.bf16.mxu0 0
      %2752 = vmatpush1.bf16.msra.mxu0 %v2274
      %2753 = vmatprep.subr.bf16.mxu0 0
      %2754 = vmatpush1.bf16.msra.mxu0 %v2275
      %2755 = vmatprep.subr.bf16.mxu0 0
      %2756 = vmatpush1.bf16.msra.mxu0 %v2276
      %2757 = vmatprep.subr.bf16.mxu0 0
      %2758 = vmatpush1.bf16.msra.mxu0 %v2277
      %2759 = vmatprep.subr.bf16.mxu0 0
      %2760 = vmatpush1.bf16.msra.mxu0 %v2278
      %2761 = vmatprep.mubr.bf16.mxu0 %v1624
      %2762 = vmatmul.mubr.bf16.gmra.mrb[0].mxu0 %v1623
      %v2763 = vpop.f32.mrb[0].mxu0
      %v2764 = vadd.f32 %v2587, %v2763
      %v2765 = vpop.f32.mrb[0].mxu0
      %v2766 = vpop.f32.mrb[0].mxu0
      %v2767 = vadd.f32 %v2590, %v2766
      %v2768 = vpop.f32.mrb[0].mxu0
      %2769 = vmatprep.mubr.bf16.mxu0 %v1633
      %2770 = vmatmul.mubr.bf16.gmra.mrb[0].mxu0 %v1632
      %v2771 = vpop.f32.mrb[0].mxu0
      %v2772 = vadd.f32 %v2595, %v2771
      %v2773 = vpop.f32.mrb[0].mxu0
      %v2774 = vpop.f32.mrb[0].mxu0
      %v2775 = vadd.f32 %v2598, %v2774
      %v2776 = vpop.f32.mrb[0].mxu0
      %2777 = vmatprep.mubr.bf16.mxu0 %v1642
      %2778 = vmatmul.mubr.bf16.gmra.mrb[0].mxu0 %v1641
      %v2779 = vpop.f32.mrb[0].mxu0
      %v2780 = vadd.f32 %v2603, %v2779
      %v2781 = vpop.f32.mrb[0].mxu0
      %v2782 = vpop.f32.mrb[0].mxu0
      %v2783 = vadd.f32 %v2606, %v2782
      %v2784 = vpop.f32.mrb[0].mxu0
      %2785 = vmatprep.mubr.bf16.mxu0 %v1651
      %2786 = vmatmul.mubr.bf16.gmra.mrb[0].mxu0 %v1650
      %v2787 = vpop.f32.mrb[0].mxu0
      %v2788 = vadd.f32 %v2611, %v2787
      %v2789 = vpop.f32.mrb[0].mxu0
      %v2790 = vpop.f32.mrb[0].mxu0
      %v2791 = vadd.f32 %v2614, %v2790
      %v2792 = vpop.f32.mrb[0].mxu0
      %2793 = vmatprep.mubr.bf16.mxu0 %v1660
      %2794 = vmatmul.mubr.bf16.gmra.mrb[0].mxu0 %v1659
      %v2795 = vpop.f32.mrb[0].mxu0
      %v2796 = vadd.f32 %v2619, %v2795
      %v2797 = vpop.f32.mrb[0].mxu0
      %v2798 = vpop.f32.mrb[0].mxu0
      %v2799 = vadd.f32 %v2622, %v2798
      %v2800 = vpop.f32.mrb[0].mxu0
      %2801 = vmatprep.mubr.bf16.mxu0 %v1669
      %2802 = vmatmul.mubr.bf16.gmra.mrb[0].mxu0 %v1668
      %v2803 = vpop.f32.mrb[0].mxu0
      %v2804 = vadd.f32 %v2627, %v2803
      %v2805 = vpop.f32.mrb[0].mxu0
      %v2806 = vpop.f32.mrb[0].mxu0
      %v2807 = vadd.f32 %v2630, %v2806
      %v2808 = vpop.f32.mrb[0].mxu0
      %2809 = vmatprep.mubr.bf16.mxu0 %v1678
      %2810 = vmatmul.mubr.bf16.gmra.mrb[0].mxu0 %v1677
      %v2811 = vpop.f32.mrb[0].mxu0
      %v2812 = vadd.f32 %v2635, %v2811
      %v2813 = vpop.f32.mrb[0].mxu0
      %v2814 = vpop.f32.mrb[0].mxu0
      %v2815 = vadd.f32 %v2638, %v2814
      %v2816 = vpop.f32.mrb[0].mxu0
      %2817 = vmatprep.mubr.bf16.mxu0 %v1687
      %2818 = vmatmul.mubr.bf16.gmra.mrb[0].mxu0 %v1686
      %v2819 = vpop.f32.mrb[0].mxu0
      %v2820 = vadd.f32 %v2643, %v2819
      %v2821 = vpop.f32.mrb[0].mxu0
      %v2822 = vpop.f32.mrb[0].mxu0
      %v2823 = vadd.f32 %v2646, %v2822
      %v2824 = vpop.f32.mrb[0].mxu0
      %2825 = vmatprep.mubr.bf16.mxu0 %v1696
      %2826 = vmatmul.mubr.bf16.gmra.mrb[0].mxu0 %v1695
      %v2827 = vpop.f32.mrb[0].mxu0
      %v2828 = vadd.f32 %v2651, %v2827
      %v2829 = vpop.f32.mrb[0].mxu0
      %v2830 = vpop.f32.mrb[0].mxu0
      %v2831 = vadd.f32 %v2654, %v2830
      %v2832 = vpop.f32.mrb[0].mxu0
      %2833 = vmatprep.mubr.bf16.mxu0 %v1705
      %2834 = vmatmul.mubr.bf16.gmra.mrb[0].mxu0 %v1704
      %v2835 = vpop.f32.mrb[0].mxu0
      %v2836 = vadd.f32 %v2659, %v2835
      %v2837 = vpop.f32.mrb[0].mxu0
      %v2838 = vpop.f32.mrb[0].mxu0
      %v2839 = vadd.f32 %v2662, %v2838
      %v2840 = vpop.f32.mrb[0].mxu0
      %2841 = vmatprep.mubr.bf16.mxu0 %v1714
      %2842 = vmatmul.mubr.bf16.gmra.mrb[0].mxu0 %v1713
      %v2843 = vpop.f32.mrb[0].mxu0
      %v2844 = vadd.f32 %v2667, %v2843
      %v2845 = vpop.f32.mrb[0].mxu0
      %v2846 = vpop.f32.mrb[0].mxu0
      %v2847 = vadd.f32 %v2670, %v2846
      %v2848 = vpop.f32.mrb[0].mxu0
      %2849 = vmatprep.mubr.bf16.mxu0 %v1723
      %2850 = vmatmul.mubr.bf16.gmra.mrb[0].mxu0 %v1722
      %v2851 = vpop.f32.mrb[0].mxu0
      %v2852 = vadd.f32 %v2675, %v2851
      %v2853 = vpop.f32.mrb[0].mxu0
      %v2854 = vpop.f32.mrb[0].mxu0
      %v2855 = vadd.f32 %v2678, %v2854
      %v2856 = vpop.f32.mrb[0].mxu0
      %2857 = vmatprep.mubr.bf16.mxu0 %v1732
      %2858 = vmatmul.mubr.bf16.gmra.mrb[0].mxu0 %v1731
      %v2859 = vpop.f32.mrb[0].mxu0
      %v2860 = vadd.f32 %v2683, %v2859
      %v2861 = vpop.f32.mrb[0].mxu0
      %v2862 = vpop.f32.mrb[0].mxu0
      %v2863 = vadd.f32 %v2686, %v2862
      %v2864 = vpop.f32.mrb[0].mxu0
      %2865 = vmatprep.mubr.bf16.mxu0 %v1741
      %2866 = vmatmul.mubr.bf16.gmra.mrb[0].mxu0 %v1740
      %v2867 = vpop.f32.mrb[0].mxu0
      %v2868 = vadd.f32 %v2691, %v2867
      %v2869 = vpop.f32.mrb[0].mxu0
      %v2870 = vpop.f32.mrb[0].mxu0
      %v2871 = vadd.f32 %v2694, %v2870
      %v2872 = vpop.f32.mrb[0].mxu0
      %2873 = vmatprep.mubr.bf16.mxu0 %v1750
      %2874 = vmatmul.mubr.bf16.gmra.mrb[0].mxu0 %v1749
      %v2875 = vpop.f32.mrb[0].mxu0
      %v2876 = vadd.f32 %v2699, %v2875
      %v2877 = vpop.f32.mrb[0].mxu0
      %v2878 = vpop.f32.mrb[0].mxu0
      %v2879 = vadd.f32 %v2702, %v2878
      %v2880 = vpop.f32.mrb[0].mxu0
      %2881 = vmatprep.mubr.bf16.mxu0 %v1759
      %2882 = vmatmul.mubr.bf16.gmra.mrb[0].mxu0 %v1758
      %v2883 = vpop.f32.mrb[0].mxu0
      %v2884 = vadd.f32 %v2707, %v2883
      %v2885 = vpop.f32.mrb[0].mxu0
      %v2886 = vpop.f32.mrb[0].mxu0
      %v2887 = vadd.f32 %v2710, %v2886
      %v2888 = vpop.f32.mrb[0].mxu0
      %2889 = vmatprep.mubr.bf16.mxu0 %v1768
      %2890 = vmatmul.mubr.bf16.gmra.mrb[0].mxu0 %v1767
      %v2891 = vpop.f32.mrb[0].mxu0
      %v2892 = vadd.f32 %v2715, %v2891
      %v2893 = vpop.f32.mrb[0].mxu0
      %v2894 = vpop.f32.mrb[0].mxu0
      %v2895 = vadd.f32 %v2718, %v2894
      %v2896 = vpop.f32.mrb[0].mxu0
      %2897 = vmatprep.mubr.bf16.mxu0 %v1777
      %2898 = vmatmul.mubr.bf16.gmra.mrb[0].mxu0 %v1776
      %v2899 = vpop.f32.mrb[0].mxu0
      %v2900 = vadd.f32 %v2723, %v2899
      %v2901 = vpop.f32.mrb[0].mxu0
      %v2902 = vpop.f32.mrb[0].mxu0
      %v2903 = vadd.f32 %v2726, %v2902
      %v2904 = vpop.f32.mrb[0].mxu0
      %2905 = vdwg.mxu0
      %2906 = vmatprep.subr.bf16.mxu0 0
      %2907 = vmatpush1.bf16.msra.mxu0 %v2279
      %2908 = vmatprep.subr.bf16.mxu0 0
      %2909 = vmatpush1.bf16.msra.mxu0 %v2280
      %2910 = vmatprep.subr.bf16.mxu0 0
      %2911 = vmatpush1.bf16.msra.mxu0 %v2281
      %2912 = vmatprep.subr.bf16.mxu0 0
      %2913 = vmatpush1.bf16.msra.mxu0 %v2282
      %2914 = vmatprep.subr.bf16.mxu0 0
      %2915 = vmatpush1.bf16.msra.mxu0 %v2283
      %2916 = vmatprep.subr.bf16.mxu0 0
      %2917 = vmatpush1.bf16.msra.mxu0 %v2284
      %2918 = vmatprep.subr.bf16.mxu0 0
      %2919 = vmatpush1.bf16.msra.mxu0 %v2285
      %2920 = vmatprep.subr.bf16.mxu0 0
      %2921 = vmatpush1.bf16.msra.mxu0 %v2286
      %2922 = vmatprep.subr.bf16.mxu0 0
      %2923 = vmatpush1.bf16.msra.mxu0 %v2287
      %2924 = vmatprep.subr.bf16.mxu0 0
      %2925 = vmatpush1.bf16.msra.mxu0 %v2288
      %2926 = vmatprep.subr.bf16.mxu0 0
      %2927 = vmatpush1.bf16.msra.mxu0 %v2289
      %2928 = vmatprep.subr.bf16.mxu0 0
      %2929 = vmatpush1.bf16.msra.mxu0 %v2290
      %2930 = vmatprep.subr.bf16.mxu0 0
      %2931 = vmatpush1.bf16.msra.mxu0 %v2291
      %2932 = vmatprep.subr.bf16.mxu0 0
      %2933 = vmatpush1.bf16.msra.mxu0 %v2292
      %2934 = vmatprep.subr.bf16.mxu0 0
      %2935 = vmatpush1.bf16.msra.mxu0 %v2293
      %2936 = vmatprep.subr.bf16.mxu0 0
      %2937 = vmatpush1.bf16.msra.mxu0 %v2294
      %2938 = vmatprep.mubr.bf16.mxu0 %v1626
      %2939 = vmatmul.mubr.bf16.gmra.mrb[0].mxu0 %v1625
      %v2940 = vpop.f32.mrb[0].mxu0
      %v2941 = vadd.f32 %v2764, %v2940
      %v2942 = vpop.f32.mrb[0].mxu0
      %v2943 = vpop.f32.mrb[0].mxu0
      %v2944 = vadd.f32 %v2767, %v2943
      %v2945 = vpop.f32.mrb[0].mxu0
      %2946 = vmatprep.mubr.bf16.mxu0 %v1635
      %2947 = vmatmul.mubr.bf16.gmra.mrb[0].mxu0 %v1634
      %v2948 = vpop.f32.mrb[0].mxu0
      %v2949 = vadd.f32 %v2772, %v2948
      %v2950 = vpop.f32.mrb[0].mxu0
      %v2951 = vpop.f32.mrb[0].mxu0
      %v2952 = vadd.f32 %v2775, %v2951
      %v2953 = vpop.f32.mrb[0].mxu0
      %2954 = vmatprep.mubr.bf16.mxu0 %v1644
      %2955 = vmatmul.mubr.bf16.gmra.mrb[0].mxu0 %v1643
      %v2956 = vpop.f32.mrb[0].mxu0
      %v2957 = vadd.f32 %v2780, %v2956
      %v2958 = vpop.f32.mrb[0].mxu0
      %v2959 = vpop.f32.mrb[0].mxu0
      %v2960 = vadd.f32 %v2783, %v2959
      %v2961 = vpop.f32.mrb[0].mxu0
      %2962 = vmatprep.mubr.bf16.mxu0 %v1653
      %2963 = vmatmul.mubr.bf16.gmra.mrb[0].mxu0 %v1652
      %v2964 = vpop.f32.mrb[0].mxu0
      %v2965 = vadd.f32 %v2788, %v2964
      %v2966 = vpop.f32.mrb[0].mxu0
      %v2967 = vpop.f32.mrb[0].mxu0
      %v2968 = vadd.f32 %v2791, %v2967
      %v2969 = vpop.f32.mrb[0].mxu0
      %2970 = vmatprep.mubr.bf16.mxu0 %v1662
      %2971 = vmatmul.mubr.bf16.gmra.mrb[0].mxu0 %v1661
      %v2972 = vpop.f32.mrb[0].mxu0
      %v2973 = vadd.f32 %v2796, %v2972
      %v2974 = vpop.f32.mrb[0].mxu0
      %v2975 = vpop.f32.mrb[0].mxu0
      %v2976 = vadd.f32 %v2799, %v2975
      %v2977 = vpop.f32.mrb[0].mxu0
      %2978 = vmatprep.mubr.bf16.mxu0 %v1671
      %2979 = vmatmul.mubr.bf16.gmra.mrb[0].mxu0 %v1670
      %v2980 = vpop.f32.mrb[0].mxu0
      %v2981 = vadd.f32 %v2804, %v2980
      %v2982 = vpop.f32.mrb[0].mxu0
      %v2983 = vpop.f32.mrb[0].mxu0
      %v2984 = vadd.f32 %v2807, %v2983
      %v2985 = vpop.f32.mrb[0].mxu0
      %2986 = vmatprep.mubr.bf16.mxu0 %v1680
      %2987 = vmatmul.mubr.bf16.gmra.mrb[0].mxu0 %v1679
      %v2988 = vpop.f32.mrb[0].mxu0
      %v2989 = vadd.f32 %v2812, %v2988
      %v2990 = vpop.f32.mrb[0].mxu0
      %v2991 = vpop.f32.mrb[0].mxu0
      %v2992 = vadd.f32 %v2815, %v2991
      %v2993 = vpop.f32.mrb[0].mxu0
      %2994 = vmatprep.mubr.bf16.mxu0 %v1689
      %2995 = vmatmul.mubr.bf16.gmra.mrb[0].mxu0 %v1688
      %v2996 = vpop.f32.mrb[0].mxu0
      %v2997 = vadd.f32 %v2820, %v2996
      %v2998 = vpop.f32.mrb[0].mxu0
      %v2999 = vpop.f32.mrb[0].mxu0
      %v3000 = vadd.f32 %v2823, %v2999
      %v3001 = vpop.f32.mrb[0].mxu0
      %3002 = vmatprep.mubr.bf16.mxu0 %v1698
      %3003 = vmatmul.mubr.bf16.gmra.mrb[0].mxu0 %v1697
      %v3004 = vpop.f32.mrb[0].mxu0
      %v3005 = vadd.f32 %v2828, %v3004
      %v3006 = vpop.f32.mrb[0].mxu0
      %v3007 = vpop.f32.mrb[0].mxu0
      %v3008 = vadd.f32 %v2831, %v3007
      %v3009 = vpop.f32.mrb[0].mxu0
      %3010 = vmatprep.mubr.bf16.mxu0 %v1707
      %3011 = vmatmul.mubr.bf16.gmra.mrb[0].mxu0 %v1706
      %v3012 = vpop.f32.mrb[0].mxu0
      %v3013 = vadd.f32 %v2836, %v3012
      %v3014 = vpop.f32.mrb[0].mxu0
      %v3015 = vpop.f32.mrb[0].mxu0
      %v3016 = vadd.f32 %v2839, %v3015
      %v3017 = vpop.f32.mrb[0].mxu0
      %3018 = vmatprep.mubr.bf16.mxu0 %v1716
      %3019 = vmatmul.mubr.bf16.gmra.mrb[0].mxu0 %v1715
      %v3020 = vpop.f32.mrb[0].mxu0
      %v3021 = vadd.f32 %v2844, %v3020
      %v3022 = vpop.f32.mrb[0].mxu0
      %v3023 = vpop.f32.mrb[0].mxu0
      %v3024 = vadd.f32 %v2847, %v3023
      %v3025 = vpop.f32.mrb[0].mxu0
      %3026 = vmatprep.mubr.bf16.mxu0 %v1725
      %3027 = vmatmul.mubr.bf16.gmra.mrb[0].mxu0 %v1724
      %v3028 = vpop.f32.mrb[0].mxu0
      %v3029 = vadd.f32 %v2852, %v3028
      %v3030 = vpop.f32.mrb[0].mxu0
      %v3031 = vpop.f32.mrb[0].mxu0
      %v3032 = vadd.f32 %v2855, %v3031
      %v3033 = vpop.f32.mrb[0].mxu0
      %3034 = vmatprep.mubr.bf16.mxu0 %v1734
      %3035 = vmatmul.mubr.bf16.gmra.mrb[0].mxu0 %v1733
      %v3036 = vpop.f32.mrb[0].mxu0
      %v3037 = vadd.f32 %v2860, %v3036
      %v3038 = vpop.f32.mrb[0].mxu0
      %v3039 = vpop.f32.mrb[0].mxu0
      %v3040 = vadd.f32 %v2863, %v3039
      %v3041 = vpop.f32.mrb[0].mxu0
      %3042 = vmatprep.mubr.bf16.mxu0 %v1743
      %3043 = vmatmul.mubr.bf16.gmra.mrb[0].mxu0 %v1742
      %v3044 = vpop.f32.mrb[0].mxu0
      %v3045 = vadd.f32 %v2868, %v3044
      %v3046 = vpop.f32.mrb[0].mxu0
      %v3047 = vpop.f32.mrb[0].mxu0
      %v3048 = vadd.f32 %v2871, %v3047
      %v3049 = vpop.f32.mrb[0].mxu0
      %3050 = vmatprep.mubr.bf16.mxu0 %v1752
      %3051 = vmatmul.mubr.bf16.gmra.mrb[0].mxu0 %v1751
      %v3052 = vpop.f32.mrb[0].mxu0
      %v3053 = vadd.f32 %v2876, %v3052
      %v3054 = vpop.f32.mrb[0].mxu0
      %v3055 = vpop.f32.mrb[0].mxu0
      %v3056 = vadd.f32 %v2879, %v3055
      %v3057 = vpop.f32.mrb[0].mxu0
      %3058 = vmatprep.mubr.bf16.mxu0 %v1761
      %3059 = vmatmul.mubr.bf16.gmra.mrb[0].mxu0 %v1760
      %v3060 = vpop.f32.mrb[0].mxu0
      %v3061 = vadd.f32 %v2884, %v3060
      %v3062 = vpop.f32.mrb[0].mxu0
      %v3063 = vpop.f32.mrb[0].mxu0
      %v3064 = vadd.f32 %v2887, %v3063
      %v3065 = vpop.f32.mrb[0].mxu0
      %3066 = vmatprep.mubr.bf16.mxu0 %v1770
      %3067 = vmatmul.mubr.bf16.gmra.mrb[0].mxu0 %v1769
      %v3068 = vpop.f32.mrb[0].mxu0
      %v3069 = vadd.f32 %v2892, %v3068
      %v3070 = vpop.f32.mrb[0].mxu0
      %v3071 = vpop.f32.mrb[0].mxu0
      %v3072 = vadd.f32 %v2895, %v3071
      %v3073 = vpop.f32.mrb[0].mxu0
      %3074 = vmatprep.mubr.bf16.mxu0 %v1779
      %3075 = vmatmul.mubr.bf16.gmra.mrb[0].mxu0 %v1778
      %v3076 = vpop.f32.mrb[0].mxu0
      %v3077 = vadd.f32 %v2900, %v3076
      %v3078 = vpop.f32.mrb[0].mxu0
      %v3079 = vpop.f32.mrb[0].mxu0
      %v3080 = vadd.f32 %v2903, %v3079
      %v3081 = vpop.f32.mrb[0].mxu0
      %3082 = vdwg.mxu0
      %3083 = vmatprep.subr.bf16.mxu0 0
      %3084 = vmatpush1.bf16.msra.mxu0 %v2295
      %3085 = vmatprep.subr.bf16.mxu0 0
      %3086 = vmatpush1.bf16.msra.mxu0 %v2296
      %3087 = vmatprep.subr.bf16.mxu0 0
      %3088 = vmatpush1.bf16.msra.mxu0 %v2297
      %3089 = vmatprep.subr.bf16.mxu0 0
      %3090 = vmatpush1.bf16.msra.mxu0 %v2298
      %3091 = vmatprep.subr.bf16.mxu0 0
      %3092 = vmatpush1.bf16.msra.mxu0 %v2299
      %3093 = vmatprep.subr.bf16.mxu0 0
      %3094 = vmatpush1.bf16.msra.mxu0 %v2300
      %3095 = vmatprep.subr.bf16.mxu0 0
      %3096 = vmatpush1.bf16.msra.mxu0 %v2301
      %3097 = vmatprep.subr.bf16.mxu0 0
      %3098 = vmatpush1.bf16.msra.mxu0 %v2302
      %3099 = vmatprep.subr.bf16.mxu0 0
      %3100 = vmatpush1.bf16.msra.mxu0 0
      %3101 = vmatprep.subr.bf16.mxu0 0
      %3102 = vmatpush1.bf16.msra.mxu0 0
      %3103 = vmatprep.subr.bf16.mxu0 0
      %3104 = vmatpush1.bf16.msra.mxu0 0
      %3105 = vmatprep.subr.bf16.mxu0 0
      %3106 = vmatpush1.bf16.msra.mxu0 0
      %3107 = vmatprep.subr.bf16.mxu0 0
      %3108 = vmatpush1.bf16.msra.mxu0 0
      %3109 = vmatprep.subr.bf16.mxu0 0
      %3110 = vmatpush1.bf16.msra.mxu0 0
      %3111 = vmatprep.subr.bf16.mxu0 0
      %3112 = vmatpush1.bf16.msra.mxu0 0
      %3113 = vmatprep.subr.bf16.mxu0 0
      %3114 = vmatpush1.bf16.msra.mxu0 0
      %3115 = vmatprep.mubr.bf16.mxu0 0
      %3116 = vmatmul.mubr.bf16.gmra.mrb[0].mxu0 %v1627
      %v3117 = vpop.f32.mrb[0].mxu0
      %v3118 = vadd.f32 %v2941, %v3117
      %v3119 = vpop.f32.mrb[0].mxu0
      %v3120 = vpop.f32.mrb[0].mxu0
      %v3121 = vadd.f32 %v2944, %v3120
      %v3122 = vpop.f32.mrb[0].mxu0
      %3123 = vmatprep.mubr.bf16.mxu0 0
      %3124 = vmatmul.mubr.bf16.gmra.mrb[0].mxu0 %v1636
      %v3125 = vpop.f32.mrb[0].mxu0
      %v3126 = vadd.f32 %v2949, %v3125
      %v3127 = vpop.f32.mrb[0].mxu0
      %v3128 = vpop.f32.mrb[0].mxu0
      %v3129 = vadd.f32 %v2952, %v3128
      %v3130 = vpop.f32.mrb[0].mxu0
      %3131 = vmatprep.mubr.bf16.mxu0 0
      %3132 = vmatmul.mubr.bf16.gmra.mrb[0].mxu0 %v1645
      %v3133 = vpop.f32.mrb[0].mxu0
      %v3134 = vadd.f32 %v2957, %v3133
      %v3135 = vpop.f32.mrb[0].mxu0
      %v3136 = vpop.f32.mrb[0].mxu0
      %v3137 = vadd.f32 %v2960, %v3136
      %v3138 = vpop.f32.mrb[0].mxu0
      %3139 = vmatprep.mubr.bf16.mxu0 0
      %3140 = vmatmul.mubr.bf16.gmra.mrb[0].mxu0 %v1654
      %v3141 = vpop.f32.mrb[0].mxu0
      %v3142 = vadd.f32 %v2965, %v3141
      %v3143 = vpop.f32.mrb[0].mxu0
      %v3144 = vpop.f32.mrb[0].mxu0
      %v3145 = vadd.f32 %v2968, %v3144
      %v3146 = vpop.f32.mrb[0].mxu0
      %3147 = vmatprep.mubr.bf16.mxu0 0
      %3148 = vmatmul.mubr.bf16.gmra.mrb[0].mxu0 %v1663
      %v3149 = vpop.f32.mrb[0].mxu0
      %v3150 = vadd.f32 %v2973, %v3149
      %v3151 = vpop.f32.mrb[0].mxu0
      %v3152 = vpop.f32.mrb[0].mxu0
      %v3153 = vadd.f32 %v2976, %v3152
      %v3154 = vpop.f32.mrb[0].mxu0
      %3155 = vmatprep.mubr.bf16.mxu0 0
      %3156 = vmatmul.mubr.bf16.gmra.mrb[0].mxu0 %v1672
      %v3157 = vpop.f32.mrb[0].mxu0
      %v3158 = vadd.f32 %v2981, %v3157
      %v3159 = vpop.f32.mrb[0].mxu0
      %v3160 = vpop.f32.mrb[0].mxu0
      %v3161 = vadd.f32 %v2984, %v3160
      %v3162 = vpop.f32.mrb[0].mxu0
      %3163 = vmatprep.mubr.bf16.mxu0 0
      %3164 = vmatmul.mubr.bf16.gmra.mrb[0].mxu0 %v1681
      %v3165 = vpop.f32.mrb[0].mxu0
      %v3166 = vadd.f32 %v2989, %v3165
      %v3167 = vpop.f32.mrb[0].mxu0
      %v3168 = vpop.f32.mrb[0].mxu0
      %v3169 = vadd.f32 %v2992, %v3168
      %v3170 = vpop.f32.mrb[0].mxu0
      %3171 = vmatprep.mubr.bf16.mxu0 0
      %3172 = vmatmul.mubr.bf16.gmra.mrb[0].mxu0 %v1690
      %v3173 = vpop.f32.mrb[0].mxu0
      %v3174 = vadd.f32 %v2997, %v3173
      %v3175 = vpop.f32.mrb[0].mxu0
      %v3176 = vpop.f32.mrb[0].mxu0
      %v3177 = vadd.f32 %v3000, %v3176
      %v3178 = vpop.f32.mrb[0].mxu0
      %3179 = vmatprep.mubr.bf16.mxu0 0
      %3180 = vmatmul.mubr.bf16.gmra.mrb[0].mxu0 %v1699
      %v3181 = vpop.f32.mrb[0].mxu0
      %v3182 = vadd.f32 %v3005, %v3181
      %v3183 = vpop.f32.mrb[0].mxu0
      %v3184 = vpop.f32.mrb[0].mxu0
      %v3185 = vadd.f32 %v3008, %v3184
      %v3186 = vpop.f32.mrb[0].mxu0
      %3187 = vmatprep.mubr.bf16.mxu0 0
      %3188 = vmatmul.mubr.bf16.gmra.mrb[0].mxu0 %v1708
      %v3189 = vpop.f32.mrb[0].mxu0
      %v3190 = vadd.f32 %v3013, %v3189
      %v3191 = vpop.f32.mrb[0].mxu0
      %v3192 = vpop.f32.mrb[0].mxu0
      %v3193 = vadd.f32 %v3016, %v3192
      %v3194 = vpop.f32.mrb[0].mxu0
      %3195 = vmatprep.mubr.bf16.mxu0 0
      %3196 = vmatmul.mubr.bf16.gmra.mrb[0].mxu0 %v1717
      %v3197 = vpop.f32.mrb[0].mxu0
      %v3198 = vadd.f32 %v3021, %v3197
      %v3199 = vpop.f32.mrb[0].mxu0
      %v3200 = vpop.f32.mrb[0].mxu0
      %v3201 = vadd.f32 %v3024, %v3200
      %v3202 = vpop.f32.mrb[0].mxu0
      %3203 = vmatprep.mubr.bf16.mxu0 0
      %3204 = vmatmul.mubr.bf16.gmra.mrb[0].mxu0 %v1726
      %v3205 = vpop.f32.mrb[0].mxu0
      %v3206 = vadd.f32 %v3029, %v3205
      %v3207 = vpop.f32.mrb[0].mxu0
      %v3208 = vpop.f32.mrb[0].mxu0
      %v3209 = vadd.f32 %v3032, %v3208
      %v3210 = vpop.f32.mrb[0].mxu0
      %3211 = vmatprep.mubr.bf16.mxu0 0
      %3212 = vmatmul.mubr.bf16.gmra.mrb[0].mxu0 %v1735
      %v3213 = vpop.f32.mrb[0].mxu0
      %v3214 = vadd.f32 %v3037, %v3213
      %v3215 = vpop.f32.mrb[0].mxu0
      %v3216 = vpop.f32.mrb[0].mxu0
      %v3217 = vadd.f32 %v3040, %v3216
      %v3218 = vpop.f32.mrb[0].mxu0
      %3219 = vmatprep.mubr.bf16.mxu0 0
      %3220 = vmatmul.mubr.bf16.gmra.mrb[0].mxu0 %v1744
      %v3221 = vpop.f32.mrb[0].mxu0
      %v3222 = vadd.f32 %v3045, %v3221
      %v3223 = vpop.f32.mrb[0].mxu0
      %v3224 = vpop.f32.mrb[0].mxu0
      %v3225 = vadd.f32 %v3048, %v3224
      %v3226 = vpop.f32.mrb[0].mxu0
      %3227 = vmatprep.mubr.bf16.mxu0 0
      %3228 = vmatmul.mubr.bf16.gmra.mrb[0].mxu0 %v1753
      %v3229 = vpop.f32.mrb[0].mxu0
      %v3230 = vadd.f32 %v3053, %v3229
      %v3231 = vpop.f32.mrb[0].mxu0
      %v3232 = vpop.f32.mrb[0].mxu0
      %v3233 = vadd.f32 %v3056, %v3232
      %v3234 = vpop.f32.mrb[0].mxu0
      %3235 = vmatprep.mubr.bf16.mxu0 0
      %3236 = vmatmul.mubr.bf16.gmra.mrb[0].mxu0 %v1762
      %v3237 = vpop.f32.mrb[0].mxu0
      %v3238 = vadd.f32 %v3061, %v3237
      %v3239 = vpop.f32.mrb[0].mxu0
      %v3240 = vpop.f32.mrb[0].mxu0
      %v3241 = vadd.f32 %v3064, %v3240
      %v3242 = vpop.f32.mrb[0].mxu0
      %3243 = vmatprep.mubr.bf16.mxu0 0
      %3244 = vmatmul.mubr.bf16.gmra.mrb[0].mxu0 %v1771
      %v3245 = vpop.f32.mrb[0].mxu0
      %v3246 = vadd.f32 %v3069, %v3245
      %v3247 = vpop.f32.mrb[0].mxu0
      %v3248 = vpop.f32.mrb[0].mxu0
      %v3249 = vadd.f32 %v3072, %v3248
      %v3250 = vpop.f32.mrb[0].mxu0
      %3251 = vmatprep.mubr.bf16.mxu0 0
      %3252 = vmatmul.mubr.bf16.gmra.mrb[0].mxu0 %v1780
      %v3253 = vpop.f32.mrb[0].mxu0
      %v3254 = vadd.f32 %v3077, %v3253
      %v3255 = vpop.f32.mrb[0].mxu0
      %v3256 = vpop.f32.mrb[0].mxu0
      %v3257 = vadd.f32 %v3080, %v3256
      %v3258 = vpop.f32.mrb[0].mxu0
      %3259 = vdwg.mxu0
      %v3260 = vmax.f32 %v3118, 0.0
      %v3261 = vmax.f32 %v3121, 0.0
      %v3262 = vmax.f32 %v3126, 0.0
      %v3263 = vmax.f32 %v3129, 0.0
      %v3264 = vmax.f32 %v3134, 0.0
      %v3265 = vmax.f32 %v3137, 0.0
      %v3266 = vmax.f32 %v3142, 0.0
      %v3267 = vmax.f32 %v3145, 0.0
      %v3268 = vmax.f32 %v3150, 0.0
      %v3269 = vmax.f32 %v3153, 0.0
      %v3270 = vmax.f32 %v3158, 0.0
      %v3271 = vmax.f32 %v3161, 0.0
      %v3272 = vmax.f32 %v3166, 0.0
      %v3273 = vmax.f32 %v3169, 0.0
      %v3274 = vmax.f32 %v3174, 0.0
      %v3275 = vmax.f32 %v3177, 0.0
      %v3276 = vmax.f32 %v3182, 0.0
      %v3277 = vmax.f32 %v3185, 0.0
      %v3278 = vmax.f32 %v3190, 0.0
      %v3279 = vmax.f32 %v3193, 0.0
      %v3280 = vmax.f32 %v3198, 0.0
      %v3281 = vmax.f32 %v3201, 0.0
      %v3282 = vmax.f32 %v3206, 0.0
      %v3283 = vmax.f32 %v3209, 0.0
      %v3284 = vmax.f32 %v3214, 0.0
      %v3285 = vmax.f32 %v3217, 0.0
      %v3286 = vmax.f32 %v3222, 0.0
      %v3287 = vmax.f32 %v3225, 0.0
      %v3288 = vmax.f32 %v3230, 0.0
      %v3289 = vmax.f32 %v3233, 0.0
      %v3290 = vmax.f32 %v3238, 0.0
      %v3291 = vmax.f32 %v3241, 0.0
      %v3292 = vmax.f32 %v3246, 0.0
      %v3293 = vmax.f32 %v3249, 0.0
      %v3294 = vmax.f32 %v3254, 0.0
      %v3295 = vmax.f32 %v3257, 0.0
      %3296 = vst [vmem:[%s194] sm:$0xff] %v3260
      %3297 = vst [vmem:[%s194 + $0x8] sm:$0xff] %v3261
      %3298 = vst [vmem:[%s194 + $0x10] sm:$0xff] %v3262
      %3299 = vst [vmem:[%s194 + $0x18] sm:$0xff] %v3263
      %3300 = vst [vmem:[%s194 + $0x20] sm:$0xff] %v3264
      %3301 = vst [vmem:[%s194 + $0x28] sm:$0xff] %v3265
      %3302 = vst [vmem:[%s194 + $0x30] sm:$0xff] %v3266
      %3303 = vst [vmem:[%s194 + $0x38] sm:$0xff] %v3267
      %3304 = vst [vmem:[%s194 + $0x40] sm:$0xff] %v3268
      %3305 = vst [vmem:[%s194 + $0x48] sm:$0xff] %v3269
      %3306 = vst [vmem:[%s194 + $0x50] sm:$0xff] %v3270
      %3307 = vst [vmem:[%s194 + $0x58] sm:$0xff] %v3271
      %3308 = vst [vmem:[%s194 + $0x60] sm:$0xff] %v3272
      %3309 = vst [vmem:[%s194 + $0x68] sm:$0xff] %v3273
      %3310 = vst [vmem:[%s194 + $0x70] sm:$0xff] %v3274
      %3311 = vst [vmem:[%s194 + $0x78] sm:$0xff] %v3275
      %3312 = vst [vmem:[%s194 + $0x80] sm:$0xff] %v3276
      %3313 = vst [vmem:[%s194 + $0x88] sm:$0xff] %v3277
      %3314 = vst [vmem:[%s194 + $0x90] sm:$0xff] %v3278
      %3315 = vst [vmem:[%s194 + $0x98] sm:$0xff] %v3279
      %3316 = vst [vmem:[%s194 + $0xa0] sm:$0xff] %v3280
      %3317 = vst [vmem:[%s194 + $0xa8] sm:$0xff] %v3281
      %3318 = vst [vmem:[%s194 + $0xb0] sm:$0xff] %v3282
      %3319 = vst [vmem:[%s194 + $0xb8] sm:$0xff] %v3283
      %3320 = vst [vmem:[%s194 + $0xc0] sm:$0xff] %v3284
      %3321 = vst [vmem:[%s194 + $0xc8] sm:$0xff] %v3285
      %3322 = vst [vmem:[%s194 + $0xd0] sm:$0xff] %v3286
      %3323 = vst [vmem:[%s194 + $0xd8] sm:$0xff] %v3287
      %3324 = vst [vmem:[%s194 + $0xe0] sm:$0xff] %v3288
      %3325 = vst [vmem:[%s194 + $0xe8] sm:$0xff] %v3289
      %3326 = vst [vmem:[%s194 + $0xf0] sm:$0xff] %v3290
      %3327 = vst [vmem:[%s194 + $0xf8] sm:$0xff] %v3291
      %3328 = vst [vmem:[%s194 + $0x100] sm:$0xff] %v3292
      %3329 = vst [vmem:[%s194 + $0x108] sm:$0xff] %v3293
      %3330 = vst [vmem:[%s194 + $0x110] sm:$0xff] %v3294
      %3331 = vst [vmem:[%s194 + $0x118] sm:$0xff] %v3295
      %s3332 = smul.u32 12, %s19
      %p3333 = scmp.lt.s32.totalorder %s18, 1
      %s3334 = scalar_select %p3333, %s18, 1
      %p3335 = scmp.lt.s32.totalorder %s3332, 23
      %s3336 = scalar_select %p3335, %s3332, 23
      %s3337 = smul.addr %s3336, 3
      %s3338 = smul.addr %s3334, 72
      %s3339 = sadd.s32 %s3337, %s3338
      %s3340 = smul.addr %s3339, 8
      %s3341 = scalar_lea.vmem %s3, %s3340
      // Predicated region
      $region33: #{stage_1_forward.10} parent=31 // pred_check
        %p3342 = pneg %p114
      $region34: #{stage_1_forward.10} parent=31 // pred_check_branch
        %3344 = sbr.rel (%p3342) target = $region36
      $region35: #{stage_1_forward.10} parent=31 // pred_region
        %s3345 = smul.u32 12, %s19
      $region36: #{stage_1_forward.10} parent=31 // pred_fallthru
        _
    $region32: #{stage_1_forward.10} parent=5 // pred_fallthru
      _
    %p3346 = scmp.le.s32.totalorder 2, %s9
    // Predicated region
    $region37: #{stage_1_forward.10} parent=5 // pred_check
      %p3347 = pneg %p3346
    $region38: #{stage_1_forward.10} parent=5 // pred_check_branch
      %3349 = sbr.rel (%p3347) target = $region40
    $region39: #{stage_1_forward.10} parent=5 // pred_region
      %s3350 = ssub.s32 %s9, 2
      // Predicated region
      $region41: #{stage_1_forward.10} parent=39 // pred_check
        %p3351 = pneg %p120
      $region42: #{stage_1_forward.10} parent=39 // pred_check_branch
        %3353 = sbr.rel (%p3351) target = $region44
      $region43: #{stage_1_forward.10} parent=39 // pred_region
        %s3354 = smul.u32 12, %s21
        %p3355 = scmp.lt.s32.totalorder %s20, 1
        %s3356 = scalar_select %p3355, %s20, 1
        %p3357 = scmp.lt.s32.totalorder %s3354, 23
        %s3358 = scalar_select %p3357, %s3354, 23
        %s3359 = smul.addr %s3358, 3
        %s3360 = smul.addr %s3356, 72
        %s3361 = sadd.s32 %s3359, %s3360
        %s3362 = smul.addr %s3361, 8
        %s3363 = scalar_lea.vmem %s3, %s3362
      $region44: #{stage_1_forward.10} parent=39 // pred_fallthru
        _
    $region40: #{stage_1_forward.10} parent=5 // pred_fallthru
      _
  $region6: #{stage_1_forward.10} parent=0 // loop_footer
    %s13 = sadd.s32 1, %s9
  $region7: #{stage_1_forward.10} parent=0 // loop_footer_branch
    %8 = sbr.rel target = $region3
  $region8: #{stage_1_forward.10} parent=0 // loop_exit
    _

// kernel: stage_1_forward.14
$region0: #{stage_1_forward.14}
  #allocation0 [shape = 'u32[]', space=smem, size = 0x4, offset = 0x4, fixed_abs, tag = 'smem constant byte address 0x4 - core index']
  #allocation1 [shape = 'u32[144,128]{1,0:T(1,128)}', space=vmem, size = 0x12000, scoped, tag = 'internal scratch']
  %s0 = inlined_call_operand.vmem [shape: f32[2,576,512], index: 0, kind: input, shape index: {}]
  %s1 = inlined_call_operand.vmem [shape: bf16[512,64], index: 1, kind: input, shape index: {}]
  %s2 = inlined_call_operand.vmem [shape: f32[1,64], index: 2, kind: input, shape index: {}]
  %s3 = inlined_call_operand.hbm [shape: f32[2,576,64], index: 3, kind: output, shape index: {}]
  %s4 = sld [smem:[#allocation0]]
  $region45: #{stage_1_forward.14} parent=0
    _
  %s6 = ssub.s32 1, %s4
  %s7 = scalar_select 0, %s6, %s4
  $region1: #{stage_1_forward.14} parent=0
    #allocation2 [shape = 'u8[294912]{0}', space=vmem, size = 0x48000, scoped, tag = 'output window, operand 0']
    #allocation3 [shape = 's32[2]{0}', space=sflag, size = 0x8, scoped, tag = 'scoped memory for stage_1_forward.14']
    %8 = vsyncpa [#allocation3], 0
    %s9 = scalar_lea.sflag [#allocation3], 1
    %10 = vsyncpa %s9, 0
    loop: start=0, step=1, limit=6
    $region2: #{stage_1_forward.14} parent=1 // loop_pre_header
      _
    $region3: #{stage_1_forward.14} parent=1 // loop_header
      %s12 = sphi 0, %s16
      %p13 = scmp.ge.s32.totalorder %s12, 6
      %s19 = sphi 0, %s31
      %s20 = sphi 0, %s27
      %s21 = sphi 0, %s19
      %s22 = sphi 0, %s20
      %s23 = sphi 0, %s21
      %s24 = sphi 0, %s22
      %s36 = sphi 0, %s38
      %s39 = sphi 0, %s36
      %s40 = sphi 0, %s39
      %s56 = sphi 0, %s40
      %s60 = sphi 0, %s60
      %s62 = sphi 0, %s60
      %s63 = sphi 0, %s62
      %s77 = sphi 0, %s63
      %s81 = sphi 0, %s81
      %s83 = sphi 0, %s81
      %s84 = sphi 0, %s83
      %s98 = sphi 0, %s84
      %s106 = sphi 0, %s108
      %s109 = sphi 0, %s106
      %s110 = sphi 0, %s109
      %s126 = sphi 0, %s110
    $region4: #{stage_1_forward.14} parent=1 // loop_header_branch
      %15 = sbr.rel (%p13) target = $region8
    $region5: #{stage_1_forward.14} parent=1 // loop_body
      %s17 = ssub.s32 %s12, 1
      %s18 = ssub.s32 %s12, 2
      %s25 = sadd.s32 1, %s20
      %p26 = scmp.ge.s32.totalorder %s25, 2
      %s27 = scalar_select %p26, 0, %s25
      %s28 = sadd.s32 1, %s19
      %s29 = scalar_select %p26, %s28, %s19
      %p30 = scmp.ge.s32.totalorder %s29, 2
      %s31 = scalar_select %p30, 0, %s29
      %s32 = ssub.s32 %s19, %s31
      %s33 = ssub.s32 %s20, %s27
      %s34 = sor.u32 %s32, %s33
      %p35 = scmp.eq.s32.totalorder %s34, 0
      %s37 = sadd.s32 %s36, 1
      %s38 = scalar_select %p35, %s36, %s37
      %p41 = pneg %p35
      %p42 = scmp.eq.s32.totalorder %s12, 3
      %p43 = por %p41, %p42
      %p44 = scmp.ne.s32.totalorder %s36, %s39
      %p45 = scmp.eq.s32.totalorder %s12, 0
      %p46 = por %p44, %p45
      %p47 = scmp.ne.s32.totalorder %s36, %s39
      %p48 = scmp.eq.s32.totalorder %s17, 3
      %p49 = por %p47, %p48
      %p50 = scmp.ne.s32.totalorder %s39, %s40
      %p51 = scmp.eq.s32.totalorder %s17, 0
      %p52 = por %p50, %p51
      %p53 = scmp.ne.s32.totalorder %s39, %s40
      %p54 = scmp.eq.s32.totalorder %s18, 3
      %p55 = por %p53, %p54
      %p57 = scmp.ne.s32.totalorder %s40, %s56
      %p58 = scmp.eq.s32.totalorder %s18, 0
      %p59 = por %p57, %p58
      %s61 = sadd.s32 %s60, 1
      %p64 = scmp.eq.s32.totalorder %s12, 3
      %p65 = scmp.ne.s32.totalorder %s60, %s62
      %p66 = scmp.eq.s32.totalorder %s12, 0
      %p67 = por %p65, %p66
      %p68 = scmp.ne.s32.totalorder %s60, %s62
      %p69 = scmp.eq.s32.totalorder %s17, 3
      %p70 = por %p68, %p69
      %p71 = scmp.ne.s32.totalorder %s62, %s63
      %p72 = scmp.eq.s32.totalorder %s17, 0
      %p73 = por %p71, %p72
      %p74 = scmp.ne.s32.totalorder %s62, %s63
      %p75 = scmp.eq.s32.totalorder %s18, 3
      %p76 = por %p74, %p75
      %p78 = scmp.ne.s32.totalorder %s63, %s77
      %p79 = scmp.eq.s32.totalorder %s18, 0
      %p80 = por %p78, %p79
      %s82 = sadd.s32 %s81, 1
      %p85 = scmp.eq.s32.totalorder %s12, 3
      %p86 = scmp.ne.s32.totalorder %s81, %s83
      %p87 = scmp.eq.s32.totalorder %s12, 0
      %p88 = por %p86, %p87
      %p89 = scmp.ne.s32.totalorder %s81, %s83
      %p90 = scmp.eq.s32.totalorder %s17, 3
      %p91 = por %p89, %p90
      %p92 = scmp.ne.s32.totalorder %s83, %s84
      %p93 = scmp.eq.s32.totalorder %s17, 0
      %p94 = por %p92, %p93
      %p95 = scmp.ne.s32.totalorder %s83, %s84
      %p96 = scmp.eq.s32.totalorder %s18, 3
      %p97 = por %p95, %p96
      %p99 = scmp.ne.s32.totalorder %s84, %s98
      %p100 = scmp.eq.s32.totalorder %s18, 0
      %p101 = por %p99, %p100
      %s102 = ssub.s32 %s19, %s31
      %s103 = ssub.s32 %s20, %s27
      %s104 = sor.u32 %s102, %s103
      %p105 = scmp.eq.s32.totalorder %s104, 0
      %s107 = sadd.s32 %s106, 1
      %s108 = scalar_select %p105, %s106, %s107
      %p111 = pneg %p105
      %p112 = scmp.eq.s32.totalorder %s12, 3
      %p113 = por %p111, %p112
      %p114 = scmp.ne.s32.totalorder %s106, %s109
      %p115 = scmp.eq.s32.totalorder %s12, 0
      %p116 = por %p114, %p115
      %p117 = scmp.ne.s32.totalorder %s106, %s109
      %p118 = scmp.eq.s32.totalorder %s17, 3
      %p119 = por %p117, %p118
      %p120 = scmp.ne.s32.totalorder %s109, %s110
      %p121 = scmp.eq.s32.totalorder %s17, 0
      %p122 = por %p120, %p121
      %p123 = scmp.ne.s32.totalorder %s109, %s110
      %p124 = scmp.eq.s32.totalorder %s18, 3
      %p125 = por %p123, %p124
      %p127 = scmp.ne.s32.totalorder %s110, %s126
      %p128 = scmp.eq.s32.totalorder %s18, 0
      %p129 = por %p127, %p128
      %p130 = scmp.le.s32.totalorder 1, %s12
      %p131 = scmp.lt.s32.totalorder %s12, 5
      %p132 = pnand %p130, %p131
      %p133 = pneg %p132
      // Predicated region
      $region9: #{stage_1_forward.14} parent=5 // pred_check
        _
      $region10: #{stage_1_forward.14} parent=5 // pred_check_branch
        %135 = sbr.rel (%p132) target = $region12
      $region11: #{stage_1_forward.14} parent=5 // pred_region
        %s136 = ssub.s32 %s12, 1
        // Predicated region
        $region13: #{stage_1_forward.14} parent=11 // pred_check
          %p137 = pneg %p73
        $region14: #{stage_1_forward.14} parent=11 // pred_check_branch
          %139 = sbr.rel (%p137) target = $region16
        $region15: #{stage_1_forward.14} parent=11 // pred_region
          _
        $region16: #{stage_1_forward.14} parent=11 // pred_fallthru
          _
        // Predicated region
        $region17: #{stage_1_forward.14} parent=11 // pred_check
          %p140 = pneg %p94
        $region18: #{stage_1_forward.14} parent=11 // pred_check_branch
          %142 = sbr.rel (%p140) target = $region20
        $region19: #{stage_1_forward.14} parent=11 // pred_region
          _
        $region20: #{stage_1_forward.14} parent=11 // pred_fallthru
          _
      $region12: #{stage_1_forward.14} parent=5 // pred_fallthru
        _
      %p143 = scmp.lt.s32.totalorder %s12, 4
      // Predicated region
      $region21: #{stage_1_forward.14} parent=5 // pred_check
        %p144 = pneg %p143
      $region22: #{stage_1_forward.14} parent=5 // pred_check_branch
        %146 = sbr.rel (%p144) target = $region24
      $region23: #{stage_1_forward.14} parent=5 // pred_region
        // Predicated region
        $region25: #{stage_1_forward.14} parent=23 // pred_check
          %p147 = pneg %p46
        $region26: #{stage_1_forward.14} parent=23 // pred_check_branch
          %149 = sbr.rel (%p147) target = $region28
        $region27: #{stage_1_forward.14} parent=23 // pred_region
          %s150 = smul.u32 36, %s20
          %p151 = scmp.lt.s32.totalorder %s19, 1
          %s152 = scalar_select %p151, %s19, 1
          %p153 = scmp.lt.s32.totalorder %s150, 71
          %s154 = scalar_select %p153, %s150, 71
          %s155 = smul.addr %s154, 4
          %s156 = smul.addr %s152, 288
          %s157 = sadd.s32 %s155, %s156
          %s158 = smul.addr %s157, 8
          %s159 = scalar_lea.vmem %s0, %s158
          %s160 = smul.u32 36, %s20
        $region28: #{stage_1_forward.14} parent=23 // pred_fallthru
          _
      $region24: #{stage_1_forward.14} parent=5 // pred_fallthru
        _
      %p161 = scmp.le.s32.totalorder 1, %s12
      %p162 = scmp.lt.s32.totalorder %s12, 5
      %p163 = pnand %p161, %p162
      %p164 = pneg %p163
      // Predicated region
      $region29: #{stage_1_forward.14} parent=5 // pred_check
        _
      $region30: #{stage_1_forward.14} parent=5 // pred_check_branch
        %166 = sbr.rel (%p163) target = $region32
      $region31: #{stage_1_forward.14} parent=5 // pred_region
        %s167 = ssub.s32 %s12, 1
        %s168 = smul.u32 36, %s22
        %p169 = scmp.lt.s32.totalorder %s21, 1
        %s170 = scalar_select %p169, %s21, 1
        %p171 = scmp.lt.s32.totalorder %s168, 71
        %s172 = scalar_select %p171, %s168, 71
        %s173 = smul.addr %s172, 4
        %s174 = smul.addr %s170, 288
        %s175 = sadd.s32 %s173, %s174
        %s176 = smul.addr %s175, 8
        %s177 = scalar_lea.vmem %s0, %s176
        %p178 = pneg %p52
        %p179 = pneg %p49
        %p180 = pneg %p73
        %p181 = pneg %p70
        %p182 = pneg %p94
        %p183 = pneg %p91
        %p184 = pneg %p122
        %p185 = pneg %p119
        %s186 = sand.u32 %s109, 1
        %s187 = scalar_lea.sflag [#allocation3], %s186
        %s188 = sand.u32 %s109, 1
        %s189 = smul.addr %s188, 288
        %s190 = scalar_lea.vmem [#allocation2], %s189
        %s191 = smul.u32 36, %s22
        %p192 = scmp.lt.s32.totalorder %s21, 1
        %s193 = scalar_select %p192, %s21, 1
        %p194 = scmp.lt.s32.totalorder %s191, 71
        %s195 = scalar_select %p194, %s191, 71
        %s196 = smul.addr %s195, 4
        %s197 = smul.addr %s193, 288
        %s198 = sadd.s32 %s196, %s197
        %s199 = smul.addr %s198, 8
        %s200 = scalar_lea.vmem %s0, %s199
        %s201 = smul.u32 36, %s22
        %s202 = smul.u32 36, %s22
        %v204 = vld [vmem:[%s200] sm:$0xff]
        %v205 = vld [vmem:[%s200 + $0x8] sm:$0xff]
        %v206 = vld [vmem:[%s200 + $0x10] sm:$0xff]
        %v207 = vld [vmem:[%s200 + $0x18] sm:$0xff]
        %v208 = vld [vmem:[%s200 + $0x20] sm:$0xff]
        %v209 = vld [vmem:[%s200 + $0x28] sm:$0xff]
        %v210 = vld [vmem:[%s200 + $0x30] sm:$0xff]
        %v211 = vld [vmem:[%s200 + $0x38] sm:$0xff]
        %v212 = vld [vmem:[%s200 + $0x40] sm:$0xff]
        %v213 = vld [vmem:[%s200 + $0x48] sm:$0xff]
        %v214 = vld [vmem:[%s200 + $0x50] sm:$0xff]
        %v215 = vld [vmem:[%s200 + $0x58] sm:$0xff]
        %v216 = vld [vmem:[%s200 + $0x60] sm:$0xff]
        %v217 = vld [vmem:[%s200 + $0x68] sm:$0xff]
        %v218 = vld [vmem:[%s200 + $0x70] sm:$0xff]
        %v219 = vld [vmem:[%s200 + $0x78] sm:$0xff]
        %v220 = vld [vmem:[%s200 + $0x80] sm:$0xff]
        %v221 = vld [vmem:[%s200 + $0x88] sm:$0xff]
        %v222 = vld [vmem:[%s200 + $0x90] sm:$0xff]
        %v223 = vld [vmem:[%s200 + $0x98] sm:$0xff]
        %v224 = vld [vmem:[%s200 + $0xa0] sm:$0xff]
        %v225 = vld [vmem:[%s200 + $0xa8] sm:$0xff]
        %v226 = vld [vmem:[%s200 + $0xb0] sm:$0xff]
        %v227 = vld [vmem:[%s200 + $0xb8] sm:$0xff]
        %v228 = vld [vmem:[%s200 + $0xc0] sm:$0xff]
        %v229 = vld [vmem:[%s200 + $0xc8] sm:$0xff]
        %v230 = vld [vmem:[%s200 + $0xd0] sm:$0xff]
        %v231 = vld [vmem:[%s200 + $0xd8] sm:$0xff]
        %v232 = vld [vmem:[%s200 + $0xe0] sm:$0xff]
        %v233 = vld [vmem:[%s200 + $0xe8] sm:$0xff]
        %v234 = vld [vmem:[%s200 + $0xf0] sm:$0xff]
        %v235 = vld [vmem:[%s200 + $0xf8] sm:$0xff]
        %v236 = vld [vmem:[%s200 + $0x100] sm:$0xff]
        %v237 = vld [vmem:[%s200 + $0x108] sm:$0xff]
        %v238 = vld [vmem:[%s200 + $0x110] sm:$0xff]
        %v239 = vld [vmem:[%s200 + $0x118] sm:$0xff]
        %v240 = vld [vmem:[%s200 + $0x120] sm:$0xff]
        %v241 = vld [vmem:[%s200 + $0x128] sm:$0xff]
        %v242 = vld [vmem:[%s200 + $0x130] sm:$0xff]
        %v243 = vld [vmem:[%s200 + $0x138] sm:$0xff]
        %v244 = vld [vmem:[%s200 + $0x140] sm:$0xff]
        %v245 = vld [vmem:[%s200 + $0x148] sm:$0xff]
        %v246 = vld [vmem:[%s200 + $0x150] sm:$0xff]
        %v247 = vld [vmem:[%s200 + $0x158] sm:$0xff]
        %v248 = vld [vmem:[%s200 + $0x160] sm:$0xff]
        %v249 = vld [vmem:[%s200 + $0x168] sm:$0xff]
        %v250 = vld [vmem:[%s200 + $0x170] sm:$0xff]
        %v251 = vld [vmem:[%s200 + $0x178] sm:$0xff]
        %v252 = vld [vmem:[%s200 + $0x180] sm:$0xff]
        %v253 = vld [vmem:[%s200 + $0x188] sm:$0xff]
        %v254 = vld [vmem:[%s200 + $0x190] sm:$0xff]
        %v255 = vld [vmem:[%s200 + $0x198] sm:$0xff]
        %v256 = vld [vmem:[%s200 + $0x1a0] sm:$0xff]
        %v257 = vld [vmem:[%s200 + $0x1a8] sm:$0xff]
        %v258 = vld [vmem:[%s200 + $0x1b0] sm:$0xff]
        %v259 = vld [vmem:[%s200 + $0x1b8] sm:$0xff]
        %v260 = vld [vmem:[%s200 + $0x1c0] sm:$0xff]
        %v261 = vld [vmem:[%s200 + $0x1c8] sm:$0xff]
        %v262 = vld [vmem:[%s200 + $0x1d0] sm:$0xff]
        %v263 = vld [vmem:[%s200 + $0x1d8] sm:$0xff]
        %v264 = vld [vmem:[%s200 + $0x1e0] sm:$0xff]
        %v265 = vld [vmem:[%s200 + $0x1e8] sm:$0xff]
        %v266 = vld [vmem:[%s200 + $0x1f0] sm:$0xff]
        %v267 = vld [vmem:[%s200 + $0x1f8] sm:$0xff]
        %v268 = vld [vmem:[%s200 + $0x200] sm:$0xff]
        %v269 = vld [vmem:[%s200 + $0x208] sm:$0xff]
        %v270 = vld [vmem:[%s200 + $0x210] sm:$0xff]
        %v271 = vld [vmem:[%s200 + $0x218] sm:$0xff]
        %v272 = vld [vmem:[%s200 + $0x220] sm:$0xff]
        %v273 = vld [vmem:[%s200 + $0x228] sm:$0xff]
        %v274 = vld [vmem:[%s200 + $0x230] sm:$0xff]
        %v275 = vld [vmem:[%s200 + $0x238] sm:$0xff]
        %v276 = vld [vmem:[%s200 + $0x240] sm:$0xff]
        %v277 = vld [vmem:[%s200 + $0x248] sm:$0xff]
        %v278 = vld [vmem:[%s200 + $0x250] sm:$0xff]
        %v279 = vld [vmem:[%s200 + $0x258] sm:$0xff]
        %v280 = vld [vmem:[%s200 + $0x260] sm:$0xff]
        %v281 = vld [vmem:[%s200 + $0x268] sm:$0xff]
        %v282 = vld [vmem:[%s200 + $0x270] sm:$0xff]
        %v283 = vld [vmem:[%s200 + $0x278] sm:$0xff]
        %v284 = vld [vmem:[%s200 + $0x280] sm:$0xff]
        %v285 = vld [vmem:[%s200 + $0x288] sm:$0xff]
        %v286 = vld [vmem:[%s200 + $0x290] sm:$0xff]
        %v287 = vld [vmem:[%s200 + $0x298] sm:$0xff]
        %v288 = vld [vmem:[%s200 + $0x2a0] sm:$0xff]
        %v289 = vld [vmem:[%s200 + $0x2a8] sm:$0xff]
        %v290 = vld [vmem:[%s200 + $0x2b0] sm:$0xff]
        %v291 = vld [vmem:[%s200 + $0x2b8] sm:$0xff]
        %v292 = vld [vmem:[%s200 + $0x2c0] sm:$0xff]
        %v293 = vld [vmem:[%s200 + $0x2c8] sm:$0xff]
        %v294 = vld [vmem:[%s200 + $0x2d0] sm:$0xff]
        %v295 = vld [vmem:[%s200 + $0x2d8] sm:$0xff]
        %v296 = vld [vmem:[%s200 + $0x2e0] sm:$0xff]
        %v297 = vld [vmem:[%s200 + $0x2e8] sm:$0xff]
        %v298 = vld [vmem:[%s200 + $0x2f0] sm:$0xff]
        %v299 = vld [vmem:[%s200 + $0x2f8] sm:$0xff]
        %v300 = vld [vmem:[%s200 + $0x300] sm:$0xff]
        %v301 = vld [vmem:[%s200 + $0x308] sm:$0xff]
        %v302 = vld [vmem:[%s200 + $0x310] sm:$0xff]
        %v303 = vld [vmem:[%s200 + $0x318] sm:$0xff]
        %v304 = vld [vmem:[%s200 + $0x320] sm:$0xff]
        %v305 = vld [vmem:[%s200 + $0x328] sm:$0xff]
        %v306 = vld [vmem:[%s200 + $0x330] sm:$0xff]
        %v307 = vld [vmem:[%s200 + $0x338] sm:$0xff]
        %v308 = vld [vmem:[%s200 + $0x340] sm:$0xff]
        %v309 = vld [vmem:[%s200 + $0x348] sm:$0xff]
        %v310 = vld [vmem:[%s200 + $0x350] sm:$0xff]
        %v311 = vld [vmem:[%s200 + $0x358] sm:$0xff]
        %v312 = vld [vmem:[%s200 + $0x360] sm:$0xff]
        %v313 = vld [vmem:[%s200 + $0x368] sm:$0xff]
        %v314 = vld [vmem:[%s200 + $0x370] sm:$0xff]
        %v315 = vld [vmem:[%s200 + $0x378] sm:$0xff]
        %v316 = vld [vmem:[%s200 + $0x380] sm:$0xff]
        %v317 = vld [vmem:[%s200 + $0x388] sm:$0xff]
        %v318 = vld [vmem:[%s200 + $0x390] sm:$0xff]
        %v319 = vld [vmem:[%s200 + $0x398] sm:$0xff]
        %v320 = vld [vmem:[%s200 + $0x3a0] sm:$0xff]
        %v321 = vld [vmem:[%s200 + $0x3a8] sm:$0xff]
        %v322 = vld [vmem:[%s200 + $0x3b0] sm:$0xff]
        %v323 = vld [vmem:[%s200 + $0x3b8] sm:$0xff]
        %v324 = vld [vmem:[%s200 + $0x3c0] sm:$0xff]
        %v325 = vld [vmem:[%s200 + $0x3c8] sm:$0xff]
        %v326 = vld [vmem:[%s200 + $0x3d0] sm:$0xff]
        %v327 = vld [vmem:[%s200 + $0x3d8] sm:$0xff]
        %v328 = vld [vmem:[%s200 + $0x3e0] sm:$0xff]
        %v329 = vld [vmem:[%s200 + $0x3e8] sm:$0xff]
        %v330 = vld [vmem:[%s200 + $0x3f0] sm:$0xff]
        %v331 = vld [vmem:[%s200 + $0x3f8] sm:$0xff]
        %v332 = vld [vmem:[%s200 + $0x400] sm:$0xff]
        %v333 = vld [vmem:[%s200 + $0x408] sm:$0xff]
        %v334 = vld [vmem:[%s200 + $0x410] sm:$0xff]
        %v335 = vld [vmem:[%s200 + $0x418] sm:$0xff]
        %v336 = vld [vmem:[%s200 + $0x420] sm:$0xff]
        %v337 = vld [vmem:[%s200 + $0x428] sm:$0xff]
        %v338 = vld [vmem:[%s200 + $0x430] sm:$0xff]
        %v339 = vld [vmem:[%s200 + $0x438] sm:$0xff]
        %v340 = vld [vmem:[%s200 + $0x440] sm:$0xff]
        %v341 = vld [vmem:[%s200 + $0x448] sm:$0xff]
        %v342 = vld [vmem:[%s200 + $0x450] sm:$0xff]
        %v343 = vld [vmem:[%s200 + $0x458] sm:$0xff]
        %v344 = vld [vmem:[%s200 + $0x460] sm:$0xff]
        %v345 = vld [vmem:[%s200 + $0x468] sm:$0xff]
        %v346 = vld [vmem:[%s200 + $0x470] sm:$0xff]
        %v347 = vld [vmem:[%s200 + $0x478] sm:$0xff]
        %v348 = vpack.c.bf16 %v208, %v204
        %v349 = vpack.c.bf16 %v209, %v205
        %v350 = vpack.c.bf16 %v210, %v206
        %v351 = vpack.c.bf16 %v211, %v207
        %v352 = vpack.c.bf16 %v216, %v212
        %v353 = vpack.c.bf16 %v217, %v213
        %v354 = vpack.c.bf16 %v218, %v214
        %v355 = vpack.c.bf16 %v219, %v215
        %v356 = vpack.c.bf16 %v224, %v220
        %v357 = vpack.c.bf16 %v225, %v221
        %v358 = vpack.c.bf16 %v226, %v222
        %v359 = vpack.c.bf16 %v227, %v223
        %v360 = vpack.c.bf16 %v232, %v228
        %v361 = vpack.c.bf16 %v233, %v229
        %v362 = vpack.c.bf16 %v234, %v230
        %v363 = vpack.c.bf16 %v235, %v231
        %v364 = vpack.c.bf16 %v240, %v236
        %v365 = vpack.c.bf16 %v241, %v237
        %v366 = vpack.c.bf16 %v242, %v238
        %v367 = vpack.c.bf16 %v243, %v239
        %v368 = vpack.c.bf16 %v248, %v244
        %v369 = vpack.c.bf16 %v249, %v245
        %v370 = vpack.c.bf16 %v250, %v246
        %v371 = vpack.c.bf16 %v251, %v247
        %v372 = vpack.c.bf16 %v256, %v252
        %v373 = vpack.c.bf16 %v257, %v253
        %v374 = vpack.c.bf16 %v258, %v254
        %v375 = vpack.c.bf16 %v259, %v255
        %v376 = vpack.c.bf16 %v264, %v260
        %v377 = vpack.c.bf16 %v265, %v261
        %v378 = vpack.c.bf16 %v266, %v262
        %v379 = vpack.c.bf16 %v267, %v263
        %v380 = vpack.c.bf16 %v272, %v268
        %v381 = vpack.c.bf16 %v273, %v269
        %v382 = vpack.c.bf16 %v274, %v270
        %v383 = vpack.c.bf16 %v275, %v271
        %v384 = vpack.c.bf16 %v280, %v276
        %v385 = vpack.c.bf16 %v281, %v277
        %v386 = vpack.c.bf16 %v282, %v278
        %v387 = vpack.c.bf16 %v283, %v279
        %v388 = vpack.c.bf16 %v288, %v284
        %v389 = vpack.c.bf16 %v289, %v285
        %v390 = vpack.c.bf16 %v290, %v286
        %v391 = vpack.c.bf16 %v291, %v287
        %v392 = vpack.c.bf16 %v296, %v292
        %v393 = vpack.c.bf16 %v297, %v293
        %v394 = vpack.c.bf16 %v298, %v294
        %v395 = vpack.c.bf16 %v299, %v295
        %v396 = vpack.c.bf16 %v304, %v300
        %v397 = vpack.c.bf16 %v305, %v301
        %v398 = vpack.c.bf16 %v306, %v302
        %v399 = vpack.c.bf16 %v307, %v303
        %v400 = vpack.c.bf16 %v312, %v308
        %v401 = vpack.c.bf16 %v313, %v309
        %v402 = vpack.c.bf16 %v314, %v310
        %v403 = vpack.c.bf16 %v315, %v311
        %v404 = vpack.c.bf16 %v320, %v316
        %v405 = vpack.c.bf16 %v321, %v317
        %v406 = vpack.c.bf16 %v322, %v318
        %v407 = vpack.c.bf16 %v323, %v319
        %v408 = vpack.c.bf16 %v328, %v324
        %v409 = vpack.c.bf16 %v329, %v325
        %v410 = vpack.c.bf16 %v330, %v326
        %v411 = vpack.c.bf16 %v331, %v327
        %v412 = vpack.c.bf16 %v336, %v332
        %v413 = vpack.c.bf16 %v337, %v333
        %v414 = vpack.c.bf16 %v338, %v334
        %v415 = vpack.c.bf16 %v339, %v335
        %v416 = vpack.c.bf16 %v344, %v340
        %v417 = vpack.c.bf16 %v345, %v341
        %v418 = vpack.c.bf16 %v346, %v342
        %v419 = vpack.c.bf16 %v347, %v343
        %v420 = vld [vmem:[%s1] sm:$0xf]
        %v421 = vld [vmem:[%s1 + $0x4] sm:$0xf]
        %v422 = vld [vmem:[%s1 + $0x8] sm:$0xf]
        %v423 = vld [vmem:[%s1 + $0xc] sm:$0xf]
        %v424 = vld [vmem:[%s1 + $0x10] sm:$0xf]
        %v425 = vld [vmem:[%s1 + $0x14] sm:$0xf]
        %v426 = vld [vmem:[%s1 + $0x18] sm:$0xf]
        %v427 = vld [vmem:[%s1 + $0x1c] sm:$0xf]
        %v428 = vld [vmem:[%s1 + $0x20] sm:$0xf]
        %v429 = vld [vmem:[%s1 + $0x24] sm:$0xf]
        %v430 = vld [vmem:[%s1 + $0x28] sm:$0xf]
        %v431 = vld [vmem:[%s1 + $0x2c] sm:$0xf]
        %v432 = vld [vmem:[%s1 + $0x30] sm:$0xf]
        %v433 = vld [vmem:[%s1 + $0x34] sm:$0xf]
        %v434 = vld [vmem:[%s1 + $0x38] sm:$0xf]
        %v435 = vld [vmem:[%s1 + $0x3c] sm:$0xf]
        %v436 = vld [vmem:[%s1 + $0x40] sm:$0xf]
        %v437 = vld [vmem:[%s1 + $0x44] sm:$0xf]
        %v438 = vld [vmem:[%s1 + $0x48] sm:$0xf]
        %v439 = vld [vmem:[%s1 + $0x4c] sm:$0xf]
        %v440 = vld [vmem:[%s1 + $0x50] sm:$0xf]
        %v441 = vld [vmem:[%s1 + $0x54] sm:$0xf]
        %v442 = vld [vmem:[%s1 + $0x58] sm:$0xf]
        %v443 = vld [vmem:[%s1 + $0x5c] sm:$0xf]
        %v444 = vld [vmem:[%s1 + $0x60] sm:$0xf]
        %v445 = vld [vmem:[%s1 + $0x64] sm:$0xf]
        %v446 = vld [vmem:[%s1 + $0x68] sm:$0xf]
        %v447 = vld [vmem:[%s1 + $0x6c] sm:$0xf]
        %v448 = vld [vmem:[%s1 + $0x70] sm:$0xf]
        %v449 = vld [vmem:[%s1 + $0x74] sm:$0xf]
        %v450 = vld [vmem:[%s1 + $0x78] sm:$0xf]
        %v451 = vld [vmem:[%s1 + $0x7c] sm:$0xf]
        %v452 = vld [vmem:[%s1 + $0x80] sm:$0xf]
        %v453 = vld [vmem:[%s1 + $0x84] sm:$0xf]
        %v454 = vld [vmem:[%s1 + $0x88] sm:$0xf]
        %v455 = vld [vmem:[%s1 + $0x8c] sm:$0xf]
        %v456 = vld [vmem:[%s1 + $0x90] sm:$0xf]
        %v457 = vld [vmem:[%s1 + $0x94] sm:$0xf]
        %v458 = vld [vmem:[%s1 + $0x98] sm:$0xf]
        %v459 = vld [vmem:[%s1 + $0x9c] sm:$0xf]
        %v460 = vld [vmem:[%s1 + $0xa0] sm:$0xf]
        %v461 = vld [vmem:[%s1 + $0xa4] sm:$0xf]
        %v462 = vld [vmem:[%s1 + $0xa8] sm:$0xf]
        %v463 = vld [vmem:[%s1 + $0xac] sm:$0xf]
        %v464 = vld [vmem:[%s1 + $0xb0] sm:$0xf]
        %v465 = vld [vmem:[%s1 + $0xb4] sm:$0xf]
        %v466 = vld [vmem:[%s1 + $0xb8] sm:$0xf]
        %v467 = vld [vmem:[%s1 + $0xbc] sm:$0xf]
        %v468 = vld [vmem:[%s1 + $0xc0] sm:$0xf]
        %v469 = vld [vmem:[%s1 + $0xc4] sm:$0xf]
        %v470 = vld [vmem:[%s1 + $0xc8] sm:$0xf]
        %v471 = vld [vmem:[%s1 + $0xcc] sm:$0xf]
        %v472 = vld [vmem:[%s1 + $0xd0] sm:$0xf]
        %v473 = vld [vmem:[%s1 + $0xd4] sm:$0xf]
        %v474 = vld [vmem:[%s1 + $0xd8] sm:$0xf]
        %v475 = vld [vmem:[%s1 + $0xdc] sm:$0xf]
        %v476 = vld [vmem:[%s1 + $0xe0] sm:$0xf]
        %v477 = vld [vmem:[%s1 + $0xe4] sm:$0xf]
        %v478 = vld [vmem:[%s1 + $0xe8] sm:$0xf]
        %v479 = vld [vmem:[%s1 + $0xec] sm:$0xf]
        %v480 = vld [vmem:[%s1 + $0xf0] sm:$0xf]
        %v481 = vld [vmem:[%s1 + $0xf4] sm:$0xf]
        %v482 = vld [vmem:[%s1 + $0xf8] sm:$0xf]
        %v483 = vld [vmem:[%s1 + $0xfc] sm:$0xf]
        %v484 = vld [vmem:[%s2] sm:$0x1]
        %v486 = vlaneseq
        %v487 = vshrl.u32 %v486, 7
        %v488 = vsub.s32 0, %v487
        %v489 = vrot.slane %v484, %v488
        %v555 = vunpack.c.l.b16 %v420
        %v556 = vunpack.c.l.b16 %v421
        %v557 = vunpack.c.l.b16 %v422
        %v558 = vunpack.c.l.b16 %v423
        %v559 = vunpack.c.l.b16 %v424
        %v560 = vunpack.c.l.b16 %v425
        %v561 = vunpack.c.l.b16 %v426
        %v562 = vunpack.c.l.b16 %v427
        %v563 = vunpack.c.l.b16 %v428
        %v564 = vunpack.c.l.b16 %v429
        %v565 = vunpack.c.l.b16 %v430
        %v566 = vunpack.c.l.b16 %v431
        %v567 = vunpack.c.l.b16 %v432
        %v568 = vunpack.c.l.b16 %v433
        %v569 = vunpack.c.l.b16 %v434
        %v570 = vunpack.c.l.b16 %v435
        %v571 = vunpack.c.l.b16 %v436
        %v572 = vunpack.c.l.b16 %v437
        %v573 = vunpack.c.l.b16 %v438
        %v574 = vunpack.c.l.b16 %v439
        %v575 = vunpack.c.l.b16 %v440
        %v576 = vunpack.c.l.b16 %v441
        %v577 = vunpack.c.l.b16 %v442
        %v578 = vunpack.c.l.b16 %v443
        %v579 = vunpack.c.l.b16 %v444
        %v580 = vunpack.c.l.b16 %v445
        %v581 = vunpack.c.l.b16 %v446
        %v582 = vunpack.c.l.b16 %v447
        %v583 = vunpack.c.l.b16 %v448
        %v584 = vunpack.c.l.b16 %v449
        %v585 = vunpack.c.l.b16 %v450
        %v586 = vunpack.c.l.b16 %v451
        %v587 = vunpack.c.l.b16 %v452
        %v588 = vunpack.c.l.b16 %v453
        %v589 = vunpack.c.l.b16 %v454
        %v590 = vunpack.c.l.b16 %v455
        %v591 = vunpack.c.l.b16 %v456
        %v592 = vunpack.c.l.b16 %v457
        %v593 = vunpack.c.l.b16 %v458
        %v594 = vunpack.c.l.b16 %v459
        %v595 = vunpack.c.l.b16 %v460
        %v596 = vunpack.c.l.b16 %v461
        %v597 = vunpack.c.l.b16 %v462
        %v598 = vunpack.c.l.b16 %v463
        %v599 = vunpack.c.l.b16 %v464
        %v600 = vunpack.c.l.b16 %v465
        %v601 = vunpack.c.l.b16 %v466
        %v602 = vunpack.c.l.b16 %v467
        %v603 = vunpack.c.l.b16 %v468
        %v604 = vunpack.c.l.b16 %v469
        %v605 = vunpack.c.l.b16 %v470
        %v606 = vunpack.c.l.b16 %v471
        %v607 = vunpack.c.l.b16 %v472
        %v608 = vunpack.c.l.b16 %v473
        %v609 = vunpack.c.l.b16 %v474
        %v610 = vunpack.c.l.b16 %v475
        %v611 = vunpack.c.l.b16 %v476
        %v612 = vunpack.c.l.b16 %v477
        %v613 = vunpack.c.l.b16 %v478
        %v614 = vunpack.c.l.b16 %v479
        %v615 = vunpack.c.l.b16 %v480
        %v616 = vunpack.c.l.b16 %v481
        %v617 = vunpack.c.l.b16 %v482
        %v618 = vunpack.c.l.b16 %v483
        %v619 = vpack.c.b16 %v556, %v555
        %v620 = vpack.c.b16 %v558, %v557
        %v621 = vpack.c.b16 %v560, %v559
        %v622 = vpack.c.b16 %v562, %v561
        %v623 = vpack.c.b16 %v564, %v563
        %v624 = vpack.c.b16 %v566, %v565
        %v625 = vpack.c.b16 %v568, %v567
        %v626 = vpack.c.b16 %v570, %v569
        %v627 = vpack.c.b16 %v572, %v571
        %v628 = vpack.c.b16 %v574, %v573
        %v629 = vpack.c.b16 %v576, %v575
        %v630 = vpack.c.b16 %v578, %v577
        %v631 = vpack.c.b16 %v580, %v579
        %v632 = vpack.c.b16 %v582, %v581
        %v633 = vpack.c.b16 %v584, %v583
        %v634 = vpack.c.b16 %v586, %v585
        %v635 = vpack.c.b16 %v588, %v587
        %v636 = vpack.c.b16 %v590, %v589
        %v637 = vpack.c.b16 %v592, %v591
        %v638 = vpack.c.b16 %v594, %v593
        %v639 = vpack.c.b16 %v596, %v595
        %v640 = vpack.c.b16 %v598, %v597
        %v641 = vpack.c.b16 %v600, %v599
        %v642 = vpack.c.b16 %v602, %v601
        %v643 = vpack.c.b16 %v604, %v603
        %v644 = vpack.c.b16 %v606, %v605
        %v645 = vpack.c.b16 %v608, %v607
        %v646 = vpack.c.b16 %v610, %v609
        %v647 = vpack.c.b16 %v612, %v611
        %v648 = vpack.c.b16 %v614, %v613
        %v649 = vpack.c.b16 %v616, %v615
        %v650 = vpack.c.b16 %v618, %v617
        %683 = vmatprep.subr.bf16.mxu0 0
        %684 = vmatpush1.bf16.msra.mxu0 %v619
        %685 = vmatprep.subr.bf16.mxu0 0
        %686 = vmatpush1.bf16.msra.mxu0 %v620
        %687 = vmatprep.subr.bf16.mxu0 0
        %688 = vmatpush1.bf16.msra.mxu0 %v621
        %689 = vmatprep.subr.bf16.mxu0 0
        %690 = vmatpush1.bf16.msra.mxu0 %v622
        %691 = vmatprep.subr.bf16.mxu0 0
        %692 = vmatpush1.bf16.msra.mxu0 %v623
        %693 = vmatprep.subr.bf16.mxu0 0
        %694 = vmatpush1.bf16.msra.mxu0 %v624
        %695 = vmatprep.subr.bf16.mxu0 0
        %696 = vmatpush1.bf16.msra.mxu0 %v625
        %697 = vmatprep.subr.bf16.mxu0 0
        %698 = vmatpush1.bf16.msra.mxu0 %v626
        %699 = vmatprep.subr.bf16.mxu0 0
        %700 = vmatpush1.bf16.msra.mxu0 %v627
        %701 = vmatprep.subr.bf16.mxu0 0
        %702 = vmatpush1.bf16.msra.mxu0 %v628
        %703 = vmatprep.subr.bf16.mxu0 0
        %704 = vmatpush1.bf16.msra.mxu0 %v629
        %705 = vmatprep.subr.bf16.mxu0 0
        %706 = vmatpush1.bf16.msra.mxu0 %v630
        %707 = vmatprep.subr.bf16.mxu0 0
        %708 = vmatpush1.bf16.msra.mxu0 %v631
        %709 = vmatprep.subr.bf16.mxu0 0
        %710 = vmatpush1.bf16.msra.mxu0 %v632
        %711 = vmatprep.subr.bf16.mxu0 0
        %712 = vmatpush1.bf16.msra.mxu0 %v633
        %713 = vmatprep.subr.bf16.mxu0 0
        %714 = vmatpush1.bf16.msra.mxu0 %v634
        %715 = vmatprep.mubr.bf16.mxu0 %v349
        %716 = vmatmul.mubr.bf16.gmra.mrb[0].mxu0 %v348
        %v717 = vpop.f32.mrb[0].mxu0
        %v718 = vadd.f32 %v489, %v717
        %v719 = vpop.f32.mrb[0].mxu0
        %v720 = vpop.f32.mrb[0].mxu0
        %v721 = vadd.f32 %v489, %v720
        %v722 = vpop.f32.mrb[0].mxu0
        %723 = vmatprep.mubr.bf16.mxu0 %v353
        %724 = vmatmul.mubr.bf16.gmra.mrb[0].mxu0 %v352
        %v725 = vpop.f32.mrb[0].mxu0
        %v726 = vadd.f32 %v489, %v725
        %v727 = vpop.f32.mrb[0].mxu0
        %v728 = vpop.f32.mrb[0].mxu0
        %v729 = vadd.f32 %v489, %v728
        %v730 = vpop.f32.mrb[0].mxu0
        %731 = vmatprep.mubr.bf16.mxu0 %v357
        %732 = vmatmul.mubr.bf16.gmra.mrb[0].mxu0 %v356
        %v733 = vpop.f32.mrb[0].mxu0
        %v734 = vadd.f32 %v489, %v733
        %v735 = vpop.f32.mrb[0].mxu0
        %v736 = vpop.f32.mrb[0].mxu0
        %v737 = vadd.f32 %v489, %v736
        %v738 = vpop.f32.mrb[0].mxu0
        %739 = vmatprep.mubr.bf16.mxu0 %v361
        %740 = vmatmul.mubr.bf16.gmra.mrb[0].mxu0 %v360
        %v741 = vpop.f32.mrb[0].mxu0
        %v742 = vadd.f32 %v489, %v741
        %v743 = vpop.f32.mrb[0].mxu0
        %v744 = vpop.f32.mrb[0].mxu0
        %v745 = vadd.f32 %v489, %v744
        %v746 = vpop.f32.mrb[0].mxu0
        %747 = vmatprep.mubr.bf16.mxu0 %v365
        %748 = vmatmul.mubr.bf16.gmra.mrb[0].mxu0 %v364
        %v749 = vpop.f32.mrb[0].mxu0
        %v750 = vadd.f32 %v489, %v749
        %v751 = vpop.f32.mrb[0].mxu0
        %v752 = vpop.f32.mrb[0].mxu0
        %v753 = vadd.f32 %v489, %v752
        %v754 = vpop.f32.mrb[0].mxu0
        %755 = vmatprep.mubr.bf16.mxu0 %v369
        %756 = vmatmul.mubr.bf16.gmra.mrb[0].mxu0 %v368
        %v757 = vpop.f32.mrb[0].mxu0
        %v758 = vadd.f32 %v489, %v757
        %v759 = vpop.f32.mrb[0].mxu0
        %v760 = vpop.f32.mrb[0].mxu0
        %v761 = vadd.f32 %v489, %v760
        %v762 = vpop.f32.mrb[0].mxu0
        %763 = vmatprep.mubr.bf16.mxu0 %v373
        %764 = vmatmul.mubr.bf16.gmra.mrb[0].mxu0 %v372
        %v765 = vpop.f32.mrb[0].mxu0
        %v766 = vadd.f32 %v489, %v765
        %v767 = vpop.f32.mrb[0].mxu0
        %v768 = vpop.f32.mrb[0].mxu0
        %v769 = vadd.f32 %v489, %v768
        %v770 = vpop.f32.mrb[0].mxu0
        %771 = vmatprep.mubr.bf16.mxu0 %v377
        %772 = vmatmul.mubr.bf16.gmra.mrb[0].mxu0 %v376
        %v773 = vpop.f32.mrb[0].mxu0
        %v774 = vadd.f32 %v489, %v773
        %v775 = vpop.f32.mrb[0].mxu0
        %v776 = vpop.f32.mrb[0].mxu0
        %v777 = vadd.f32 %v489, %v776
        %v778 = vpop.f32.mrb[0].mxu0
        %779 = vmatprep.mubr.bf16.mxu0 %v381
        %780 = vmatmul.mubr.bf16.gmra.mrb[0].mxu0 %v380
        %v781 = vpop.f32.mrb[0].mxu0
        %v782 = vadd.f32 %v489, %v781
        %v783 = vpop.f32.mrb[0].mxu0
        %v784 = vpop.f32.mrb[0].mxu0
        %v785 = vadd.f32 %v489, %v784
        %v786 = vpop.f32.mrb[0].mxu0
        %787 = vmatprep.mubr.bf16.mxu0 %v385
        %788 = vmatmul.mubr.bf16.gmra.mrb[0].mxu0 %v384
        %v789 = vpop.f32.mrb[0].mxu0
        %v790 = vadd.f32 %v489, %v789
        %v791 = vpop.f32.mrb[0].mxu0
        %v792 = vpop.f32.mrb[0].mxu0
        %v793 = vadd.f32 %v489, %v792
        %v794 = vpop.f32.mrb[0].mxu0
        %795 = vmatprep.mubr.bf16.mxu0 %v389
        %796 = vmatmul.mubr.bf16.gmra.mrb[0].mxu0 %v388
        %v797 = vpop.f32.mrb[0].mxu0
        %v798 = vadd.f32 %v489, %v797
        %v799 = vpop.f32.mrb[0].mxu0
        %v800 = vpop.f32.mrb[0].mxu0
        %v801 = vadd.f32 %v489, %v800
        %v802 = vpop.f32.mrb[0].mxu0
        %803 = vmatprep.mubr.bf16.mxu0 %v393
        %804 = vmatmul.mubr.bf16.gmra.mrb[0].mxu0 %v392
        %v805 = vpop.f32.mrb[0].mxu0
        %v806 = vadd.f32 %v489, %v805
        %v807 = vpop.f32.mrb[0].mxu0
        %v808 = vpop.f32.mrb[0].mxu0
        %v809 = vadd.f32 %v489, %v808
        %v810 = vpop.f32.mrb[0].mxu0
        %811 = vmatprep.mubr.bf16.mxu0 %v397
        %812 = vmatmul.mubr.bf16.gmra.mrb[0].mxu0 %v396
        %v813 = vpop.f32.mrb[0].mxu0
        %v814 = vadd.f32 %v489, %v813
        %v815 = vpop.f32.mrb[0].mxu0
        %v816 = vpop.f32.mrb[0].mxu0
        %v817 = vadd.f32 %v489, %v816
        %v818 = vpop.f32.mrb[0].mxu0
        %819 = vmatprep.mubr.bf16.mxu0 %v401
        %820 = vmatmul.mubr.bf16.gmra.mrb[0].mxu0 %v400
        %v821 = vpop.f32.mrb[0].mxu0
        %v822 = vadd.f32 %v489, %v821
        %v823 = vpop.f32.mrb[0].mxu0
        %v824 = vpop.f32.mrb[0].mxu0
        %v825 = vadd.f32 %v489, %v824
        %v826 = vpop.f32.mrb[0].mxu0
        %827 = vmatprep.mubr.bf16.mxu0 %v405
        %828 = vmatmul.mubr.bf16.gmra.mrb[0].mxu0 %v404
        %v829 = vpop.f32.mrb[0].mxu0
        %v830 = vadd.f32 %v489, %v829
        %v831 = vpop.f32.mrb[0].mxu0
        %v832 = vpop.f32.mrb[0].mxu0
        %v833 = vadd.f32 %v489, %v832
        %v834 = vpop.f32.mrb[0].mxu0
        %835 = vmatprep.mubr.bf16.mxu0 %v409
        %836 = vmatmul.mubr.bf16.gmra.mrb[0].mxu0 %v408
        %v837 = vpop.f32.mrb[0].mxu0
        %v838 = vadd.f32 %v489, %v837
        %v839 = vpop.f32.mrb[0].mxu0
        %v840 = vpop.f32.mrb[0].mxu0
        %v841 = vadd.f32 %v489, %v840
        %v842 = vpop.f32.mrb[0].mxu0
        %843 = vmatprep.mubr.bf16.mxu0 %v413
        %844 = vmatmul.mubr.bf16.gmra.mrb[0].mxu0 %v412
        %v845 = vpop.f32.mrb[0].mxu0
        %v846 = vadd.f32 %v489, %v845
        %v847 = vpop.f32.mrb[0].mxu0
        %v848 = vpop.f32.mrb[0].mxu0
        %v849 = vadd.f32 %v489, %v848
        %v850 = vpop.f32.mrb[0].mxu0
        %851 = vmatprep.mubr.bf16.mxu0 %v417
        %852 = vmatmul.mubr.bf16.gmra.mrb[0].mxu0 %v416
        %v853 = vpop.f32.mrb[0].mxu0
        %v854 = vadd.f32 %v489, %v853
        %v855 = vpop.f32.mrb[0].mxu0
        %v856 = vpop.f32.mrb[0].mxu0
        %v857 = vadd.f32 %v489, %v856
        %v858 = vpop.f32.mrb[0].mxu0
        %859 = vdwg.mxu0
        %860 = vmatprep.subr.bf16.mxu0 0
        %861 = vmatpush1.bf16.msra.mxu0 %v635
        %862 = vmatprep.subr.bf16.mxu0 0
        %863 = vmatpush1.bf16.msra.mxu0 %v636
        %864 = vmatprep.subr.bf16.mxu0 0
        %865 = vmatpush1.bf16.msra.mxu0 %v637
        %866 = vmatprep.subr.bf16.mxu0 0
        %867 = vmatpush1.bf16.msra.mxu0 %v638
        %868 = vmatprep.subr.bf16.mxu0 0
        %869 = vmatpush1.bf16.msra.mxu0 %v639
        %870 = vmatprep.subr.bf16.mxu0 0
        %871 = vmatpush1.bf16.msra.mxu0 %v640
        %872 = vmatprep.subr.bf16.mxu0 0
        %873 = vmatpush1.bf16.msra.mxu0 %v641
        %874 = vmatprep.subr.bf16.mxu0 0
        %875 = vmatpush1.bf16.msra.mxu0 %v642
        %876 = vmatprep.subr.bf16.mxu0 0
        %877 = vmatpush1.bf16.msra.mxu0 %v643
        %878 = vmatprep.subr.bf16.mxu0 0
        %879 = vmatpush1.bf16.msra.mxu0 %v644
        %880 = vmatprep.subr.bf16.mxu0 0
        %881 = vmatpush1.bf16.msra.mxu0 %v645
        %882 = vmatprep.subr.bf16.mxu0 0
        %883 = vmatpush1.bf16.msra.mxu0 %v646
        %884 = vmatprep.subr.bf16.mxu0 0
        %885 = vmatpush1.bf16.msra.mxu0 %v647
        %886 = vmatprep.subr.bf16.mxu0 0
        %887 = vmatpush1.bf16.msra.mxu0 %v648
        %888 = vmatprep.subr.bf16.mxu0 0
        %889 = vmatpush1.bf16.msra.mxu0 %v649
        %890 = vmatprep.subr.bf16.mxu0 0
        %891 = vmatpush1.bf16.msra.mxu0 %v650
        %892 = vmatprep.mubr.bf16.mxu0 %v351
        %893 = vmatmul.mubr.bf16.gmra.mrb[0].mxu0 %v350
        %v894 = vpop.f32.mrb[0].mxu0
        %v895 = vadd.f32 %v718, %v894
        %v896 = vpop.f32.mrb[0].mxu0
        %v897 = vpop.f32.mrb[0].mxu0
        %v898 = vadd.f32 %v721, %v897
        %v899 = vpop.f32.mrb[0].mxu0
        %900 = vmatprep.mubr.bf16.mxu0 %v355
        %901 = vmatmul.mubr.bf16.gmra.mrb[0].mxu0 %v354
        %v902 = vpop.f32.mrb[0].mxu0
        %v903 = vadd.f32 %v726, %v902
        %v904 = vpop.f32.mrb[0].mxu0
        %v905 = vpop.f32.mrb[0].mxu0
        %v906 = vadd.f32 %v729, %v905
        %v907 = vpop.f32.mrb[0].mxu0
        %908 = vmatprep.mubr.bf16.mxu0 %v359
        %909 = vmatmul.mubr.bf16.gmra.mrb[0].mxu0 %v358
        %v910 = vpop.f32.mrb[0].mxu0
        %v911 = vadd.f32 %v734, %v910
        %v912 = vpop.f32.mrb[0].mxu0
        %v913 = vpop.f32.mrb[0].mxu0
        %v914 = vadd.f32 %v737, %v913
        %v915 = vpop.f32.mrb[0].mxu0
        %916 = vmatprep.mubr.bf16.mxu0 %v363
        %917 = vmatmul.mubr.bf16.gmra.mrb[0].mxu0 %v362
        %v918 = vpop.f32.mrb[0].mxu0
        %v919 = vadd.f32 %v742, %v918
        %v920 = vpop.f32.mrb[0].mxu0
        %v921 = vpop.f32.mrb[0].mxu0
        %v922 = vadd.f32 %v745, %v921
        %v923 = vpop.f32.mrb[0].mxu0
        %924 = vmatprep.mubr.bf16.mxu0 %v367
        %925 = vmatmul.mubr.bf16.gmra.mrb[0].mxu0 %v366
        %v926 = vpop.f32.mrb[0].mxu0
        %v927 = vadd.f32 %v750, %v926
        %v928 = vpop.f32.mrb[0].mxu0
        %v929 = vpop.f32.mrb[0].mxu0
        %v930 = vadd.f32 %v753, %v929
        %v931 = vpop.f32.mrb[0].mxu0
        %932 = vmatprep.mubr.bf16.mxu0 %v371
        %933 = vmatmul.mubr.bf16.gmra.mrb[0].mxu0 %v370
        %v934 = vpop.f32.mrb[0].mxu0
        %v935 = vadd.f32 %v758, %v934
        %v936 = vpop.f32.mrb[0].mxu0
        %v937 = vpop.f32.mrb[0].mxu0
        %v938 = vadd.f32 %v761, %v937
        %v939 = vpop.f32.mrb[0].mxu0
        %940 = vmatprep.mubr.bf16.mxu0 %v375
        %941 = vmatmul.mubr.bf16.gmra.mrb[0].mxu0 %v374
        %v942 = vpop.f32.mrb[0].mxu0
        %v943 = vadd.f32 %v766, %v942
        %v944 = vpop.f32.mrb[0].mxu0
        %v945 = vpop.f32.mrb[0].mxu0
        %v946 = vadd.f32 %v769, %v945
        %v947 = vpop.f32.mrb[0].mxu0
        %948 = vmatprep.mubr.bf16.mxu0 %v379
        %949 = vmatmul.mubr.bf16.gmra.mrb[0].mxu0 %v378
        %v950 = vpop.f32.mrb[0].mxu0
        %v951 = vadd.f32 %v774, %v950
        %v952 = vpop.f32.mrb[0].mxu0
        %v953 = vpop.f32.mrb[0].mxu0
        %v954 = vadd.f32 %v777, %v953
        %v955 = vpop.f32.mrb[0].mxu0
        %956 = vmatprep.mubr.bf16.mxu0 %v383
        %957 = vmatmul.mubr.bf16.gmra.mrb[0].mxu0 %v382
        %v958 = vpop.f32.mrb[0].mxu0
        %v959 = vadd.f32 %v782, %v958
        %v960 = vpop.f32.mrb[0].mxu0
        %v961 = vpop.f32.mrb[0].mxu0
        %v962 = vadd.f32 %v785, %v961
        %v963 = vpop.f32.mrb[0].mxu0
        %964 = vmatprep.mubr.bf16.mxu0 %v387
        %965 = vmatmul.mubr.bf16.gmra.mrb[0].mxu0 %v386
        %v966 = vpop.f32.mrb[0].mxu0
        %v967 = vadd.f32 %v790, %v966
        %v968 = vpop.f32.mrb[0].mxu0
        %v969 = vpop.f32.mrb[0].mxu0
        %v970 = vadd.f32 %v793, %v969
        %v971 = vpop.f32.mrb[0].mxu0
        %972 = vmatprep.mubr.bf16.mxu0 %v391
        %973 = vmatmul.mubr.bf16.gmra.mrb[0].mxu0 %v390
        %v974 = vpop.f32.mrb[0].mxu0
        %v975 = vadd.f32 %v798, %v974
        %v976 = vpop.f32.mrb[0].mxu0
        %v977 = vpop.f32.mrb[0].mxu0
        %v978 = vadd.f32 %v801, %v977
        %v979 = vpop.f32.mrb[0].mxu0
        %980 = vmatprep.mubr.bf16.mxu0 %v395
        %981 = vmatmul.mubr.bf16.gmra.mrb[0].mxu0 %v394
        %v982 = vpop.f32.mrb[0].mxu0
        %v983 = vadd.f32 %v806, %v982
        %v984 = vpop.f32.mrb[0].mxu0
        %v985 = vpop.f32.mrb[0].mxu0
        %v986 = vadd.f32 %v809, %v985
        %v987 = vpop.f32.mrb[0].mxu0
        %988 = vmatprep.mubr.bf16.mxu0 %v399
        %989 = vmatmul.mubr.bf16.gmra.mrb[0].mxu0 %v398
        %v990 = vpop.f32.mrb[0].mxu0
        %v991 = vadd.f32 %v814, %v990
        %v992 = vpop.f32.mrb[0].mxu0
        %v993 = vpop.f32.mrb[0].mxu0
        %v994 = vadd.f32 %v817, %v993
        %v995 = vpop.f32.mrb[0].mxu0
        %996 = vmatprep.mubr.bf16.mxu0 %v403
        %997 = vmatmul.mubr.bf16.gmra.mrb[0].mxu0 %v402
        %v998 = vpop.f32.mrb[0].mxu0
        %v999 = vadd.f32 %v822, %v998
        %v1000 = vpop.f32.mrb[0].mxu0
        %v1001 = vpop.f32.mrb[0].mxu0
        %v1002 = vadd.f32 %v825, %v1001
        %v1003 = vpop.f32.mrb[0].mxu0
        %1004 = vmatprep.mubr.bf16.mxu0 %v407
        %1005 = vmatmul.mubr.bf16.gmra.mrb[0].mxu0 %v406
        %v1006 = vpop.f32.mrb[0].mxu0
        %v1007 = vadd.f32 %v830, %v1006
        %v1008 = vpop.f32.mrb[0].mxu0
        %v1009 = vpop.f32.mrb[0].mxu0
        %v1010 = vadd.f32 %v833, %v1009
        %v1011 = vpop.f32.mrb[0].mxu0
        %1012 = vmatprep.mubr.bf16.mxu0 %v411
        %1013 = vmatmul.mubr.bf16.gmra.mrb[0].mxu0 %v410
        %v1014 = vpop.f32.mrb[0].mxu0
        %v1015 = vadd.f32 %v838, %v1014
        %v1016 = vpop.f32.mrb[0].mxu0
        %v1017 = vpop.f32.mrb[0].mxu0
        %v1018 = vadd.f32 %v841, %v1017
        %v1019 = vpop.f32.mrb[0].mxu0
        %1020 = vmatprep.mubr.bf16.mxu0 %v415
        %1021 = vmatmul.mubr.bf16.gmra.mrb[0].mxu0 %v414
        %v1022 = vpop.f32.mrb[0].mxu0
        %v1023 = vadd.f32 %v846, %v1022
        %v1024 = vpop.f32.mrb[0].mxu0
        %v1025 = vpop.f32.mrb[0].mxu0
        %v1026 = vadd.f32 %v849, %v1025
        %v1027 = vpop.f32.mrb[0].mxu0
        %1028 = vmatprep.mubr.bf16.mxu0 %v419
        %1029 = vmatmul.mubr.bf16.gmra.mrb[0].mxu0 %v418
        %v1030 = vpop.f32.mrb[0].mxu0
        %v1031 = vadd.f32 %v854, %v1030
        %v1032 = vpop.f32.mrb[0].mxu0
        %v1033 = vpop.f32.mrb[0].mxu0
        %v1034 = vadd.f32 %v857, %v1033
        %v1035 = vpop.f32.mrb[0].mxu0
        %1036 = vdwg.mxu0
        %vm1037 = vcmask 523264
        %1038 = vst.msk [vmem:[%s190] sm:$0xff] %vm1037, %v895
        %1039 = vst.msk [vmem:[%s190 + $0x8] sm:$0xff] %vm1037, %v898
        %1040 = vst.msk [vmem:[%s190 + $0x10] sm:$0xff] %vm1037, %v903
        %1041 = vst.msk [vmem:[%s190 + $0x18] sm:$0xff] %vm1037, %v906
        %1042 = vst.msk [vmem:[%s190 + $0x20] sm:$0xff] %vm1037, %v911
        %1043 = vst.msk [vmem:[%s190 + $0x28] sm:$0xff] %vm1037, %v914
        %1044 = vst.msk [vmem:[%s190 + $0x30] sm:$0xff] %vm1037, %v919
        %1045 = vst.msk [vmem:[%s190 + $0x38] sm:$0xff] %vm1037, %v922
        %1046 = vst.msk [vmem:[%s190 + $0x40] sm:$0xff] %vm1037, %v927
        %1047 = vst.msk [vmem:[%s190 + $0x48] sm:$0xff] %vm1037, %v930
        %1048 = vst.msk [vmem:[%s190 + $0x50] sm:$0xff] %vm1037, %v935
        %1049 = vst.msk [vmem:[%s190 + $0x58] sm:$0xff] %vm1037, %v938
        %1050 = vst.msk [vmem:[%s190 + $0x60] sm:$0xff] %vm1037, %v943
        %1051 = vst.msk [vmem:[%s190 + $0x68] sm:$0xff] %vm1037, %v946
        %1052 = vst.msk [vmem:[%s190 + $0x70] sm:$0xff] %vm1037, %v951
        %1053 = vst.msk [vmem:[%s190 + $0x78] sm:$0xff] %vm1037, %v954
        %1054 = vst.msk [vmem:[%s190 + $0x80] sm:$0xff] %vm1037, %v959
        %1055 = vst.msk [vmem:[%s190 + $0x88] sm:$0xff] %vm1037, %v962
        %1056 = vst.msk [vmem:[%s190 + $0x90] sm:$0xff] %vm1037, %v967
        %1057 = vst.msk [vmem:[%s190 + $0x98] sm:$0xff] %vm1037, %v970
        %1058 = vst.msk [vmem:[%s190 + $0xa0] sm:$0xff] %vm1037, %v975
        %1059 = vst.msk [vmem:[%s190 + $0xa8] sm:$0xff] %vm1037, %v978
        %1060 = vst.msk [vmem:[%s190 + $0xb0] sm:$0xff] %vm1037, %v983
        %1061 = vst.msk [vmem:[%s190 + $0xb8] sm:$0xff] %vm1037, %v986
        %1062 = vst.msk [vmem:[%s190 + $0xc0] sm:$0xff] %vm1037, %v991
        %1063 = vst.msk [vmem:[%s190 + $0xc8] sm:$0xff] %vm1037, %v994
        %1064 = vst.msk [vmem:[%s190 + $0xd0] sm:$0xff] %vm1037, %v999
        %1065 = vst.msk [vmem:[%s190 + $0xd8] sm:$0xff] %vm1037, %v1002
        %1066 = vst.msk [vmem:[%s190 + $0xe0] sm:$0xff] %vm1037, %v1007
        %1067 = vst.msk [vmem:[%s190 + $0xe8] sm:$0xff] %vm1037, %v1010
        %1068 = vst.msk [vmem:[%s190 + $0xf0] sm:$0xff] %vm1037, %v1015
        %1069 = vst.msk [vmem:[%s190 + $0xf8] sm:$0xff] %vm1037, %v1018
        %1070 = vst.msk [vmem:[%s190 + $0x100] sm:$0xff] %vm1037, %v1023
        %1071 = vst.msk [vmem:[%s190 + $0x108] sm:$0xff] %vm1037, %v1026
        %1072 = vst.msk [vmem:[%s190 + $0x110] sm:$0xff] %vm1037, %v1031
        %1073 = vst.msk [vmem:[%s190 + $0x118] sm:$0xff] %vm1037, %v1034
        %s1074 = sand.u32 %s109, 1
        %s1075 = scalar_lea.sflag [#allocation3], %s1074
        %s1076 = sand.u32 %s109, 1
        %s1077 = smul.addr %s1076, 288
        %s1078 = scalar_lea.vmem [#allocation2], %s1077
        // Predicated region
        $region33: #{stage_1_forward.14} parent=31 // pred_check
          %p1079 = pneg %p119
        $region34: #{stage_1_forward.14} parent=31 // pred_check_branch
          %1081 = sbr.rel (%p1079) target = $region36
        $region35: #{stage_1_forward.14} parent=31 // pred_region
          %s1082 = smul.u32 36, %s22
          %s1084 = ssub.s32 4608, 4608
          %1085 = vsyncadd %s1075, %s1084
          %s1086 = smul.addr %s21, 72
          %s1087 = sadd.s32 %s1082, %s1086
          %s1088 = smul.addr %s1087, 128
          %s1089 = scalar_lea.hbm %s3, %s1088
          %s1090 = sshll.u32 %s1078, 4
          %s1091 = int_to_ptr.vmem [resolvable:$true] %s1090
          %1096 = dma.vmem_to_hbm [thread:$0]  %s1091, 4608, %s1089, %s1075, 128, 128, 8
        $region36: #{stage_1_forward.14} parent=31 // pred_fallthru
          _
      $region32: #{stage_1_forward.14} parent=5 // pred_fallthru
        _
      %p1097 = scmp.le.s32.totalorder 2, %s12
      // Predicated region
      $region37: #{stage_1_forward.14} parent=5 // pred_check
        %p1098 = pneg %p1097
      $region38: #{stage_1_forward.14} parent=5 // pred_check_branch
        %1100 = sbr.rel (%p1098) target = $region40
      $region39: #{stage_1_forward.14} parent=5 // pred_region
        %s1101 = ssub.s32 %s12, 2
        // Predicated region
        $region41: #{stage_1_forward.14} parent=39 // pred_check
          %p1102 = pneg %p125
        $region42: #{stage_1_forward.14} parent=39 // pred_check_branch
          %1104 = sbr.rel (%p1102) target = $region44
        $region43: #{stage_1_forward.14} parent=39 // pred_region
          %s1105 = sand.u32 %s110, 1
          %s1106 = scalar_lea.sflag [#allocation3], %s1105
          %s1107 = sand.u32 %s110, 1
          %s1108 = smul.addr %s1107, 288
          %s1109 = scalar_lea.vmem [#allocation2], %s1108
          %1110 = dma.done %s1106, 4608
        $region44: #{stage_1_forward.14} parent=39 // pred_fallthru
          _
      $region40: #{stage_1_forward.14} parent=5 // pred_fallthru
        _
    $region6: #{stage_1_forward.14} parent=1 // loop_footer
      %s16 = sadd.s32 1, %s12
    $region7: #{stage_1_forward.14} parent=1 // loop_footer_branch
      %11 = sbr.rel target = $region3
    $region8: #{stage_1_forward.14} parent=1 // loop_exit
      _
    %1111 = vsyncpa [#allocation3], 1
    %s1112 = scalar_lea.sflag [#allocation3], 1
    %1113 = vsyncpa %s1112, 1

</llo_original>
